<compile_context>
chip_gen: v7x
topology: tpu7x:2x2x1
jax: 0.10.0
libtpu: 0.0.40
codegen_flags: <defaults>
</compile_context>

<pallas_src>
import functools

import jax
import jax.numpy as jnp
import numpy as np
from jax.experimental import pallas as pl
from jax.experimental.pallas import tpu as pltpu

LANE = 128  # TPU lane width: hidden (H) and tag (T) dims are padded to this.


# ---------------------------------------------------------------------------
# Fused Pallas kernel
# ---------------------------------------------------------------------------
def _lstm_cell(xw_row, h_prev, c_prev, whh, hp):
    """One LSTM cell step on gate-padded operands.

    xw_row : (1, 4*hp)  precomputed x @ W_ih + bias for this timestep
    h_prev : (1, hp)
    c_prev : (1, hp)
    whh    : (hp, 4*hp)
    Gate order is PyTorch's [i, f, g, o]; each gate occupies its own
    lane-aligned hp-wide block, so gate slicing is a whole-vreg select.
    """
    gates = xw_row + jnp.dot(h_prev, whh, preferred_element_type=jnp.float32)
    i_g = jax.nn.sigmoid(gates[:, 0 * hp:1 * hp])
    f_g = jax.nn.sigmoid(gates[:, 1 * hp:2 * hp])
    g_g = jnp.tanh(gates[:, 2 * hp:3 * hp])
    o_g = jax.nn.sigmoid(gates[:, 3 * hp:4 * hp])
    c_new = f_g * c_prev + i_g * g_g
    h_new = o_g * jnp.tanh(c_new)
    return h_new, c_new


def _bilstm_layer(xw_f, xw_b, whh_f, whh_b, h_sc, *, seq_len, hp):
    """Both directions of one layer, interleaved in one unrolled time loop.

    xw_f, xw_b  : (S, 4*hp) hoisted input projections (bias already folded in)
    whh_f, whh_b: (hp, 4*hp)
    h_sc        : (S, 2*hp) VMEM scratch; fwd -> lanes [0,hp), bwd -> [hp,2hp)
    """
    zeros = jnp.zeros((1, hp), jnp.float32)
    h_f, c_f, h_b, c_b = zeros, zeros, zeros, zeros
    for t in range(seq_len):          # static unroll: S is compile-time known
        rb = seq_len - 1 - t
        h_f, c_f = _lstm_cell(xw_f[t:t + 1, :], h_f, c_f, whh_f, hp)
        h_b, c_b = _lstm_cell(xw_b[rb:rb + 1, :], h_b, c_b, whh_b, hp)
        h_sc[t:t + 1, 0:hp] = h_f
        h_sc[rb:rb + 1, hp:2 * hp] = h_b


def _fused_tagger_kernel(idx_ref, emb_ref,
                         wih0f_ref, whh0f_ref, b0f_ref,
                         wih0b_ref, whh0b_ref, b0b_ref,
                         wih1f_ref, whh1f_ref, b1f_ref,
                         wih1b_ref, whh1b_ref, b1b_ref,
                         wout_ref, bout_ref,
                         out_ref,
                         x_sc, h0_sc, h1_sc, *, seq_len, hp):
    # ---- Embedding gather: indices in SMEM, table VMEM-resident. ----
    for t in range(seq_len):
        x_sc[t:t + 1, :] = emb_ref[pl.ds(idx_ref[t], 1), :]
    x = x_sc[...]                                               # (S, E)

    # ---- Layer 0: input projection hoisted out of the recurrence. ----
    xw0f = jnp.dot(x, wih0f_ref[...],
                   preferred_element_type=jnp.float32) + b0f_ref[...]
    xw0b = jnp.dot(x, wih0b_ref[...],
                   preferred_element_type=jnp.float32) + b0b_ref[...]
    _bilstm_layer(xw0f, xw0b, whh0f_ref[...], whh0b_ref[...], h0_sc,
                  seq_len=seq_len, hp=hp)
    h0 = h0_sc[...]                                             # (S, 2*hp)

    # ---- Layer 1. ----
    xw1f = jnp.dot(h0, wih1f_ref[...],
                   preferred_element_type=jnp.float32) + b1f_ref[...]
    xw1b = jnp.dot(h0, wih1b_ref[...],
                   preferred_element_type=jnp.float32) + b1b_ref[...]
    _bilstm_layer(xw1f, xw1b, whh1f_ref[...], whh1b_ref[...], h1_sc,
                  seq_len=seq_len, hp=hp)
    h1 = h1_sc[...]                                             # (S, 2*hp)

    # ---- Head: Linear(2H -> T) + row-wise log_softmax. Padded tag columns
    # carry a -1e30 bias so they vanish under exp and never win the max. ----
    logits = jnp.dot(h1, wout_ref[...],
                     preferred_element_type=jnp.float32) + bout_ref[...]
    m = jnp.max(logits, axis=-1, keepdims=True)
    lse = jnp.log(jnp.sum(jnp.exp(logits - m), axis=-1, keepdims=True)) + m
    out_ref[...] = logits - lse


# ---------------------------------------------------------------------------
# Wrapper around pallas_call
# ---------------------------------------------------------------------------
_VMEM = pl.BlockSpec(memory_space=pltpu.MemorySpace.VMEM)
_SMEM = pl.BlockSpec(memory_space=pltpu.MemorySpace.SMEM)


def dnn_pos_tagger_forward(word_idx_tensor, params, tag_vocab_size):
    """word_idx_tensor: (1, S) int32 -> (S, tag_vocab_size) f32 log-probs."""
    idx = word_idx_tensor.reshape(-1).astype(jnp.int32)         # (S,)
    seq_len = int(idx.shape[0])
    hp = params["hp"]
    emb_dim = params["embedding"].shape[1]

    kernel = functools.partial(_fused_tagger_kernel, seq_len=seq_len, hp=hp)
    out_padded = pl.pallas_call(
        kernel,
        out_shape=jax.ShapeDtypeStruct((seq_len, LANE), jnp.float32),
        in_specs=[_SMEM] + [_VMEM] * 15,
        out_specs=_VMEM,
        scratch_shapes=[
            pltpu.VMEM((seq_len, emb_dim), jnp.float32),   # gathered embeds
            pltpu.VMEM((seq_len, 2 * hp), jnp.float32),    # layer-0 output
            pltpu.VMEM((seq_len, 2 * hp), jnp.float32),    # layer-1 output
        ],
    )(idx, params["embedding"],
      params["w_ih_l0"], params["w_hh_l0"], params["b_l0"],
      params["w_ih_l0_rev"], params["w_hh_l0_rev"], params["b_l0_rev"],
      params["w_ih_l1"], params["w_hh_l1"], params["b_l1"],
      params["w_ih_l1_rev"], params["w_hh_l1_rev"], params["b_l1_rev"],
      params["w_out"], params["b_out"])
    return out_padded[:, :tag_vocab_size]


# ---------------------------------------------------------------------------
# Parameter construction (PyTorch-default-style init) + lane-aligned packing
# ---------------------------------------------------------------------------
def _pad_gate_cols(w, h, hp):
    """(rows, 4h) -> (rows, 4*hp): gate g moves to columns [g*hp, g*hp + h)."""
    rows = w.shape[0]
    out = jnp.zeros((rows, 4 * hp), jnp.float32)
    for g in range(4):
        out = out.at[:, g * hp:g * hp + h].set(w[:, g * h:(g + 1) * h])
    return out


def _scatter_bidir_rows(w, h, hp):
    """(2h, cols) -> (2*hp, cols): fwd rows -> [0, h), bwd rows -> [hp, hp+h)."""
    cols = w.shape[1]
    out = jnp.zeros((2 * hp, cols), jnp.float32)
    out = out.at[0:h, :].set(w[0:h, :])
    out = out.at[hp:hp + h, :].set(w[h:2 * h, :])
    return out


def make_params(key, hidden_dim, word_vocab_size, tag_vocab_size, emb_dim,
                hp=LANE):
    assert hidden_dim <= hp and tag_vocab_size <= LANE
    h = hidden_dim
    raw = {"hidden_dim": hidden_dim}
    kparams = {"hp": hp}
    k = 1.0 / float(np.sqrt(hidden_dim))

    key, sub = jax.random.split(key)
    emb = jax.random.normal(sub, (word_vocab_size, emb_dim), jnp.float32)
    raw["embedding"] = emb
    kparams["embedding"] = emb

    for layer in range(2):
        in_dim = emb_dim if layer == 0 else 2 * h
        for suffix in ("", "_rev"):
            key, k1, k2, k3, k4 = jax.random.split(key, 5)
            w_ih = jax.random.uniform(k1, (4 * h, in_dim), jnp.float32, -k, k)
            w_hh = jax.random.uniform(k2, (4 * h, h), jnp.float32, -k, k)
            b_ih = jax.random.uniform(k3, (4 * h,), jnp.float32, -k, k)
            b_hh = jax.random.uniform(k4, (4 * h,), jnp.float32, -k, k)
            raw[f"w_ih_l{layer}{suffix}"] = w_ih
            raw[f"w_hh_l{layer}{suffix}"] = w_hh
            raw[f"b_l{layer}{suffix}"] = b_ih + b_hh

            # Kernel layout: x @ W, gates padded to hp lanes each, layer-1
            # input rows scattered to the [0,h) / [hp,hp+h) halves so the
            # padded hidden units (which stay exactly zero) line up.
            wih_t = w_ih.T                                    # (in_dim, 4h)
            if layer == 1:
                wih_t = _scatter_bidir_rows(wih_t, h, hp)     # (2*hp, 4h)
            kparams[f"w_ih_l{layer}{suffix}"] = _pad_gate_cols(wih_t, h, hp)

            whh_t = jnp.zeros((hp, 4 * h), jnp.float32).at[:h, :].set(w_hh.T)
            kparams[f"w_hh_l{layer}{suffix}"] = _pad_gate_cols(whh_t, h, hp)

            kparams[f"b_l{layer}{suffix}"] = _pad_gate_cols(
                (b_ih + b_hh)[None, :], h, hp)                # (1, 4*hp)

    k_lin = 1.0 / float(np.sqrt(2 * hidden_dim))
    key, k1, k2 = jax.random.split(key, 3)
    w_out = jax.random.uniform(k1, (tag_vocab_size, 2 * h), jnp.float32,
                               -k_lin, k_lin)
    b_out = jax.random.uniform(k2, (tag_vocab_size,), jnp.float32,
                               -k_lin, k_lin)
    raw["w_out"] = w_out
    raw["b_out"] = b_out

    w_out_rows = _scatter_bidir_rows(w_out.T, h, hp)          # (2*hp, T)
    kparams["w_out"] = jnp.zeros((2 * hp, LANE), jnp.float32).at[
        :, :tag_vocab_size].set(w_out_rows)
    kparams["b_out"] = jnp.full((1, LANE), -1e30, jnp.float32).at[
        0, :tag_vocab_size].set(b_out)
    return kparams, raw


# ---------------------------------------------------------------------------
# Pure-JAX reference (mirrors the PyTorch module) for a sanity check
# ---------------------------------------------------------------------------
def reference_forward(word_idx_tensor, raw):
    h_dim = raw["hidden_dim"]
    x = raw["embedding"][word_idx_tensor[0]]                  # (S, E)
    seq_len = x.shape[0]
    for layer in range(2):
        outs = []
        for suffix, reverse in (("", False), ("_rev", True)):
            w_ih = raw[f"w_ih_l{layer}{suffix}"]
            w_hh = raw[f"w_hh_l{layer}{suffix}"]
            b = raw[f"b_l{layer}{suffix}"]
            h = jnp.zeros((h_dim,), jnp.float32)
            c = jnp.zeros((h_dim,), jnp.float32)
            hs = [None] * seq_len
            order = range(seq_len - 1, -1, -1) if reverse else range(seq_len)
            for t in order:
                gates = w_ih @ x[t] + w_hh @ h + b
                i_g = jax.nn.sigmoid(gates[0:h_dim])
                f_g = jax.nn.sigmoid(gates[h_dim:2 * h_dim])
                g_g = jnp.tanh(gates[2 * h_dim:3 * h_dim])
                o_g = jax.nn.sigmoid(gates[3 * h_dim:4 * h_dim])
                c = f_g * c + i_g * g_g
                h = o_g * jnp.tanh(c)
                hs[t] = h
            outs.append(jnp.stack(hs, axis=0))
        x = jnp.concatenate(outs, axis=-1)
    logits = x @ raw["w_out"].T + raw["b_out"]
    return jax.nn.log_softmax(logits, axis=-1)


# ---------------------------------------------------------------------------
if __name__ == "__main__":
    hidden_dim = 32
    word_embedding_dim = 32
    word_vocab_size = 100
    tag_vocab_size = 16
    seq_len = 8

    key = jax.random.PRNGKey(0)
    key, pkey, ikey = jax.random.split(key, 3)
    kparams, raw = make_params(pkey, hidden_dim, word_vocab_size,
                               tag_vocab_size, word_embedding_dim)

    # word_idx_tensor mirrors the PyTorch input: (batch=1, seq_len) int32.
    word_idx_tensor = jax.random.randint(
        ikey, (1, seq_len), 0, word_vocab_size, dtype=jnp.int32)

    tag_scores = dnn_pos_tagger_forward(word_idx_tensor, kparams,
                                        tag_vocab_size)
    jax.block_until_ready(tag_scores)
    assert tag_scores.shape == (seq_len, tag_vocab_size)

    # Sanity check against the pure-JAX reference (loose tolerance: the MXU
    # f32 matmul accumulation differs slightly from the XLA reference path).
    ref = reference_forward(word_idx_tensor, raw)
    np.testing.assert_allclose(np.asarray(tag_scores), np.asarray(ref),
                               rtol=5e-2, atol=5e-2)
    print("KERNEL_OK")
</pallas_src>

<mosaic_0001>
module attributes {stable_mosaic.version = 11 : i64} {
  func.func @_fused_tagger_kernel(%arg0: memref<8xi32, #tpu.memory_space<smem>>, %arg1: memref<100x32xf32, #tpu.memory_space<vmem>>, %arg2: memref<32x512xf32, #tpu.memory_space<vmem>>, %arg3: memref<128x512xf32, #tpu.memory_space<vmem>>, %arg4: memref<1x512xf32, #tpu.memory_space<vmem>>, %arg5: memref<32x512xf32, #tpu.memory_space<vmem>>, %arg6: memref<128x512xf32, #tpu.memory_space<vmem>>, %arg7: memref<1x512xf32, #tpu.memory_space<vmem>>, %arg8: memref<256x512xf32, #tpu.memory_space<vmem>>, %arg9: memref<128x512xf32, #tpu.memory_space<vmem>>, %arg10: memref<1x512xf32, #tpu.memory_space<vmem>>, %arg11: memref<256x512xf32, #tpu.memory_space<vmem>>, %arg12: memref<128x512xf32, #tpu.memory_space<vmem>>, %arg13: memref<1x512xf32, #tpu.memory_space<vmem>>, %arg14: memref<256x128xf32, #tpu.memory_space<vmem>>, %arg15: memref<1x128xf32, #tpu.memory_space<vmem>>, %arg16: memref<8x128xf32, #tpu.memory_space<vmem>>, %arg17: memref<8x32xf32, #tpu.memory_space<vmem>>, %arg18: memref<8x256xf32, #tpu.memory_space<vmem>>, %arg19: memref<8x256xf32, #tpu.memory_space<vmem>>) attributes {dimension_semantics = [], scalar_prefetch = 0 : i64, scratch_operands = 3 : i64, tpu.core_type = #tpu.core_type<tc>} {
    %c0 = arith.constant 0 : index
    %0 = memref.load %arg0[%c0] : memref<8xi32, #tpu.memory_space<smem>>
    %1 = arith.index_cast %0 : i32 to index
    %c0_0 = arith.constant 0 : index
    %2 = vector.load %arg1[%1, %c0_0] : memref<100x32xf32, #tpu.memory_space<vmem>>, vector<1x32xf32>
    %c0_1 = arith.constant 0 : index
    %c0_2 = arith.constant 0 : index
    %3 = vector.load %arg17[%c0_1, %c0_2] : memref<8x32xf32, #tpu.memory_space<vmem>>, vector<1x32xf32>
    tpu.vector_store %arg17[%c0_1, %c0_2], %2 {strides = array<i32>} : memref<8x32xf32, #tpu.memory_space<vmem>>, vector<1x32xf32>,
    %c1 = arith.constant 1 : index
    %4 = memref.load %arg0[%c1] : memref<8xi32, #tpu.memory_space<smem>>
    %5 = arith.index_cast %4 : i32 to index
    %c0_3 = arith.constant 0 : index
    %6 = vector.load %arg1[%5, %c0_3] : memref<100x32xf32, #tpu.memory_space<vmem>>, vector<1x32xf32>
    %c1_4 = arith.constant 1 : index
    %c0_5 = arith.constant 0 : index
    %7 = vector.load %arg17[%c1_4, %c0_5] : memref<8x32xf32, #tpu.memory_space<vmem>>, vector<1x32xf32>
    tpu.vector_store %arg17[%c1_4, %c0_5], %6 {strides = array<i32>} : memref<8x32xf32, #tpu.memory_space<vmem>>, vector<1x32xf32>,
    %c2 = arith.constant 2 : index
    %8 = memref.load %arg0[%c2] : memref<8xi32, #tpu.memory_space<smem>>
    %9 = arith.index_cast %8 : i32 to index
    %c0_6 = arith.constant 0 : index
    %10 = vector.load %arg1[%9, %c0_6] : memref<100x32xf32, #tpu.memory_space<vmem>>, vector<1x32xf32>
    %c2_7 = arith.constant 2 : index
    %c0_8 = arith.constant 0 : index
    %11 = vector.load %arg17[%c2_7, %c0_8] : memref<8x32xf32, #tpu.memory_space<vmem>>, vector<1x32xf32>
    tpu.vector_store %arg17[%c2_7, %c0_8], %10 {strides = array<i32>} : memref<8x32xf32, #tpu.memory_space<vmem>>, vector<1x32xf32>,
    %c3 = arith.constant 3 : index
    %12 = memref.load %arg0[%c3] : memref<8xi32, #tpu.memory_space<smem>>
    %13 = arith.index_cast %12 : i32 to index
    %c0_9 = arith.constant 0 : index
    %14 = vector.load %arg1[%13, %c0_9] : memref<100x32xf32, #tpu.memory_space<vmem>>, vector<1x32xf32>
    %c3_10 = arith.constant 3 : index
    %c0_11 = arith.constant 0 : index
    %15 = vector.load %arg17[%c3_10, %c0_11] : memref<8x32xf32, #tpu.memory_space<vmem>>, vector<1x32xf32>
    tpu.vector_store %arg17[%c3_10, %c0_11], %14 {strides = array<i32>} : memref<8x32xf32, #tpu.memory_space<vmem>>, vector<1x32xf32>,
    %c4 = arith.constant 4 : index
    %16 = memref.load %arg0[%c4] : memref<8xi32, #tpu.memory_space<smem>>
    %17 = arith.index_cast %16 : i32 to index
    %c0_12 = arith.constant 0 : index
    %18 = vector.load %arg1[%17, %c0_12] : memref<100x32xf32, #tpu.memory_space<vmem>>, vector<1x32xf32>
    %c4_13 = arith.constant 4 : index
    %c0_14 = arith.constant 0 : index
    %19 = vector.load %arg17[%c4_13, %c0_14] : memref<8x32xf32, #tpu.memory_space<vmem>>, vector<1x32xf32>
    tpu.vector_store %arg17[%c4_13, %c0_14], %18 {strides = array<i32>} : memref<8x32xf32, #tpu.memory_space<vmem>>, vector<1x32xf32>,
    %c5 = arith.constant 5 : index
    %20 = memref.load %arg0[%c5] : memref<8xi32, #tpu.memory_space<smem>>
    %21 = arith.index_cast %20 : i32 to index
    %c0_15 = arith.constant 0 : index
    %22 = vector.load %arg1[%21, %c0_15] : memref<100x32xf32, #tpu.memory_space<vmem>>, vector<1x32xf32>
    %c5_16 = arith.constant 5 : index
    %c0_17 = arith.constant 0 : index
    %23 = vector.load %arg17[%c5_16, %c0_17] : memref<8x32xf32, #tpu.memory_space<vmem>>, vector<1x32xf32>
    tpu.vector_store %arg17[%c5_16, %c0_17], %22 {strides = array<i32>} : memref<8x32xf32, #tpu.memory_space<vmem>>, vector<1x32xf32>,
    %c6 = arith.constant 6 : index
    %24 = memref.load %arg0[%c6] : memref<8xi32, #tpu.memory_space<smem>>
    %25 = arith.index_cast %24 : i32 to index
    %c0_18 = arith.constant 0 : index
    %26 = vector.load %arg1[%25, %c0_18] : memref<100x32xf32, #tpu.memory_space<vmem>>, vector<1x32xf32>
    %c6_19 = arith.constant 6 : index
    %c0_20 = arith.constant 0 : index
    %27 = vector.load %arg17[%c6_19, %c0_20] : memref<8x32xf32, #tpu.memory_space<vmem>>, vector<1x32xf32>
    tpu.vector_store %arg17[%c6_19, %c0_20], %26 {strides = array<i32>} : memref<8x32xf32, #tpu.memory_space<vmem>>, vector<1x32xf32>,
    %c7 = arith.constant 7 : index
    %28 = memref.load %arg0[%c7] : memref<8xi32, #tpu.memory_space<smem>>
    %29 = arith.index_cast %28 : i32 to index
    %c0_21 = arith.constant 0 : index
    %30 = vector.load %arg1[%29, %c0_21] : memref<100x32xf32, #tpu.memory_space<vmem>>, vector<1x32xf32>
    %c7_22 = arith.constant 7 : index
    %c0_23 = arith.constant 0 : index
    %31 = vector.load %arg17[%c7_22, %c0_23] : memref<8x32xf32, #tpu.memory_space<vmem>>, vector<1x32xf32>
    tpu.vector_store %arg17[%c7_22, %c0_23], %30 {strides = array<i32>} : memref<8x32xf32, #tpu.memory_space<vmem>>, vector<1x32xf32>,
    %c0_24 = arith.constant 0 : index
    %c0_25 = arith.constant 0 : index
    %32 = vector.load %arg17[%c0_24, %c0_25] : memref<8x32xf32, #tpu.memory_space<vmem>>, vector<8x32xf32>
    %c0_26 = arith.constant 0 : index
    %c0_27 = arith.constant 0 : index
    %33 = vector.load %arg2[%c0_26, %c0_27] : memref<32x512xf32, #tpu.memory_space<vmem>>, vector<32x512xf32>
    %cst = arith.constant dense<0.000000e+00> : vector<8x512xf32>
    %34 = tpu.matmul %32, %33, %cst {dimension_numbers = #tpu.dot_dimension_numbers<[1], [0], [0], [1], [0, 0, 1, 1], [], []>} : vector<8x32xf32>, vector<32x512xf32>, vector<8x512xf32> -> vector<8x512xf32>
    %c0_28 = arith.constant 0 : index
    %c0_29 = arith.constant 0 : index
    %35 = vector.load %arg4[%c0_28, %c0_29] : memref<1x512xf32, #tpu.memory_space<vmem>>, vector<1x512xf32>
    %36 = vector.broadcast %35 : vector<1x512xf32> to vector<8x512xf32>
    %37 = arith.addf %34, %36 : vector<8x512xf32>
    %c0_30 = arith.constant 0 : index
    %c0_31 = arith.constant 0 : index
    %38 = vector.load %arg5[%c0_30, %c0_31] : memref<32x512xf32, #tpu.memory_space<vmem>>, vector<32x512xf32>
    %cst_32 = arith.constant dense<0.000000e+00> : vector<8x512xf32>
    %39 = tpu.matmul %32, %38, %cst_32 {dimension_numbers = #tpu.dot_dimension_numbers<[1], [0], [0], [1], [0, 0, 1, 1], [], []>} : vector<8x32xf32>, vector<32x512xf32>, vector<8x512xf32> -> vector<8x512xf32>
    %c0_33 = arith.constant 0 : index
    %c0_34 = arith.constant 0 : index
    %40 = vector.load %arg7[%c0_33, %c0_34] : memref<1x512xf32, #tpu.memory_space<vmem>>, vector<1x512xf32>
    %41 = vector.broadcast %40 : vector<1x512xf32> to vector<8x512xf32>
    %42 = arith.addf %39, %41 : vector<8x512xf32>
    %c0_35 = arith.constant 0 : index
    %c0_36 = arith.constant 0 : index
    %43 = vector.load %arg3[%c0_35, %c0_36] : memref<128x512xf32, #tpu.memory_space<vmem>>, vector<128x512xf32>
    %c0_37 = arith.constant 0 : index
    %c0_38 = arith.constant 0 : index
    %44 = vector.load %arg6[%c0_37, %c0_38] : memref<128x512xf32, #tpu.memory_space<vmem>>, vector<128x512xf32>
    %cst_39 = arith.constant 0.000000e+00 : f32
    %45 = vector.broadcast %cst_39 : f32 to vector<1x128xf32>
    %46 = vector.extract_strided_slice %37 {offsets = [0, 0], sizes = [1, 512], strides = [1, 1]} : vector<8x512xf32> to vector<1x512xf32>
    %cst_40 = arith.constant dense<0.000000e+00> : vector<1x512xf32>
    %47 = tpu.matmul %45, %43, %cst_40 {dimension_numbers = #tpu.dot_dimension_numbers<[1], [0], [0], [1], [0, 0, 1, 1], [], []>} : vector<1x128xf32>, vector<128x512xf32>, vector<1x512xf32> -> vector<1x512xf32>
    %48 = arith.addf %46, %47 : vector<1x512xf32>
    %49 = vector.extract_strided_slice %48 {offsets = [0, 0], sizes = [1, 128], strides = [1, 1]} : vector<1x512xf32> to vector<1x128xf32>
    %50 = arith.negf %49 : vector<1x128xf32>
    %51 = math.exp %50 : vector<1x128xf32>
    %cst_41 = arith.constant 1.000000e+00 : f32
    %52 = vector.broadcast %cst_41 : f32 to vector<1x128xf32>
    %53 = arith.addf %52, %51 : vector<1x128xf32>
    %54 = arith.divf %52, %53 : vector<1x128xf32>
    %55 = vector.extract_strided_slice %48 {offsets = [0, 128], sizes = [1, 128], strides = [1, 1]} : vector<1x512xf32> to vector<1x128xf32>
    %56 = arith.negf %55 : vector<1x128xf32>
    %57 = math.exp %56 : vector<1x128xf32>
    %cst_42 = arith.constant 1.000000e+00 : f32
    %58 = vector.broadcast %cst_42 : f32 to vector<1x128xf32>
    %59 = arith.addf %58, %57 : vector<1x128xf32>
    %60 = arith.divf %58, %59 : vector<1x128xf32>
    %61 = vector.extract_strided_slice %48 {offsets = [0, 256], sizes = [1, 128], strides = [1, 1]} : vector<1x512xf32> to vector<1x128xf32>
    %62 = math.tanh %61 : vector<1x128xf32>
    %63 = vector.extract_strided_slice %48 {offsets = [0, 384], sizes = [1, 128], strides = [1, 1]} : vector<1x512xf32> to vector<1x128xf32>
    %64 = arith.negf %63 : vector<1x128xf32>
    %65 = math.exp %64 : vector<1x128xf32>
    %cst_43 = arith.constant 1.000000e+00 : f32
    %66 = vector.broadcast %cst_43 : f32 to vector<1x128xf32>
    %67 = arith.addf %66, %65 : vector<1x128xf32>
    %68 = arith.divf %66, %67 : vector<1x128xf32>
    %69 = arith.mulf %60, %45 : vector<1x128xf32>
    %70 = arith.mulf %54, %62 : vector<1x128xf32>
    %71 = arith.addf %69, %70 : vector<1x128xf32>
    %72 = math.tanh %71 : vector<1x128xf32>
    %73 = arith.mulf %68, %72 : vector<1x128xf32>
    %74 = vector.extract_strided_slice %42 {offsets = [7, 0], sizes = [1, 512], strides = [1, 1]} : vector<8x512xf32> to vector<1x512xf32>
    %cst_44 = arith.constant dense<0.000000e+00> : vector<1x512xf32>
    %75 = tpu.matmul %45, %44, %cst_44 {dimension_numbers = #tpu.dot_dimension_numbers<[1], [0], [0], [1], [0, 0, 1, 1], [], []>} : vector<1x128xf32>, vector<128x512xf32>, vector<1x512xf32> -> vector<1x512xf32>
    %76 = arith.addf %74, %75 : vector<1x512xf32>
    %77 = vector.extract_strided_slice %76 {offsets = [0, 0], sizes = [1, 128], strides = [1, 1]} : vector<1x512xf32> to vector<1x128xf32>
    %78 = arith.negf %77 : vector<1x128xf32>
    %79 = math.exp %78 : vector<1x128xf32>
    %cst_45 = arith.constant 1.000000e+00 : f32
    %80 = vector.broadcast %cst_45 : f32 to vector<1x128xf32>
    %81 = arith.addf %80, %79 : vector<1x128xf32>
    %82 = arith.divf %80, %81 : vector<1x128xf32>
    %83 = vector.extract_strided_slice %76 {offsets = [0, 128], sizes = [1, 128], strides = [1, 1]} : vector<1x512xf32> to vector<1x128xf32>
    %84 = arith.negf %83 : vector<1x128xf32>
    %85 = math.exp %84 : vector<1x128xf32>
    %cst_46 = arith.constant 1.000000e+00 : f32
    %86 = vector.broadcast %cst_46 : f32 to vector<1x128xf32>
    %87 = arith.addf %86, %85 : vector<1x128xf32>
    %88 = arith.divf %86, %87 : vector<1x128xf32>
    %89 = vector.extract_strided_slice %76 {offsets = [0, 256], sizes = [1, 128], strides = [1, 1]} : vector<1x512xf32> to vector<1x128xf32>
    %90 = math.tanh %89 : vector<1x128xf32>
    %91 = vector.extract_strided_slice %76 {offsets = [0, 384], sizes = [1, 128], strides = [1, 1]} : vector<1x512xf32> to vector<1x128xf32>
    %92 = arith.negf %91 : vector<1x128xf32>
    %93 = math.exp %92 : vector<1x128xf32>
    %cst_47 = arith.constant 1.000000e+00 : f32
    %94 = vector.broadcast %cst_47 : f32 to vector<1x128xf32>
    %95 = arith.addf %94, %93 : vector<1x128xf32>
    %96 = arith.divf %94, %95 : vector<1x128xf32>
    %97 = arith.mulf %88, %45 : vector<1x128xf32>
    %98 = arith.mulf %82, %90 : vector<1x128xf32>
    %99 = arith.addf %97, %98 : vector<1x128xf32>
    %100 = math.tanh %99 : vector<1x128xf32>
    %101 = arith.mulf %96, %100 : vector<1x128xf32>
    %c0_48 = arith.constant 0 : index
    %c0_49 = arith.constant 0 : index
    %102 = vector.load %arg18[%c0_48, %c0_49] : memref<8x256xf32, #tpu.memory_space<vmem>>, vector<1x128xf32>
    tpu.vector_store %arg18[%c0_48, %c0_49], %73 {strides = array<i32>} : memref<8x256xf32, #tpu.memory_space<vmem>>, vector<1x128xf32>,
    %c7_50 = arith.constant 7 : index
    %c128 = arith.constant 128 : index
    %103 = vector.load %arg18[%c7_50, %c128] : memref<8x256xf32, #tpu.memory_space<vmem>>, vector<1x128xf32>
    tpu.vector_store %arg18[%c7_50, %c128], %101 {strides = array<i32>} : memref<8x256xf32, #tpu.memory_space<vmem>>, vector<1x128xf32>,
    %104 = vector.extract_strided_slice %37 {offsets = [1, 0], sizes = [1, 512], strides = [1, 1]} : vector<8x512xf32> to vector<1x512xf32>
    %cst_51 = arith.constant dense<0.000000e+00> : vector<1x512xf32>
    %105 = tpu.matmul %73, %43, %cst_51 {dimension_numbers = #tpu.dot_dimension_numbers<[1], [0], [0], [1], [0, 0, 1, 1], [], []>} : vector<1x128xf32>, vector<128x512xf32>, vector<1x512xf32> -> vector<1x512xf32>
    %106 = arith.addf %104, %105 : vector<1x512xf32>
    %107 = vector.extract_strided_slice %106 {offsets = [0, 0], sizes = [1, 128], strides = [1, 1]} : vector<1x512xf32> to vector<1x128xf32>
    %108 = arith.negf %107 : vector<1x128xf32>
    %109 = math.exp %108 : vector<1x128xf32>
    %cst_52 = arith.constant 1.000000e+00 : f32
    %110 = vector.broadcast %cst_52 : f32 to vector<1x128xf32>
    %111 = arith.addf %110, %109 : vector<1x128xf32>
    %112 = arith.divf %110, %111 : vector<1x128xf32>
    %113 = vector.extract_strided_slice %106 {offsets = [0, 128], sizes = [1, 128], strides = [1, 1]} : vector<1x512xf32> to vector<1x128xf32>
    %114 = arith.negf %113 : vector<1x128xf32>
    %115 = math.exp %114 : vector<1x128xf32>
    %cst_53 = arith.constant 1.000000e+00 : f32
    %116 = vector.broadcast %cst_53 : f32 to vector<1x128xf32>
    %117 = arith.addf %116, %115 : vector<1x128xf32>
    %118 = arith.divf %116, %117 : vector<1x128xf32>
    %119 = vector.extract_strided_slice %106 {offsets = [0, 256], sizes = [1, 128], strides = [1, 1]} : vector<1x512xf32> to vector<1x128xf32>
    %120 = math.tanh %119 : vector<1x128xf32>
    %121 = vector.extract_strided_slice %106 {offsets = [0, 384], sizes = [1, 128], strides = [1, 1]} : vector<1x512xf32> to vector<1x128xf32>
    %122 = arith.negf %121 : vector<1x128xf32>
    %123 = math.exp %122 : vector<1x128xf32>
    %cst_54 = arith.constant 1.000000e+00 : f32
    %124 = vector.broadcast %cst_54 : f32 to vector<1x128xf32>
    %125 = arith.addf %124, %123 : vector<1x128xf32>
    %126 = arith.divf %124, %125 : vector<1x128xf32>
    %127 = arith.mulf %118, %71 : vector<1x128xf32>
    %128 = arith.mulf %112, %120 : vector<1x128xf32>
    %129 = arith.addf %127, %128 : vector<1x128xf32>
    %130 = math.tanh %129 : vector<1x128xf32>
    %131 = arith.mulf %126, %130 : vector<1x128xf32>
    %132 = vector.extract_strided_slice %42 {offsets = [6, 0], sizes = [1, 512], strides = [1, 1]} : vector<8x512xf32> to vector<1x512xf32>
    %cst_55 = arith.constant dense<0.000000e+00> : vector<1x512xf32>
    %133 = tpu.matmul %101, %44, %cst_55 {dimension_numbers = #tpu.dot_dimension_numbers<[1], [0], [0], [1], [0, 0, 1, 1], [], []>} : vector<1x128xf32>, vector<128x512xf32>, vector<1x512xf32> -> vector<1x512xf32>
    %134 = arith.addf %132, %133 : vector<1x512xf32>
    %135 = vector.extract_strided_slice %134 {offsets = [0, 0], sizes = [1, 128], strides = [1, 1]} : vector<1x512xf32> to vector<1x128xf32>
    %136 = arith.negf %135 : vector<1x128xf32>
    %137 = math.exp %136 : vector<1x128xf32>
    %cst_56 = arith.constant 1.000000e+00 : f32
    %138 = vector.broadcast %cst_56 : f32 to vector<1x128xf32>
    %139 = arith.addf %138, %137 : vector<1x128xf32>
    %140 = arith.divf %138, %139 : vector<1x128xf32>
    %141 = vector.extract_strided_slice %134 {offsets = [0, 128], sizes = [1, 128], strides = [1, 1]} : vector<1x512xf32> to vector<1x128xf32>
    %142 = arith.negf %141 : vector<1x128xf32>
    %143 = math.exp %142 : vector<1x128xf32>
    %cst_57 = arith.constant 1.000000e+00 : f32
    %144 = vector.broadcast %cst_57 : f32 to vector<1x128xf32>
    %145 = arith.addf %144, %143 : vector<1x128xf32>
    %146 = arith.divf %144, %145 : vector<1x128xf32>
    %147 = vector.extract_strided_slice %134 {offsets = [0, 256], sizes = [1, 128], strides = [1, 1]} : vector<1x512xf32> to vector<1x128xf32>
    %148 = math.tanh %147 : vector<1x128xf32>
    %149 = vector.extract_strided_slice %134 {offsets = [0, 384], sizes = [1, 128], strides = [1, 1]} : vector<1x512xf32> to vector<1x128xf32>
    %150 = arith.negf %149 : vector<1x128xf32>
    %151 = math.exp %150 : vector<1x128xf32>
    %cst_58 = arith.constant 1.000000e+00 : f32
    %152 = vector.broadcast %cst_58 : f32 to vector<1x128xf32>
    %153 = arith.addf %152, %151 : vector<1x128xf32>
    %154 = arith.divf %152, %153 : vector<1x128xf32>
    %155 = arith.mulf %146, %99 : vector<1x128xf32>
    %156 = arith.mulf %140, %148 : vector<1x128xf32>
    %157 = arith.addf %155, %156 : vector<1x128xf32>
    %158 = math.tanh %157 : vector<1x128xf32>
    %159 = arith.mulf %154, %158 : vector<1x128xf32>
    %c1_59 = arith.constant 1 : index
    %c0_60 = arith.constant 0 : index
    %160 = vector.load %arg18[%c1_59, %c0_60] : memref<8x256xf32, #tpu.memory_space<vmem>>, vector<1x128xf32>
    tpu.vector_store %arg18[%c1_59, %c0_60], %131 {strides = array<i32>} : memref<8x256xf32, #tpu.memory_space<vmem>>, vector<1x128xf32>,
    %c6_61 = arith.constant 6 : index
    %c128_62 = arith.constant 128 : index
    %161 = vector.load %arg18[%c6_61, %c128_62] : memref<8x256xf32, #tpu.memory_space<vmem>>, vector<1x128xf32>
    tpu.vector_store %arg18[%c6_61, %c128_62], %159 {strides = array<i32>} : memref<8x256xf32, #tpu.memory_space<vmem>>, vector<1x128xf32>,
    %162 = vector.extract_strided_slice %37 {offsets = [2, 0], sizes = [1, 512], strides = [1, 1]} : vector<8x512xf32> to vector<1x512xf32>
    %cst_63 = arith.constant dense<0.000000e+00> : vector<1x512xf32>
    %163 = tpu.matmul %131, %43, %cst_63 {dimension_numbers = #tpu.dot_dimension_numbers<[1], [0], [0], [1], [0, 0, 1, 1], [], []>} : vector<1x128xf32>, vector<128x512xf32>, vector<1x512xf32> -> vector<1x512xf32>
    %164 = arith.addf %162, %163 : vector<1x512xf32>
    %165 = vector.extract_strided_slice %164 {offsets = [0, 0], sizes = [1, 128], strides = [1, 1]} : vector<1x512xf32> to vector<1x128xf32>
    %166 = arith.negf %165 : vector<1x128xf32>
    %167 = math.exp %166 : vector<1x128xf32>
    %cst_64 = arith.constant 1.000000e+00 : f32
    %168 = vector.broadcast %cst_64 : f32 to vector<1x128xf32>
    %169 = arith.addf %168, %167 : vector<1x128xf32>
    %170 = arith.divf %168, %169 : vector<1x128xf32>
    %171 = vector.extract_strided_slice %164 {offsets = [0, 128], sizes = [1, 128], strides = [1, 1]} : vector<1x512xf32> to vector<1x128xf32>
    %172 = arith.negf %171 : vector<1x128xf32>
    %173 = math.exp %172 : vector<1x128xf32>
    %cst_65 = arith.constant 1.000000e+00 : f32
    %174 = vector.broadcast %cst_65 : f32 to vector<1x128xf32>
    %175 = arith.addf %174, %173 : vector<1x128xf32>
    %176 = arith.divf %174, %175 : vector<1x128xf32>
    %177 = vector.extract_strided_slice %164 {offsets = [0, 256], sizes = [1, 128], strides = [1, 1]} : vector<1x512xf32> to vector<1x128xf32>
    %178 = math.tanh %177 : vector<1x128xf32>
    %179 = vector.extract_strided_slice %164 {offsets = [0, 384], sizes = [1, 128], strides = [1, 1]} : vector<1x512xf32> to vector<1x128xf32>
    %180 = arith.negf %179 : vector<1x128xf32>
    %181 = math.exp %180 : vector<1x128xf32>
    %cst_66 = arith.constant 1.000000e+00 : f32
    %182 = vector.broadcast %cst_66 : f32 to vector<1x128xf32>
    %183 = arith.addf %182, %181 : vector<1x128xf32>
    %184 = arith.divf %182, %183 : vector<1x128xf32>
    %185 = arith.mulf %176, %129 : vector<1x128xf32>
    %186 = arith.mulf %170, %178 : vector<1x128xf32>
    %187 = arith.addf %185, %186 : vector<1x128xf32>
    %188 = math.tanh %187 : vector<1x128xf32>
    %189 = arith.mulf %184, %188 : vector<1x128xf32>
    %190 = vector.extract_strided_slice %42 {offsets = [5, 0], sizes = [1, 512], strides = [1, 1]} : vector<8x512xf32> to vector<1x512xf32>
    %cst_67 = arith.constant dense<0.000000e+00> : vector<1x512xf32>
    %191 = tpu.matmul %159, %44, %cst_67 {dimension_numbers = #tpu.dot_dimension_numbers<[1], [0], [0], [1], [0, 0, 1, 1], [], []>} : vector<1x128xf32>, vector<128x512xf32>, vector<1x512xf32> -> vector<1x512xf32>
    %192 = arith.addf %190, %191 : vector<1x512xf32>
    %193 = vector.extract_strided_slice %192 {offsets = [0, 0], sizes = [1, 128], strides = [1, 1]} : vector<1x512xf32> to vector<1x128xf32>
    %194 = arith.negf %193 : vector<1x128xf32>
    %195 = math.exp %194 : vector<1x128xf32>
    %cst_68 = arith.constant 1.000000e+00 : f32
    %196 = vector.broadcast %cst_68 : f32 to vector<1x128xf32>
    %197 = arith.addf %196, %195 : vector<1x128xf32>
    %198 = arith.divf %196, %197 : vector<1x128xf32>
    %199 = vector.extract_strided_slice %192 {offsets = [0, 128], sizes = [1, 128], strides = [1, 1]} : vector<1x512xf32> to vector<1x128xf32>
    %200 = arith.negf %199 : vector<1x128xf32>
    %201 = math.exp %200 : vector<1x128xf32>
    %cst_69 = arith.constant 1.000000e+00 : f32
    %202 = vector.broadcast %cst_69 : f32 to vector<1x128xf32>
    %203 = arith.addf %202, %201 : vector<1x128xf32>
    %204 = arith.divf %202, %203 : vector<1x128xf32>
    %205 = vector.extract_strided_slice %192 {offsets = [0, 256], sizes = [1, 128], strides = [1, 1]} : vector<1x512xf32> to vector<1x128xf32>
    %206 = math.tanh %205 : vector<1x128xf32>
    %207 = vector.extract_strided_slice %192 {offsets = [0, 384], sizes = [1, 128], strides = [1, 1]} : vector<1x512xf32> to vector<1x128xf32>
    %208 = arith.negf %207 : vector<1x128xf32>
    %209 = math.exp %208 : vector<1x128xf32>
    %cst_70 = arith.constant 1.000000e+00 : f32
    %210 = vector.broadcast %cst_70 : f32 to vector<1x128xf32>
    %211 = arith.addf %210, %209 : vector<1x128xf32>
    %212 = arith.divf %210, %211 : vector<1x128xf32>
    %213 = arith.mulf %204, %157 : vector<1x128xf32>
    %214 = arith.mulf %198, %206 : vector<1x128xf32>
    %215 = arith.addf %213, %214 : vector<1x128xf32>
    %216 = math.tanh %215 : vector<1x128xf32>
    %217 = arith.mulf %212, %216 : vector<1x128xf32>
    %c2_71 = arith.constant 2 : index
    %c0_72 = arith.constant 0 : index
    %218 = vector.load %arg18[%c2_71, %c0_72] : memref<8x256xf32, #tpu.memory_space<vmem>>, vector<1x128xf32>
    tpu.vector_store %arg18[%c2_71, %c0_72], %189 {strides = array<i32>} : memref<8x256xf32, #tpu.memory_space<vmem>>, vector<1x128xf32>,
    %c5_73 = arith.constant 5 : index
    %c128_74 = arith.constant 128 : index
    %219 = vector.load %arg18[%c5_73, %c128_74] : memref<8x256xf32, #tpu.memory_space<vmem>>, vector<1x128xf32>
    tpu.vector_store %arg18[%c5_73, %c128_74], %217 {strides = array<i32>} : memref<8x256xf32, #tpu.memory_space<vmem>>, vector<1x128xf32>,
    %220 = vector.extract_strided_slice %37 {offsets = [3, 0], sizes = [1, 512], strides = [1, 1]} : vector<8x512xf32> to vector<1x512xf32>
    %cst_75 = arith.constant dense<0.000000e+00> : vector<1x512xf32>
    %221 = tpu.matmul %189, %43, %cst_75 {dimension_numbers = #tpu.dot_dimension_numbers<[1], [0], [0], [1], [0, 0, 1, 1], [], []>} : vector<1x128xf32>, vector<128x512xf32>, vector<1x512xf32> -> vector<1x512xf32>
    %222 = arith.addf %220, %221 : vector<1x512xf32>
    %223 = vector.extract_strided_slice %222 {offsets = [0, 0], sizes = [1, 128], strides = [1, 1]} : vector<1x512xf32> to vector<1x128xf32>
    %224 = arith.negf %223 : vector<1x128xf32>
    %225 = math.exp %224 : vector<1x128xf32>
    %cst_76 = arith.constant 1.000000e+00 : f32
    %226 = vector.broadcast %cst_76 : f32 to vector<1x128xf32>
    %227 = arith.addf %226, %225 : vector<1x128xf32>
    %228 = arith.divf %226, %227 : vector<1x128xf32>
    %229 = vector.extract_strided_slice %222 {offsets = [0, 128], sizes = [1, 128], strides = [1, 1]} : vector<1x512xf32> to vector<1x128xf32>
    %230 = arith.negf %229 : vector<1x128xf32>
    %231 = math.exp %230 : vector<1x128xf32>
    %cst_77 = arith.constant 1.000000e+00 : f32
    %232 = vector.broadcast %cst_77 : f32 to vector<1x128xf32>
    %233 = arith.addf %232, %231 : vector<1x128xf32>
    %234 = arith.divf %232, %233 : vector<1x128xf32>
    %235 = vector.extract_strided_slice %222 {offsets = [0, 256], sizes = [1, 128], strides = [1, 1]} : vector<1x512xf32> to vector<1x128xf32>
    %236 = math.tanh %235 : vector<1x128xf32>
    %237 = vector.extract_strided_slice %222 {offsets = [0, 384], sizes = [1, 128], strides = [1, 1]} : vector<1x512xf32> to vector<1x128xf32>
    %238 = arith.negf %237 : vector<1x128xf32>
    %239 = math.exp %238 : vector<1x128xf32>
    %cst_78 = arith.constant 1.000000e+00 : f32
    %240 = vector.broadcast %cst_78 : f32 to vector<1x128xf32>
    %241 = arith.addf %240, %239 : vector<1x128xf32>
    %242 = arith.divf %240, %241 : vector<1x128xf32>
    %243 = arith.mulf %234, %187 : vector<1x128xf32>
    %244 = arith.mulf %228, %236 : vector<1x128xf32>
    %245 = arith.addf %243, %244 : vector<1x128xf32>
    %246 = math.tanh %245 : vector<1x128xf32>
    %247 = arith.mulf %242, %246 : vector<1x128xf32>
    %248 = vector.extract_strided_slice %42 {offsets = [4, 0], sizes = [1, 512], strides = [1, 1]} : vector<8x512xf32> to vector<1x512xf32>
    %cst_79 = arith.constant dense<0.000000e+00> : vector<1x512xf32>
    %249 = tpu.matmul %217, %44, %cst_79 {dimension_numbers = #tpu.dot_dimension_numbers<[1], [0], [0], [1], [0, 0, 1, 1], [], []>} : vector<1x128xf32>, vector<128x512xf32>, vector<1x512xf32> -> vector<1x512xf32>
    %250 = arith.addf %248, %249 : vector<1x512xf32>
    %251 = vector.extract_strided_slice %250 {offsets = [0, 0], sizes = [1, 128], strides = [1, 1]} : vector<1x512xf32> to vector<1x128xf32>
    %252 = arith.negf %251 : vector<1x128xf32>
    %253 = math.exp %252 : vector<1x128xf32>
    %cst_80 = arith.constant 1.000000e+00 : f32
    %254 = vector.broadcast %cst_80 : f32 to vector<1x128xf32>
    %255 = arith.addf %254, %253 : vector<1x128xf32>
    %256 = arith.divf %254, %255 : vector<1x128xf32>
    %257 = vector.extract_strided_slice %250 {offsets = [0, 128], sizes = [1, 128], strides = [1, 1]} : vector<1x512xf32> to vector<1x128xf32>
    %258 = arith.negf %257 : vector<1x128xf32>
    %259 = math.exp %258 : vector<1x128xf32>
    %cst_81 = arith.constant 1.000000e+00 : f32
    %260 = vector.broadcast %cst_81 : f32 to vector<1x128xf32>
    %261 = arith.addf %260, %259 : vector<1x128xf32>
    %262 = arith.divf %260, %261 : vector<1x128xf32>
    %263 = vector.extract_strided_slice %250 {offsets = [0, 256], sizes = [1, 128], strides = [1, 1]} : vector<1x512xf32> to vector<1x128xf32>
    %264 = math.tanh %263 : vector<1x128xf32>
    %265 = vector.extract_strided_slice %250 {offsets = [0, 384], sizes = [1, 128], strides = [1, 1]} : vector<1x512xf32> to vector<1x128xf32>
    %266 = arith.negf %265 : vector<1x128xf32>
    %267 = math.exp %266 : vector<1x128xf32>
    %cst_82 = arith.constant 1.000000e+00 : f32
    %268 = vector.broadcast %cst_82 : f32 to vector<1x128xf32>
    %269 = arith.addf %268, %267 : vector<1x128xf32>
    %270 = arith.divf %268, %269 : vector<1x128xf32>
    %271 = arith.mulf %262, %215 : vector<1x128xf32>
    %272 = arith.mulf %256, %264 : vector<1x128xf32>
    %273 = arith.addf %271, %272 : vector<1x128xf32>
    %274 = math.tanh %273 : vector<1x128xf32>
    %275 = arith.mulf %270, %274 : vector<1x128xf32>
    %c3_83 = arith.constant 3 : index
    %c0_84 = arith.constant 0 : index
    %276 = vector.load %arg18[%c3_83, %c0_84] : memref<8x256xf32, #tpu.memory_space<vmem>>, vector<1x128xf32>
    tpu.vector_store %arg18[%c3_83, %c0_84], %247 {strides = array<i32>} : memref<8x256xf32, #tpu.memory_space<vmem>>, vector<1x128xf32>,
    %c4_85 = arith.constant 4 : index
    %c128_86 = arith.constant 128 : index
    %277 = vector.load %arg18[%c4_85, %c128_86] : memref<8x256xf32, #tpu.memory_space<vmem>>, vector<1x128xf32>
    tpu.vector_store %arg18[%c4_85, %c128_86], %275 {strides = array<i32>} : memref<8x256xf32, #tpu.memory_space<vmem>>, vector<1x128xf32>,
    %278 = vector.extract_strided_slice %37 {offsets = [4, 0], sizes = [1, 512], strides = [1, 1]} : vector<8x512xf32> to vector<1x512xf32>
    %cst_87 = arith.constant dense<0.000000e+00> : vector<1x512xf32>
    %279 = tpu.matmul %247, %43, %cst_87 {dimension_numbers = #tpu.dot_dimension_numbers<[1], [0], [0], [1], [0, 0, 1, 1], [], []>} : vector<1x128xf32>, vector<128x512xf32>, vector<1x512xf32> -> vector<1x512xf32>
    %280 = arith.addf %278, %279 : vector<1x512xf32>
    %281 = vector.extract_strided_slice %280 {offsets = [0, 0], sizes = [1, 128], strides = [1, 1]} : vector<1x512xf32> to vector<1x128xf32>
    %282 = arith.negf %281 : vector<1x128xf32>
    %283 = math.exp %282 : vector<1x128xf32>
    %cst_88 = arith.constant 1.000000e+00 : f32
    %284 = vector.broadcast %cst_88 : f32 to vector<1x128xf32>
    %285 = arith.addf %284, %283 : vector<1x128xf32>
    %286 = arith.divf %284, %285 : vector<1x128xf32>
    %287 = vector.extract_strided_slice %280 {offsets = [0, 128], sizes = [1, 128], strides = [1, 1]} : vector<1x512xf32> to vector<1x128xf32>
    %288 = arith.negf %287 : vector<1x128xf32>
    %289 = math.exp %288 : vector<1x128xf32>
    %cst_89 = arith.constant 1.000000e+00 : f32
    %290 = vector.broadcast %cst_89 : f32 to vector<1x128xf32>
    %291 = arith.addf %290, %289 : vector<1x128xf32>
    %292 = arith.divf %290, %291 : vector<1x128xf32>
    %293 = vector.extract_strided_slice %280 {offsets = [0, 256], sizes = [1, 128], strides = [1, 1]} : vector<1x512xf32> to vector<1x128xf32>
    %294 = math.tanh %293 : vector<1x128xf32>
    %295 = vector.extract_strided_slice %280 {offsets = [0, 384], sizes = [1, 128], strides = [1, 1]} : vector<1x512xf32> to vector<1x128xf32>
    %296 = arith.negf %295 : vector<1x128xf32>
    %297 = math.exp %296 : vector<1x128xf32>
    %cst_90 = arith.constant 1.000000e+00 : f32
    %298 = vector.broadcast %cst_90 : f32 to vector<1x128xf32>
    %299 = arith.addf %298, %297 : vector<1x128xf32>
    %300 = arith.divf %298, %299 : vector<1x128xf32>
    %301 = arith.mulf %292, %245 : vector<1x128xf32>
    %302 = arith.mulf %286, %294 : vector<1x128xf32>
    %303 = arith.addf %301, %302 : vector<1x128xf32>
    %304 = math.tanh %303 : vector<1x128xf32>
    %305 = arith.mulf %300, %304 : vector<1x128xf32>
    %306 = vector.extract_strided_slice %42 {offsets = [3, 0], sizes = [1, 512], strides = [1, 1]} : vector<8x512xf32> to vector<1x512xf32>
    %cst_91 = arith.constant dense<0.000000e+00> : vector<1x512xf32>
    %307 = tpu.matmul %275, %44, %cst_91 {dimension_numbers = #tpu.dot_dimension_numbers<[1], [0], [0], [1], [0, 0, 1, 1], [], []>} : vector<1x128xf32>, vector<128x512xf32>, vector<1x512xf32> -> vector<1x512xf32>
    %308 = arith.addf %306, %307 : vector<1x512xf32>
    %309 = vector.extract_strided_slice %308 {offsets = [0, 0], sizes = [1, 128], strides = [1, 1]} : vector<1x512xf32> to vector<1x128xf32>
    %310 = arith.negf %309 : vector<1x128xf32>
    %311 = math.exp %310 : vector<1x128xf32>
    %cst_92 = arith.constant 1.000000e+00 : f32
    %312 = vector.broadcast %cst_92 : f32 to vector<1x128xf32>
    %313 = arith.addf %312, %311 : vector<1x128xf32>
    %314 = arith.divf %312, %313 : vector<1x128xf32>
    %315 = vector.extract_strided_slice %308 {offsets = [0, 128], sizes = [1, 128], strides = [1, 1]} : vector<1x512xf32> to vector<1x128xf32>
    %316 = arith.negf %315 : vector<1x128xf32>
    %317 = math.exp %316 : vector<1x128xf32>
    %cst_93 = arith.constant 1.000000e+00 : f32
    %318 = vector.broadcast %cst_93 : f32 to vector<1x128xf32>
    %319 = arith.addf %318, %317 : vector<1x128xf32>
    %320 = arith.divf %318, %319 : vector<1x128xf32>
    %321 = vector.extract_strided_slice %308 {offsets = [0, 256], sizes = [1, 128], strides = [1, 1]} : vector<1x512xf32> to vector<1x128xf32>
    %322 = math.tanh %321 : vector<1x128xf32>
    %323 = vector.extract_strided_slice %308 {offsets = [0, 384], sizes = [1, 128], strides = [1, 1]} : vector<1x512xf32> to vector<1x128xf32>
    %324 = arith.negf %323 : vector<1x128xf32>
    %325 = math.exp %324 : vector<1x128xf32>
    %cst_94 = arith.constant 1.000000e+00 : f32
    %326 = vector.broadcast %cst_94 : f32 to vector<1x128xf32>
    %327 = arith.addf %326, %325 : vector<1x128xf32>
    %328 = arith.divf %326, %327 : vector<1x128xf32>
    %329 = arith.mulf %320, %273 : vector<1x128xf32>
    %330 = arith.mulf %314, %322 : vector<1x128xf32>
    %331 = arith.addf %329, %330 : vector<1x128xf32>
    %332 = math.tanh %331 : vector<1x128xf32>
    %333 = arith.mulf %328, %332 : vector<1x128xf32>
    %c4_95 = arith.constant 4 : index
    %c0_96 = arith.constant 0 : index
    %334 = vector.load %arg18[%c4_95, %c0_96] : memref<8x256xf32, #tpu.memory_space<vmem>>, vector<1x128xf32>
    tpu.vector_store %arg18[%c4_95, %c0_96], %305 {strides = array<i32>} : memref<8x256xf32, #tpu.memory_space<vmem>>, vector<1x128xf32>,
    %c3_97 = arith.constant 3 : index
    %c128_98 = arith.constant 128 : index
    %335 = vector.load %arg18[%c3_97, %c128_98] : memref<8x256xf32, #tpu.memory_space<vmem>>, vector<1x128xf32>
    tpu.vector_store %arg18[%c3_97, %c128_98], %333 {strides = array<i32>} : memref<8x256xf32, #tpu.memory_space<vmem>>, vector<1x128xf32>,
    %336 = vector.extract_strided_slice %37 {offsets = [5, 0], sizes = [1, 512], strides = [1, 1]} : vector<8x512xf32> to vector<1x512xf32>
    %cst_99 = arith.constant dense<0.000000e+00> : vector<1x512xf32>
    %337 = tpu.matmul %305, %43, %cst_99 {dimension_numbers = #tpu.dot_dimension_numbers<[1], [0], [0], [1], [0, 0, 1, 1], [], []>} : vector<1x128xf32>, vector<128x512xf32>, vector<1x512xf32> -> vector<1x512xf32>
    %338 = arith.addf %336, %337 : vector<1x512xf32>
    %339 = vector.extract_strided_slice %338 {offsets = [0, 0], sizes = [1, 128], strides = [1, 1]} : vector<1x512xf32> to vector<1x128xf32>
    %340 = arith.negf %339 : vector<1x128xf32>
    %341 = math.exp %340 : vector<1x128xf32>
    %cst_100 = arith.constant 1.000000e+00 : f32
    %342 = vector.broadcast %cst_100 : f32 to vector<1x128xf32>
    %343 = arith.addf %342, %341 : vector<1x128xf32>
    %344 = arith.divf %342, %343 : vector<1x128xf32>
    %345 = vector.extract_strided_slice %338 {offsets = [0, 128], sizes = [1, 128], strides = [1, 1]} : vector<1x512xf32> to vector<1x128xf32>
    %346 = arith.negf %345 : vector<1x128xf32>
    %347 = math.exp %346 : vector<1x128xf32>
    %cst_101 = arith.constant 1.000000e+00 : f32
    %348 = vector.broadcast %cst_101 : f32 to vector<1x128xf32>
    %349 = arith.addf %348, %347 : vector<1x128xf32>
    %350 = arith.divf %348, %349 : vector<1x128xf32>
    %351 = vector.extract_strided_slice %338 {offsets = [0, 256], sizes = [1, 128], strides = [1, 1]} : vector<1x512xf32> to vector<1x128xf32>
    %352 = math.tanh %351 : vector<1x128xf32>
    %353 = vector.extract_strided_slice %338 {offsets = [0, 384], sizes = [1, 128], strides = [1, 1]} : vector<1x512xf32> to vector<1x128xf32>
    %354 = arith.negf %353 : vector<1x128xf32>
    %355 = math.exp %354 : vector<1x128xf32>
    %cst_102 = arith.constant 1.000000e+00 : f32
    %356 = vector.broadcast %cst_102 : f32 to vector<1x128xf32>
    %357 = arith.addf %356, %355 : vector<1x128xf32>
    %358 = arith.divf %356, %357 : vector<1x128xf32>
    %359 = arith.mulf %350, %303 : vector<1x128xf32>
    %360 = arith.mulf %344, %352 : vector<1x128xf32>
    %361 = arith.addf %359, %360 : vector<1x128xf32>
    %362 = math.tanh %361 : vector<1x128xf32>
    %363 = arith.mulf %358, %362 : vector<1x128xf32>
    %364 = vector.extract_strided_slice %42 {offsets = [2, 0], sizes = [1, 512], strides = [1, 1]} : vector<8x512xf32> to vector<1x512xf32>
    %cst_103 = arith.constant dense<0.000000e+00> : vector<1x512xf32>
    %365 = tpu.matmul %333, %44, %cst_103 {dimension_numbers = #tpu.dot_dimension_numbers<[1], [0], [0], [1], [0, 0, 1, 1], [], []>} : vector<1x128xf32>, vector<128x512xf32>, vector<1x512xf32> -> vector<1x512xf32>
    %366 = arith.addf %364, %365 : vector<1x512xf32>
    %367 = vector.extract_strided_slice %366 {offsets = [0, 0], sizes = [1, 128], strides = [1, 1]} : vector<1x512xf32> to vector<1x128xf32>
    %368 = arith.negf %367 : vector<1x128xf32>
    %369 = math.exp %368 : vector<1x128xf32>
    %cst_104 = arith.constant 1.000000e+00 : f32
    %370 = vector.broadcast %cst_104 : f32 to vector<1x128xf32>
    %371 = arith.addf %370, %369 : vector<1x128xf32>
    %372 = arith.divf %370, %371 : vector<1x128xf32>
    %373 = vector.extract_strided_slice %366 {offsets = [0, 128], sizes = [1, 128], strides = [1, 1]} : vector<1x512xf32> to vector<1x128xf32>
    %374 = arith.negf %373 : vector<1x128xf32>
    %375 = math.exp %374 : vector<1x128xf32>
    %cst_105 = arith.constant 1.000000e+00 : f32
    %376 = vector.broadcast %cst_105 : f32 to vector<1x128xf32>
    %377 = arith.addf %376, %375 : vector<1x128xf32>
    %378 = arith.divf %376, %377 : vector<1x128xf32>
    %379 = vector.extract_strided_slice %366 {offsets = [0, 256], sizes = [1, 128], strides = [1, 1]} : vector<1x512xf32> to vector<1x128xf32>
    %380 = math.tanh %379 : vector<1x128xf32>
    %381 = vector.extract_strided_slice %366 {offsets = [0, 384], sizes = [1, 128], strides = [1, 1]} : vector<1x512xf32> to vector<1x128xf32>
    %382 = arith.negf %381 : vector<1x128xf32>
    %383 = math.exp %382 : vector<1x128xf32>
    %cst_106 = arith.constant 1.000000e+00 : f32
    %384 = vector.broadcast %cst_106 : f32 to vector<1x128xf32>
    %385 = arith.addf %384, %383 : vector<1x128xf32>
    %386 = arith.divf %384, %385 : vector<1x128xf32>
    %387 = arith.mulf %378, %331 : vector<1x128xf32>
    %388 = arith.mulf %372, %380 : vector<1x128xf32>
    %389 = arith.addf %387, %388 : vector<1x128xf32>
    %390 = math.tanh %389 : vector<1x128xf32>
    %391 = arith.mulf %386, %390 : vector<1x128xf32>
    %c5_107 = arith.constant 5 : index
    %c0_108 = arith.constant 0 : index
    %392 = vector.load %arg18[%c5_107, %c0_108] : memref<8x256xf32, #tpu.memory_space<vmem>>, vector<1x128xf32>
    tpu.vector_store %arg18[%c5_107, %c0_108], %363 {strides = array<i32>} : memref<8x256xf32, #tpu.memory_space<vmem>>, vector<1x128xf32>,
    %c2_109 = arith.constant 2 : index
    %c128_110 = arith.constant 128 : index
    %393 = vector.load %arg18[%c2_109, %c128_110] : memref<8x256xf32, #tpu.memory_space<vmem>>, vector<1x128xf32>
    tpu.vector_store %arg18[%c2_109, %c128_110], %391 {strides = array<i32>} : memref<8x256xf32, #tpu.memory_space<vmem>>, vector<1x128xf32>,
    %394 = vector.extract_strided_slice %37 {offsets = [6, 0], sizes = [1, 512], strides = [1, 1]} : vector<8x512xf32> to vector<1x512xf32>
    %cst_111 = arith.constant dense<0.000000e+00> : vector<1x512xf32>
    %395 = tpu.matmul %363, %43, %cst_111 {dimension_numbers = #tpu.dot_dimension_numbers<[1], [0], [0], [1], [0, 0, 1, 1], [], []>} : vector<1x128xf32>, vector<128x512xf32>, vector<1x512xf32> -> vector<1x512xf32>
    %396 = arith.addf %394, %395 : vector<1x512xf32>
    %397 = vector.extract_strided_slice %396 {offsets = [0, 0], sizes = [1, 128], strides = [1, 1]} : vector<1x512xf32> to vector<1x128xf32>
    %398 = arith.negf %397 : vector<1x128xf32>
    %399 = math.exp %398 : vector<1x128xf32>
    %cst_112 = arith.constant 1.000000e+00 : f32
    %400 = vector.broadcast %cst_112 : f32 to vector<1x128xf32>
    %401 = arith.addf %400, %399 : vector<1x128xf32>
    %402 = arith.divf %400, %401 : vector<1x128xf32>
    %403 = vector.extract_strided_slice %396 {offsets = [0, 128], sizes = [1, 128], strides = [1, 1]} : vector<1x512xf32> to vector<1x128xf32>
    %404 = arith.negf %403 : vector<1x128xf32>
    %405 = math.exp %404 : vector<1x128xf32>
    %cst_113 = arith.constant 1.000000e+00 : f32
    %406 = vector.broadcast %cst_113 : f32 to vector<1x128xf32>
    %407 = arith.addf %406, %405 : vector<1x128xf32>
    %408 = arith.divf %406, %407 : vector<1x128xf32>
    %409 = vector.extract_strided_slice %396 {offsets = [0, 256], sizes = [1, 128], strides = [1, 1]} : vector<1x512xf32> to vector<1x128xf32>
    %410 = math.tanh %409 : vector<1x128xf32>
    %411 = vector.extract_strided_slice %396 {offsets = [0, 384], sizes = [1, 128], strides = [1, 1]} : vector<1x512xf32> to vector<1x128xf32>
    %412 = arith.negf %411 : vector<1x128xf32>
    %413 = math.exp %412 : vector<1x128xf32>
    %cst_114 = arith.constant 1.000000e+00 : f32
    %414 = vector.broadcast %cst_114 : f32 to vector<1x128xf32>
    %415 = arith.addf %414, %413 : vector<1x128xf32>
    %416 = arith.divf %414, %415 : vector<1x128xf32>
    %417 = arith.mulf %408, %361 : vector<1x128xf32>
    %418 = arith.mulf %402, %410 : vector<1x128xf32>
    %419 = arith.addf %417, %418 : vector<1x128xf32>
    %420 = math.tanh %419 : vector<1x128xf32>
    %421 = arith.mulf %416, %420 : vector<1x128xf32>
    %422 = vector.extract_strided_slice %42 {offsets = [1, 0], sizes = [1, 512], strides = [1, 1]} : vector<8x512xf32> to vector<1x512xf32>
    %cst_115 = arith.constant dense<0.000000e+00> : vector<1x512xf32>
    %423 = tpu.matmul %391, %44, %cst_115 {dimension_numbers = #tpu.dot_dimension_numbers<[1], [0], [0], [1], [0, 0, 1, 1], [], []>} : vector<1x128xf32>, vector<128x512xf32>, vector<1x512xf32> -> vector<1x512xf32>
    %424 = arith.addf %422, %423 : vector<1x512xf32>
    %425 = vector.extract_strided_slice %424 {offsets = [0, 0], sizes = [1, 128], strides = [1, 1]} : vector<1x512xf32> to vector<1x128xf32>
    %426 = arith.negf %425 : vector<1x128xf32>
    %427 = math.exp %426 : vector<1x128xf32>
    %cst_116 = arith.constant 1.000000e+00 : f32
    %428 = vector.broadcast %cst_116 : f32 to vector<1x128xf32>
    %429 = arith.addf %428, %427 : vector<1x128xf32>
    %430 = arith.divf %428, %429 : vector<1x128xf32>
    %431 = vector.extract_strided_slice %424 {offsets = [0, 128], sizes = [1, 128], strides = [1, 1]} : vector<1x512xf32> to vector<1x128xf32>
    %432 = arith.negf %431 : vector<1x128xf32>
    %433 = math.exp %432 : vector<1x128xf32>
    %cst_117 = arith.constant 1.000000e+00 : f32
    %434 = vector.broadcast %cst_117 : f32 to vector<1x128xf32>
    %435 = arith.addf %434, %433 : vector<1x128xf32>
    %436 = arith.divf %434, %435 : vector<1x128xf32>
    %437 = vector.extract_strided_slice %424 {offsets = [0, 256], sizes = [1, 128], strides = [1, 1]} : vector<1x512xf32> to vector<1x128xf32>
    %438 = math.tanh %437 : vector<1x128xf32>
    %439 = vector.extract_strided_slice %424 {offsets = [0, 384], sizes = [1, 128], strides = [1, 1]} : vector<1x512xf32> to vector<1x128xf32>
    %440 = arith.negf %439 : vector<1x128xf32>
    %441 = math.exp %440 : vector<1x128xf32>
    %cst_118 = arith.constant 1.000000e+00 : f32
    %442 = vector.broadcast %cst_118 : f32 to vector<1x128xf32>
    %443 = arith.addf %442, %441 : vector<1x128xf32>
    %444 = arith.divf %442, %443 : vector<1x128xf32>
    %445 = arith.mulf %436, %389 : vector<1x128xf32>
    %446 = arith.mulf %430, %438 : vector<1x128xf32>
    %447 = arith.addf %445, %446 : vector<1x128xf32>
    %448 = math.tanh %447 : vector<1x128xf32>
    %449 = arith.mulf %444, %448 : vector<1x128xf32>
    %c6_119 = arith.constant 6 : index
    %c0_120 = arith.constant 0 : index
    %450 = vector.load %arg18[%c6_119, %c0_120] : memref<8x256xf32, #tpu.memory_space<vmem>>, vector<1x128xf32>
    tpu.vector_store %arg18[%c6_119, %c0_120], %421 {strides = array<i32>} : memref<8x256xf32, #tpu.memory_space<vmem>>, vector<1x128xf32>,
    %c1_121 = arith.constant 1 : index
    %c128_122 = arith.constant 128 : index
    %451 = vector.load %arg18[%c1_121, %c128_122] : memref<8x256xf32, #tpu.memory_space<vmem>>, vector<1x128xf32>
    tpu.vector_store %arg18[%c1_121, %c128_122], %449 {strides = array<i32>} : memref<8x256xf32, #tpu.memory_space<vmem>>, vector<1x128xf32>,
    %452 = vector.extract_strided_slice %37 {offsets = [7, 0], sizes = [1, 512], strides = [1, 1]} : vector<8x512xf32> to vector<1x512xf32>
    %cst_123 = arith.constant dense<0.000000e+00> : vector<1x512xf32>
    %453 = tpu.matmul %421, %43, %cst_123 {dimension_numbers = #tpu.dot_dimension_numbers<[1], [0], [0], [1], [0, 0, 1, 1], [], []>} : vector<1x128xf32>, vector<128x512xf32>, vector<1x512xf32> -> vector<1x512xf32>
    %454 = arith.addf %452, %453 : vector<1x512xf32>
    %455 = vector.extract_strided_slice %454 {offsets = [0, 0], sizes = [1, 128], strides = [1, 1]} : vector<1x512xf32> to vector<1x128xf32>
    %456 = arith.negf %455 : vector<1x128xf32>
    %457 = math.exp %456 : vector<1x128xf32>
    %cst_124 = arith.constant 1.000000e+00 : f32
    %458 = vector.broadcast %cst_124 : f32 to vector<1x128xf32>
    %459 = arith.addf %458, %457 : vector<1x128xf32>
    %460 = arith.divf %458, %459 : vector<1x128xf32>
    %461 = vector.extract_strided_slice %454 {offsets = [0, 128], sizes = [1, 128], strides = [1, 1]} : vector<1x512xf32> to vector<1x128xf32>
    %462 = arith.negf %461 : vector<1x128xf32>
    %463 = math.exp %462 : vector<1x128xf32>
    %cst_125 = arith.constant 1.000000e+00 : f32
    %464 = vector.broadcast %cst_125 : f32 to vector<1x128xf32>
    %465 = arith.addf %464, %463 : vector<1x128xf32>
    %466 = arith.divf %464, %465 : vector<1x128xf32>
    %467 = vector.extract_strided_slice %454 {offsets = [0, 256], sizes = [1, 128], strides = [1, 1]} : vector<1x512xf32> to vector<1x128xf32>
    %468 = math.tanh %467 : vector<1x128xf32>
    %469 = vector.extract_strided_slice %454 {offsets = [0, 384], sizes = [1, 128], strides = [1, 1]} : vector<1x512xf32> to vector<1x128xf32>
    %470 = arith.negf %469 : vector<1x128xf32>
    %471 = math.exp %470 : vector<1x128xf32>
    %cst_126 = arith.constant 1.000000e+00 : f32
    %472 = vector.broadcast %cst_126 : f32 to vector<1x128xf32>
    %473 = arith.addf %472, %471 : vector<1x128xf32>
    %474 = arith.divf %472, %473 : vector<1x128xf32>
    %475 = arith.mulf %466, %419 : vector<1x128xf32>
    %476 = arith.mulf %460, %468 : vector<1x128xf32>
    %477 = arith.addf %475, %476 : vector<1x128xf32>
    %478 = math.tanh %477 : vector<1x128xf32>
    %479 = arith.mulf %474, %478 : vector<1x128xf32>
    %480 = vector.extract_strided_slice %42 {offsets = [0, 0], sizes = [1, 512], strides = [1, 1]} : vector<8x512xf32> to vector<1x512xf32>
    %cst_127 = arith.constant dense<0.000000e+00> : vector<1x512xf32>
    %481 = tpu.matmul %449, %44, %cst_127 {dimension_numbers = #tpu.dot_dimension_numbers<[1], [0], [0], [1], [0, 0, 1, 1], [], []>} : vector<1x128xf32>, vector<128x512xf32>, vector<1x512xf32> -> vector<1x512xf32>
    %482 = arith.addf %480, %481 : vector<1x512xf32>
    %483 = vector.extract_strided_slice %482 {offsets = [0, 0], sizes = [1, 128], strides = [1, 1]} : vector<1x512xf32> to vector<1x128xf32>
    %484 = arith.negf %483 : vector<1x128xf32>
    %485 = math.exp %484 : vector<1x128xf32>
    %cst_128 = arith.constant 1.000000e+00 : f32
    %486 = vector.broadcast %cst_128 : f32 to vector<1x128xf32>
    %487 = arith.addf %486, %485 : vector<1x128xf32>
    %488 = arith.divf %486, %487 : vector<1x128xf32>
    %489 = vector.extract_strided_slice %482 {offsets = [0, 128], sizes = [1, 128], strides = [1, 1]} : vector<1x512xf32> to vector<1x128xf32>
    %490 = arith.negf %489 : vector<1x128xf32>
    %491 = math.exp %490 : vector<1x128xf32>
    %cst_129 = arith.constant 1.000000e+00 : f32
    %492 = vector.broadcast %cst_129 : f32 to vector<1x128xf32>
    %493 = arith.addf %492, %491 : vector<1x128xf32>
    %494 = arith.divf %492, %493 : vector<1x128xf32>
    %495 = vector.extract_strided_slice %482 {offsets = [0, 256], sizes = [1, 128], strides = [1, 1]} : vector<1x512xf32> to vector<1x128xf32>
    %496 = math.tanh %495 : vector<1x128xf32>
    %497 = vector.extract_strided_slice %482 {offsets = [0, 384], sizes = [1, 128], strides = [1, 1]} : vector<1x512xf32> to vector<1x128xf32>
    %498 = arith.negf %497 : vector<1x128xf32>
    %499 = math.exp %498 : vector<1x128xf32>
    %cst_130 = arith.constant 1.000000e+00 : f32
    %500 = vector.broadcast %cst_130 : f32 to vector<1x128xf32>
    %501 = arith.addf %500, %499 : vector<1x128xf32>
    %502 = arith.divf %500, %501 : vector<1x128xf32>
    %503 = arith.mulf %494, %447 : vector<1x128xf32>
    %504 = arith.mulf %488, %496 : vector<1x128xf32>
    %505 = arith.addf %503, %504 : vector<1x128xf32>
    %506 = math.tanh %505 : vector<1x128xf32>
    %507 = arith.mulf %502, %506 : vector<1x128xf32>
    %c7_131 = arith.constant 7 : index
    %c0_132 = arith.constant 0 : index
    %508 = vector.load %arg18[%c7_131, %c0_132] : memref<8x256xf32, #tpu.memory_space<vmem>>, vector<1x128xf32>
    tpu.vector_store %arg18[%c7_131, %c0_132], %479 {strides = array<i32>} : memref<8x256xf32, #tpu.memory_space<vmem>>, vector<1x128xf32>,
    %c0_133 = arith.constant 0 : index
    %c128_134 = arith.constant 128 : index
    %509 = vector.load %arg18[%c0_133, %c128_134] : memref<8x256xf32, #tpu.memory_space<vmem>>, vector<1x128xf32>
    tpu.vector_store %arg18[%c0_133, %c128_134], %507 {strides = array<i32>} : memref<8x256xf32, #tpu.memory_space<vmem>>, vector<1x128xf32>,
    %c0_135 = arith.constant 0 : index
    %c0_136 = arith.constant 0 : index
    %510 = vector.load %arg18[%c0_135, %c0_136] : memref<8x256xf32, #tpu.memory_space<vmem>>, vector<8x256xf32>
    %c0_137 = arith.constant 0 : index
    %c0_138 = arith.constant 0 : index
    %511 = vector.load %arg8[%c0_137, %c0_138] : memref<256x512xf32, #tpu.memory_space<vmem>>, vector<256x512xf32>
    %cst_139 = arith.constant dense<0.000000e+00> : vector<8x512xf32>
    %512 = tpu.matmul %510, %511, %cst_139 {dimension_numbers = #tpu.dot_dimension_numbers<[1], [0], [0], [1], [0, 0, 1, 1], [], []>} : vector<8x256xf32>, vector<256x512xf32>, vector<8x512xf32> -> vector<8x512xf32>
    %c0_140 = arith.constant 0 : index
    %c0_141 = arith.constant 0 : index
    %513 = vector.load %arg10[%c0_140, %c0_141] : memref<1x512xf32, #tpu.memory_space<vmem>>, vector<1x512xf32>
    %514 = vector.broadcast %513 : vector<1x512xf32> to vector<8x512xf32>
    %515 = arith.addf %512, %514 : vector<8x512xf32>
    %c0_142 = arith.constant 0 : index
    %c0_143 = arith.constant 0 : index
    %516 = vector.load %arg11[%c0_142, %c0_143] : memref<256x512xf32, #tpu.memory_space<vmem>>, vector<256x512xf32>
    %cst_144 = arith.constant dense<0.000000e+00> : vector<8x512xf32>
    %517 = tpu.matmul %510, %516, %cst_144 {dimension_numbers = #tpu.dot_dimension_numbers<[1], [0], [0], [1], [0, 0, 1, 1], [], []>} : vector<8x256xf32>, vector<256x512xf32>, vector<8x512xf32> -> vector<8x512xf32>
    %c0_145 = arith.constant 0 : index
    %c0_146 = arith.constant 0 : index
    %518 = vector.load %arg13[%c0_145, %c0_146] : memref<1x512xf32, #tpu.memory_space<vmem>>, vector<1x512xf32>
    %519 = vector.broadcast %518 : vector<1x512xf32> to vector<8x512xf32>
    %520 = arith.addf %517, %519 : vector<8x512xf32>
    %c0_147 = arith.constant 0 : index
    %c0_148 = arith.constant 0 : index
    %521 = vector.load %arg9[%c0_147, %c0_148] : memref<128x512xf32, #tpu.memory_space<vmem>>, vector<128x512xf32>
    %c0_149 = arith.constant 0 : index
    %c0_150 = arith.constant 0 : index
    %522 = vector.load %arg12[%c0_149, %c0_150] : memref<128x512xf32, #tpu.memory_space<vmem>>, vector<128x512xf32>
    %cst_151 = arith.constant 0.000000e+00 : f32
    %523 = vector.broadcast %cst_151 : f32 to vector<1x128xf32>
    %524 = vector.extract_strided_slice %515 {offsets = [0, 0], sizes = [1, 512], strides = [1, 1]} : vector<8x512xf32> to vector<1x512xf32>
    %cst_152 = arith.constant dense<0.000000e+00> : vector<1x512xf32>
    %525 = tpu.matmul %523, %521, %cst_152 {dimension_numbers = #tpu.dot_dimension_numbers<[1], [0], [0], [1], [0, 0, 1, 1], [], []>} : vector<1x128xf32>, vector<128x512xf32>, vector<1x512xf32> -> vector<1x512xf32>
    %526 = arith.addf %524, %525 : vector<1x512xf32>
    %527 = vector.extract_strided_slice %526 {offsets = [0, 0], sizes = [1, 128], strides = [1, 1]} : vector<1x512xf32> to vector<1x128xf32>
    %528 = arith.negf %527 : vector<1x128xf32>
    %529 = math.exp %528 : vector<1x128xf32>
    %cst_153 = arith.constant 1.000000e+00 : f32
    %530 = vector.broadcast %cst_153 : f32 to vector<1x128xf32>
    %531 = arith.addf %530, %529 : vector<1x128xf32>
    %532 = arith.divf %530, %531 : vector<1x128xf32>
    %533 = vector.extract_strided_slice %526 {offsets = [0, 128], sizes = [1, 128], strides = [1, 1]} : vector<1x512xf32> to vector<1x128xf32>
    %534 = arith.negf %533 : vector<1x128xf32>
    %535 = math.exp %534 : vector<1x128xf32>
    %cst_154 = arith.constant 1.000000e+00 : f32
    %536 = vector.broadcast %cst_154 : f32 to vector<1x128xf32>
    %537 = arith.addf %536, %535 : vector<1x128xf32>
    %538 = arith.divf %536, %537 : vector<1x128xf32>
    %539 = vector.extract_strided_slice %526 {offsets = [0, 256], sizes = [1, 128], strides = [1, 1]} : vector<1x512xf32> to vector<1x128xf32>
    %540 = math.tanh %539 : vector<1x128xf32>
    %541 = vector.extract_strided_slice %526 {offsets = [0, 384], sizes = [1, 128], strides = [1, 1]} : vector<1x512xf32> to vector<1x128xf32>
    %542 = arith.negf %541 : vector<1x128xf32>
    %543 = math.exp %542 : vector<1x128xf32>
    %cst_155 = arith.constant 1.000000e+00 : f32
    %544 = vector.broadcast %cst_155 : f32 to vector<1x128xf32>
    %545 = arith.addf %544, %543 : vector<1x128xf32>
    %546 = arith.divf %544, %545 : vector<1x128xf32>
    %547 = arith.mulf %538, %523 : vector<1x128xf32>
    %548 = arith.mulf %532, %540 : vector<1x128xf32>
    %549 = arith.addf %547, %548 : vector<1x128xf32>
    %550 = math.tanh %549 : vector<1x128xf32>
    %551 = arith.mulf %546, %550 : vector<1x128xf32>
    %552 = vector.extract_strided_slice %520 {offsets = [7, 0], sizes = [1, 512], strides = [1, 1]} : vector<8x512xf32> to vector<1x512xf32>
    %cst_156 = arith.constant dense<0.000000e+00> : vector<1x512xf32>
    %553 = tpu.matmul %523, %522, %cst_156 {dimension_numbers = #tpu.dot_dimension_numbers<[1], [0], [0], [1], [0, 0, 1, 1], [], []>} : vector<1x128xf32>, vector<128x512xf32>, vector<1x512xf32> -> vector<1x512xf32>
    %554 = arith.addf %552, %553 : vector<1x512xf32>
    %555 = vector.extract_strided_slice %554 {offsets = [0, 0], sizes = [1, 128], strides = [1, 1]} : vector<1x512xf32> to vector<1x128xf32>
    %556 = arith.negf %555 : vector<1x128xf32>
    %557 = math.exp %556 : vector<1x128xf32>
    %cst_157 = arith.constant 1.000000e+00 : f32
    %558 = vector.broadcast %cst_157 : f32 to vector<1x128xf32>
    %559 = arith.addf %558, %557 : vector<1x128xf32>
    %560 = arith.divf %558, %559 : vector<1x128xf32>
    %561 = vector.extract_strided_slice %554 {offsets = [0, 128], sizes = [1, 128], strides = [1, 1]} : vector<1x512xf32> to vector<1x128xf32>
    %562 = arith.negf %561 : vector<1x128xf32>
    %563 = math.exp %562 : vector<1x128xf32>
    %cst_158 = arith.constant 1.000000e+00 : f32
    %564 = vector.broadcast %cst_158 : f32 to vector<1x128xf32>
    %565 = arith.addf %564, %563 : vector<1x128xf32>
    %566 = arith.divf %564, %565 : vector<1x128xf32>
    %567 = vector.extract_strided_slice %554 {offsets = [0, 256], sizes = [1, 128], strides = [1, 1]} : vector<1x512xf32> to vector<1x128xf32>
    %568 = math.tanh %567 : vector<1x128xf32>
    %569 = vector.extract_strided_slice %554 {offsets = [0, 384], sizes = [1, 128], strides = [1, 1]} : vector<1x512xf32> to vector<1x128xf32>
    %570 = arith.negf %569 : vector<1x128xf32>
    %571 = math.exp %570 : vector<1x128xf32>
    %cst_159 = arith.constant 1.000000e+00 : f32
    %572 = vector.broadcast %cst_159 : f32 to vector<1x128xf32>
    %573 = arith.addf %572, %571 : vector<1x128xf32>
    %574 = arith.divf %572, %573 : vector<1x128xf32>
    %575 = arith.mulf %566, %523 : vector<1x128xf32>
    %576 = arith.mulf %560, %568 : vector<1x128xf32>
    %577 = arith.addf %575, %576 : vector<1x128xf32>
    %578 = math.tanh %577 : vector<1x128xf32>
    %579 = arith.mulf %574, %578 : vector<1x128xf32>
    %c0_160 = arith.constant 0 : index
    %c0_161 = arith.constant 0 : index
    %580 = vector.load %arg19[%c0_160, %c0_161] : memref<8x256xf32, #tpu.memory_space<vmem>>, vector<1x128xf32>
    tpu.vector_store %arg19[%c0_160, %c0_161], %551 {strides = array<i32>} : memref<8x256xf32, #tpu.memory_space<vmem>>, vector<1x128xf32>,
    %c7_162 = arith.constant 7 : index
    %c128_163 = arith.constant 128 : index
    %581 = vector.load %arg19[%c7_162, %c128_163] : memref<8x256xf32, #tpu.memory_space<vmem>>, vector<1x128xf32>
    tpu.vector_store %arg19[%c7_162, %c128_163], %579 {strides = array<i32>} : memref<8x256xf32, #tpu.memory_space<vmem>>, vector<1x128xf32>,
    %582 = vector.extract_strided_slice %515 {offsets = [1, 0], sizes = [1, 512], strides = [1, 1]} : vector<8x512xf32> to vector<1x512xf32>
    %cst_164 = arith.constant dense<0.000000e+00> : vector<1x512xf32>
    %583 = tpu.matmul %551, %521, %cst_164 {dimension_numbers = #tpu.dot_dimension_numbers<[1], [0], [0], [1], [0, 0, 1, 1], [], []>} : vector<1x128xf32>, vector<128x512xf32>, vector<1x512xf32> -> vector<1x512xf32>
    %584 = arith.addf %582, %583 : vector<1x512xf32>
    %585 = vector.extract_strided_slice %584 {offsets = [0, 0], sizes = [1, 128], strides = [1, 1]} : vector<1x512xf32> to vector<1x128xf32>
    %586 = arith.negf %585 : vector<1x128xf32>
    %587 = math.exp %586 : vector<1x128xf32>
    %cst_165 = arith.constant 1.000000e+00 : f32
    %588 = vector.broadcast %cst_165 : f32 to vector<1x128xf32>
    %589 = arith.addf %588, %587 : vector<1x128xf32>
    %590 = arith.divf %588, %589 : vector<1x128xf32>
    %591 = vector.extract_strided_slice %584 {offsets = [0, 128], sizes = [1, 128], strides = [1, 1]} : vector<1x512xf32> to vector<1x128xf32>
    %592 = arith.negf %591 : vector<1x128xf32>
    %593 = math.exp %592 : vector<1x128xf32>
    %cst_166 = arith.constant 1.000000e+00 : f32
    %594 = vector.broadcast %cst_166 : f32 to vector<1x128xf32>
    %595 = arith.addf %594, %593 : vector<1x128xf32>
    %596 = arith.divf %594, %595 : vector<1x128xf32>
    %597 = vector.extract_strided_slice %584 {offsets = [0, 256], sizes = [1, 128], strides = [1, 1]} : vector<1x512xf32> to vector<1x128xf32>
    %598 = math.tanh %597 : vector<1x128xf32>
    %599 = vector.extract_strided_slice %584 {offsets = [0, 384], sizes = [1, 128], strides = [1, 1]} : vector<1x512xf32> to vector<1x128xf32>
    %600 = arith.negf %599 : vector<1x128xf32>
    %601 = math.exp %600 : vector<1x128xf32>
    %cst_167 = arith.constant 1.000000e+00 : f32
    %602 = vector.broadcast %cst_167 : f32 to vector<1x128xf32>
    %603 = arith.addf %602, %601 : vector<1x128xf32>
    %604 = arith.divf %602, %603 : vector<1x128xf32>
    %605 = arith.mulf %596, %549 : vector<1x128xf32>
    %606 = arith.mulf %590, %598 : vector<1x128xf32>
    %607 = arith.addf %605, %606 : vector<1x128xf32>
    %608 = math.tanh %607 : vector<1x128xf32>
    %609 = arith.mulf %604, %608 : vector<1x128xf32>
    %610 = vector.extract_strided_slice %520 {offsets = [6, 0], sizes = [1, 512], strides = [1, 1]} : vector<8x512xf32> to vector<1x512xf32>
    %cst_168 = arith.constant dense<0.000000e+00> : vector<1x512xf32>
    %611 = tpu.matmul %579, %522, %cst_168 {dimension_numbers = #tpu.dot_dimension_numbers<[1], [0], [0], [1], [0, 0, 1, 1], [], []>} : vector<1x128xf32>, vector<128x512xf32>, vector<1x512xf32> -> vector<1x512xf32>
    %612 = arith.addf %610, %611 : vector<1x512xf32>
    %613 = vector.extract_strided_slice %612 {offsets = [0, 0], sizes = [1, 128], strides = [1, 1]} : vector<1x512xf32> to vector<1x128xf32>
    %614 = arith.negf %613 : vector<1x128xf32>
    %615 = math.exp %614 : vector<1x128xf32>
    %cst_169 = arith.constant 1.000000e+00 : f32
    %616 = vector.broadcast %cst_169 : f32 to vector<1x128xf32>
    %617 = arith.addf %616, %615 : vector<1x128xf32>
    %618 = arith.divf %616, %617 : vector<1x128xf32>
    %619 = vector.extract_strided_slice %612 {offsets = [0, 128], sizes = [1, 128], strides = [1, 1]} : vector<1x512xf32> to vector<1x128xf32>
    %620 = arith.negf %619 : vector<1x128xf32>
    %621 = math.exp %620 : vector<1x128xf32>
    %cst_170 = arith.constant 1.000000e+00 : f32
    %622 = vector.broadcast %cst_170 : f32 to vector<1x128xf32>
    %623 = arith.addf %622, %621 : vector<1x128xf32>
    %624 = arith.divf %622, %623 : vector<1x128xf32>
    %625 = vector.extract_strided_slice %612 {offsets = [0, 256], sizes = [1, 128], strides = [1, 1]} : vector<1x512xf32> to vector<1x128xf32>
    %626 = math.tanh %625 : vector<1x128xf32>
    %627 = vector.extract_strided_slice %612 {offsets = [0, 384], sizes = [1, 128], strides = [1, 1]} : vector<1x512xf32> to vector<1x128xf32>
    %628 = arith.negf %627 : vector<1x128xf32>
    %629 = math.exp %628 : vector<1x128xf32>
    %cst_171 = arith.constant 1.000000e+00 : f32
    %630 = vector.broadcast %cst_171 : f32 to vector<1x128xf32>
    %631 = arith.addf %630, %629 : vector<1x128xf32>
    %632 = arith.divf %630, %631 : vector<1x128xf32>
    %633 = arith.mulf %624, %577 : vector<1x128xf32>
    %634 = arith.mulf %618, %626 : vector<1x128xf32>
    %635 = arith.addf %633, %634 : vector<1x128xf32>
    %636 = math.tanh %635 : vector<1x128xf32>
    %637 = arith.mulf %632, %636 : vector<1x128xf32>
    %c1_172 = arith.constant 1 : index
    %c0_173 = arith.constant 0 : index
    %638 = vector.load %arg19[%c1_172, %c0_173] : memref<8x256xf32, #tpu.memory_space<vmem>>, vector<1x128xf32>
    tpu.vector_store %arg19[%c1_172, %c0_173], %609 {strides = array<i32>} : memref<8x256xf32, #tpu.memory_space<vmem>>, vector<1x128xf32>,
    %c6_174 = arith.constant 6 : index
    %c128_175 = arith.constant 128 : index
    %639 = vector.load %arg19[%c6_174, %c128_175] : memref<8x256xf32, #tpu.memory_space<vmem>>, vector<1x128xf32>
    tpu.vector_store %arg19[%c6_174, %c128_175], %637 {strides = array<i32>} : memref<8x256xf32, #tpu.memory_space<vmem>>, vector<1x128xf32>,
    %640 = vector.extract_strided_slice %515 {offsets = [2, 0], sizes = [1, 512], strides = [1, 1]} : vector<8x512xf32> to vector<1x512xf32>
    %cst_176 = arith.constant dense<0.000000e+00> : vector<1x512xf32>
    %641 = tpu.matmul %609, %521, %cst_176 {dimension_numbers = #tpu.dot_dimension_numbers<[1], [0], [0], [1], [0, 0, 1, 1], [], []>} : vector<1x128xf32>, vector<128x512xf32>, vector<1x512xf32> -> vector<1x512xf32>
    %642 = arith.addf %640, %641 : vector<1x512xf32>
    %643 = vector.extract_strided_slice %642 {offsets = [0, 0], sizes = [1, 128], strides = [1, 1]} : vector<1x512xf32> to vector<1x128xf32>
    %644 = arith.negf %643 : vector<1x128xf32>
    %645 = math.exp %644 : vector<1x128xf32>
    %cst_177 = arith.constant 1.000000e+00 : f32
    %646 = vector.broadcast %cst_177 : f32 to vector<1x128xf32>
    %647 = arith.addf %646, %645 : vector<1x128xf32>
    %648 = arith.divf %646, %647 : vector<1x128xf32>
    %649 = vector.extract_strided_slice %642 {offsets = [0, 128], sizes = [1, 128], strides = [1, 1]} : vector<1x512xf32> to vector<1x128xf32>
    %650 = arith.negf %649 : vector<1x128xf32>
    %651 = math.exp %650 : vector<1x128xf32>
    %cst_178 = arith.constant 1.000000e+00 : f32
    %652 = vector.broadcast %cst_178 : f32 to vector<1x128xf32>
    %653 = arith.addf %652, %651 : vector<1x128xf32>
    %654 = arith.divf %652, %653 : vector<1x128xf32>
    %655 = vector.extract_strided_slice %642 {offsets = [0, 256], sizes = [1, 128], strides = [1, 1]} : vector<1x512xf32> to vector<1x128xf32>
    %656 = math.tanh %655 : vector<1x128xf32>
    %657 = vector.extract_strided_slice %642 {offsets = [0, 384], sizes = [1, 128], strides = [1, 1]} : vector<1x512xf32> to vector<1x128xf32>
    %658 = arith.negf %657 : vector<1x128xf32>
    %659 = math.exp %658 : vector<1x128xf32>
    %cst_179 = arith.constant 1.000000e+00 : f32
    %660 = vector.broadcast %cst_179 : f32 to vector<1x128xf32>
    %661 = arith.addf %660, %659 : vector<1x128xf32>
    %662 = arith.divf %660, %661 : vector<1x128xf32>
    %663 = arith.mulf %654, %607 : vector<1x128xf32>
    %664 = arith.mulf %648, %656 : vector<1x128xf32>
    %665 = arith.addf %663, %664 : vector<1x128xf32>
    %666 = math.tanh %665 : vector<1x128xf32>
    %667 = arith.mulf %662, %666 : vector<1x128xf32>
    %668 = vector.extract_strided_slice %520 {offsets = [5, 0], sizes = [1, 512], strides = [1, 1]} : vector<8x512xf32> to vector<1x512xf32>
    %cst_180 = arith.constant dense<0.000000e+00> : vector<1x512xf32>
    %669 = tpu.matmul %637, %522, %cst_180 {dimension_numbers = #tpu.dot_dimension_numbers<[1], [0], [0], [1], [0, 0, 1, 1], [], []>} : vector<1x128xf32>, vector<128x512xf32>, vector<1x512xf32> -> vector<1x512xf32>
    %670 = arith.addf %668, %669 : vector<1x512xf32>
    %671 = vector.extract_strided_slice %670 {offsets = [0, 0], sizes = [1, 128], strides = [1, 1]} : vector<1x512xf32> to vector<1x128xf32>
    %672 = arith.negf %671 : vector<1x128xf32>
    %673 = math.exp %672 : vector<1x128xf32>
    %cst_181 = arith.constant 1.000000e+00 : f32
    %674 = vector.broadcast %cst_181 : f32 to vector<1x128xf32>
    %675 = arith.addf %674, %673 : vector<1x128xf32>
    %676 = arith.divf %674, %675 : vector<1x128xf32>
    %677 = vector.extract_strided_slice %670 {offsets = [0, 128], sizes = [1, 128], strides = [1, 1]} : vector<1x512xf32> to vector<1x128xf32>
    %678 = arith.negf %677 : vector<1x128xf32>
    %679 = math.exp %678 : vector<1x128xf32>
    %cst_182 = arith.constant 1.000000e+00 : f32
    %680 = vector.broadcast %cst_182 : f32 to vector<1x128xf32>
    %681 = arith.addf %680, %679 : vector<1x128xf32>
    %682 = arith.divf %680, %681 : vector<1x128xf32>
    %683 = vector.extract_strided_slice %670 {offsets = [0, 256], sizes = [1, 128], strides = [1, 1]} : vector<1x512xf32> to vector<1x128xf32>
    %684 = math.tanh %683 : vector<1x128xf32>
    %685 = vector.extract_strided_slice %670 {offsets = [0, 384], sizes = [1, 128], strides = [1, 1]} : vector<1x512xf32> to vector<1x128xf32>
    %686 = arith.negf %685 : vector<1x128xf32>
    %687 = math.exp %686 : vector<1x128xf32>
    %cst_183 = arith.constant 1.000000e+00 : f32
    %688 = vector.broadcast %cst_183 : f32 to vector<1x128xf32>
    %689 = arith.addf %688, %687 : vector<1x128xf32>
    %690 = arith.divf %688, %689 : vector<1x128xf32>
    %691 = arith.mulf %682, %635 : vector<1x128xf32>
    %692 = arith.mulf %676, %684 : vector<1x128xf32>
    %693 = arith.addf %691, %692 : vector<1x128xf32>
    %694 = math.tanh %693 : vector<1x128xf32>
    %695 = arith.mulf %690, %694 : vector<1x128xf32>
    %c2_184 = arith.constant 2 : index
    %c0_185 = arith.constant 0 : index
    %696 = vector.load %arg19[%c2_184, %c0_185] : memref<8x256xf32, #tpu.memory_space<vmem>>, vector<1x128xf32>
    tpu.vector_store %arg19[%c2_184, %c0_185], %667 {strides = array<i32>} : memref<8x256xf32, #tpu.memory_space<vmem>>, vector<1x128xf32>,
    %c5_186 = arith.constant 5 : index
    %c128_187 = arith.constant 128 : index
    %697 = vector.load %arg19[%c5_186, %c128_187] : memref<8x256xf32, #tpu.memory_space<vmem>>, vector<1x128xf32>
    tpu.vector_store %arg19[%c5_186, %c128_187], %695 {strides = array<i32>} : memref<8x256xf32, #tpu.memory_space<vmem>>, vector<1x128xf32>,
    %698 = vector.extract_strided_slice %515 {offsets = [3, 0], sizes = [1, 512], strides = [1, 1]} : vector<8x512xf32> to vector<1x512xf32>
    %cst_188 = arith.constant dense<0.000000e+00> : vector<1x512xf32>
    %699 = tpu.matmul %667, %521, %cst_188 {dimension_numbers = #tpu.dot_dimension_numbers<[1], [0], [0], [1], [0, 0, 1, 1], [], []>} : vector<1x128xf32>, vector<128x512xf32>, vector<1x512xf32> -> vector<1x512xf32>
    %700 = arith.addf %698, %699 : vector<1x512xf32>
    %701 = vector.extract_strided_slice %700 {offsets = [0, 0], sizes = [1, 128], strides = [1, 1]} : vector<1x512xf32> to vector<1x128xf32>
    %702 = arith.negf %701 : vector<1x128xf32>
    %703 = math.exp %702 : vector<1x128xf32>
    %cst_189 = arith.constant 1.000000e+00 : f32
    %704 = vector.broadcast %cst_189 : f32 to vector<1x128xf32>
    %705 = arith.addf %704, %703 : vector<1x128xf32>
    %706 = arith.divf %704, %705 : vector<1x128xf32>
    %707 = vector.extract_strided_slice %700 {offsets = [0, 128], sizes = [1, 128], strides = [1, 1]} : vector<1x512xf32> to vector<1x128xf32>
    %708 = arith.negf %707 : vector<1x128xf32>
    %709 = math.exp %708 : vector<1x128xf32>
    %cst_190 = arith.constant 1.000000e+00 : f32
    %710 = vector.broadcast %cst_190 : f32 to vector<1x128xf32>
    %711 = arith.addf %710, %709 : vector<1x128xf32>
    %712 = arith.divf %710, %711 : vector<1x128xf32>
    %713 = vector.extract_strided_slice %700 {offsets = [0, 256], sizes = [1, 128], strides = [1, 1]} : vector<1x512xf32> to vector<1x128xf32>
    %714 = math.tanh %713 : vector<1x128xf32>
    %715 = vector.extract_strided_slice %700 {offsets = [0, 384], sizes = [1, 128], strides = [1, 1]} : vector<1x512xf32> to vector<1x128xf32>
    %716 = arith.negf %715 : vector<1x128xf32>
    %717 = math.exp %716 : vector<1x128xf32>
    %cst_191 = arith.constant 1.000000e+00 : f32
    %718 = vector.broadcast %cst_191 : f32 to vector<1x128xf32>
    %719 = arith.addf %718, %717 : vector<1x128xf32>
    %720 = arith.divf %718, %719 : vector<1x128xf32>
    %721 = arith.mulf %712, %665 : vector<1x128xf32>
    %722 = arith.mulf %706, %714 : vector<1x128xf32>
    %723 = arith.addf %721, %722 : vector<1x128xf32>
    %724 = math.tanh %723 : vector<1x128xf32>
    %725 = arith.mulf %720, %724 : vector<1x128xf32>
    %726 = vector.extract_strided_slice %520 {offsets = [4, 0], sizes = [1, 512], strides = [1, 1]} : vector<8x512xf32> to vector<1x512xf32>
    %cst_192 = arith.constant dense<0.000000e+00> : vector<1x512xf32>
    %727 = tpu.matmul %695, %522, %cst_192 {dimension_numbers = #tpu.dot_dimension_numbers<[1], [0], [0], [1], [0, 0, 1, 1], [], []>} : vector<1x128xf32>, vector<128x512xf32>, vector<1x512xf32> -> vector<1x512xf32>
    %728 = arith.addf %726, %727 : vector<1x512xf32>
    %729 = vector.extract_strided_slice %728 {offsets = [0, 0], sizes = [1, 128], strides = [1, 1]} : vector<1x512xf32> to vector<1x128xf32>
    %730 = arith.negf %729 : vector<1x128xf32>
    %731 = math.exp %730 : vector<1x128xf32>
    %cst_193 = arith.constant 1.000000e+00 : f32
    %732 = vector.broadcast %cst_193 : f32 to vector<1x128xf32>
    %733 = arith.addf %732, %731 : vector<1x128xf32>
    %734 = arith.divf %732, %733 : vector<1x128xf32>
    %735 = vector.extract_strided_slice %728 {offsets = [0, 128], sizes = [1, 128], strides = [1, 1]} : vector<1x512xf32> to vector<1x128xf32>
    %736 = arith.negf %735 : vector<1x128xf32>
    %737 = math.exp %736 : vector<1x128xf32>
    %cst_194 = arith.constant 1.000000e+00 : f32
    %738 = vector.broadcast %cst_194 : f32 to vector<1x128xf32>
    %739 = arith.addf %738, %737 : vector<1x128xf32>
    %740 = arith.divf %738, %739 : vector<1x128xf32>
    %741 = vector.extract_strided_slice %728 {offsets = [0, 256], sizes = [1, 128], strides = [1, 1]} : vector<1x512xf32> to vector<1x128xf32>
    %742 = math.tanh %741 : vector<1x128xf32>
    %743 = vector.extract_strided_slice %728 {offsets = [0, 384], sizes = [1, 128], strides = [1, 1]} : vector<1x512xf32> to vector<1x128xf32>
    %744 = arith.negf %743 : vector<1x128xf32>
    %745 = math.exp %744 : vector<1x128xf32>
    %cst_195 = arith.constant 1.000000e+00 : f32
    %746 = vector.broadcast %cst_195 : f32 to vector<1x128xf32>
    %747 = arith.addf %746, %745 : vector<1x128xf32>
    %748 = arith.divf %746, %747 : vector<1x128xf32>
    %749 = arith.mulf %740, %693 : vector<1x128xf32>
    %750 = arith.mulf %734, %742 : vector<1x128xf32>
    %751 = arith.addf %749, %750 : vector<1x128xf32>
    %752 = math.tanh %751 : vector<1x128xf32>
    %753 = arith.mulf %748, %752 : vector<1x128xf32>
    %c3_196 = arith.constant 3 : index
    %c0_197 = arith.constant 0 : index
    %754 = vector.load %arg19[%c3_196, %c0_197] : memref<8x256xf32, #tpu.memory_space<vmem>>, vector<1x128xf32>
    tpu.vector_store %arg19[%c3_196, %c0_197], %725 {strides = array<i32>} : memref<8x256xf32, #tpu.memory_space<vmem>>, vector<1x128xf32>,
    %c4_198 = arith.constant 4 : index
    %c128_199 = arith.constant 128 : index
    %755 = vector.load %arg19[%c4_198, %c128_199] : memref<8x256xf32, #tpu.memory_space<vmem>>, vector<1x128xf32>
    tpu.vector_store %arg19[%c4_198, %c128_199], %753 {strides = array<i32>} : memref<8x256xf32, #tpu.memory_space<vmem>>, vector<1x128xf32>,
    %756 = vector.extract_strided_slice %515 {offsets = [4, 0], sizes = [1, 512], strides = [1, 1]} : vector<8x512xf32> to vector<1x512xf32>
    %cst_200 = arith.constant dense<0.000000e+00> : vector<1x512xf32>
    %757 = tpu.matmul %725, %521, %cst_200 {dimension_numbers = #tpu.dot_dimension_numbers<[1], [0], [0], [1], [0, 0, 1, 1], [], []>} : vector<1x128xf32>, vector<128x512xf32>, vector<1x512xf32> -> vector<1x512xf32>
    %758 = arith.addf %756, %757 : vector<1x512xf32>
    %759 = vector.extract_strided_slice %758 {offsets = [0, 0], sizes = [1, 128], strides = [1, 1]} : vector<1x512xf32> to vector<1x128xf32>
    %760 = arith.negf %759 : vector<1x128xf32>
    %761 = math.exp %760 : vector<1x128xf32>
    %cst_201 = arith.constant 1.000000e+00 : f32
    %762 = vector.broadcast %cst_201 : f32 to vector<1x128xf32>
    %763 = arith.addf %762, %761 : vector<1x128xf32>
    %764 = arith.divf %762, %763 : vector<1x128xf32>
    %765 = vector.extract_strided_slice %758 {offsets = [0, 128], sizes = [1, 128], strides = [1, 1]} : vector<1x512xf32> to vector<1x128xf32>
    %766 = arith.negf %765 : vector<1x128xf32>
    %767 = math.exp %766 : vector<1x128xf32>
    %cst_202 = arith.constant 1.000000e+00 : f32
    %768 = vector.broadcast %cst_202 : f32 to vector<1x128xf32>
    %769 = arith.addf %768, %767 : vector<1x128xf32>
    %770 = arith.divf %768, %769 : vector<1x128xf32>
    %771 = vector.extract_strided_slice %758 {offsets = [0, 256], sizes = [1, 128], strides = [1, 1]} : vector<1x512xf32> to vector<1x128xf32>
    %772 = math.tanh %771 : vector<1x128xf32>
    %773 = vector.extract_strided_slice %758 {offsets = [0, 384], sizes = [1, 128], strides = [1, 1]} : vector<1x512xf32> to vector<1x128xf32>
    %774 = arith.negf %773 : vector<1x128xf32>
    %775 = math.exp %774 : vector<1x128xf32>
    %cst_203 = arith.constant 1.000000e+00 : f32
    %776 = vector.broadcast %cst_203 : f32 to vector<1x128xf32>
    %777 = arith.addf %776, %775 : vector<1x128xf32>
    %778 = arith.divf %776, %777 : vector<1x128xf32>
    %779 = arith.mulf %770, %723 : vector<1x128xf32>
    %780 = arith.mulf %764, %772 : vector<1x128xf32>
    %781 = arith.addf %779, %780 : vector<1x128xf32>
    %782 = math.tanh %781 : vector<1x128xf32>
    %783 = arith.mulf %778, %782 : vector<1x128xf32>
    %784 = vector.extract_strided_slice %520 {offsets = [3, 0], sizes = [1, 512], strides = [1, 1]} : vector<8x512xf32> to vector<1x512xf32>
    %cst_204 = arith.constant dense<0.000000e+00> : vector<1x512xf32>
    %785 = tpu.matmul %753, %522, %cst_204 {dimension_numbers = #tpu.dot_dimension_numbers<[1], [0], [0], [1], [0, 0, 1, 1], [], []>} : vector<1x128xf32>, vector<128x512xf32>, vector<1x512xf32> -> vector<1x512xf32>
    %786 = arith.addf %784, %785 : vector<1x512xf32>
    %787 = vector.extract_strided_slice %786 {offsets = [0, 0], sizes = [1, 128], strides = [1, 1]} : vector<1x512xf32> to vector<1x128xf32>
    %788 = arith.negf %787 : vector<1x128xf32>
    %789 = math.exp %788 : vector<1x128xf32>
    %cst_205 = arith.constant 1.000000e+00 : f32
    %790 = vector.broadcast %cst_205 : f32 to vector<1x128xf32>
    %791 = arith.addf %790, %789 : vector<1x128xf32>
    %792 = arith.divf %790, %791 : vector<1x128xf32>
    %793 = vector.extract_strided_slice %786 {offsets = [0, 128], sizes = [1, 128], strides = [1, 1]} : vector<1x512xf32> to vector<1x128xf32>
    %794 = arith.negf %793 : vector<1x128xf32>
    %795 = math.exp %794 : vector<1x128xf32>
    %cst_206 = arith.constant 1.000000e+00 : f32
    %796 = vector.broadcast %cst_206 : f32 to vector<1x128xf32>
    %797 = arith.addf %796, %795 : vector<1x128xf32>
    %798 = arith.divf %796, %797 : vector<1x128xf32>
    %799 = vector.extract_strided_slice %786 {offsets = [0, 256], sizes = [1, 128], strides = [1, 1]} : vector<1x512xf32> to vector<1x128xf32>
    %800 = math.tanh %799 : vector<1x128xf32>
    %801 = vector.extract_strided_slice %786 {offsets = [0, 384], sizes = [1, 128], strides = [1, 1]} : vector<1x512xf32> to vector<1x128xf32>
    %802 = arith.negf %801 : vector<1x128xf32>
    %803 = math.exp %802 : vector<1x128xf32>
    %cst_207 = arith.constant 1.000000e+00 : f32
    %804 = vector.broadcast %cst_207 : f32 to vector<1x128xf32>
    %805 = arith.addf %804, %803 : vector<1x128xf32>
    %806 = arith.divf %804, %805 : vector<1x128xf32>
    %807 = arith.mulf %798, %751 : vector<1x128xf32>
    %808 = arith.mulf %792, %800 : vector<1x128xf32>
    %809 = arith.addf %807, %808 : vector<1x128xf32>
    %810 = math.tanh %809 : vector<1x128xf32>
    %811 = arith.mulf %806, %810 : vector<1x128xf32>
    %c4_208 = arith.constant 4 : index
    %c0_209 = arith.constant 0 : index
    %812 = vector.load %arg19[%c4_208, %c0_209] : memref<8x256xf32, #tpu.memory_space<vmem>>, vector<1x128xf32>
    tpu.vector_store %arg19[%c4_208, %c0_209], %783 {strides = array<i32>} : memref<8x256xf32, #tpu.memory_space<vmem>>, vector<1x128xf32>,
    %c3_210 = arith.constant 3 : index
    %c128_211 = arith.constant 128 : index
    %813 = vector.load %arg19[%c3_210, %c128_211] : memref<8x256xf32, #tpu.memory_space<vmem>>, vector<1x128xf32>
    tpu.vector_store %arg19[%c3_210, %c128_211], %811 {strides = array<i32>} : memref<8x256xf32, #tpu.memory_space<vmem>>, vector<1x128xf32>,
    %814 = vector.extract_strided_slice %515 {offsets = [5, 0], sizes = [1, 512], strides = [1, 1]} : vector<8x512xf32> to vector<1x512xf32>
    %cst_212 = arith.constant dense<0.000000e+00> : vector<1x512xf32>
    %815 = tpu.matmul %783, %521, %cst_212 {dimension_numbers = #tpu.dot_dimension_numbers<[1], [0], [0], [1], [0, 0, 1, 1], [], []>} : vector<1x128xf32>, vector<128x512xf32>, vector<1x512xf32> -> vector<1x512xf32>
    %816 = arith.addf %814, %815 : vector<1x512xf32>
    %817 = vector.extract_strided_slice %816 {offsets = [0, 0], sizes = [1, 128], strides = [1, 1]} : vector<1x512xf32> to vector<1x128xf32>
    %818 = arith.negf %817 : vector<1x128xf32>
    %819 = math.exp %818 : vector<1x128xf32>
    %cst_213 = arith.constant 1.000000e+00 : f32
    %820 = vector.broadcast %cst_213 : f32 to vector<1x128xf32>
    %821 = arith.addf %820, %819 : vector<1x128xf32>
    %822 = arith.divf %820, %821 : vector<1x128xf32>
    %823 = vector.extract_strided_slice %816 {offsets = [0, 128], sizes = [1, 128], strides = [1, 1]} : vector<1x512xf32> to vector<1x128xf32>
    %824 = arith.negf %823 : vector<1x128xf32>
    %825 = math.exp %824 : vector<1x128xf32>
    %cst_214 = arith.constant 1.000000e+00 : f32
    %826 = vector.broadcast %cst_214 : f32 to vector<1x128xf32>
    %827 = arith.addf %826, %825 : vector<1x128xf32>
    %828 = arith.divf %826, %827 : vector<1x128xf32>
    %829 = vector.extract_strided_slice %816 {offsets = [0, 256], sizes = [1, 128], strides = [1, 1]} : vector<1x512xf32> to vector<1x128xf32>
    %830 = math.tanh %829 : vector<1x128xf32>
    %831 = vector.extract_strided_slice %816 {offsets = [0, 384], sizes = [1, 128], strides = [1, 1]} : vector<1x512xf32> to vector<1x128xf32>
    %832 = arith.negf %831 : vector<1x128xf32>
    %833 = math.exp %832 : vector<1x128xf32>
    %cst_215 = arith.constant 1.000000e+00 : f32
    %834 = vector.broadcast %cst_215 : f32 to vector<1x128xf32>
    %835 = arith.addf %834, %833 : vector<1x128xf32>
    %836 = arith.divf %834, %835 : vector<1x128xf32>
    %837 = arith.mulf %828, %781 : vector<1x128xf32>
    %838 = arith.mulf %822, %830 : vector<1x128xf32>
    %839 = arith.addf %837, %838 : vector<1x128xf32>
    %840 = math.tanh %839 : vector<1x128xf32>
    %841 = arith.mulf %836, %840 : vector<1x128xf32>
    %842 = vector.extract_strided_slice %520 {offsets = [2, 0], sizes = [1, 512], strides = [1, 1]} : vector<8x512xf32> to vector<1x512xf32>
    %cst_216 = arith.constant dense<0.000000e+00> : vector<1x512xf32>
    %843 = tpu.matmul %811, %522, %cst_216 {dimension_numbers = #tpu.dot_dimension_numbers<[1], [0], [0], [1], [0, 0, 1, 1], [], []>} : vector<1x128xf32>, vector<128x512xf32>, vector<1x512xf32> -> vector<1x512xf32>
    %844 = arith.addf %842, %843 : vector<1x512xf32>
    %845 = vector.extract_strided_slice %844 {offsets = [0, 0], sizes = [1, 128], strides = [1, 1]} : vector<1x512xf32> to vector<1x128xf32>
    %846 = arith.negf %845 : vector<1x128xf32>
    %847 = math.exp %846 : vector<1x128xf32>
    %cst_217 = arith.constant 1.000000e+00 : f32
    %848 = vector.broadcast %cst_217 : f32 to vector<1x128xf32>
    %849 = arith.addf %848, %847 : vector<1x128xf32>
    %850 = arith.divf %848, %849 : vector<1x128xf32>
    %851 = vector.extract_strided_slice %844 {offsets = [0, 128], sizes = [1, 128], strides = [1, 1]} : vector<1x512xf32> to vector<1x128xf32>
    %852 = arith.negf %851 : vector<1x128xf32>
    %853 = math.exp %852 : vector<1x128xf32>
    %cst_218 = arith.constant 1.000000e+00 : f32
    %854 = vector.broadcast %cst_218 : f32 to vector<1x128xf32>
    %855 = arith.addf %854, %853 : vector<1x128xf32>
    %856 = arith.divf %854, %855 : vector<1x128xf32>
    %857 = vector.extract_strided_slice %844 {offsets = [0, 256], sizes = [1, 128], strides = [1, 1]} : vector<1x512xf32> to vector<1x128xf32>
    %858 = math.tanh %857 : vector<1x128xf32>
    %859 = vector.extract_strided_slice %844 {offsets = [0, 384], sizes = [1, 128], strides = [1, 1]} : vector<1x512xf32> to vector<1x128xf32>
    %860 = arith.negf %859 : vector<1x128xf32>
    %861 = math.exp %860 : vector<1x128xf32>
    %cst_219 = arith.constant 1.000000e+00 : f32
    %862 = vector.broadcast %cst_219 : f32 to vector<1x128xf32>
    %863 = arith.addf %862, %861 : vector<1x128xf32>
    %864 = arith.divf %862, %863 : vector<1x128xf32>
    %865 = arith.mulf %856, %809 : vector<1x128xf32>
    %866 = arith.mulf %850, %858 : vector<1x128xf32>
    %867 = arith.addf %865, %866 : vector<1x128xf32>
    %868 = math.tanh %867 : vector<1x128xf32>
    %869 = arith.mulf %864, %868 : vector<1x128xf32>
    %c5_220 = arith.constant 5 : index
    %c0_221 = arith.constant 0 : index
    %870 = vector.load %arg19[%c5_220, %c0_221] : memref<8x256xf32, #tpu.memory_space<vmem>>, vector<1x128xf32>
    tpu.vector_store %arg19[%c5_220, %c0_221], %841 {strides = array<i32>} : memref<8x256xf32, #tpu.memory_space<vmem>>, vector<1x128xf32>,
    %c2_222 = arith.constant 2 : index
    %c128_223 = arith.constant 128 : index
    %871 = vector.load %arg19[%c2_222, %c128_223] : memref<8x256xf32, #tpu.memory_space<vmem>>, vector<1x128xf32>
    tpu.vector_store %arg19[%c2_222, %c128_223], %869 {strides = array<i32>} : memref<8x256xf32, #tpu.memory_space<vmem>>, vector<1x128xf32>,
    %872 = vector.extract_strided_slice %515 {offsets = [6, 0], sizes = [1, 512], strides = [1, 1]} : vector<8x512xf32> to vector<1x512xf32>
    %cst_224 = arith.constant dense<0.000000e+00> : vector<1x512xf32>
    %873 = tpu.matmul %841, %521, %cst_224 {dimension_numbers = #tpu.dot_dimension_numbers<[1], [0], [0], [1], [0, 0, 1, 1], [], []>} : vector<1x128xf32>, vector<128x512xf32>, vector<1x512xf32> -> vector<1x512xf32>
    %874 = arith.addf %872, %873 : vector<1x512xf32>
    %875 = vector.extract_strided_slice %874 {offsets = [0, 0], sizes = [1, 128], strides = [1, 1]} : vector<1x512xf32> to vector<1x128xf32>
    %876 = arith.negf %875 : vector<1x128xf32>
    %877 = math.exp %876 : vector<1x128xf32>
    %cst_225 = arith.constant 1.000000e+00 : f32
    %878 = vector.broadcast %cst_225 : f32 to vector<1x128xf32>
    %879 = arith.addf %878, %877 : vector<1x128xf32>
    %880 = arith.divf %878, %879 : vector<1x128xf32>
    %881 = vector.extract_strided_slice %874 {offsets = [0, 128], sizes = [1, 128], strides = [1, 1]} : vector<1x512xf32> to vector<1x128xf32>
    %882 = arith.negf %881 : vector<1x128xf32>
    %883 = math.exp %882 : vector<1x128xf32>
    %cst_226 = arith.constant 1.000000e+00 : f32
    %884 = vector.broadcast %cst_226 : f32 to vector<1x128xf32>
    %885 = arith.addf %884, %883 : vector<1x128xf32>
    %886 = arith.divf %884, %885 : vector<1x128xf32>
    %887 = vector.extract_strided_slice %874 {offsets = [0, 256], sizes = [1, 128], strides = [1, 1]} : vector<1x512xf32> to vector<1x128xf32>
    %888 = math.tanh %887 : vector<1x128xf32>
    %889 = vector.extract_strided_slice %874 {offsets = [0, 384], sizes = [1, 128], strides = [1, 1]} : vector<1x512xf32> to vector<1x128xf32>
    %890 = arith.negf %889 : vector<1x128xf32>
    %891 = math.exp %890 : vector<1x128xf32>
    %cst_227 = arith.constant 1.000000e+00 : f32
    %892 = vector.broadcast %cst_227 : f32 to vector<1x128xf32>
    %893 = arith.addf %892, %891 : vector<1x128xf32>
    %894 = arith.divf %892, %893 : vector<1x128xf32>
    %895 = arith.mulf %886, %839 : vector<1x128xf32>
    %896 = arith.mulf %880, %888 : vector<1x128xf32>
    %897 = arith.addf %895, %896 : vector<1x128xf32>
    %898 = math.tanh %897 : vector<1x128xf32>
    %899 = arith.mulf %894, %898 : vector<1x128xf32>
    %900 = vector.extract_strided_slice %520 {offsets = [1, 0], sizes = [1, 512], strides = [1, 1]} : vector<8x512xf32> to vector<1x512xf32>
    %cst_228 = arith.constant dense<0.000000e+00> : vector<1x512xf32>
    %901 = tpu.matmul %869, %522, %cst_228 {dimension_numbers = #tpu.dot_dimension_numbers<[1], [0], [0], [1], [0, 0, 1, 1], [], []>} : vector<1x128xf32>, vector<128x512xf32>, vector<1x512xf32> -> vector<1x512xf32>
    %902 = arith.addf %900, %901 : vector<1x512xf32>
    %903 = vector.extract_strided_slice %902 {offsets = [0, 0], sizes = [1, 128], strides = [1, 1]} : vector<1x512xf32> to vector<1x128xf32>
    %904 = arith.negf %903 : vector<1x128xf32>
    %905 = math.exp %904 : vector<1x128xf32>
    %cst_229 = arith.constant 1.000000e+00 : f32
    %906 = vector.broadcast %cst_229 : f32 to vector<1x128xf32>
    %907 = arith.addf %906, %905 : vector<1x128xf32>
    %908 = arith.divf %906, %907 : vector<1x128xf32>
    %909 = vector.extract_strided_slice %902 {offsets = [0, 128], sizes = [1, 128], strides = [1, 1]} : vector<1x512xf32> to vector<1x128xf32>
    %910 = arith.negf %909 : vector<1x128xf32>
    %911 = math.exp %910 : vector<1x128xf32>
    %cst_230 = arith.constant 1.000000e+00 : f32
    %912 = vector.broadcast %cst_230 : f32 to vector<1x128xf32>
    %913 = arith.addf %912, %911 : vector<1x128xf32>
    %914 = arith.divf %912, %913 : vector<1x128xf32>
    %915 = vector.extract_strided_slice %902 {offsets = [0, 256], sizes = [1, 128], strides = [1, 1]} : vector<1x512xf32> to vector<1x128xf32>
    %916 = math.tanh %915 : vector<1x128xf32>
    %917 = vector.extract_strided_slice %902 {offsets = [0, 384], sizes = [1, 128], strides = [1, 1]} : vector<1x512xf32> to vector<1x128xf32>
    %918 = arith.negf %917 : vector<1x128xf32>
    %919 = math.exp %918 : vector<1x128xf32>
    %cst_231 = arith.constant 1.000000e+00 : f32
    %920 = vector.broadcast %cst_231 : f32 to vector<1x128xf32>
    %921 = arith.addf %920, %919 : vector<1x128xf32>
    %922 = arith.divf %920, %921 : vector<1x128xf32>
    %923 = arith.mulf %914, %867 : vector<1x128xf32>
    %924 = arith.mulf %908, %916 : vector<1x128xf32>
    %925 = arith.addf %923, %924 : vector<1x128xf32>
    %926 = math.tanh %925 : vector<1x128xf32>
    %927 = arith.mulf %922, %926 : vector<1x128xf32>
    %c6_232 = arith.constant 6 : index
    %c0_233 = arith.constant 0 : index
    %928 = vector.load %arg19[%c6_232, %c0_233] : memref<8x256xf32, #tpu.memory_space<vmem>>, vector<1x128xf32>
    tpu.vector_store %arg19[%c6_232, %c0_233], %899 {strides = array<i32>} : memref<8x256xf32, #tpu.memory_space<vmem>>, vector<1x128xf32>,
    %c1_234 = arith.constant 1 : index
    %c128_235 = arith.constant 128 : index
    %929 = vector.load %arg19[%c1_234, %c128_235] : memref<8x256xf32, #tpu.memory_space<vmem>>, vector<1x128xf32>
    tpu.vector_store %arg19[%c1_234, %c128_235], %927 {strides = array<i32>} : memref<8x256xf32, #tpu.memory_space<vmem>>, vector<1x128xf32>,
    %930 = vector.extract_strided_slice %515 {offsets = [7, 0], sizes = [1, 512], strides = [1, 1]} : vector<8x512xf32> to vector<1x512xf32>
    %cst_236 = arith.constant dense<0.000000e+00> : vector<1x512xf32>
    %931 = tpu.matmul %899, %521, %cst_236 {dimension_numbers = #tpu.dot_dimension_numbers<[1], [0], [0], [1], [0, 0, 1, 1], [], []>} : vector<1x128xf32>, vector<128x512xf32>, vector<1x512xf32> -> vector<1x512xf32>
    %932 = arith.addf %930, %931 : vector<1x512xf32>
    %933 = vector.extract_strided_slice %932 {offsets = [0, 0], sizes = [1, 128], strides = [1, 1]} : vector<1x512xf32> to vector<1x128xf32>
    %934 = arith.negf %933 : vector<1x128xf32>
    %935 = math.exp %934 : vector<1x128xf32>
    %cst_237 = arith.constant 1.000000e+00 : f32
    %936 = vector.broadcast %cst_237 : f32 to vector<1x128xf32>
    %937 = arith.addf %936, %935 : vector<1x128xf32>
    %938 = arith.divf %936, %937 : vector<1x128xf32>
    %939 = vector.extract_strided_slice %932 {offsets = [0, 128], sizes = [1, 128], strides = [1, 1]} : vector<1x512xf32> to vector<1x128xf32>
    %940 = arith.negf %939 : vector<1x128xf32>
    %941 = math.exp %940 : vector<1x128xf32>
    %cst_238 = arith.constant 1.000000e+00 : f32
    %942 = vector.broadcast %cst_238 : f32 to vector<1x128xf32>
    %943 = arith.addf %942, %941 : vector<1x128xf32>
    %944 = arith.divf %942, %943 : vector<1x128xf32>
    %945 = vector.extract_strided_slice %932 {offsets = [0, 256], sizes = [1, 128], strides = [1, 1]} : vector<1x512xf32> to vector<1x128xf32>
    %946 = math.tanh %945 : vector<1x128xf32>
    %947 = vector.extract_strided_slice %932 {offsets = [0, 384], sizes = [1, 128], strides = [1, 1]} : vector<1x512xf32> to vector<1x128xf32>
    %948 = arith.negf %947 : vector<1x128xf32>
    %949 = math.exp %948 : vector<1x128xf32>
    %cst_239 = arith.constant 1.000000e+00 : f32
    %950 = vector.broadcast %cst_239 : f32 to vector<1x128xf32>
    %951 = arith.addf %950, %949 : vector<1x128xf32>
    %952 = arith.divf %950, %951 : vector<1x128xf32>
    %953 = arith.mulf %944, %897 : vector<1x128xf32>
    %954 = arith.mulf %938, %946 : vector<1x128xf32>
    %955 = arith.addf %953, %954 : vector<1x128xf32>
    %956 = math.tanh %955 : vector<1x128xf32>
    %957 = arith.mulf %952, %956 : vector<1x128xf32>
    %958 = vector.extract_strided_slice %520 {offsets = [0, 0], sizes = [1, 512], strides = [1, 1]} : vector<8x512xf32> to vector<1x512xf32>
    %cst_240 = arith.constant dense<0.000000e+00> : vector<1x512xf32>
    %959 = tpu.matmul %927, %522, %cst_240 {dimension_numbers = #tpu.dot_dimension_numbers<[1], [0], [0], [1], [0, 0, 1, 1], [], []>} : vector<1x128xf32>, vector<128x512xf32>, vector<1x512xf32> -> vector<1x512xf32>
    %960 = arith.addf %958, %959 : vector<1x512xf32>
    %961 = vector.extract_strided_slice %960 {offsets = [0, 0], sizes = [1, 128], strides = [1, 1]} : vector<1x512xf32> to vector<1x128xf32>
    %962 = arith.negf %961 : vector<1x128xf32>
    %963 = math.exp %962 : vector<1x128xf32>
    %cst_241 = arith.constant 1.000000e+00 : f32
    %964 = vector.broadcast %cst_241 : f32 to vector<1x128xf32>
    %965 = arith.addf %964, %963 : vector<1x128xf32>
    %966 = arith.divf %964, %965 : vector<1x128xf32>
    %967 = vector.extract_strided_slice %960 {offsets = [0, 128], sizes = [1, 128], strides = [1, 1]} : vector<1x512xf32> to vector<1x128xf32>
    %968 = arith.negf %967 : vector<1x128xf32>
    %969 = math.exp %968 : vector<1x128xf32>
    %cst_242 = arith.constant 1.000000e+00 : f32
    %970 = vector.broadcast %cst_242 : f32 to vector<1x128xf32>
    %971 = arith.addf %970, %969 : vector<1x128xf32>
    %972 = arith.divf %970, %971 : vector<1x128xf32>
    %973 = vector.extract_strided_slice %960 {offsets = [0, 256], sizes = [1, 128], strides = [1, 1]} : vector<1x512xf32> to vector<1x128xf32>
    %974 = math.tanh %973 : vector<1x128xf32>
    %975 = vector.extract_strided_slice %960 {offsets = [0, 384], sizes = [1, 128], strides = [1, 1]} : vector<1x512xf32> to vector<1x128xf32>
    %976 = arith.negf %975 : vector<1x128xf32>
    %977 = math.exp %976 : vector<1x128xf32>
    %cst_243 = arith.constant 1.000000e+00 : f32
    %978 = vector.broadcast %cst_243 : f32 to vector<1x128xf32>
    %979 = arith.addf %978, %977 : vector<1x128xf32>
    %980 = arith.divf %978, %979 : vector<1x128xf32>
    %981 = arith.mulf %972, %925 : vector<1x128xf32>
    %982 = arith.mulf %966, %974 : vector<1x128xf32>
    %983 = arith.addf %981, %982 : vector<1x128xf32>
    %984 = math.tanh %983 : vector<1x128xf32>
    %985 = arith.mulf %980, %984 : vector<1x128xf32>
    %c7_244 = arith.constant 7 : index
    %c0_245 = arith.constant 0 : index
    %986 = vector.load %arg19[%c7_244, %c0_245] : memref<8x256xf32, #tpu.memory_space<vmem>>, vector<1x128xf32>
    tpu.vector_store %arg19[%c7_244, %c0_245], %957 {strides = array<i32>} : memref<8x256xf32, #tpu.memory_space<vmem>>, vector<1x128xf32>,
    %c0_246 = arith.constant 0 : index
    %c128_247 = arith.constant 128 : index
    %987 = vector.load %arg19[%c0_246, %c128_247] : memref<8x256xf32, #tpu.memory_space<vmem>>, vector<1x128xf32>
    tpu.vector_store %arg19[%c0_246, %c128_247], %985 {strides = array<i32>} : memref<8x256xf32, #tpu.memory_space<vmem>>, vector<1x128xf32>,
    %c0_248 = arith.constant 0 : index
    %c0_249 = arith.constant 0 : index
    %988 = vector.load %arg19[%c0_248, %c0_249] : memref<8x256xf32, #tpu.memory_space<vmem>>, vector<8x256xf32>
    %c0_250 = arith.constant 0 : index
    %c0_251 = arith.constant 0 : index
    %989 = vector.load %arg14[%c0_250, %c0_251] : memref<256x128xf32, #tpu.memory_space<vmem>>, vector<256x128xf32>
    %cst_252 = arith.constant dense<0.000000e+00> : vector<8x128xf32>
    %990 = tpu.matmul %988, %989, %cst_252 {dimension_numbers = #tpu.dot_dimension_numbers<[1], [0], [0], [1], [0, 0, 1, 1], [], []>} : vector<8x256xf32>, vector<256x128xf32>, vector<8x128xf32> -> vector<8x128xf32>
    %c0_253 = arith.constant 0 : index
    %c0_254 = arith.constant 0 : index
    %991 = vector.load %arg15[%c0_253, %c0_254] : memref<1x128xf32, #tpu.memory_space<vmem>>, vector<1x128xf32>
    %992 = vector.broadcast %991 : vector<1x128xf32> to vector<8x128xf32>
    %993 = arith.addf %990, %992 : vector<8x128xf32>
    %cst_255 = arith.constant dense<0xFF800000> : vector<8xf32>
    %994 = vector.multi_reduction <maximumf>, %993, %cst_255 [1] : vector<8x128xf32> to vector<8xf32>
    %995 = vector.shape_cast %994 : vector<8xf32> to vector<8x1xf32>
    %996 = vector.broadcast %995 : vector<8x1xf32> to vector<8x128xf32>
    %997 = arith.subf %993, %996 : vector<8x128xf32>
    %998 = math.exp %997 : vector<8x128xf32>
    %cst_256 = arith.constant dense<0.000000e+00> : vector<8xf32>
    %999 = vector.multi_reduction <add>, %998, %cst_256 [1] : vector<8x128xf32> to vector<8xf32>
    %1000 = vector.shape_cast %999 : vector<8xf32> to vector<8x1xf32>
    %1001 = math.log %1000 : vector<8x1xf32>
    %1002 = arith.addf %1001, %995 : vector<8x1xf32>
    %1003 = vector.broadcast %1002 : vector<8x1xf32> to vector<8x128xf32>
    %1004 = arith.subf %993, %1003 : vector<8x128xf32>
    %c0_257 = arith.constant 0 : index
    %c0_258 = arith.constant 0 : index
    %1005 = vector.load %arg16[%c0_257, %c0_258] : memref<8x128xf32, #tpu.memory_space<vmem>>, vector<8x128xf32>
    tpu.vector_store %arg16[%c0_257, %c0_258], %1004 {strides = array<i32>} : memref<8x128xf32, #tpu.memory_space<vmem>>, vector<8x128xf32>,
    return
  }
}

</mosaic_0001>

<llo_original>
// kernel: tpu_custom_call.1
$region0: #{tpu_custom_call.1}
  #allocation0 [shape = 'u32[]', space=smem, size = 0x4, offset = 0x4, fixed_abs, tag = 'smem constant byte address 0x4 - core index']
  #allocation1 [shape = 'u32[144,128]{1,0:T(1,128)}', space=vmem, size = 0x12000, scoped, tag = 'internal scratch']
  #allocation2 [shape = 'f32[8,32]{1,0:T(8,128)}', space=vmem, size = 0x1000, scoped, tag = 'scratch operand']
  #allocation3 [shape = 'f32[8,256]{1,0:T(8,128)}', space=vmem, size = 0x2000, scoped, tag = 'scratch operand']
  #allocation4 [shape = 'f32[8,256]{1,0:T(8,128)}', space=vmem, size = 0x2000, scoped, tag = 'scratch operand']
  %s0 = inlined_call_operand.vmem [shape: s32[8], index: 0, kind: input, shape index: {}]
  %s1 = inlined_call_operand.vmem [shape: f32[100,32], index: 1, kind: input, shape index: {}]
  %s2 = inlined_call_operand.vmem [shape: f32[32,512], index: 2, kind: input, shape index: {}]
  %s3 = inlined_call_operand.hbm [shape: f32[128,512], index: 3, kind: input, shape index: {}]
  %s4 = inlined_call_operand.vmem [shape: f32[1,512], index: 4, kind: input, shape index: {}]
  %s5 = inlined_call_operand.hbm [shape: f32[32,512], index: 5, kind: input, shape index: {}]
  %s6 = inlined_call_operand.hbm [shape: f32[128,512], index: 6, kind: input, shape index: {}]
  %s7 = inlined_call_operand.vmem [shape: f32[1,512], index: 7, kind: input, shape index: {}]
  %s8 = inlined_call_operand.hbm [shape: f32[256,512], index: 8, kind: input, shape index: {}]
  %s9 = inlined_call_operand.hbm [shape: f32[128,512], index: 9, kind: input, shape index: {}]
  %s10 = inlined_call_operand.vmem [shape: f32[1,512], index: 10, kind: input, shape index: {}]
  %s11 = inlined_call_operand.hbm [shape: f32[256,512], index: 11, kind: input, shape index: {}]
  %s12 = inlined_call_operand.hbm [shape: f32[128,512], index: 12, kind: input, shape index: {}]
  %s13 = inlined_call_operand.vmem [shape: f32[1,512], index: 13, kind: input, shape index: {}]
  %s14 = inlined_call_operand.hbm [shape: f32[256,128], index: 14, kind: input, shape index: {}]
  %s15 = inlined_call_operand.vmem [shape: f32[1,128], index: 15, kind: input, shape index: {}]
  %s16 = inlined_call_operand.hbm [shape: f32[8,128], index: 16, kind: output, shape index: {}]
  %s17 = sld [smem:[#allocation0]]
  $region110: #{tpu_custom_call.1} parent=0
    _
  %s19 = ssub.s32 1, %s17
  %s20 = scalar_select 0, %s19, %s17
  $region1: #{tpu_custom_call.1} parent=0
    #allocation5 [shape = 'u8[512]{0}', space=smem, size = 0x200, scoped, tag = 'input window, operand 0, single buffered']
    #allocation6 [shape = 's32[1]{0}', space=sflag, size = 0x4, scoped, tag = 'scoped memory for tpu_custom_call.1']
    #allocation7 [shape = 's32[1]{0}', space=sflag, size = 0x4, scoped, tag = 'scoped memory for tpu_custom_call.1']
    #allocation8 [shape = 's32[1]{0}', space=sflag, size = 0x4, scoped, tag = 'scoped memory for tpu_custom_call.1']
    #allocation9 [shape = 'u8[262144]{0}', space=vmem, size = 0x40000, scoped, tag = 'input window, operand 3, single buffered']
    #allocation10 [shape = 'u8[65536]{0}', space=vmem, size = 0x10000, scoped, tag = 'input window, operand 5, single buffered']
    #allocation11 [shape = 's32[1]{0}', space=sflag, size = 0x4, scoped, tag = 'scoped memory for tpu_custom_call.1']
    #allocation12 [shape = 'u8[262144]{0}', space=vmem, size = 0x40000, scoped, tag = 'input window, operand 6, single buffered']
    #allocation13 [shape = 'u8[524288]{0}', space=vmem, size = 0x80000, scoped, tag = 'input window, operand 8, single buffered']
    #allocation14 [shape = 's32[1]{0}', space=sflag, size = 0x4, scoped, tag = 'scoped memory for tpu_custom_call.1']
    #allocation15 [shape = 'u8[262144]{0}', space=vmem, size = 0x40000, scoped, tag = 'input window, operand 9, single buffered']
    #allocation16 [shape = 'u8[524288]{0}', space=vmem, size = 0x80000, scoped, tag = 'input window, operand 11, single buffered']
    #allocation17 [shape = 's32[1]{0}', space=sflag, size = 0x4, scoped, tag = 'scoped memory for tpu_custom_call.1']
    #allocation18 [shape = 'u8[262144]{0}', space=vmem, size = 0x40000, scoped, tag = 'input window, operand 12, single buffered']
    #allocation19 [shape = 'u8[131072]{0}', space=vmem, size = 0x20000, scoped, tag = 'input window, operand 14, single buffered']
    #allocation20 [shape = 's32[1]{0}', space=sflag, size = 0x4, scoped, tag = 'scoped memory for tpu_custom_call.1']
    #allocation21 [shape = 'u8[4096]{0}', space=vmem, size = 0x1000, scoped, tag = 'output window, operand 0, single buffered']
    %21 = vsyncpa [#allocation8], 0
    %22 = vsyncpa [#allocation6], 0
    %23 = vsyncpa [#allocation11], 0
    %24 = vsyncpa [#allocation14], 0
    %25 = vsyncpa [#allocation17], 0
    %26 = vsyncpa [#allocation20], 0
    %27 = vsyncpa [#allocation7], 0
    // Predicated region
    $region2: #{tpu_custom_call.1} parent=1 // pred_check
      _
    $region3: #{tpu_custom_call.1} parent=1 // pred_check_branch
      %29 = sbr.rel (0) target = $region5
    $region4: #{tpu_custom_call.1} parent=1 // pred_region
      %s31 = ssub.s32 16, 16
      %32 = vsyncadd [#allocation8], %s31
      %s34 = sshll.u32 %s0, 4
      %s35 = int_to_ptr.vmem [resolvable:$true] %s34
      %37 = dma.vmem_to_smem %s35, 16, [#allocation5], [#allocation8]
    $region5: #{tpu_custom_call.1} parent=1 // pred_fallthru
      _
    // Predicated region
    $region6: #{tpu_custom_call.1} parent=1 // pred_check
      _
    $region7: #{tpu_custom_call.1} parent=1 // pred_check_branch
      %39 = sbr.rel (0) target = $region9
    $region8: #{tpu_custom_call.1} parent=1 // pred_region
      _
    $region9: #{tpu_custom_call.1} parent=1 // pred_fallthru
      _
    // Predicated region
    $region10: #{tpu_custom_call.1} parent=1 // pred_check
      _
    $region11: #{tpu_custom_call.1} parent=1 // pred_check_branch
      %41 = sbr.rel (0) target = $region13
    $region12: #{tpu_custom_call.1} parent=1 // pred_region
      _
    $region13: #{tpu_custom_call.1} parent=1 // pred_fallthru
      _
    // Predicated region
    $region14: #{tpu_custom_call.1} parent=1 // pred_check
      _
    $region15: #{tpu_custom_call.1} parent=1 // pred_check_branch
      %43 = sbr.rel (0) target = $region17
    $region16: #{tpu_custom_call.1} parent=1 // pred_region
      %s45 = ssub.s32 8192, 8192
      %46 = vsyncadd [#allocation6], %s45
      %s47 = sshll.u32 [#allocation9], 4
      %s48 = int_to_ptr.vmem [resolvable:$true] %s47
      %53 = dma.hbm_to_vmem [thread:$0]  %s3, 8192, %s48, [#allocation6], 512, 512, 32
    $region17: #{tpu_custom_call.1} parent=1 // pred_fallthru
      _
    // Predicated region
    $region18: #{tpu_custom_call.1} parent=1 // pred_check
      _
    $region19: #{tpu_custom_call.1} parent=1 // pred_check_branch
      %55 = sbr.rel (0) target = $region21
    $region20: #{tpu_custom_call.1} parent=1 // pred_region
      _
    $region21: #{tpu_custom_call.1} parent=1 // pred_fallthru
      _
    // Predicated region
    $region22: #{tpu_custom_call.1} parent=1 // pred_check
      _
    $region23: #{tpu_custom_call.1} parent=1 // pred_check_branch
      %57 = sbr.rel (0) target = $region25
    $region24: #{tpu_custom_call.1} parent=1 // pred_region
      %s59 = ssub.s32 2048, 2048
      %60 = vsyncadd [#allocation11], %s59
      %s61 = sshll.u32 [#allocation10], 4
      %s62 = int_to_ptr.vmem [resolvable:$true] %s61
      %67 = dma.hbm_to_vmem [thread:$0]  %s5, 2048, %s62, [#allocation11], 512, 512, 32
    $region25: #{tpu_custom_call.1} parent=1 // pred_fallthru
      _
    // Predicated region
    $region26: #{tpu_custom_call.1} parent=1 // pred_check
      _
    $region27: #{tpu_custom_call.1} parent=1 // pred_check_branch
      %69 = sbr.rel (0) target = $region29
    $region28: #{tpu_custom_call.1} parent=1 // pred_region
      %s71 = ssub.s32 8192, 8192
      %72 = vsyncadd [#allocation11], %s71
      %s73 = sshll.u32 [#allocation12], 4
      %s74 = int_to_ptr.vmem [resolvable:$true] %s73
      %79 = dma.hbm_to_vmem [thread:$0]  %s6, 8192, %s74, [#allocation11], 512, 512, 32
    $region29: #{tpu_custom_call.1} parent=1 // pred_fallthru
      _
    // Predicated region
    $region30: #{tpu_custom_call.1} parent=1 // pred_check
      _
    $region31: #{tpu_custom_call.1} parent=1 // pred_check_branch
      %81 = sbr.rel (0) target = $region33
    $region32: #{tpu_custom_call.1} parent=1 // pred_region
      _
    $region33: #{tpu_custom_call.1} parent=1 // pred_fallthru
      _
    // Predicated region
    $region34: #{tpu_custom_call.1} parent=1 // pred_check
      _
    $region35: #{tpu_custom_call.1} parent=1 // pred_check_branch
      %83 = sbr.rel (0) target = $region37
    $region36: #{tpu_custom_call.1} parent=1 // pred_region
      %s85 = ssub.s32 16384, 16384
      %86 = vsyncadd [#allocation14], %s85
      %s87 = sshll.u32 [#allocation13], 4
      %s88 = int_to_ptr.vmem [resolvable:$true] %s87
      %93 = dma.hbm_to_vmem [thread:$0]  %s8, 16384, %s88, [#allocation14], 512, 512, 32
    $region37: #{tpu_custom_call.1} parent=1 // pred_fallthru
      _
    // Predicated region
    $region38: #{tpu_custom_call.1} parent=1 // pred_check
      _
    $region39: #{tpu_custom_call.1} parent=1 // pred_check_branch
      %95 = sbr.rel (0) target = $region41
    $region40: #{tpu_custom_call.1} parent=1 // pred_region
      %s97 = ssub.s32 8192, 8192
      %98 = vsyncadd [#allocation14], %s97
      %s99 = sshll.u32 [#allocation15], 4
      %s100 = int_to_ptr.vmem [resolvable:$true] %s99
      %105 = dma.hbm_to_vmem [thread:$0]  %s9, 8192, %s100, [#allocation14], 512, 512, 32
    $region41: #{tpu_custom_call.1} parent=1 // pred_fallthru
      _
    // Predicated region
    $region42: #{tpu_custom_call.1} parent=1 // pred_check
      _
    $region43: #{tpu_custom_call.1} parent=1 // pred_check_branch
      %107 = sbr.rel (0) target = $region45
    $region44: #{tpu_custom_call.1} parent=1 // pred_region
      _
    $region45: #{tpu_custom_call.1} parent=1 // pred_fallthru
      _
    // Predicated region
    $region46: #{tpu_custom_call.1} parent=1 // pred_check
      _
    $region47: #{tpu_custom_call.1} parent=1 // pred_check_branch
      %109 = sbr.rel (0) target = $region49
    $region48: #{tpu_custom_call.1} parent=1 // pred_region
      %s111 = ssub.s32 16384, 16384
      %112 = vsyncadd [#allocation17], %s111
      %s113 = sshll.u32 [#allocation16], 4
      %s114 = int_to_ptr.vmem [resolvable:$true] %s113
      %119 = dma.hbm_to_vmem [thread:$0]  %s11, 16384, %s114, [#allocation17], 512, 512, 32
    $region49: #{tpu_custom_call.1} parent=1 // pred_fallthru
      _
    // Predicated region
    $region50: #{tpu_custom_call.1} parent=1 // pred_check
      _
    $region51: #{tpu_custom_call.1} parent=1 // pred_check_branch
      %121 = sbr.rel (0) target = $region53
    $region52: #{tpu_custom_call.1} parent=1 // pred_region
      %s123 = ssub.s32 8192, 8192
      %124 = vsyncadd [#allocation17], %s123
      %s125 = sshll.u32 [#allocation18], 4
      %s126 = int_to_ptr.vmem [resolvable:$true] %s125
      %131 = dma.hbm_to_vmem [thread:$0]  %s12, 8192, %s126, [#allocation17], 512, 512, 32
    $region53: #{tpu_custom_call.1} parent=1 // pred_fallthru
      _
    // Predicated region
    $region54: #{tpu_custom_call.1} parent=1 // pred_check
      _
    $region55: #{tpu_custom_call.1} parent=1 // pred_check_branch
      %133 = sbr.rel (0) target = $region57
    $region56: #{tpu_custom_call.1} parent=1 // pred_region
      _
    $region57: #{tpu_custom_call.1} parent=1 // pred_fallthru
      _
    // Predicated region
    $region58: #{tpu_custom_call.1} parent=1 // pred_check
      _
    $region59: #{tpu_custom_call.1} parent=1 // pred_check_branch
      %135 = sbr.rel (0) target = $region61
    $region60: #{tpu_custom_call.1} parent=1 // pred_region
      %s137 = ssub.s32 4096, 4096
      %138 = vsyncadd [#allocation20], %s137
      %s139 = sshll.u32 [#allocation19], 4
      %s140 = int_to_ptr.vmem [resolvable:$true] %s139
      %145 = dma.hbm_to_vmem [thread:$0]  %s14, 4096, %s140, [#allocation20], 128, 128, 8
    $region61: #{tpu_custom_call.1} parent=1 // pred_fallthru
      _
    // Predicated region
    $region62: #{tpu_custom_call.1} parent=1 // pred_check
      _
    $region63: #{tpu_custom_call.1} parent=1 // pred_check_branch
      %147 = sbr.rel (0) target = $region65
    $region64: #{tpu_custom_call.1} parent=1 // pred_region
      _
    $region65: #{tpu_custom_call.1} parent=1 // pred_fallthru
      _
    // Predicated region
    $region66: #{tpu_custom_call.1} parent=1 // pred_check
      _
    $region67: #{tpu_custom_call.1} parent=1 // pred_check_branch
      %149 = sbr.rel (0) target = $region69
    $region68: #{tpu_custom_call.1} parent=1 // pred_region
      %150 = dma.done [#allocation8], 16
    $region69: #{tpu_custom_call.1} parent=1 // pred_fallthru
      _
    // Predicated region
    $region70: #{tpu_custom_call.1} parent=1 // pred_check
      _
    $region71: #{tpu_custom_call.1} parent=1 // pred_check_branch
      %152 = sbr.rel (0) target = $region73
    $region72: #{tpu_custom_call.1} parent=1 // pred_region
      %153 = dma.done [#allocation6], 8192
    $region73: #{tpu_custom_call.1} parent=1 // pred_fallthru
      _
    // Predicated region
    $region74: #{tpu_custom_call.1} parent=1 // pred_check
      _
    $region75: #{tpu_custom_call.1} parent=1 // pred_check_branch
      %155 = sbr.rel (0) target = $region77
    $region76: #{tpu_custom_call.1} parent=1 // pred_region
      %156 = dma.done [#allocation11], 2048
    $region77: #{tpu_custom_call.1} parent=1 // pred_fallthru
      _
    // Predicated region
    $region78: #{tpu_custom_call.1} parent=1 // pred_check
      _
    $region79: #{tpu_custom_call.1} parent=1 // pred_check_branch
      %158 = sbr.rel (0) target = $region81
    $region80: #{tpu_custom_call.1} parent=1 // pred_region
      %159 = dma.done [#allocation11], 8192
    $region81: #{tpu_custom_call.1} parent=1 // pred_fallthru
      _
    // Predicated region
    $region82: #{tpu_custom_call.1} parent=1 // pred_check
      _
    $region83: #{tpu_custom_call.1} parent=1 // pred_check_branch
      %161 = sbr.rel (0) target = $region85
    $region84: #{tpu_custom_call.1} parent=1 // pred_region
      %162 = dma.done [#allocation14], 16384
    $region85: #{tpu_custom_call.1} parent=1 // pred_fallthru
      _
    // Predicated region
    $region86: #{tpu_custom_call.1} parent=1 // pred_check
      _
    $region87: #{tpu_custom_call.1} parent=1 // pred_check_branch
      %164 = sbr.rel (0) target = $region89
    $region88: #{tpu_custom_call.1} parent=1 // pred_region
      %165 = dma.done [#allocation14], 8192
    $region89: #{tpu_custom_call.1} parent=1 // pred_fallthru
      _
    // Predicated region
    $region90: #{tpu_custom_call.1} parent=1 // pred_check
      _
    $region91: #{tpu_custom_call.1} parent=1 // pred_check_branch
      %167 = sbr.rel (0) target = $region93
    $region92: #{tpu_custom_call.1} parent=1 // pred_region
      %168 = dma.done [#allocation17], 16384
    $region93: #{tpu_custom_call.1} parent=1 // pred_fallthru
      _
    // Predicated region
    $region94: #{tpu_custom_call.1} parent=1 // pred_check
      _
    $region95: #{tpu_custom_call.1} parent=1 // pred_check_branch
      %170 = sbr.rel (0) target = $region97
    $region96: #{tpu_custom_call.1} parent=1 // pred_region
      %171 = dma.done [#allocation17], 8192
    $region97: #{tpu_custom_call.1} parent=1 // pred_fallthru
      _
    // Predicated region
    $region98: #{tpu_custom_call.1} parent=1 // pred_check
      _
    $region99: #{tpu_custom_call.1} parent=1 // pred_check_branch
      %173 = sbr.rel (0) target = $region101
    $region100: #{tpu_custom_call.1} parent=1 // pred_region
      %174 = dma.done [#allocation20], 4096
    $region101: #{tpu_custom_call.1} parent=1 // pred_fallthru
      _
    %175 = sfence
    %s176 = sld [smem:[#allocation5]]
    %s177 = scalar_lea.vmem %s1, %s176
    %v178 = vld [vmem:[%s177] sm:$0x1]
    %vm179 = vcmask 253952
    %180 = vst.msk [vmem:[#allocation2] sm:$0x1] %vm179, %v178
    %s181 = sld [smem:[#allocation5 + $0x1]]
    %s182 = scalar_lea.vmem %s1, %s181
    %v183 = vld [vmem:[%s182] sm:$0x1]
    %184 = vst.msk [vmem:[#allocation2 + $0x1] sm:$0x1] %vm179, %v183
    %s185 = sld [smem:[#allocation5 + $0x2]]
    %s186 = scalar_lea.vmem %s1, %s185
    %v187 = vld [vmem:[%s186] sm:$0x1]
    %188 = vst.msk [vmem:[#allocation2 + $0x2] sm:$0x1] %vm179, %v187
    %s189 = sld [smem:[#allocation5 + $0x3]]
    %s190 = scalar_lea.vmem %s1, %s189
    %v191 = vld [vmem:[%s190] sm:$0x1]
    %192 = vst.msk [vmem:[#allocation2 + $0x3] sm:$0x1] %vm179, %v191
    %s193 = sld [smem:[#allocation5 + $0x4]]
    %s194 = scalar_lea.vmem %s1, %s193
    %v195 = vld [vmem:[%s194] sm:$0x1]
    %196 = vst.msk [vmem:[#allocation2 + $0x4] sm:$0x1] %vm179, %v195
    %s197 = sld [smem:[#allocation5 + $0x5]]
    %s198 = scalar_lea.vmem %s1, %s197
    %v199 = vld [vmem:[%s198] sm:$0x1]
    %200 = vst.msk [vmem:[#allocation2 + $0x5] sm:$0x1] %vm179, %v199
    %s201 = sld [smem:[#allocation5 + $0x6]]
    %s202 = scalar_lea.vmem %s1, %s201
    %v203 = vld [vmem:[%s202] sm:$0x1]
    %204 = vst.msk [vmem:[#allocation2 + $0x6] sm:$0x1] %vm179, %v203
    %s205 = sld [smem:[#allocation5 + $0x7]]
    %s206 = scalar_lea.vmem %s1, %s205
    %v207 = vld [vmem:[%s206] sm:$0x1]
    %208 = vst.msk [vmem:[#allocation2 + $0x7] sm:$0x1] %vm179, %v207
    %v209 = vld [vmem:[#allocation2] sm:$0xff]
    %v210 = vld [vmem:[%s2] sm:$0xff]
    %v211 = vld [vmem:[%s2 + $0x8] sm:$0xff]
    %v212 = vld [vmem:[%s2 + $0x10] sm:$0xff]
    %v213 = vld [vmem:[%s2 + $0x18] sm:$0xff]
    %v214 = vld [vmem:[%s2 + $0x20] sm:$0xff]
    %v215 = vld [vmem:[%s2 + $0x28] sm:$0xff]
    %v216 = vld [vmem:[%s2 + $0x30] sm:$0xff]
    %v217 = vld [vmem:[%s2 + $0x38] sm:$0xff]
    %v218 = vld [vmem:[%s2 + $0x40] sm:$0xff]
    %v219 = vld [vmem:[%s2 + $0x48] sm:$0xff]
    %v220 = vld [vmem:[%s2 + $0x50] sm:$0xff]
    %v221 = vld [vmem:[%s2 + $0x58] sm:$0xff]
    %v222 = vld [vmem:[%s2 + $0x60] sm:$0xff]
    %v223 = vld [vmem:[%s2 + $0x68] sm:$0xff]
    %v224 = vld [vmem:[%s2 + $0x70] sm:$0xff]
    %v225 = vld [vmem:[%s2 + $0x78] sm:$0xff]
    %v226 = vld [vmem:[%s4] sm:$0xf]
    %v228 = vlaneseq
    %v229 = vshrl.u32 %v228, 7
    %v230 = vsub.s32 0, %v229
    %v231 = vrot.slane %v226, %v230
    %v232 = vlaneseq
    %v233 = vshrl.u32 %v232, 7
    %v234 = vsub.s32 1, %v233
    %v235 = vrot.slane %v226, %v234
    %v236 = vlaneseq
    %v237 = vshrl.u32 %v236, 7
    %v238 = vsub.s32 2, %v237
    %v239 = vrot.slane %v226, %v238
    %v240 = vlaneseq
    %v241 = vshrl.u32 %v240, 7
    %v242 = vsub.s32 3, %v241
    %v243 = vrot.slane %v226, %v242
    %vm248 = vcmask 261120
    %v250 = vsel %vm248, %v209, 0
    %252 = vmatprep.subr.mxu0 %v211
    %253 = vmatpush1.msra.mxu0 %v210
    %254 = vmatprep.subr.mxu0 %v215
    %255 = vmatpush1.msra.mxu0 %v214
    %256 = vmatprep.subr.mxu0 %v219
    %257 = vmatpush1.msra.mxu0 %v218
    %258 = vmatprep.subr.mxu0 %v223
    %259 = vmatpush1.msra.mxu0 %v222
    %260 = vmatprep.subr.mxu0 0.0
    %261 = vmatpush1.msra.mxu0 0.0
    %262 = vmatprep.subr.mxu0 0.0
    %263 = vmatpush1.msra.mxu0 0.0
    %264 = vmatprep.subr.mxu0 0.0
    %265 = vmatpush1.msra.mxu0 0.0
    %266 = vmatprep.subr.mxu0 0.0
    %267 = vmatpush1.msra.mxu0 0.0
    %268 = vmatprep.subr.mxu0 0.0
    %269 = vmatpush1.msra.mxu0 0.0
    %270 = vmatprep.subr.mxu0 0.0
    %271 = vmatpush1.msra.mxu0 0.0
    %272 = vmatprep.subr.mxu0 0.0
    %273 = vmatpush1.msra.mxu0 0.0
    %274 = vmatprep.subr.mxu0 0.0
    %275 = vmatpush1.msra.mxu0 0.0
    %276 = vmatprep.subr.mxu0 0.0
    %277 = vmatpush1.msra.mxu0 0.0
    %278 = vmatprep.subr.mxu0 0.0
    %279 = vmatpush1.msra.mxu0 0.0
    %280 = vmatprep.subr.mxu0 0.0
    %281 = vmatpush1.msra.mxu0 0.0
    %282 = vmatprep.subr.mxu0 0.0
    %283 = vmatpush1.msra.mxu0 0.0
    %284 = vmatprep.subr.mxu0 0.0
    %285 = vmatpush1.msra.mxu0 0.0
    %286 = vmatprep.subr.mxu0 0.0
    %287 = vmatpush1.msra.mxu0 0.0
    %288 = vmatprep.subr.mxu0 0.0
    %289 = vmatpush1.msra.mxu0 0.0
    %290 = vmatprep.subr.mxu0 0.0
    %291 = vmatpush1.msra.mxu0 0.0
    %292 = vmatprep.subr.mxu0 0.0
    %293 = vmatpush1.msra.mxu0 0.0
    %294 = vmatprep.subr.mxu0 0.0
    %295 = vmatpush1.msra.mxu0 0.0
    %296 = vmatprep.subr.mxu0 0.0
    %297 = vmatpush1.msra.mxu0 0.0
    %298 = vmatprep.subr.mxu0 0.0
    %299 = vmatpush1.msra.mxu0 0.0
    %300 = vmatprep.subr.mxu0 0.0
    %301 = vmatpush1.msra.mxu0 0.0
    %302 = vmatprep.subr.mxu0 0.0
    %303 = vmatpush1.msra.mxu0 0.0
    %304 = vmatprep.subr.mxu0 0.0
    %305 = vmatpush1.msra.mxu0 0.0
    %306 = vmatprep.subr.mxu0 0.0
    %307 = vmatpush1.msra.mxu0 0.0
    %308 = vmatprep.subr.mxu0 0.0
    %309 = vmatpush1.msra.mxu0 0.0
    %310 = vmatprep.subr.mxu0 0.0
    %311 = vmatpush1.msra.mxu0 0.0
    %312 = vmatprep.subr.mxu0 0.0
    %313 = vmatpush1.msra.mxu0 0.0
    %314 = vmatprep.subr.mxu0 0.0
    %315 = vmatpush1.msra.mxu0 0.0
    %316 = vmatprep.mubr.f32.mxu0 0.0
    %317 = vmatmul.mubr.f32.gmra.mrb[0].mxu0 %v250
    %v318 = vpop.f32.mrb[0].mxu0
    %v319 = vadd.f32 %v231, %v318
    %v320 = vpop.f32.mrb[0].mxu0
    %v321 = vadd.f32 %v235, %v320
    %322 = vdwg.mxu0
    %323 = vmatprep.subr.mxu0 %v213
    %324 = vmatpush1.msra.mxu0 %v212
    %325 = vmatprep.subr.mxu0 %v217
    %326 = vmatpush1.msra.mxu0 %v216
    %327 = vmatprep.subr.mxu0 %v221
    %328 = vmatpush1.msra.mxu0 %v220
    %329 = vmatprep.subr.mxu0 %v225
    %330 = vmatpush1.msra.mxu0 %v224
    %331 = vmatprep.subr.mxu0 0.0
    %332 = vmatpush1.msra.mxu0 0.0
    %333 = vmatprep.subr.mxu0 0.0
    %334 = vmatpush1.msra.mxu0 0.0
    %335 = vmatprep.subr.mxu0 0.0
    %336 = vmatpush1.msra.mxu0 0.0
    %337 = vmatprep.subr.mxu0 0.0
    %338 = vmatpush1.msra.mxu0 0.0
    %339 = vmatprep.subr.mxu0 0.0
    %340 = vmatpush1.msra.mxu0 0.0
    %341 = vmatprep.subr.mxu0 0.0
    %342 = vmatpush1.msra.mxu0 0.0
    %343 = vmatprep.subr.mxu0 0.0
    %344 = vmatpush1.msra.mxu0 0.0
    %345 = vmatprep.subr.mxu0 0.0
    %346 = vmatpush1.msra.mxu0 0.0
    %347 = vmatprep.subr.mxu0 0.0
    %348 = vmatpush1.msra.mxu0 0.0
    %349 = vmatprep.subr.mxu0 0.0
    %350 = vmatpush1.msra.mxu0 0.0
    %351 = vmatprep.subr.mxu0 0.0
    %352 = vmatpush1.msra.mxu0 0.0
    %353 = vmatprep.subr.mxu0 0.0
    %354 = vmatpush1.msra.mxu0 0.0
    %355 = vmatprep.subr.mxu0 0.0
    %356 = vmatpush1.msra.mxu0 0.0
    %357 = vmatprep.subr.mxu0 0.0
    %358 = vmatpush1.msra.mxu0 0.0
    %359 = vmatprep.subr.mxu0 0.0
    %360 = vmatpush1.msra.mxu0 0.0
    %361 = vmatprep.subr.mxu0 0.0
    %362 = vmatpush1.msra.mxu0 0.0
    %363 = vmatprep.subr.mxu0 0.0
    %364 = vmatpush1.msra.mxu0 0.0
    %365 = vmatprep.subr.mxu0 0.0
    %366 = vmatpush1.msra.mxu0 0.0
    %367 = vmatprep.subr.mxu0 0.0
    %368 = vmatpush1.msra.mxu0 0.0
    %369 = vmatprep.subr.mxu0 0.0
    %370 = vmatpush1.msra.mxu0 0.0
    %371 = vmatprep.subr.mxu0 0.0
    %372 = vmatpush1.msra.mxu0 0.0
    %373 = vmatprep.subr.mxu0 0.0
    %374 = vmatpush1.msra.mxu0 0.0
    %375 = vmatprep.subr.mxu0 0.0
    %376 = vmatpush1.msra.mxu0 0.0
    %377 = vmatprep.subr.mxu0 0.0
    %378 = vmatpush1.msra.mxu0 0.0
    %379 = vmatprep.subr.mxu0 0.0
    %380 = vmatpush1.msra.mxu0 0.0
    %381 = vmatprep.subr.mxu0 0.0
    %382 = vmatpush1.msra.mxu0 0.0
    %383 = vmatprep.subr.mxu0 0.0
    %384 = vmatpush1.msra.mxu0 0.0
    %385 = vmatprep.subr.mxu0 0.0
    %386 = vmatpush1.msra.mxu0 0.0
    %387 = vmatprep.mubr.f32.mxu0 0.0
    %388 = vmatmul.mubr.f32.gmra.mrb[0].mxu0 %v250
    %v389 = vpop.f32.mrb[0].mxu0
    %v390 = vadd.f32 %v239, %v389
    %v391 = vpop.f32.mrb[0].mxu0
    %v392 = vadd.f32 %v243, %v391
    %393 = vdwg.mxu0
    %v394 = vld [vmem:[#allocation10] sm:$0xff]
    %v395 = vld [vmem:[#allocation10 + $0x8] sm:$0xff]
    %v396 = vld [vmem:[#allocation10 + $0x10] sm:$0xff]
    %v397 = vld [vmem:[#allocation10 + $0x18] sm:$0xff]
    %v398 = vld [vmem:[#allocation10 + $0x20] sm:$0xff]
    %v399 = vld [vmem:[#allocation10 + $0x28] sm:$0xff]
    %v400 = vld [vmem:[#allocation10 + $0x30] sm:$0xff]
    %v401 = vld [vmem:[#allocation10 + $0x38] sm:$0xff]
    %v402 = vld [vmem:[#allocation10 + $0x40] sm:$0xff]
    %v403 = vld [vmem:[#allocation10 + $0x48] sm:$0xff]
    %v404 = vld [vmem:[#allocation10 + $0x50] sm:$0xff]
    %v405 = vld [vmem:[#allocation10 + $0x58] sm:$0xff]
    %v406 = vld [vmem:[#allocation10 + $0x60] sm:$0xff]
    %v407 = vld [vmem:[#allocation10 + $0x68] sm:$0xff]
    %v408 = vld [vmem:[#allocation10 + $0x70] sm:$0xff]
    %v409 = vld [vmem:[#allocation10 + $0x78] sm:$0xff]
    %v410 = vld [vmem:[%s7] sm:$0xf]
    %v412 = vlaneseq
    %v413 = vshrl.u32 %v412, 7
    %v414 = vsub.s32 0, %v413
    %v415 = vrot.slane %v410, %v414
    %v416 = vlaneseq
    %v417 = vshrl.u32 %v416, 7
    %v418 = vsub.s32 1, %v417
    %v419 = vrot.slane %v410, %v418
    %v420 = vlaneseq
    %v421 = vshrl.u32 %v420, 7
    %v422 = vsub.s32 2, %v421
    %v423 = vrot.slane %v410, %v422
    %v424 = vlaneseq
    %v425 = vshrl.u32 %v424, 7
    %v426 = vsub.s32 3, %v425
    %v427 = vrot.slane %v410, %v426
    %432 = vmatprep.subr.mxu0 %v395
    %433 = vmatpush1.msra.mxu0 %v394
    %434 = vmatprep.subr.mxu0 %v399
    %435 = vmatpush1.msra.mxu0 %v398
    %436 = vmatprep.subr.mxu0 %v403
    %437 = vmatpush1.msra.mxu0 %v402
    %438 = vmatprep.subr.mxu0 %v407
    %439 = vmatpush1.msra.mxu0 %v406
    %440 = vmatprep.subr.mxu0 0.0
    %441 = vmatpush1.msra.mxu0 0.0
    %442 = vmatprep.subr.mxu0 0.0
    %443 = vmatpush1.msra.mxu0 0.0
    %444 = vmatprep.subr.mxu0 0.0
    %445 = vmatpush1.msra.mxu0 0.0
    %446 = vmatprep.subr.mxu0 0.0
    %447 = vmatpush1.msra.mxu0 0.0
    %448 = vmatprep.subr.mxu0 0.0
    %449 = vmatpush1.msra.mxu0 0.0
    %450 = vmatprep.subr.mxu0 0.0
    %451 = vmatpush1.msra.mxu0 0.0
    %452 = vmatprep.subr.mxu0 0.0
    %453 = vmatpush1.msra.mxu0 0.0
    %454 = vmatprep.subr.mxu0 0.0
    %455 = vmatpush1.msra.mxu0 0.0
    %456 = vmatprep.subr.mxu0 0.0
    %457 = vmatpush1.msra.mxu0 0.0
    %458 = vmatprep.subr.mxu0 0.0
    %459 = vmatpush1.msra.mxu0 0.0
    %460 = vmatprep.subr.mxu0 0.0
    %461 = vmatpush1.msra.mxu0 0.0
    %462 = vmatprep.subr.mxu0 0.0
    %463 = vmatpush1.msra.mxu0 0.0
    %464 = vmatprep.subr.mxu0 0.0
    %465 = vmatpush1.msra.mxu0 0.0
    %466 = vmatprep.subr.mxu0 0.0
    %467 = vmatpush1.msra.mxu0 0.0
    %468 = vmatprep.subr.mxu0 0.0
    %469 = vmatpush1.msra.mxu0 0.0
    %470 = vmatprep.subr.mxu0 0.0
    %471 = vmatpush1.msra.mxu0 0.0
    %472 = vmatprep.subr.mxu0 0.0
    %473 = vmatpush1.msra.mxu0 0.0
    %474 = vmatprep.subr.mxu0 0.0
    %475 = vmatpush1.msra.mxu0 0.0
    %476 = vmatprep.subr.mxu0 0.0
    %477 = vmatpush1.msra.mxu0 0.0
    %478 = vmatprep.subr.mxu0 0.0
    %479 = vmatpush1.msra.mxu0 0.0
    %480 = vmatprep.subr.mxu0 0.0
    %481 = vmatpush1.msra.mxu0 0.0
    %482 = vmatprep.subr.mxu0 0.0
    %483 = vmatpush1.msra.mxu0 0.0
    %484 = vmatprep.subr.mxu0 0.0
    %485 = vmatpush1.msra.mxu0 0.0
    %486 = vmatprep.subr.mxu0 0.0
    %487 = vmatpush1.msra.mxu0 0.0
    %488 = vmatprep.subr.mxu0 0.0
    %489 = vmatpush1.msra.mxu0 0.0
    %490 = vmatprep.subr.mxu0 0.0
    %491 = vmatpush1.msra.mxu0 0.0
    %492 = vmatprep.subr.mxu0 0.0
    %493 = vmatpush1.msra.mxu0 0.0
    %494 = vmatprep.subr.mxu0 0.0
    %495 = vmatpush1.msra.mxu0 0.0
    %496 = vmatprep.mubr.f32.mxu0 0.0
    %497 = vmatmul.mubr.f32.gmra.mrb[0].mxu0 %v250
    %v498 = vpop.f32.mrb[0].mxu0
    %v499 = vadd.f32 %v415, %v498
    %v500 = vpop.f32.mrb[0].mxu0
    %v501 = vadd.f32 %v419, %v500
    %502 = vdwg.mxu0
    %503 = vmatprep.subr.mxu0 %v397
    %504 = vmatpush1.msra.mxu0 %v396
    %505 = vmatprep.subr.mxu0 %v401
    %506 = vmatpush1.msra.mxu0 %v400
    %507 = vmatprep.subr.mxu0 %v405
    %508 = vmatpush1.msra.mxu0 %v404
    %509 = vmatprep.subr.mxu0 %v409
    %510 = vmatpush1.msra.mxu0 %v408
    %511 = vmatprep.subr.mxu0 0.0
    %512 = vmatpush1.msra.mxu0 0.0
    %513 = vmatprep.subr.mxu0 0.0
    %514 = vmatpush1.msra.mxu0 0.0
    %515 = vmatprep.subr.mxu0 0.0
    %516 = vmatpush1.msra.mxu0 0.0
    %517 = vmatprep.subr.mxu0 0.0
    %518 = vmatpush1.msra.mxu0 0.0
    %519 = vmatprep.subr.mxu0 0.0
    %520 = vmatpush1.msra.mxu0 0.0
    %521 = vmatprep.subr.mxu0 0.0
    %522 = vmatpush1.msra.mxu0 0.0
    %523 = vmatprep.subr.mxu0 0.0
    %524 = vmatpush1.msra.mxu0 0.0
    %525 = vmatprep.subr.mxu0 0.0
    %526 = vmatpush1.msra.mxu0 0.0
    %527 = vmatprep.subr.mxu0 0.0
    %528 = vmatpush1.msra.mxu0 0.0
    %529 = vmatprep.subr.mxu0 0.0
    %530 = vmatpush1.msra.mxu0 0.0
    %531 = vmatprep.subr.mxu0 0.0
    %532 = vmatpush1.msra.mxu0 0.0
    %533 = vmatprep.subr.mxu0 0.0
    %534 = vmatpush1.msra.mxu0 0.0
    %535 = vmatprep.subr.mxu0 0.0
    %536 = vmatpush1.msra.mxu0 0.0
    %537 = vmatprep.subr.mxu0 0.0
    %538 = vmatpush1.msra.mxu0 0.0
    %539 = vmatprep.subr.mxu0 0.0
    %540 = vmatpush1.msra.mxu0 0.0
    %541 = vmatprep.subr.mxu0 0.0
    %542 = vmatpush1.msra.mxu0 0.0
    %543 = vmatprep.subr.mxu0 0.0
    %544 = vmatpush1.msra.mxu0 0.0
    %545 = vmatprep.subr.mxu0 0.0
    %546 = vmatpush1.msra.mxu0 0.0
    %547 = vmatprep.subr.mxu0 0.0
    %548 = vmatpush1.msra.mxu0 0.0
    %549 = vmatprep.subr.mxu0 0.0
    %550 = vmatpush1.msra.mxu0 0.0
    %551 = vmatprep.subr.mxu0 0.0
    %552 = vmatpush1.msra.mxu0 0.0
    %553 = vmatprep.subr.mxu0 0.0
    %554 = vmatpush1.msra.mxu0 0.0
    %555 = vmatprep.subr.mxu0 0.0
    %556 = vmatpush1.msra.mxu0 0.0
    %557 = vmatprep.subr.mxu0 0.0
    %558 = vmatpush1.msra.mxu0 0.0
    %559 = vmatprep.subr.mxu0 0.0
    %560 = vmatpush1.msra.mxu0 0.0
    %561 = vmatprep.subr.mxu0 0.0
    %562 = vmatpush1.msra.mxu0 0.0
    %563 = vmatprep.subr.mxu0 0.0
    %564 = vmatpush1.msra.mxu0 0.0
    %565 = vmatprep.subr.mxu0 0.0
    %566 = vmatpush1.msra.mxu0 0.0
    %567 = vmatprep.mubr.f32.mxu0 0.0
    %568 = vmatmul.mubr.f32.gmra.mrb[0].mxu0 %v250
    %v569 = vpop.f32.mrb[0].mxu0
    %v570 = vadd.f32 %v423, %v569
    %v571 = vpop.f32.mrb[0].mxu0
    %v572 = vadd.f32 %v427, %v571
    %573 = vdwg.mxu0
    %v574 = vld [vmem:[#allocation9] sm:$0xff]
    %v575 = vld [vmem:[#allocation9 + $0x8] sm:$0xff]
    %v576 = vld [vmem:[#allocation9 + $0x10] sm:$0xff]
    %v577 = vld [vmem:[#allocation9 + $0x18] sm:$0xff]
    %v578 = vld [vmem:[#allocation9 + $0x20] sm:$0xff]
    %v579 = vld [vmem:[#allocation9 + $0x28] sm:$0xff]
    %v580 = vld [vmem:[#allocation9 + $0x30] sm:$0xff]
    %v581 = vld [vmem:[#allocation9 + $0x38] sm:$0xff]
    %v582 = vld [vmem:[#allocation9 + $0x40] sm:$0xff]
    %v583 = vld [vmem:[#allocation9 + $0x48] sm:$0xff]
    %v584 = vld [vmem:[#allocation9 + $0x50] sm:$0xff]
    %v585 = vld [vmem:[#allocation9 + $0x58] sm:$0xff]
    %v586 = vld [vmem:[#allocation9 + $0x60] sm:$0xff]
    %v587 = vld [vmem:[#allocation9 + $0x68] sm:$0xff]
    %v588 = vld [vmem:[#allocation9 + $0x70] sm:$0xff]
    %v589 = vld [vmem:[#allocation9 + $0x78] sm:$0xff]
    %v590 = vld [vmem:[#allocation9 + $0x80] sm:$0xff]
    %v591 = vld [vmem:[#allocation9 + $0x88] sm:$0xff]
    %v592 = vld [vmem:[#allocation9 + $0x90] sm:$0xff]
    %v593 = vld [vmem:[#allocation9 + $0x98] sm:$0xff]
    %v594 = vld [vmem:[#allocation9 + $0xa0] sm:$0xff]
    %v595 = vld [vmem:[#allocation9 + $0xa8] sm:$0xff]
    %v596 = vld [vmem:[#allocation9 + $0xb0] sm:$0xff]
    %v597 = vld [vmem:[#allocation9 + $0xb8] sm:$0xff]
    %v598 = vld [vmem:[#allocation9 + $0xc0] sm:$0xff]
    %v599 = vld [vmem:[#allocation9 + $0xc8] sm:$0xff]
    %v600 = vld [vmem:[#allocation9 + $0xd0] sm:$0xff]
    %v601 = vld [vmem:[#allocation9 + $0xd8] sm:$0xff]
    %v602 = vld [vmem:[#allocation9 + $0xe0] sm:$0xff]
    %v603 = vld [vmem:[#allocation9 + $0xe8] sm:$0xff]
    %v604 = vld [vmem:[#allocation9 + $0xf0] sm:$0xff]
    %v605 = vld [vmem:[#allocation9 + $0xf8] sm:$0xff]
    %v606 = vld [vmem:[#allocation9 + $0x100] sm:$0xff]
    %v607 = vld [vmem:[#allocation9 + $0x108] sm:$0xff]
    %v608 = vld [vmem:[#allocation9 + $0x110] sm:$0xff]
    %v609 = vld [vmem:[#allocation9 + $0x118] sm:$0xff]
    %v610 = vld [vmem:[#allocation9 + $0x120] sm:$0xff]
    %v611 = vld [vmem:[#allocation9 + $0x128] sm:$0xff]
    %v612 = vld [vmem:[#allocation9 + $0x130] sm:$0xff]
    %v613 = vld [vmem:[#allocation9 + $0x138] sm:$0xff]
    %v614 = vld [vmem:[#allocation9 + $0x140] sm:$0xff]
    %v615 = vld [vmem:[#allocation9 + $0x148] sm:$0xff]
    %v616 = vld [vmem:[#allocation9 + $0x150] sm:$0xff]
    %v617 = vld [vmem:[#allocation9 + $0x158] sm:$0xff]
    %v618 = vld [vmem:[#allocation9 + $0x160] sm:$0xff]
    %v619 = vld [vmem:[#allocation9 + $0x168] sm:$0xff]
    %v620 = vld [vmem:[#allocation9 + $0x170] sm:$0xff]
    %v621 = vld [vmem:[#allocation9 + $0x178] sm:$0xff]
    %v622 = vld [vmem:[#allocation9 + $0x180] sm:$0xff]
    %v623 = vld [vmem:[#allocation9 + $0x188] sm:$0xff]
    %v624 = vld [vmem:[#allocation9 + $0x190] sm:$0xff]
    %v625 = vld [vmem:[#allocation9 + $0x198] sm:$0xff]
    %v626 = vld [vmem:[#allocation9 + $0x1a0] sm:$0xff]
    %v627 = vld [vmem:[#allocation9 + $0x1a8] sm:$0xff]
    %v628 = vld [vmem:[#allocation9 + $0x1b0] sm:$0xff]
    %v629 = vld [vmem:[#allocation9 + $0x1b8] sm:$0xff]
    %v630 = vld [vmem:[#allocation9 + $0x1c0] sm:$0xff]
    %v631 = vld [vmem:[#allocation9 + $0x1c8] sm:$0xff]
    %v632 = vld [vmem:[#allocation9 + $0x1d0] sm:$0xff]
    %v633 = vld [vmem:[#allocation9 + $0x1d8] sm:$0xff]
    %v634 = vld [vmem:[#allocation9 + $0x1e0] sm:$0xff]
    %v635 = vld [vmem:[#allocation9 + $0x1e8] sm:$0xff]
    %v636 = vld [vmem:[#allocation9 + $0x1f0] sm:$0xff]
    %v637 = vld [vmem:[#allocation9 + $0x1f8] sm:$0xff]
    %v638 = vld [vmem:[#allocation12] sm:$0xff]
    %v639 = vld [vmem:[#allocation12 + $0x8] sm:$0xff]
    %v640 = vld [vmem:[#allocation12 + $0x10] sm:$0xff]
    %v641 = vld [vmem:[#allocation12 + $0x18] sm:$0xff]
    %v642 = vld [vmem:[#allocation12 + $0x20] sm:$0xff]
    %v643 = vld [vmem:[#allocation12 + $0x28] sm:$0xff]
    %v644 = vld [vmem:[#allocation12 + $0x30] sm:$0xff]
    %v645 = vld [vmem:[#allocation12 + $0x38] sm:$0xff]
    %v646 = vld [vmem:[#allocation12 + $0x40] sm:$0xff]
    %v647 = vld [vmem:[#allocation12 + $0x48] sm:$0xff]
    %v648 = vld [vmem:[#allocation12 + $0x50] sm:$0xff]
    %v649 = vld [vmem:[#allocation12 + $0x58] sm:$0xff]
    %v650 = vld [vmem:[#allocation12 + $0x60] sm:$0xff]
    %v651 = vld [vmem:[#allocation12 + $0x68] sm:$0xff]
    %v652 = vld [vmem:[#allocation12 + $0x70] sm:$0xff]
    %v653 = vld [vmem:[#allocation12 + $0x78] sm:$0xff]
    %v654 = vld [vmem:[#allocation12 + $0x80] sm:$0xff]
    %v655 = vld [vmem:[#allocation12 + $0x88] sm:$0xff]
    %v656 = vld [vmem:[#allocation12 + $0x90] sm:$0xff]
    %v657 = vld [vmem:[#allocation12 + $0x98] sm:$0xff]
    %v658 = vld [vmem:[#allocation12 + $0xa0] sm:$0xff]
    %v659 = vld [vmem:[#allocation12 + $0xa8] sm:$0xff]
    %v660 = vld [vmem:[#allocation12 + $0xb0] sm:$0xff]
    %v661 = vld [vmem:[#allocation12 + $0xb8] sm:$0xff]
    %v662 = vld [vmem:[#allocation12 + $0xc0] sm:$0xff]
    %v663 = vld [vmem:[#allocation12 + $0xc8] sm:$0xff]
    %v664 = vld [vmem:[#allocation12 + $0xd0] sm:$0xff]
    %v665 = vld [vmem:[#allocation12 + $0xd8] sm:$0xff]
    %v666 = vld [vmem:[#allocation12 + $0xe0] sm:$0xff]
    %v667 = vld [vmem:[#allocation12 + $0xe8] sm:$0xff]
    %v668 = vld [vmem:[#allocation12 + $0xf0] sm:$0xff]
    %v669 = vld [vmem:[#allocation12 + $0xf8] sm:$0xff]
    %v670 = vld [vmem:[#allocation12 + $0x100] sm:$0xff]
    %v671 = vld [vmem:[#allocation12 + $0x108] sm:$0xff]
    %v672 = vld [vmem:[#allocation12 + $0x110] sm:$0xff]
    %v673 = vld [vmem:[#allocation12 + $0x118] sm:$0xff]
    %v674 = vld [vmem:[#allocation12 + $0x120] sm:$0xff]
    %v675 = vld [vmem:[#allocation12 + $0x128] sm:$0xff]
    %v676 = vld [vmem:[#allocation12 + $0x130] sm:$0xff]
    %v677 = vld [vmem:[#allocation12 + $0x138] sm:$0xff]
    %v678 = vld [vmem:[#allocation12 + $0x140] sm:$0xff]
    %v679 = vld [vmem:[#allocation12 + $0x148] sm:$0xff]
    %v680 = vld [vmem:[#allocation12 + $0x150] sm:$0xff]
    %v681 = vld [vmem:[#allocation12 + $0x158] sm:$0xff]
    %v682 = vld [vmem:[#allocation12 + $0x160] sm:$0xff]
    %v683 = vld [vmem:[#allocation12 + $0x168] sm:$0xff]
    %v684 = vld [vmem:[#allocation12 + $0x170] sm:$0xff]
    %v685 = vld [vmem:[#allocation12 + $0x178] sm:$0xff]
    %v686 = vld [vmem:[#allocation12 + $0x180] sm:$0xff]
    %v687 = vld [vmem:[#allocation12 + $0x188] sm:$0xff]
    %v688 = vld [vmem:[#allocation12 + $0x190] sm:$0xff]
    %v689 = vld [vmem:[#allocation12 + $0x198] sm:$0xff]
    %v690 = vld [vmem:[#allocation12 + $0x1a0] sm:$0xff]
    %v691 = vld [vmem:[#allocation12 + $0x1a8] sm:$0xff]
    %v692 = vld [vmem:[#allocation12 + $0x1b0] sm:$0xff]
    %v693 = vld [vmem:[#allocation12 + $0x1b8] sm:$0xff]
    %v694 = vld [vmem:[#allocation12 + $0x1c0] sm:$0xff]
    %v695 = vld [vmem:[#allocation12 + $0x1c8] sm:$0xff]
    %v696 = vld [vmem:[#allocation12 + $0x1d0] sm:$0xff]
    %v697 = vld [vmem:[#allocation12 + $0x1d8] sm:$0xff]
    %v698 = vld [vmem:[#allocation12 + $0x1e0] sm:$0xff]
    %v699 = vld [vmem:[#allocation12 + $0x1e8] sm:$0xff]
    %v700 = vld [vmem:[#allocation12 + $0x1f0] sm:$0xff]
    %v701 = vld [vmem:[#allocation12 + $0x1f8] sm:$0xff]
    %702 = vmatprep.subr.mxu0 %v575
    %703 = vmatpush1.msra.mxu0 %v574
    %704 = vmatprep.subr.mxu0 %v579
    %705 = vmatpush1.msra.mxu0 %v578
    %706 = vmatprep.subr.mxu0 %v583
    %707 = vmatpush1.msra.mxu0 %v582
    %708 = vmatprep.subr.mxu0 %v587
    %709 = vmatpush1.msra.mxu0 %v586
    %710 = vmatprep.subr.mxu0 %v591
    %711 = vmatpush1.msra.mxu0 %v590
    %712 = vmatprep.subr.mxu0 %v595
    %713 = vmatpush1.msra.mxu0 %v594
    %714 = vmatprep.subr.mxu0 %v599
    %715 = vmatpush1.msra.mxu0 %v598
    %716 = vmatprep.subr.mxu0 %v603
    %717 = vmatpush1.msra.mxu0 %v602
    %718 = vmatprep.subr.mxu0 %v607
    %719 = vmatpush1.msra.mxu0 %v606
    %720 = vmatprep.subr.mxu0 %v611
    %721 = vmatpush1.msra.mxu0 %v610
    %722 = vmatprep.subr.mxu0 %v615
    %723 = vmatpush1.msra.mxu0 %v614
    %724 = vmatprep.subr.mxu0 %v619
    %725 = vmatpush1.msra.mxu0 %v618
    %726 = vmatprep.subr.mxu0 %v623
    %727 = vmatpush1.msra.mxu0 %v622
    %728 = vmatprep.subr.mxu0 %v627
    %729 = vmatpush1.msra.mxu0 %v626
    %730 = vmatprep.subr.mxu0 %v631
    %731 = vmatpush1.msra.mxu0 %v630
    %732 = vmatprep.subr.mxu0 %v635
    %733 = vmatpush1.msra.mxu0 %v634
    %734 = vmatprep.subr.mxu0 0.0
    %735 = vmatpush1.msra.mxu0 0.0
    %736 = vmatprep.subr.mxu0 0.0
    %737 = vmatpush1.msra.mxu0 0.0
    %738 = vmatprep.subr.mxu0 0.0
    %739 = vmatpush1.msra.mxu0 0.0
    %740 = vmatprep.subr.mxu0 0.0
    %741 = vmatpush1.msra.mxu0 0.0
    %742 = vmatprep.subr.mxu0 0.0
    %743 = vmatpush1.msra.mxu0 0.0
    %744 = vmatprep.subr.mxu0 0.0
    %745 = vmatpush1.msra.mxu0 0.0
    %746 = vmatprep.subr.mxu0 0.0
    %747 = vmatpush1.msra.mxu0 0.0
    %748 = vmatprep.subr.mxu0 0.0
    %749 = vmatpush1.msra.mxu0 0.0
    %750 = vmatprep.subr.mxu0 0.0
    %751 = vmatpush1.msra.mxu0 0.0
    %752 = vmatprep.subr.mxu0 0.0
    %753 = vmatpush1.msra.mxu0 0.0
    %754 = vmatprep.subr.mxu0 0.0
    %755 = vmatpush1.msra.mxu0 0.0
    %756 = vmatprep.subr.mxu0 0.0
    %757 = vmatpush1.msra.mxu0 0.0
    %758 = vmatprep.subr.mxu0 0.0
    %759 = vmatpush1.msra.mxu0 0.0
    %760 = vmatprep.subr.mxu0 0.0
    %761 = vmatpush1.msra.mxu0 0.0
    %762 = vmatprep.subr.mxu0 0.0
    %763 = vmatpush1.msra.mxu0 0.0
    %764 = vmatprep.subr.mxu0 0.0
    %765 = vmatpush1.msra.mxu0 0.0
    %766 = vmatprep.mubr.f32.mxu0 0.0
    %767 = vmatmul.mubr.f32.gmra.mrb[0].mxu0 0.0
    %v768 = vpop.f32.mrb[0].mxu0
    %v769 = vadd.f32 0.0, %v768
    %v770 = vpop.f32.mrb[0].mxu0
    %v771 = vadd.f32 0.0, %v770
    %772 = vdwg.mxu0
    %773 = vmatprep.subr.mxu0 %v577
    %774 = vmatpush1.msra.mxu0 %v576
    %775 = vmatprep.subr.mxu0 %v581
    %776 = vmatpush1.msra.mxu0 %v580
    %777 = vmatprep.subr.mxu0 %v585
    %778 = vmatpush1.msra.mxu0 %v584
    %779 = vmatprep.subr.mxu0 %v589
    %780 = vmatpush1.msra.mxu0 %v588
    %781 = vmatprep.subr.mxu0 %v593
    %782 = vmatpush1.msra.mxu0 %v592
    %783 = vmatprep.subr.mxu0 %v597
    %784 = vmatpush1.msra.mxu0 %v596
    %785 = vmatprep.subr.mxu0 %v601
    %786 = vmatpush1.msra.mxu0 %v600
    %787 = vmatprep.subr.mxu0 %v605
    %788 = vmatpush1.msra.mxu0 %v604
    %789 = vmatprep.subr.mxu0 %v609
    %790 = vmatpush1.msra.mxu0 %v608
    %791 = vmatprep.subr.mxu0 %v613
    %792 = vmatpush1.msra.mxu0 %v612
    %793 = vmatprep.subr.mxu0 %v617
    %794 = vmatpush1.msra.mxu0 %v616
    %795 = vmatprep.subr.mxu0 %v621
    %796 = vmatpush1.msra.mxu0 %v620
    %797 = vmatprep.subr.mxu0 %v625
    %798 = vmatpush1.msra.mxu0 %v624
    %799 = vmatprep.subr.mxu0 %v629
    %800 = vmatpush1.msra.mxu0 %v628
    %801 = vmatprep.subr.mxu0 %v633
    %802 = vmatpush1.msra.mxu0 %v632
    %803 = vmatprep.subr.mxu0 %v637
    %804 = vmatpush1.msra.mxu0 %v636
    %805 = vmatprep.subr.mxu0 0.0
    %806 = vmatpush1.msra.mxu0 0.0
    %807 = vmatprep.subr.mxu0 0.0
    %808 = vmatpush1.msra.mxu0 0.0
    %809 = vmatprep.subr.mxu0 0.0
    %810 = vmatpush1.msra.mxu0 0.0
    %811 = vmatprep.subr.mxu0 0.0
    %812 = vmatpush1.msra.mxu0 0.0
    %813 = vmatprep.subr.mxu0 0.0
    %814 = vmatpush1.msra.mxu0 0.0
    %815 = vmatprep.subr.mxu0 0.0
    %816 = vmatpush1.msra.mxu0 0.0
    %817 = vmatprep.subr.mxu0 0.0
    %818 = vmatpush1.msra.mxu0 0.0
    %819 = vmatprep.subr.mxu0 0.0
    %820 = vmatpush1.msra.mxu0 0.0
    %821 = vmatprep.subr.mxu0 0.0
    %822 = vmatpush1.msra.mxu0 0.0
    %823 = vmatprep.subr.mxu0 0.0
    %824 = vmatpush1.msra.mxu0 0.0
    %825 = vmatprep.subr.mxu0 0.0
    %826 = vmatpush1.msra.mxu0 0.0
    %827 = vmatprep.subr.mxu0 0.0
    %828 = vmatpush1.msra.mxu0 0.0
    %829 = vmatprep.subr.mxu0 0.0
    %830 = vmatpush1.msra.mxu0 0.0
    %831 = vmatprep.subr.mxu0 0.0
    %832 = vmatpush1.msra.mxu0 0.0
    %833 = vmatprep.subr.mxu0 0.0
    %834 = vmatpush1.msra.mxu0 0.0
    %835 = vmatprep.subr.mxu0 0.0
    %836 = vmatpush1.msra.mxu0 0.0
    %837 = vmatprep.mubr.f32.mxu0 0.0
    %838 = vmatmul.mubr.f32.gmra.mrb[0].mxu0 0.0
    %v839 = vpop.f32.mrb[0].mxu0
    %v840 = vadd.f32 0.0, %v839
    %v841 = vpop.f32.mrb[0].mxu0
    %v842 = vadd.f32 0.0, %v841
    %843 = vdwg.mxu0
    %v844 = vadd.f32 %v319, %v769
    %v845 = vadd.f32 %v321, %v771
    %v846 = vadd.f32 %v390, %v840
    %v847 = vadd.f32 %v392, %v842
    %v848 = vxor.u32 %v844, 2147483648
    %v849 = vmul.f32 %v848, 1.442695
    %v850 = vpow.pop %v849
    %v851 = vadd.f32 %v850, 1.0
    %v852 = vrcp.pop %v851
    %v853 = vmul.f32 1.0, %v852
    %v854 = vxor.u32 %v845, 2147483648
    %v855 = vmul.f32 %v854, 1.442695
    %v856 = vpow.pop %v855
    %v857 = vadd.f32 %v856, 1.0
    %v858 = vrcp.pop %v857
    %v859 = vmul.f32 1.0, %v858
    %v860 = vtanh.pop %v846
    %v861 = vxor.u32 %v847, 2147483648
    %v862 = vmul.f32 %v861, 1.442695
    %v863 = vpow.pop %v862
    %v864 = vadd.f32 %v863, 1.0
    %v865 = vrcp.pop %v864
    %v866 = vmul.f32 1.0, %v865
    %v867 = vmul.f32 %v859, 0.0
    %v868 = vmul.f32 %v853, %v860
    %v869 = vadd.f32 %v867, %v868
    %v870 = vtanh.pop %v869
    %v871 = vmul.f32 %v866, %v870
    %872 = vmatprep.subr.mxu0 %v639
    %873 = vmatpush1.msra.mxu0 %v638
    %874 = vmatprep.subr.mxu0 %v643
    %875 = vmatpush1.msra.mxu0 %v642
    %876 = vmatprep.subr.mxu0 %v647
    %877 = vmatpush1.msra.mxu0 %v646
    %878 = vmatprep.subr.mxu0 %v651
    %879 = vmatpush1.msra.mxu0 %v650
    %880 = vmatprep.subr.mxu0 %v655
    %881 = vmatpush1.msra.mxu0 %v654
    %882 = vmatprep.subr.mxu0 %v659
    %883 = vmatpush1.msra.mxu0 %v658
    %884 = vmatprep.subr.mxu0 %v663
    %885 = vmatpush1.msra.mxu0 %v662
    %886 = vmatprep.subr.mxu0 %v667
    %887 = vmatpush1.msra.mxu0 %v666
    %888 = vmatprep.subr.mxu0 %v671
    %889 = vmatpush1.msra.mxu0 %v670
    %890 = vmatprep.subr.mxu0 %v675
    %891 = vmatpush1.msra.mxu0 %v674
    %892 = vmatprep.subr.mxu0 %v679
    %893 = vmatpush1.msra.mxu0 %v678
    %894 = vmatprep.subr.mxu0 %v683
    %895 = vmatpush1.msra.mxu0 %v682
    %896 = vmatprep.subr.mxu0 %v687
    %897 = vmatpush1.msra.mxu0 %v686
    %898 = vmatprep.subr.mxu0 %v691
    %899 = vmatpush1.msra.mxu0 %v690
    %900 = vmatprep.subr.mxu0 %v695
    %901 = vmatpush1.msra.mxu0 %v694
    %902 = vmatprep.subr.mxu0 %v699
    %903 = vmatpush1.msra.mxu0 %v698
    %904 = vmatprep.subr.mxu0 0.0
    %905 = vmatpush1.msra.mxu0 0.0
    %906 = vmatprep.subr.mxu0 0.0
    %907 = vmatpush1.msra.mxu0 0.0
    %908 = vmatprep.subr.mxu0 0.0
    %909 = vmatpush1.msra.mxu0 0.0
    %910 = vmatprep.subr.mxu0 0.0
    %911 = vmatpush1.msra.mxu0 0.0
    %912 = vmatprep.subr.mxu0 0.0
    %913 = vmatpush1.msra.mxu0 0.0
    %914 = vmatprep.subr.mxu0 0.0
    %915 = vmatpush1.msra.mxu0 0.0
    %916 = vmatprep.subr.mxu0 0.0
    %917 = vmatpush1.msra.mxu0 0.0
    %918 = vmatprep.subr.mxu0 0.0
    %919 = vmatpush1.msra.mxu0 0.0
    %920 = vmatprep.subr.mxu0 0.0
    %921 = vmatpush1.msra.mxu0 0.0
    %922 = vmatprep.subr.mxu0 0.0
    %923 = vmatpush1.msra.mxu0 0.0
    %924 = vmatprep.subr.mxu0 0.0
    %925 = vmatpush1.msra.mxu0 0.0
    %926 = vmatprep.subr.mxu0 0.0
    %927 = vmatpush1.msra.mxu0 0.0
    %928 = vmatprep.subr.mxu0 0.0
    %929 = vmatpush1.msra.mxu0 0.0
    %930 = vmatprep.subr.mxu0 0.0
    %931 = vmatpush1.msra.mxu0 0.0
    %932 = vmatprep.subr.mxu0 0.0
    %933 = vmatpush1.msra.mxu0 0.0
    %934 = vmatprep.subr.mxu0 0.0
    %935 = vmatpush1.msra.mxu0 0.0
    %936 = vmatprep.mubr.f32.mxu0 0.0
    %937 = vmatmul.mubr.f32.gmra.mrb[0].mxu0 0.0
    %v938 = vpop.f32.mrb[0].mxu0
    %v939 = vadd.f32 0.0, %v938
    %v940 = vpop.f32.mrb[0].mxu0
    %v941 = vadd.f32 0.0, %v940
    %942 = vdwg.mxu0
    %943 = vmatprep.subr.mxu0 %v641
    %944 = vmatpush1.msra.mxu0 %v640
    %945 = vmatprep.subr.mxu0 %v645
    %946 = vmatpush1.msra.mxu0 %v644
    %947 = vmatprep.subr.mxu0 %v649
    %948 = vmatpush1.msra.mxu0 %v648
    %949 = vmatprep.subr.mxu0 %v653
    %950 = vmatpush1.msra.mxu0 %v652
    %951 = vmatprep.subr.mxu0 %v657
    %952 = vmatpush1.msra.mxu0 %v656
    %953 = vmatprep.subr.mxu0 %v661
    %954 = vmatpush1.msra.mxu0 %v660
    %955 = vmatprep.subr.mxu0 %v665
    %956 = vmatpush1.msra.mxu0 %v664
    %957 = vmatprep.subr.mxu0 %v669
    %958 = vmatpush1.msra.mxu0 %v668
    %959 = vmatprep.subr.mxu0 %v673
    %960 = vmatpush1.msra.mxu0 %v672
    %961 = vmatprep.subr.mxu0 %v677
    %962 = vmatpush1.msra.mxu0 %v676
    %963 = vmatprep.subr.mxu0 %v681
    %964 = vmatpush1.msra.mxu0 %v680
    %965 = vmatprep.subr.mxu0 %v685
    %966 = vmatpush1.msra.mxu0 %v684
    %967 = vmatprep.subr.mxu0 %v689
    %968 = vmatpush1.msra.mxu0 %v688
    %969 = vmatprep.subr.mxu0 %v693
    %970 = vmatpush1.msra.mxu0 %v692
    %971 = vmatprep.subr.mxu0 %v697
    %972 = vmatpush1.msra.mxu0 %v696
    %973 = vmatprep.subr.mxu0 %v701
    %974 = vmatpush1.msra.mxu0 %v700
    %975 = vmatprep.subr.mxu0 0.0
    %976 = vmatpush1.msra.mxu0 0.0
    %977 = vmatprep.subr.mxu0 0.0
    %978 = vmatpush1.msra.mxu0 0.0
    %979 = vmatprep.subr.mxu0 0.0
    %980 = vmatpush1.msra.mxu0 0.0
    %981 = vmatprep.subr.mxu0 0.0
    %982 = vmatpush1.msra.mxu0 0.0
    %983 = vmatprep.subr.mxu0 0.0
    %984 = vmatpush1.msra.mxu0 0.0
    %985 = vmatprep.subr.mxu0 0.0
    %986 = vmatpush1.msra.mxu0 0.0
    %987 = vmatprep.subr.mxu0 0.0
    %988 = vmatpush1.msra.mxu0 0.0
    %989 = vmatprep.subr.mxu0 0.0
    %990 = vmatpush1.msra.mxu0 0.0
    %991 = vmatprep.subr.mxu0 0.0
    %992 = vmatpush1.msra.mxu0 0.0
    %993 = vmatprep.subr.mxu0 0.0
    %994 = vmatpush1.msra.mxu0 0.0
    %995 = vmatprep.subr.mxu0 0.0
    %996 = vmatpush1.msra.mxu0 0.0
    %997 = vmatprep.subr.mxu0 0.0
    %998 = vmatpush1.msra.mxu0 0.0
    %999 = vmatprep.subr.mxu0 0.0
    %1000 = vmatpush1.msra.mxu0 0.0
    %1001 = vmatprep.subr.mxu0 0.0
    %1002 = vmatpush1.msra.mxu0 0.0
    %1003 = vmatprep.subr.mxu0 0.0
    %1004 = vmatpush1.msra.mxu0 0.0
    %1005 = vmatprep.subr.mxu0 0.0
    %1006 = vmatpush1.msra.mxu0 0.0
    %1007 = vmatprep.mubr.f32.mxu0 0.0
    %1008 = vmatmul.mubr.f32.gmra.mrb[0].mxu0 0.0
    %v1009 = vpop.f32.mrb[0].mxu0
    %v1010 = vadd.f32 0.0, %v1009
    %v1011 = vpop.f32.mrb[0].mxu0
    %v1012 = vadd.f32 0.0, %v1011
    %1013 = vdwg.mxu0
    %v1018 = vrot.slane %v939, 1
    %v1019 = vrot.slane %v941, 1
    %v1020 = vrot.slane %v1010, 1
    %v1021 = vrot.slane %v1012, 1
    %v1026 = vadd.f32 %v499, %v1018
    %v1027 = vadd.f32 %v501, %v1019
    %v1028 = vadd.f32 %v570, %v1020
    %v1029 = vadd.f32 %v572, %v1021
    %v1030 = vxor.u32 %v1026, 2147483648
    %v1031 = vmul.f32 %v1030, 1.442695
    %v1032 = vpow.pop %v1031
    %v1033 = vadd.f32 %v1032, 1.0
    %v1034 = vrcp.pop %v1033
    %v1035 = vmul.f32 1.0, %v1034
    %v1036 = vxor.u32 %v1027, 2147483648
    %v1037 = vmul.f32 %v1036, 1.442695
    %v1038 = vpow.pop %v1037
    %v1039 = vadd.f32 %v1038, 1.0
    %v1040 = vrcp.pop %v1039
    %v1041 = vmul.f32 1.0, %v1040
    %v1042 = vtanh.pop %v1028
    %v1043 = vxor.u32 %v1029, 2147483648
    %v1044 = vmul.f32 %v1043, 1.442695
    %v1045 = vpow.pop %v1044
    %v1046 = vadd.f32 %v1045, 1.0
    %v1047 = vrcp.pop %v1046
    %v1048 = vmul.f32 1.0, %v1047
    %v1049 = vmul.f32 %v1041, 0.0
    %v1050 = vmul.f32 %v1035, %v1042
    %v1051 = vadd.f32 %v1049, %v1050
    %v1052 = vtanh.pop %v1051
    %v1053 = vmul.f32 %v1048, %v1052
    %1054 = vst [vmem:[#allocation3] sm:$0x1] %v871
    %v1056 = vrot.slane %v1053, 7
    %1058 = vst [vmem:[#allocation3 + $0xf] sm:$0x1] %v1056
    %1059 = vmatprep.subr.mxu0 %v575
    %1060 = vmatpush1.msra.mxu0 %v574
    %1061 = vmatprep.subr.mxu0 %v579
    %1062 = vmatpush1.msra.mxu0 %v578
    %1063 = vmatprep.subr.mxu0 %v583
    %1064 = vmatpush1.msra.mxu0 %v582
    %1065 = vmatprep.subr.mxu0 %v587
    %1066 = vmatpush1.msra.mxu0 %v586
    %1067 = vmatprep.subr.mxu0 %v591
    %1068 = vmatpush1.msra.mxu0 %v590
    %1069 = vmatprep.subr.mxu0 %v595
    %1070 = vmatpush1.msra.mxu0 %v594
    %1071 = vmatprep.subr.mxu0 %v599
    %1072 = vmatpush1.msra.mxu0 %v598
    %1073 = vmatprep.subr.mxu0 %v603
    %1074 = vmatpush1.msra.mxu0 %v602
    %1075 = vmatprep.subr.mxu0 %v607
    %1076 = vmatpush1.msra.mxu0 %v606
    %1077 = vmatprep.subr.mxu0 %v611
    %1078 = vmatpush1.msra.mxu0 %v610
    %1079 = vmatprep.subr.mxu0 %v615
    %1080 = vmatpush1.msra.mxu0 %v614
    %1081 = vmatprep.subr.mxu0 %v619
    %1082 = vmatpush1.msra.mxu0 %v618
    %1083 = vmatprep.subr.mxu0 %v623
    %1084 = vmatpush1.msra.mxu0 %v622
    %1085 = vmatprep.subr.mxu0 %v627
    %1086 = vmatpush1.msra.mxu0 %v626
    %1087 = vmatprep.subr.mxu0 %v631
    %1088 = vmatpush1.msra.mxu0 %v630
    %1089 = vmatprep.subr.mxu0 %v635
    %1090 = vmatpush1.msra.mxu0 %v634
    %1091 = vmatprep.subr.mxu0 0.0
    %1092 = vmatpush1.msra.mxu0 0.0
    %1093 = vmatprep.subr.mxu0 0.0
    %1094 = vmatpush1.msra.mxu0 0.0
    %1095 = vmatprep.subr.mxu0 0.0
    %1096 = vmatpush1.msra.mxu0 0.0
    %1097 = vmatprep.subr.mxu0 0.0
    %1098 = vmatpush1.msra.mxu0 0.0
    %1099 = vmatprep.subr.mxu0 0.0
    %1100 = vmatpush1.msra.mxu0 0.0
    %1101 = vmatprep.subr.mxu0 0.0
    %1102 = vmatpush1.msra.mxu0 0.0
    %1103 = vmatprep.subr.mxu0 0.0
    %1104 = vmatpush1.msra.mxu0 0.0
    %1105 = vmatprep.subr.mxu0 0.0
    %1106 = vmatpush1.msra.mxu0 0.0
    %1107 = vmatprep.subr.mxu0 0.0
    %1108 = vmatpush1.msra.mxu0 0.0
    %1109 = vmatprep.subr.mxu0 0.0
    %1110 = vmatpush1.msra.mxu0 0.0
    %1111 = vmatprep.subr.mxu0 0.0
    %1112 = vmatpush1.msra.mxu0 0.0
    %1113 = vmatprep.subr.mxu0 0.0
    %1114 = vmatpush1.msra.mxu0 0.0
    %1115 = vmatprep.subr.mxu0 0.0
    %1116 = vmatpush1.msra.mxu0 0.0
    %1117 = vmatprep.subr.mxu0 0.0
    %1118 = vmatpush1.msra.mxu0 0.0
    %1119 = vmatprep.subr.mxu0 0.0
    %1120 = vmatpush1.msra.mxu0 0.0
    %1121 = vmatprep.subr.mxu0 0.0
    %1122 = vmatpush1.msra.mxu0 0.0
    %1123 = vmatprep.mubr.f32.mxu0 0.0
    %1124 = vmatmul.mubr.f32.gmra.mrb[0].mxu0 %v871
    %v1125 = vpop.f32.mrb[0].mxu0
    %v1126 = vadd.f32 0.0, %v1125
    %v1127 = vpop.f32.mrb[0].mxu0
    %v1128 = vadd.f32 0.0, %v1127
    %1129 = vdwg.mxu0
    %1130 = vmatprep.subr.mxu0 %v577
    %1131 = vmatpush1.msra.mxu0 %v576
    %1132 = vmatprep.subr.mxu0 %v581
    %1133 = vmatpush1.msra.mxu0 %v580
    %1134 = vmatprep.subr.mxu0 %v585
    %1135 = vmatpush1.msra.mxu0 %v584
    %1136 = vmatprep.subr.mxu0 %v589
    %1137 = vmatpush1.msra.mxu0 %v588
    %1138 = vmatprep.subr.mxu0 %v593
    %1139 = vmatpush1.msra.mxu0 %v592
    %1140 = vmatprep.subr.mxu0 %v597
    %1141 = vmatpush1.msra.mxu0 %v596
    %1142 = vmatprep.subr.mxu0 %v601
    %1143 = vmatpush1.msra.mxu0 %v600
    %1144 = vmatprep.subr.mxu0 %v605
    %1145 = vmatpush1.msra.mxu0 %v604
    %1146 = vmatprep.subr.mxu0 %v609
    %1147 = vmatpush1.msra.mxu0 %v608
    %1148 = vmatprep.subr.mxu0 %v613
    %1149 = vmatpush1.msra.mxu0 %v612
    %1150 = vmatprep.subr.mxu0 %v617
    %1151 = vmatpush1.msra.mxu0 %v616
    %1152 = vmatprep.subr.mxu0 %v621
    %1153 = vmatpush1.msra.mxu0 %v620
    %1154 = vmatprep.subr.mxu0 %v625
    %1155 = vmatpush1.msra.mxu0 %v624
    %1156 = vmatprep.subr.mxu0 %v629
    %1157 = vmatpush1.msra.mxu0 %v628
    %1158 = vmatprep.subr.mxu0 %v633
    %1159 = vmatpush1.msra.mxu0 %v632
    %1160 = vmatprep.subr.mxu0 %v637
    %1161 = vmatpush1.msra.mxu0 %v636
    %1162 = vmatprep.subr.mxu0 0.0
    %1163 = vmatpush1.msra.mxu0 0.0
    %1164 = vmatprep.subr.mxu0 0.0
    %1165 = vmatpush1.msra.mxu0 0.0
    %1166 = vmatprep.subr.mxu0 0.0
    %1167 = vmatpush1.msra.mxu0 0.0
    %1168 = vmatprep.subr.mxu0 0.0
    %1169 = vmatpush1.msra.mxu0 0.0
    %1170 = vmatprep.subr.mxu0 0.0
    %1171 = vmatpush1.msra.mxu0 0.0
    %1172 = vmatprep.subr.mxu0 0.0
    %1173 = vmatpush1.msra.mxu0 0.0
    %1174 = vmatprep.subr.mxu0 0.0
    %1175 = vmatpush1.msra.mxu0 0.0
    %1176 = vmatprep.subr.mxu0 0.0
    %1177 = vmatpush1.msra.mxu0 0.0
    %1178 = vmatprep.subr.mxu0 0.0
    %1179 = vmatpush1.msra.mxu0 0.0
    %1180 = vmatprep.subr.mxu0 0.0
    %1181 = vmatpush1.msra.mxu0 0.0
    %1182 = vmatprep.subr.mxu0 0.0
    %1183 = vmatpush1.msra.mxu0 0.0
    %1184 = vmatprep.subr.mxu0 0.0
    %1185 = vmatpush1.msra.mxu0 0.0
    %1186 = vmatprep.subr.mxu0 0.0
    %1187 = vmatpush1.msra.mxu0 0.0
    %1188 = vmatprep.subr.mxu0 0.0
    %1189 = vmatpush1.msra.mxu0 0.0
    %1190 = vmatprep.subr.mxu0 0.0
    %1191 = vmatpush1.msra.mxu0 0.0
    %1192 = vmatprep.subr.mxu0 0.0
    %1193 = vmatpush1.msra.mxu0 0.0
    %1194 = vmatprep.mubr.f32.mxu0 0.0
    %1195 = vmatmul.mubr.f32.gmra.mrb[0].mxu0 %v871
    %v1196 = vpop.f32.mrb[0].mxu0
    %v1197 = vadd.f32 0.0, %v1196
    %v1198 = vpop.f32.mrb[0].mxu0
    %v1199 = vadd.f32 0.0, %v1198
    %1200 = vdwg.mxu0
    %v1205 = vrot.slane %v1126, 7
    %v1206 = vrot.slane %v1128, 7
    %v1207 = vrot.slane %v1197, 7
    %v1208 = vrot.slane %v1199, 7
    %v1213 = vadd.f32 %v319, %v1205
    %v1214 = vadd.f32 %v321, %v1206
    %v1215 = vadd.f32 %v390, %v1207
    %v1216 = vadd.f32 %v392, %v1208
    %v1217 = vxor.u32 %v1213, 2147483648
    %v1218 = vmul.f32 %v1217, 1.442695
    %v1219 = vpow.pop %v1218
    %v1220 = vadd.f32 %v1219, 1.0
    %v1221 = vrcp.pop %v1220
    %v1222 = vmul.f32 1.0, %v1221
    %v1223 = vxor.u32 %v1214, 2147483648
    %v1224 = vmul.f32 %v1223, 1.442695
    %v1225 = vpow.pop %v1224
    %v1226 = vadd.f32 %v1225, 1.0
    %v1227 = vrcp.pop %v1226
    %v1228 = vmul.f32 1.0, %v1227
    %v1229 = vtanh.pop %v1215
    %v1230 = vxor.u32 %v1216, 2147483648
    %v1231 = vmul.f32 %v1230, 1.442695
    %v1232 = vpow.pop %v1231
    %v1233 = vadd.f32 %v1232, 1.0
    %v1234 = vrcp.pop %v1233
    %v1235 = vmul.f32 1.0, %v1234
    %v1237 = vrot.slane %v869, 7
    %v1239 = vmul.f32 %v1228, %v1237
    %v1240 = vmul.f32 %v1222, %v1229
    %v1241 = vadd.f32 %v1239, %v1240
    %v1242 = vtanh.pop %v1241
    %v1243 = vmul.f32 %v1235, %v1242
    %1244 = vmatprep.subr.mxu0 %v639
    %1245 = vmatpush1.msra.mxu0 %v638
    %1246 = vmatprep.subr.mxu0 %v643
    %1247 = vmatpush1.msra.mxu0 %v642
    %1248 = vmatprep.subr.mxu0 %v647
    %1249 = vmatpush1.msra.mxu0 %v646
    %1250 = vmatprep.subr.mxu0 %v651
    %1251 = vmatpush1.msra.mxu0 %v650
    %1252 = vmatprep.subr.mxu0 %v655
    %1253 = vmatpush1.msra.mxu0 %v654
    %1254 = vmatprep.subr.mxu0 %v659
    %1255 = vmatpush1.msra.mxu0 %v658
    %1256 = vmatprep.subr.mxu0 %v663
    %1257 = vmatpush1.msra.mxu0 %v662
    %1258 = vmatprep.subr.mxu0 %v667
    %1259 = vmatpush1.msra.mxu0 %v666
    %1260 = vmatprep.subr.mxu0 %v671
    %1261 = vmatpush1.msra.mxu0 %v670
    %1262 = vmatprep.subr.mxu0 %v675
    %1263 = vmatpush1.msra.mxu0 %v674
    %1264 = vmatprep.subr.mxu0 %v679
    %1265 = vmatpush1.msra.mxu0 %v678
    %1266 = vmatprep.subr.mxu0 %v683
    %1267 = vmatpush1.msra.mxu0 %v682
    %1268 = vmatprep.subr.mxu0 %v687
    %1269 = vmatpush1.msra.mxu0 %v686
    %1270 = vmatprep.subr.mxu0 %v691
    %1271 = vmatpush1.msra.mxu0 %v690
    %1272 = vmatprep.subr.mxu0 %v695
    %1273 = vmatpush1.msra.mxu0 %v694
    %1274 = vmatprep.subr.mxu0 %v699
    %1275 = vmatpush1.msra.mxu0 %v698
    %1276 = vmatprep.subr.mxu0 0.0
    %1277 = vmatpush1.msra.mxu0 0.0
    %1278 = vmatprep.subr.mxu0 0.0
    %1279 = vmatpush1.msra.mxu0 0.0
    %1280 = vmatprep.subr.mxu0 0.0
    %1281 = vmatpush1.msra.mxu0 0.0
    %1282 = vmatprep.subr.mxu0 0.0
    %1283 = vmatpush1.msra.mxu0 0.0
    %1284 = vmatprep.subr.mxu0 0.0
    %1285 = vmatpush1.msra.mxu0 0.0
    %1286 = vmatprep.subr.mxu0 0.0
    %1287 = vmatpush1.msra.mxu0 0.0
    %1288 = vmatprep.subr.mxu0 0.0
    %1289 = vmatpush1.msra.mxu0 0.0
    %1290 = vmatprep.subr.mxu0 0.0
    %1291 = vmatpush1.msra.mxu0 0.0
    %1292 = vmatprep.subr.mxu0 0.0
    %1293 = vmatpush1.msra.mxu0 0.0
    %1294 = vmatprep.subr.mxu0 0.0
    %1295 = vmatpush1.msra.mxu0 0.0
    %1296 = vmatprep.subr.mxu0 0.0
    %1297 = vmatpush1.msra.mxu0 0.0
    %1298 = vmatprep.subr.mxu0 0.0
    %1299 = vmatpush1.msra.mxu0 0.0
    %1300 = vmatprep.subr.mxu0 0.0
    %1301 = vmatpush1.msra.mxu0 0.0
    %1302 = vmatprep.subr.mxu0 0.0
    %1303 = vmatpush1.msra.mxu0 0.0
    %1304 = vmatprep.subr.mxu0 0.0
    %1305 = vmatpush1.msra.mxu0 0.0
    %1306 = vmatprep.subr.mxu0 0.0
    %1307 = vmatpush1.msra.mxu0 0.0
    %1308 = vmatprep.mubr.f32.mxu0 0.0
    %1309 = vmatmul.mubr.f32.gmra.mrb[0].mxu0 %v1056
    %v1310 = vpop.f32.mrb[0].mxu0
    %v1311 = vadd.f32 0.0, %v1310
    %v1312 = vpop.f32.mrb[0].mxu0
    %v1313 = vadd.f32 0.0, %v1312
    %1314 = vdwg.mxu0
    %1315 = vmatprep.subr.mxu0 %v641
    %1316 = vmatpush1.msra.mxu0 %v640
    %1317 = vmatprep.subr.mxu0 %v645
    %1318 = vmatpush1.msra.mxu0 %v644
    %1319 = vmatprep.subr.mxu0 %v649
    %1320 = vmatpush1.msra.mxu0 %v648
    %1321 = vmatprep.subr.mxu0 %v653
    %1322 = vmatpush1.msra.mxu0 %v652
    %1323 = vmatprep.subr.mxu0 %v657
    %1324 = vmatpush1.msra.mxu0 %v656
    %1325 = vmatprep.subr.mxu0 %v661
    %1326 = vmatpush1.msra.mxu0 %v660
    %1327 = vmatprep.subr.mxu0 %v665
    %1328 = vmatpush1.msra.mxu0 %v664
    %1329 = vmatprep.subr.mxu0 %v669
    %1330 = vmatpush1.msra.mxu0 %v668
    %1331 = vmatprep.subr.mxu0 %v673
    %1332 = vmatpush1.msra.mxu0 %v672
    %1333 = vmatprep.subr.mxu0 %v677
    %1334 = vmatpush1.msra.mxu0 %v676
    %1335 = vmatprep.subr.mxu0 %v681
    %1336 = vmatpush1.msra.mxu0 %v680
    %1337 = vmatprep.subr.mxu0 %v685
    %1338 = vmatpush1.msra.mxu0 %v684
    %1339 = vmatprep.subr.mxu0 %v689
    %1340 = vmatpush1.msra.mxu0 %v688
    %1341 = vmatprep.subr.mxu0 %v693
    %1342 = vmatpush1.msra.mxu0 %v692
    %1343 = vmatprep.subr.mxu0 %v697
    %1344 = vmatpush1.msra.mxu0 %v696
    %1345 = vmatprep.subr.mxu0 %v701
    %1346 = vmatpush1.msra.mxu0 %v700
    %1347 = vmatprep.subr.mxu0 0.0
    %1348 = vmatpush1.msra.mxu0 0.0
    %1349 = vmatprep.subr.mxu0 0.0
    %1350 = vmatpush1.msra.mxu0 0.0
    %1351 = vmatprep.subr.mxu0 0.0
    %1352 = vmatpush1.msra.mxu0 0.0
    %1353 = vmatprep.subr.mxu0 0.0
    %1354 = vmatpush1.msra.mxu0 0.0
    %1355 = vmatprep.subr.mxu0 0.0
    %1356 = vmatpush1.msra.mxu0 0.0
    %1357 = vmatprep.subr.mxu0 0.0
    %1358 = vmatpush1.msra.mxu0 0.0
    %1359 = vmatprep.subr.mxu0 0.0
    %1360 = vmatpush1.msra.mxu0 0.0
    %1361 = vmatprep.subr.mxu0 0.0
    %1362 = vmatpush1.msra.mxu0 0.0
    %1363 = vmatprep.subr.mxu0 0.0
    %1364 = vmatpush1.msra.mxu0 0.0
    %1365 = vmatprep.subr.mxu0 0.0
    %1366 = vmatpush1.msra.mxu0 0.0
    %1367 = vmatprep.subr.mxu0 0.0
    %1368 = vmatpush1.msra.mxu0 0.0
    %1369 = vmatprep.subr.mxu0 0.0
    %1370 = vmatpush1.msra.mxu0 0.0
    %1371 = vmatprep.subr.mxu0 0.0
    %1372 = vmatpush1.msra.mxu0 0.0
    %1373 = vmatprep.subr.mxu0 0.0
    %1374 = vmatpush1.msra.mxu0 0.0
    %1375 = vmatprep.subr.mxu0 0.0
    %1376 = vmatpush1.msra.mxu0 0.0
    %1377 = vmatprep.subr.mxu0 0.0
    %1378 = vmatpush1.msra.mxu0 0.0
    %1379 = vmatprep.mubr.f32.mxu0 0.0
    %1380 = vmatmul.mubr.f32.gmra.mrb[0].mxu0 %v1056
    %v1381 = vpop.f32.mrb[0].mxu0
    %v1382 = vadd.f32 0.0, %v1381
    %v1383 = vpop.f32.mrb[0].mxu0
    %v1384 = vadd.f32 0.0, %v1383
    %1385 = vdwg.mxu0
    %v1390 = vrot.slane %v1311, 2
    %v1391 = vrot.slane %v1313, 2
    %v1392 = vrot.slane %v1382, 2
    %v1393 = vrot.slane %v1384, 2
    %v1398 = vadd.f32 %v499, %v1390
    %v1399 = vadd.f32 %v501, %v1391
    %v1400 = vadd.f32 %v570, %v1392
    %v1401 = vadd.f32 %v572, %v1393
    %v1402 = vxor.u32 %v1398, 2147483648
    %v1403 = vmul.f32 %v1402, 1.442695
    %v1404 = vpow.pop %v1403
    %v1405 = vadd.f32 %v1404, 1.0
    %v1406 = vrcp.pop %v1405
    %v1407 = vmul.f32 1.0, %v1406
    %v1408 = vxor.u32 %v1399, 2147483648
    %v1409 = vmul.f32 %v1408, 1.442695
    %v1410 = vpow.pop %v1409
    %v1411 = vadd.f32 %v1410, 1.0
    %v1412 = vrcp.pop %v1411
    %v1413 = vmul.f32 1.0, %v1412
    %v1414 = vtanh.pop %v1400
    %v1415 = vxor.u32 %v1401, 2147483648
    %v1416 = vmul.f32 %v1415, 1.442695
    %v1417 = vpow.pop %v1416
    %v1418 = vadd.f32 %v1417, 1.0
    %v1419 = vrcp.pop %v1418
    %v1420 = vmul.f32 1.0, %v1419
    %v1422 = vrot.slane %v1051, 1
    %v1424 = vmul.f32 %v1413, %v1422
    %v1425 = vmul.f32 %v1407, %v1414
    %v1426 = vadd.f32 %v1424, %v1425
    %v1427 = vtanh.pop %v1426
    %v1428 = vmul.f32 %v1420, %v1427
    %v1430 = vrot.slane %v1243, 1
    %1432 = vst [vmem:[#allocation3 + $0x1] sm:$0x1] %v1430
    %v1434 = vrot.slane %v1428, 6
    %1436 = vst [vmem:[#allocation3 + $0xe] sm:$0x1] %v1434
    %1437 = vmatprep.subr.mxu0 %v575
    %1438 = vmatpush1.msra.mxu0 %v574
    %1439 = vmatprep.subr.mxu0 %v579
    %1440 = vmatpush1.msra.mxu0 %v578
    %1441 = vmatprep.subr.mxu0 %v583
    %1442 = vmatpush1.msra.mxu0 %v582
    %1443 = vmatprep.subr.mxu0 %v587
    %1444 = vmatpush1.msra.mxu0 %v586
    %1445 = vmatprep.subr.mxu0 %v591
    %1446 = vmatpush1.msra.mxu0 %v590
    %1447 = vmatprep.subr.mxu0 %v595
    %1448 = vmatpush1.msra.mxu0 %v594
    %1449 = vmatprep.subr.mxu0 %v599
    %1450 = vmatpush1.msra.mxu0 %v598
    %1451 = vmatprep.subr.mxu0 %v603
    %1452 = vmatpush1.msra.mxu0 %v602
    %1453 = vmatprep.subr.mxu0 %v607
    %1454 = vmatpush1.msra.mxu0 %v606
    %1455 = vmatprep.subr.mxu0 %v611
    %1456 = vmatpush1.msra.mxu0 %v610
    %1457 = vmatprep.subr.mxu0 %v615
    %1458 = vmatpush1.msra.mxu0 %v614
    %1459 = vmatprep.subr.mxu0 %v619
    %1460 = vmatpush1.msra.mxu0 %v618
    %1461 = vmatprep.subr.mxu0 %v623
    %1462 = vmatpush1.msra.mxu0 %v622
    %1463 = vmatprep.subr.mxu0 %v627
    %1464 = vmatpush1.msra.mxu0 %v626
    %1465 = vmatprep.subr.mxu0 %v631
    %1466 = vmatpush1.msra.mxu0 %v630
    %1467 = vmatprep.subr.mxu0 %v635
    %1468 = vmatpush1.msra.mxu0 %v634
    %1469 = vmatprep.subr.mxu0 0.0
    %1470 = vmatpush1.msra.mxu0 0.0
    %1471 = vmatprep.subr.mxu0 0.0
    %1472 = vmatpush1.msra.mxu0 0.0
    %1473 = vmatprep.subr.mxu0 0.0
    %1474 = vmatpush1.msra.mxu0 0.0
    %1475 = vmatprep.subr.mxu0 0.0
    %1476 = vmatpush1.msra.mxu0 0.0
    %1477 = vmatprep.subr.mxu0 0.0
    %1478 = vmatpush1.msra.mxu0 0.0
    %1479 = vmatprep.subr.mxu0 0.0
    %1480 = vmatpush1.msra.mxu0 0.0
    %1481 = vmatprep.subr.mxu0 0.0
    %1482 = vmatpush1.msra.mxu0 0.0
    %1483 = vmatprep.subr.mxu0 0.0
    %1484 = vmatpush1.msra.mxu0 0.0
    %1485 = vmatprep.subr.mxu0 0.0
    %1486 = vmatpush1.msra.mxu0 0.0
    %1487 = vmatprep.subr.mxu0 0.0
    %1488 = vmatpush1.msra.mxu0 0.0
    %1489 = vmatprep.subr.mxu0 0.0
    %1490 = vmatpush1.msra.mxu0 0.0
    %1491 = vmatprep.subr.mxu0 0.0
    %1492 = vmatpush1.msra.mxu0 0.0
    %1493 = vmatprep.subr.mxu0 0.0
    %1494 = vmatpush1.msra.mxu0 0.0
    %1495 = vmatprep.subr.mxu0 0.0
    %1496 = vmatpush1.msra.mxu0 0.0
    %1497 = vmatprep.subr.mxu0 0.0
    %1498 = vmatpush1.msra.mxu0 0.0
    %1499 = vmatprep.subr.mxu0 0.0
    %1500 = vmatpush1.msra.mxu0 0.0
    %1501 = vmatprep.mubr.f32.mxu0 0.0
    %1502 = vmatmul.mubr.f32.gmra.mrb[0].mxu0 %v1430
    %v1503 = vpop.f32.mrb[0].mxu0
    %v1504 = vadd.f32 0.0, %v1503
    %v1505 = vpop.f32.mrb[0].mxu0
    %v1506 = vadd.f32 0.0, %v1505
    %1507 = vdwg.mxu0
    %1508 = vmatprep.subr.mxu0 %v577
    %1509 = vmatpush1.msra.mxu0 %v576
    %1510 = vmatprep.subr.mxu0 %v581
    %1511 = vmatpush1.msra.mxu0 %v580
    %1512 = vmatprep.subr.mxu0 %v585
    %1513 = vmatpush1.msra.mxu0 %v584
    %1514 = vmatprep.subr.mxu0 %v589
    %1515 = vmatpush1.msra.mxu0 %v588
    %1516 = vmatprep.subr.mxu0 %v593
    %1517 = vmatpush1.msra.mxu0 %v592
    %1518 = vmatprep.subr.mxu0 %v597
    %1519 = vmatpush1.msra.mxu0 %v596
    %1520 = vmatprep.subr.mxu0 %v601
    %1521 = vmatpush1.msra.mxu0 %v600
    %1522 = vmatprep.subr.mxu0 %v605
    %1523 = vmatpush1.msra.mxu0 %v604
    %1524 = vmatprep.subr.mxu0 %v609
    %1525 = vmatpush1.msra.mxu0 %v608
    %1526 = vmatprep.subr.mxu0 %v613
    %1527 = vmatpush1.msra.mxu0 %v612
    %1528 = vmatprep.subr.mxu0 %v617
    %1529 = vmatpush1.msra.mxu0 %v616
    %1530 = vmatprep.subr.mxu0 %v621
    %1531 = vmatpush1.msra.mxu0 %v620
    %1532 = vmatprep.subr.mxu0 %v625
    %1533 = vmatpush1.msra.mxu0 %v624
    %1534 = vmatprep.subr.mxu0 %v629
    %1535 = vmatpush1.msra.mxu0 %v628
    %1536 = vmatprep.subr.mxu0 %v633
    %1537 = vmatpush1.msra.mxu0 %v632
    %1538 = vmatprep.subr.mxu0 %v637
    %1539 = vmatpush1.msra.mxu0 %v636
    %1540 = vmatprep.subr.mxu0 0.0
    %1541 = vmatpush1.msra.mxu0 0.0
    %1542 = vmatprep.subr.mxu0 0.0
    %1543 = vmatpush1.msra.mxu0 0.0
    %1544 = vmatprep.subr.mxu0 0.0
    %1545 = vmatpush1.msra.mxu0 0.0
    %1546 = vmatprep.subr.mxu0 0.0
    %1547 = vmatpush1.msra.mxu0 0.0
    %1548 = vmatprep.subr.mxu0 0.0
    %1549 = vmatpush1.msra.mxu0 0.0
    %1550 = vmatprep.subr.mxu0 0.0
    %1551 = vmatpush1.msra.mxu0 0.0
    %1552 = vmatprep.subr.mxu0 0.0
    %1553 = vmatpush1.msra.mxu0 0.0
    %1554 = vmatprep.subr.mxu0 0.0
    %1555 = vmatpush1.msra.mxu0 0.0
    %1556 = vmatprep.subr.mxu0 0.0
    %1557 = vmatpush1.msra.mxu0 0.0
    %1558 = vmatprep.subr.mxu0 0.0
    %1559 = vmatpush1.msra.mxu0 0.0
    %1560 = vmatprep.subr.mxu0 0.0
    %1561 = vmatpush1.msra.mxu0 0.0
    %1562 = vmatprep.subr.mxu0 0.0
    %1563 = vmatpush1.msra.mxu0 0.0
    %1564 = vmatprep.subr.mxu0 0.0
    %1565 = vmatpush1.msra.mxu0 0.0
    %1566 = vmatprep.subr.mxu0 0.0
    %1567 = vmatpush1.msra.mxu0 0.0
    %1568 = vmatprep.subr.mxu0 0.0
    %1569 = vmatpush1.msra.mxu0 0.0
    %1570 = vmatprep.subr.mxu0 0.0
    %1571 = vmatpush1.msra.mxu0 0.0
    %1572 = vmatprep.mubr.f32.mxu0 0.0
    %1573 = vmatmul.mubr.f32.gmra.mrb[0].mxu0 %v1430
    %v1574 = vpop.f32.mrb[0].mxu0
    %v1575 = vadd.f32 0.0, %v1574
    %v1576 = vpop.f32.mrb[0].mxu0
    %v1577 = vadd.f32 0.0, %v1576
    %1578 = vdwg.mxu0
    %v1583 = vrot.slane %v1504, 6
    %v1584 = vrot.slane %v1506, 6
    %v1585 = vrot.slane %v1575, 6
    %v1586 = vrot.slane %v1577, 6
    %v1591 = vadd.f32 %v319, %v1583
    %v1592 = vadd.f32 %v321, %v1584
    %v1593 = vadd.f32 %v390, %v1585
    %v1594 = vadd.f32 %v392, %v1586
    %v1595 = vxor.u32 %v1591, 2147483648
    %v1596 = vmul.f32 %v1595, 1.442695
    %v1597 = vpow.pop %v1596
    %v1598 = vadd.f32 %v1597, 1.0
    %v1599 = vrcp.pop %v1598
    %v1600 = vmul.f32 1.0, %v1599
    %v1601 = vxor.u32 %v1592, 2147483648
    %v1602 = vmul.f32 %v1601, 1.442695
    %v1603 = vpow.pop %v1602
    %v1604 = vadd.f32 %v1603, 1.0
    %v1605 = vrcp.pop %v1604
    %v1606 = vmul.f32 1.0, %v1605
    %v1607 = vtanh.pop %v1593
    %v1608 = vxor.u32 %v1594, 2147483648
    %v1609 = vmul.f32 %v1608, 1.442695
    %v1610 = vpow.pop %v1609
    %v1611 = vadd.f32 %v1610, 1.0
    %v1612 = vrcp.pop %v1611
    %v1613 = vmul.f32 1.0, %v1612
    %v1615 = vrot.slane %v1241, 7
    %v1617 = vmul.f32 %v1606, %v1615
    %v1618 = vmul.f32 %v1600, %v1607
    %v1619 = vadd.f32 %v1617, %v1618
    %v1620 = vtanh.pop %v1619
    %v1621 = vmul.f32 %v1613, %v1620
    %1622 = vmatprep.subr.mxu0 %v639
    %1623 = vmatpush1.msra.mxu0 %v638
    %1624 = vmatprep.subr.mxu0 %v643
    %1625 = vmatpush1.msra.mxu0 %v642
    %1626 = vmatprep.subr.mxu0 %v647
    %1627 = vmatpush1.msra.mxu0 %v646
    %1628 = vmatprep.subr.mxu0 %v651
    %1629 = vmatpush1.msra.mxu0 %v650
    %1630 = vmatprep.subr.mxu0 %v655
    %1631 = vmatpush1.msra.mxu0 %v654
    %1632 = vmatprep.subr.mxu0 %v659
    %1633 = vmatpush1.msra.mxu0 %v658
    %1634 = vmatprep.subr.mxu0 %v663
    %1635 = vmatpush1.msra.mxu0 %v662
    %1636 = vmatprep.subr.mxu0 %v667
    %1637 = vmatpush1.msra.mxu0 %v666
    %1638 = vmatprep.subr.mxu0 %v671
    %1639 = vmatpush1.msra.mxu0 %v670
    %1640 = vmatprep.subr.mxu0 %v675
    %1641 = vmatpush1.msra.mxu0 %v674
    %1642 = vmatprep.subr.mxu0 %v679
    %1643 = vmatpush1.msra.mxu0 %v678
    %1644 = vmatprep.subr.mxu0 %v683
    %1645 = vmatpush1.msra.mxu0 %v682
    %1646 = vmatprep.subr.mxu0 %v687
    %1647 = vmatpush1.msra.mxu0 %v686
    %1648 = vmatprep.subr.mxu0 %v691
    %1649 = vmatpush1.msra.mxu0 %v690
    %1650 = vmatprep.subr.mxu0 %v695
    %1651 = vmatpush1.msra.mxu0 %v694
    %1652 = vmatprep.subr.mxu0 %v699
    %1653 = vmatpush1.msra.mxu0 %v698
    %1654 = vmatprep.subr.mxu0 0.0
    %1655 = vmatpush1.msra.mxu0 0.0
    %1656 = vmatprep.subr.mxu0 0.0
    %1657 = vmatpush1.msra.mxu0 0.0
    %1658 = vmatprep.subr.mxu0 0.0
    %1659 = vmatpush1.msra.mxu0 0.0
    %1660 = vmatprep.subr.mxu0 0.0
    %1661 = vmatpush1.msra.mxu0 0.0
    %1662 = vmatprep.subr.mxu0 0.0
    %1663 = vmatpush1.msra.mxu0 0.0
    %1664 = vmatprep.subr.mxu0 0.0
    %1665 = vmatpush1.msra.mxu0 0.0
    %1666 = vmatprep.subr.mxu0 0.0
    %1667 = vmatpush1.msra.mxu0 0.0
    %1668 = vmatprep.subr.mxu0 0.0
    %1669 = vmatpush1.msra.mxu0 0.0
    %1670 = vmatprep.subr.mxu0 0.0
    %1671 = vmatpush1.msra.mxu0 0.0
    %1672 = vmatprep.subr.mxu0 0.0
    %1673 = vmatpush1.msra.mxu0 0.0
    %1674 = vmatprep.subr.mxu0 0.0
    %1675 = vmatpush1.msra.mxu0 0.0
    %1676 = vmatprep.subr.mxu0 0.0
    %1677 = vmatpush1.msra.mxu0 0.0
    %1678 = vmatprep.subr.mxu0 0.0
    %1679 = vmatpush1.msra.mxu0 0.0
    %1680 = vmatprep.subr.mxu0 0.0
    %1681 = vmatpush1.msra.mxu0 0.0
    %1682 = vmatprep.subr.mxu0 0.0
    %1683 = vmatpush1.msra.mxu0 0.0
    %1684 = vmatprep.subr.mxu0 0.0
    %1685 = vmatpush1.msra.mxu0 0.0
    %1686 = vmatprep.mubr.f32.mxu0 0.0
    %1687 = vmatmul.mubr.f32.gmra.mrb[0].mxu0 %v1434
    %v1688 = vpop.f32.mrb[0].mxu0
    %v1689 = vadd.f32 0.0, %v1688
    %v1690 = vpop.f32.mrb[0].mxu0
    %v1691 = vadd.f32 0.0, %v1690
    %1692 = vdwg.mxu0
    %1693 = vmatprep.subr.mxu0 %v641
    %1694 = vmatpush1.msra.mxu0 %v640
    %1695 = vmatprep.subr.mxu0 %v645
    %1696 = vmatpush1.msra.mxu0 %v644
    %1697 = vmatprep.subr.mxu0 %v649
    %1698 = vmatpush1.msra.mxu0 %v648
    %1699 = vmatprep.subr.mxu0 %v653
    %1700 = vmatpush1.msra.mxu0 %v652
    %1701 = vmatprep.subr.mxu0 %v657
    %1702 = vmatpush1.msra.mxu0 %v656
    %1703 = vmatprep.subr.mxu0 %v661
    %1704 = vmatpush1.msra.mxu0 %v660
    %1705 = vmatprep.subr.mxu0 %v665
    %1706 = vmatpush1.msra.mxu0 %v664
    %1707 = vmatprep.subr.mxu0 %v669
    %1708 = vmatpush1.msra.mxu0 %v668
    %1709 = vmatprep.subr.mxu0 %v673
    %1710 = vmatpush1.msra.mxu0 %v672
    %1711 = vmatprep.subr.mxu0 %v677
    %1712 = vmatpush1.msra.mxu0 %v676
    %1713 = vmatprep.subr.mxu0 %v681
    %1714 = vmatpush1.msra.mxu0 %v680
    %1715 = vmatprep.subr.mxu0 %v685
    %1716 = vmatpush1.msra.mxu0 %v684
    %1717 = vmatprep.subr.mxu0 %v689
    %1718 = vmatpush1.msra.mxu0 %v688
    %1719 = vmatprep.subr.mxu0 %v693
    %1720 = vmatpush1.msra.mxu0 %v692
    %1721 = vmatprep.subr.mxu0 %v697
    %1722 = vmatpush1.msra.mxu0 %v696
    %1723 = vmatprep.subr.mxu0 %v701
    %1724 = vmatpush1.msra.mxu0 %v700
    %1725 = vmatprep.subr.mxu0 0.0
    %1726 = vmatpush1.msra.mxu0 0.0
    %1727 = vmatprep.subr.mxu0 0.0
    %1728 = vmatpush1.msra.mxu0 0.0
    %1729 = vmatprep.subr.mxu0 0.0
    %1730 = vmatpush1.msra.mxu0 0.0
    %1731 = vmatprep.subr.mxu0 0.0
    %1732 = vmatpush1.msra.mxu0 0.0
    %1733 = vmatprep.subr.mxu0 0.0
    %1734 = vmatpush1.msra.mxu0 0.0
    %1735 = vmatprep.subr.mxu0 0.0
    %1736 = vmatpush1.msra.mxu0 0.0
    %1737 = vmatprep.subr.mxu0 0.0
    %1738 = vmatpush1.msra.mxu0 0.0
    %1739 = vmatprep.subr.mxu0 0.0
    %1740 = vmatpush1.msra.mxu0 0.0
    %1741 = vmatprep.subr.mxu0 0.0
    %1742 = vmatpush1.msra.mxu0 0.0
    %1743 = vmatprep.subr.mxu0 0.0
    %1744 = vmatpush1.msra.mxu0 0.0
    %1745 = vmatprep.subr.mxu0 0.0
    %1746 = vmatpush1.msra.mxu0 0.0
    %1747 = vmatprep.subr.mxu0 0.0
    %1748 = vmatpush1.msra.mxu0 0.0
    %1749 = vmatprep.subr.mxu0 0.0
    %1750 = vmatpush1.msra.mxu0 0.0
    %1751 = vmatprep.subr.mxu0 0.0
    %1752 = vmatpush1.msra.mxu0 0.0
    %1753 = vmatprep.subr.mxu0 0.0
    %1754 = vmatpush1.msra.mxu0 0.0
    %1755 = vmatprep.subr.mxu0 0.0
    %1756 = vmatpush1.msra.mxu0 0.0
    %1757 = vmatprep.mubr.f32.mxu0 0.0
    %1758 = vmatmul.mubr.f32.gmra.mrb[0].mxu0 %v1434
    %v1759 = vpop.f32.mrb[0].mxu0
    %v1760 = vadd.f32 0.0, %v1759
    %v1761 = vpop.f32.mrb[0].mxu0
    %v1762 = vadd.f32 0.0, %v1761
    %1763 = vdwg.mxu0
    %v1768 = vrot.slane %v1689, 3
    %v1769 = vrot.slane %v1691, 3
    %v1770 = vrot.slane %v1760, 3
    %v1771 = vrot.slane %v1762, 3
    %v1776 = vadd.f32 %v499, %v1768
    %v1777 = vadd.f32 %v501, %v1769
    %v1778 = vadd.f32 %v570, %v1770
    %v1779 = vadd.f32 %v572, %v1771
    %v1780 = vxor.u32 %v1776, 2147483648
    %v1781 = vmul.f32 %v1780, 1.442695
    %v1782 = vpow.pop %v1781
    %v1783 = vadd.f32 %v1782, 1.0
    %v1784 = vrcp.pop %v1783
    %v1785 = vmul.f32 1.0, %v1784
    %v1786 = vxor.u32 %v1777, 2147483648
    %v1787 = vmul.f32 %v1786, 1.442695
    %v1788 = vpow.pop %v1787
    %v1789 = vadd.f32 %v1788, 1.0
    %v1790 = vrcp.pop %v1789
    %v1791 = vmul.f32 1.0, %v1790
    %v1792 = vtanh.pop %v1778
    %v1793 = vxor.u32 %v1779, 2147483648
    %v1794 = vmul.f32 %v1793, 1.442695
    %v1795 = vpow.pop %v1794
    %v1796 = vadd.f32 %v1795, 1.0
    %v1797 = vrcp.pop %v1796
    %v1798 = vmul.f32 1.0, %v1797
    %v1800 = vrot.slane %v1426, 1
    %v1802 = vmul.f32 %v1791, %v1800
    %v1803 = vmul.f32 %v1785, %v1792
    %v1804 = vadd.f32 %v1802, %v1803
    %v1805 = vtanh.pop %v1804
    %v1806 = vmul.f32 %v1798, %v1805
    %v1808 = vrot.slane %v1621, 2
    %1810 = vst [vmem:[#allocation3 + $0x2] sm:$0x1] %v1808
    %v1812 = vrot.slane %v1806, 5
    %1814 = vst [vmem:[#allocation3 + $0xd] sm:$0x1] %v1812
    %1815 = vmatprep.subr.mxu0 %v575
    %1816 = vmatpush1.msra.mxu0 %v574
    %1817 = vmatprep.subr.mxu0 %v579
    %1818 = vmatpush1.msra.mxu0 %v578
    %1819 = vmatprep.subr.mxu0 %v583
    %1820 = vmatpush1.msra.mxu0 %v582
    %1821 = vmatprep.subr.mxu0 %v587
    %1822 = vmatpush1.msra.mxu0 %v586
    %1823 = vmatprep.subr.mxu0 %v591
    %1824 = vmatpush1.msra.mxu0 %v590
    %1825 = vmatprep.subr.mxu0 %v595
    %1826 = vmatpush1.msra.mxu0 %v594
    %1827 = vmatprep.subr.mxu0 %v599
    %1828 = vmatpush1.msra.mxu0 %v598
    %1829 = vmatprep.subr.mxu0 %v603
    %1830 = vmatpush1.msra.mxu0 %v602
    %1831 = vmatprep.subr.mxu0 %v607
    %1832 = vmatpush1.msra.mxu0 %v606
    %1833 = vmatprep.subr.mxu0 %v611
    %1834 = vmatpush1.msra.mxu0 %v610
    %1835 = vmatprep.subr.mxu0 %v615
    %1836 = vmatpush1.msra.mxu0 %v614
    %1837 = vmatprep.subr.mxu0 %v619
    %1838 = vmatpush1.msra.mxu0 %v618
    %1839 = vmatprep.subr.mxu0 %v623
    %1840 = vmatpush1.msra.mxu0 %v622
    %1841 = vmatprep.subr.mxu0 %v627
    %1842 = vmatpush1.msra.mxu0 %v626
    %1843 = vmatprep.subr.mxu0 %v631
    %1844 = vmatpush1.msra.mxu0 %v630
    %1845 = vmatprep.subr.mxu0 %v635
    %1846 = vmatpush1.msra.mxu0 %v634
    %1847 = vmatprep.subr.mxu0 0.0
    %1848 = vmatpush1.msra.mxu0 0.0
    %1849 = vmatprep.subr.mxu0 0.0
    %1850 = vmatpush1.msra.mxu0 0.0
    %1851 = vmatprep.subr.mxu0 0.0
    %1852 = vmatpush1.msra.mxu0 0.0
    %1853 = vmatprep.subr.mxu0 0.0
    %1854 = vmatpush1.msra.mxu0 0.0
    %1855 = vmatprep.subr.mxu0 0.0
    %1856 = vmatpush1.msra.mxu0 0.0
    %1857 = vmatprep.subr.mxu0 0.0
    %1858 = vmatpush1.msra.mxu0 0.0
    %1859 = vmatprep.subr.mxu0 0.0
    %1860 = vmatpush1.msra.mxu0 0.0
    %1861 = vmatprep.subr.mxu0 0.0
    %1862 = vmatpush1.msra.mxu0 0.0
    %1863 = vmatprep.subr.mxu0 0.0
    %1864 = vmatpush1.msra.mxu0 0.0
    %1865 = vmatprep.subr.mxu0 0.0
    %1866 = vmatpush1.msra.mxu0 0.0
    %1867 = vmatprep.subr.mxu0 0.0
    %1868 = vmatpush1.msra.mxu0 0.0
    %1869 = vmatprep.subr.mxu0 0.0
    %1870 = vmatpush1.msra.mxu0 0.0
    %1871 = vmatprep.subr.mxu0 0.0
    %1872 = vmatpush1.msra.mxu0 0.0
    %1873 = vmatprep.subr.mxu0 0.0
    %1874 = vmatpush1.msra.mxu0 0.0
    %1875 = vmatprep.subr.mxu0 0.0
    %1876 = vmatpush1.msra.mxu0 0.0
    %1877 = vmatprep.subr.mxu0 0.0
    %1878 = vmatpush1.msra.mxu0 0.0
    %1879 = vmatprep.mubr.f32.mxu0 0.0
    %1880 = vmatmul.mubr.f32.gmra.mrb[0].mxu0 %v1808
    %v1881 = vpop.f32.mrb[0].mxu0
    %v1882 = vadd.f32 0.0, %v1881
    %v1883 = vpop.f32.mrb[0].mxu0
    %v1884 = vadd.f32 0.0, %v1883
    %1885 = vdwg.mxu0
    %1886 = vmatprep.subr.mxu0 %v577
    %1887 = vmatpush1.msra.mxu0 %v576
    %1888 = vmatprep.subr.mxu0 %v581
    %1889 = vmatpush1.msra.mxu0 %v580
    %1890 = vmatprep.subr.mxu0 %v585
    %1891 = vmatpush1.msra.mxu0 %v584
    %1892 = vmatprep.subr.mxu0 %v589
    %1893 = vmatpush1.msra.mxu0 %v588
    %1894 = vmatprep.subr.mxu0 %v593
    %1895 = vmatpush1.msra.mxu0 %v592
    %1896 = vmatprep.subr.mxu0 %v597
    %1897 = vmatpush1.msra.mxu0 %v596
    %1898 = vmatprep.subr.mxu0 %v601
    %1899 = vmatpush1.msra.mxu0 %v600
    %1900 = vmatprep.subr.mxu0 %v605
    %1901 = vmatpush1.msra.mxu0 %v604
    %1902 = vmatprep.subr.mxu0 %v609
    %1903 = vmatpush1.msra.mxu0 %v608
    %1904 = vmatprep.subr.mxu0 %v613
    %1905 = vmatpush1.msra.mxu0 %v612
    %1906 = vmatprep.subr.mxu0 %v617
    %1907 = vmatpush1.msra.mxu0 %v616
    %1908 = vmatprep.subr.mxu0 %v621
    %1909 = vmatpush1.msra.mxu0 %v620
    %1910 = vmatprep.subr.mxu0 %v625
    %1911 = vmatpush1.msra.mxu0 %v624
    %1912 = vmatprep.subr.mxu0 %v629
    %1913 = vmatpush1.msra.mxu0 %v628
    %1914 = vmatprep.subr.mxu0 %v633
    %1915 = vmatpush1.msra.mxu0 %v632
    %1916 = vmatprep.subr.mxu0 %v637
    %1917 = vmatpush1.msra.mxu0 %v636
    %1918 = vmatprep.subr.mxu0 0.0
    %1919 = vmatpush1.msra.mxu0 0.0
    %1920 = vmatprep.subr.mxu0 0.0
    %1921 = vmatpush1.msra.mxu0 0.0
    %1922 = vmatprep.subr.mxu0 0.0
    %1923 = vmatpush1.msra.mxu0 0.0
    %1924 = vmatprep.subr.mxu0 0.0
    %1925 = vmatpush1.msra.mxu0 0.0
    %1926 = vmatprep.subr.mxu0 0.0
    %1927 = vmatpush1.msra.mxu0 0.0
    %1928 = vmatprep.subr.mxu0 0.0
    %1929 = vmatpush1.msra.mxu0 0.0
    %1930 = vmatprep.subr.mxu0 0.0
    %1931 = vmatpush1.msra.mxu0 0.0
    %1932 = vmatprep.subr.mxu0 0.0
    %1933 = vmatpush1.msra.mxu0 0.0
    %1934 = vmatprep.subr.mxu0 0.0
    %1935 = vmatpush1.msra.mxu0 0.0
    %1936 = vmatprep.subr.mxu0 0.0
    %1937 = vmatpush1.msra.mxu0 0.0
    %1938 = vmatprep.subr.mxu0 0.0
    %1939 = vmatpush1.msra.mxu0 0.0
    %1940 = vmatprep.subr.mxu0 0.0
    %1941 = vmatpush1.msra.mxu0 0.0
    %1942 = vmatprep.subr.mxu0 0.0
    %1943 = vmatpush1.msra.mxu0 0.0
    %1944 = vmatprep.subr.mxu0 0.0
    %1945 = vmatpush1.msra.mxu0 0.0
    %1946 = vmatprep.subr.mxu0 0.0
    %1947 = vmatpush1.msra.mxu0 0.0
    %1948 = vmatprep.subr.mxu0 0.0
    %1949 = vmatpush1.msra.mxu0 0.0
    %1950 = vmatprep.mubr.f32.mxu0 0.0
    %1951 = vmatmul.mubr.f32.gmra.mrb[0].mxu0 %v1808
    %v1952 = vpop.f32.mrb[0].mxu0
    %v1953 = vadd.f32 0.0, %v1952
    %v1954 = vpop.f32.mrb[0].mxu0
    %v1955 = vadd.f32 0.0, %v1954
    %1956 = vdwg.mxu0
    %v1961 = vrot.slane %v1882, 5
    %v1962 = vrot.slane %v1884, 5
    %v1963 = vrot.slane %v1953, 5
    %v1964 = vrot.slane %v1955, 5
    %v1969 = vadd.f32 %v319, %v1961
    %v1970 = vadd.f32 %v321, %v1962
    %v1971 = vadd.f32 %v390, %v1963
    %v1972 = vadd.f32 %v392, %v1964
    %v1973 = vxor.u32 %v1969, 2147483648
    %v1974 = vmul.f32 %v1973, 1.442695
    %v1975 = vpow.pop %v1974
    %v1976 = vadd.f32 %v1975, 1.0
    %v1977 = vrcp.pop %v1976
    %v1978 = vmul.f32 1.0, %v1977
    %v1979 = vxor.u32 %v1970, 2147483648
    %v1980 = vmul.f32 %v1979, 1.442695
    %v1981 = vpow.pop %v1980
    %v1982 = vadd.f32 %v1981, 1.0
    %v1983 = vrcp.pop %v1982
    %v1984 = vmul.f32 1.0, %v1983
    %v1985 = vtanh.pop %v1971
    %v1986 = vxor.u32 %v1972, 2147483648
    %v1987 = vmul.f32 %v1986, 1.442695
    %v1988 = vpow.pop %v1987
    %v1989 = vadd.f32 %v1988, 1.0
    %v1990 = vrcp.pop %v1989
    %v1991 = vmul.f32 1.0, %v1990
    %v1993 = vrot.slane %v1619, 7
    %v1995 = vmul.f32 %v1984, %v1993
    %v1996 = vmul.f32 %v1978, %v1985
    %v1997 = vadd.f32 %v1995, %v1996
    %v1998 = vtanh.pop %v1997
    %v1999 = vmul.f32 %v1991, %v1998
    %2000 = vmatprep.subr.mxu0 %v639
    %2001 = vmatpush1.msra.mxu0 %v638
    %2002 = vmatprep.subr.mxu0 %v643
    %2003 = vmatpush1.msra.mxu0 %v642
    %2004 = vmatprep.subr.mxu0 %v647
    %2005 = vmatpush1.msra.mxu0 %v646
    %2006 = vmatprep.subr.mxu0 %v651
    %2007 = vmatpush1.msra.mxu0 %v650
    %2008 = vmatprep.subr.mxu0 %v655
    %2009 = vmatpush1.msra.mxu0 %v654
    %2010 = vmatprep.subr.mxu0 %v659
    %2011 = vmatpush1.msra.mxu0 %v658
    %2012 = vmatprep.subr.mxu0 %v663
    %2013 = vmatpush1.msra.mxu0 %v662
    %2014 = vmatprep.subr.mxu0 %v667
    %2015 = vmatpush1.msra.mxu0 %v666
    %2016 = vmatprep.subr.mxu0 %v671
    %2017 = vmatpush1.msra.mxu0 %v670
    %2018 = vmatprep.subr.mxu0 %v675
    %2019 = vmatpush1.msra.mxu0 %v674
    %2020 = vmatprep.subr.mxu0 %v679
    %2021 = vmatpush1.msra.mxu0 %v678
    %2022 = vmatprep.subr.mxu0 %v683
    %2023 = vmatpush1.msra.mxu0 %v682
    %2024 = vmatprep.subr.mxu0 %v687
    %2025 = vmatpush1.msra.mxu0 %v686
    %2026 = vmatprep.subr.mxu0 %v691
    %2027 = vmatpush1.msra.mxu0 %v690
    %2028 = vmatprep.subr.mxu0 %v695
    %2029 = vmatpush1.msra.mxu0 %v694
    %2030 = vmatprep.subr.mxu0 %v699
    %2031 = vmatpush1.msra.mxu0 %v698
    %2032 = vmatprep.subr.mxu0 0.0
    %2033 = vmatpush1.msra.mxu0 0.0
    %2034 = vmatprep.subr.mxu0 0.0
    %2035 = vmatpush1.msra.mxu0 0.0
    %2036 = vmatprep.subr.mxu0 0.0
    %2037 = vmatpush1.msra.mxu0 0.0
    %2038 = vmatprep.subr.mxu0 0.0
    %2039 = vmatpush1.msra.mxu0 0.0
    %2040 = vmatprep.subr.mxu0 0.0
    %2041 = vmatpush1.msra.mxu0 0.0
    %2042 = vmatprep.subr.mxu0 0.0
    %2043 = vmatpush1.msra.mxu0 0.0
    %2044 = vmatprep.subr.mxu0 0.0
    %2045 = vmatpush1.msra.mxu0 0.0
    %2046 = vmatprep.subr.mxu0 0.0
    %2047 = vmatpush1.msra.mxu0 0.0
    %2048 = vmatprep.subr.mxu0 0.0
    %2049 = vmatpush1.msra.mxu0 0.0
    %2050 = vmatprep.subr.mxu0 0.0
    %2051 = vmatpush1.msra.mxu0 0.0
    %2052 = vmatprep.subr.mxu0 0.0
    %2053 = vmatpush1.msra.mxu0 0.0
    %2054 = vmatprep.subr.mxu0 0.0
    %2055 = vmatpush1.msra.mxu0 0.0
    %2056 = vmatprep.subr.mxu0 0.0
    %2057 = vmatpush1.msra.mxu0 0.0
    %2058 = vmatprep.subr.mxu0 0.0
    %2059 = vmatpush1.msra.mxu0 0.0
    %2060 = vmatprep.subr.mxu0 0.0
    %2061 = vmatpush1.msra.mxu0 0.0
    %2062 = vmatprep.subr.mxu0 0.0
    %2063 = vmatpush1.msra.mxu0 0.0
    %2064 = vmatprep.mubr.f32.mxu0 0.0
    %2065 = vmatmul.mubr.f32.gmra.mrb[0].mxu0 %v1812
    %v2066 = vpop.f32.mrb[0].mxu0
    %v2067 = vadd.f32 0.0, %v2066
    %v2068 = vpop.f32.mrb[0].mxu0
    %v2069 = vadd.f32 0.0, %v2068
    %2070 = vdwg.mxu0
    %2071 = vmatprep.subr.mxu0 %v641
    %2072 = vmatpush1.msra.mxu0 %v640
    %2073 = vmatprep.subr.mxu0 %v645
    %2074 = vmatpush1.msra.mxu0 %v644
    %2075 = vmatprep.subr.mxu0 %v649
    %2076 = vmatpush1.msra.mxu0 %v648
    %2077 = vmatprep.subr.mxu0 %v653
    %2078 = vmatpush1.msra.mxu0 %v652
    %2079 = vmatprep.subr.mxu0 %v657
    %2080 = vmatpush1.msra.mxu0 %v656
    %2081 = vmatprep.subr.mxu0 %v661
    %2082 = vmatpush1.msra.mxu0 %v660
    %2083 = vmatprep.subr.mxu0 %v665
    %2084 = vmatpush1.msra.mxu0 %v664
    %2085 = vmatprep.subr.mxu0 %v669
    %2086 = vmatpush1.msra.mxu0 %v668
    %2087 = vmatprep.subr.mxu0 %v673
    %2088 = vmatpush1.msra.mxu0 %v672
    %2089 = vmatprep.subr.mxu0 %v677
    %2090 = vmatpush1.msra.mxu0 %v676
    %2091 = vmatprep.subr.mxu0 %v681
    %2092 = vmatpush1.msra.mxu0 %v680
    %2093 = vmatprep.subr.mxu0 %v685
    %2094 = vmatpush1.msra.mxu0 %v684
    %2095 = vmatprep.subr.mxu0 %v689
    %2096 = vmatpush1.msra.mxu0 %v688
    %2097 = vmatprep.subr.mxu0 %v693
    %2098 = vmatpush1.msra.mxu0 %v692
    %2099 = vmatprep.subr.mxu0 %v697
    %2100 = vmatpush1.msra.mxu0 %v696
    %2101 = vmatprep.subr.mxu0 %v701
    %2102 = vmatpush1.msra.mxu0 %v700
    %2103 = vmatprep.subr.mxu0 0.0
    %2104 = vmatpush1.msra.mxu0 0.0
    %2105 = vmatprep.subr.mxu0 0.0
    %2106 = vmatpush1.msra.mxu0 0.0
    %2107 = vmatprep.subr.mxu0 0.0
    %2108 = vmatpush1.msra.mxu0 0.0
    %2109 = vmatprep.subr.mxu0 0.0
    %2110 = vmatpush1.msra.mxu0 0.0
    %2111 = vmatprep.subr.mxu0 0.0
    %2112 = vmatpush1.msra.mxu0 0.0
    %2113 = vmatprep.subr.mxu0 0.0
    %2114 = vmatpush1.msra.mxu0 0.0
    %2115 = vmatprep.subr.mxu0 0.0
    %2116 = vmatpush1.msra.mxu0 0.0
    %2117 = vmatprep.subr.mxu0 0.0
    %2118 = vmatpush1.msra.mxu0 0.0
    %2119 = vmatprep.subr.mxu0 0.0
    %2120 = vmatpush1.msra.mxu0 0.0
    %2121 = vmatprep.subr.mxu0 0.0
    %2122 = vmatpush1.msra.mxu0 0.0
    %2123 = vmatprep.subr.mxu0 0.0
    %2124 = vmatpush1.msra.mxu0 0.0
    %2125 = vmatprep.subr.mxu0 0.0
    %2126 = vmatpush1.msra.mxu0 0.0
    %2127 = vmatprep.subr.mxu0 0.0
    %2128 = vmatpush1.msra.mxu0 0.0
    %2129 = vmatprep.subr.mxu0 0.0
    %2130 = vmatpush1.msra.mxu0 0.0
    %2131 = vmatprep.subr.mxu0 0.0
    %2132 = vmatpush1.msra.mxu0 0.0
    %2133 = vmatprep.subr.mxu0 0.0
    %2134 = vmatpush1.msra.mxu0 0.0
    %2135 = vmatprep.mubr.f32.mxu0 0.0
    %2136 = vmatmul.mubr.f32.gmra.mrb[0].mxu0 %v1812
    %v2137 = vpop.f32.mrb[0].mxu0
    %v2138 = vadd.f32 0.0, %v2137
    %v2139 = vpop.f32.mrb[0].mxu0
    %v2140 = vadd.f32 0.0, %v2139
    %2141 = vdwg.mxu0
    %v2146 = vrot.slane %v2067, 4
    %v2147 = vrot.slane %v2069, 4
    %v2148 = vrot.slane %v2138, 4
    %v2149 = vrot.slane %v2140, 4
    %v2154 = vadd.f32 %v499, %v2146
    %v2155 = vadd.f32 %v501, %v2147
    %v2156 = vadd.f32 %v570, %v2148
    %v2157 = vadd.f32 %v572, %v2149
    %v2158 = vxor.u32 %v2154, 2147483648
    %v2159 = vmul.f32 %v2158, 1.442695
    %v2160 = vpow.pop %v2159
    %v2161 = vadd.f32 %v2160, 1.0
    %v2162 = vrcp.pop %v2161
    %v2163 = vmul.f32 1.0, %v2162
    %v2164 = vxor.u32 %v2155, 2147483648
    %v2165 = vmul.f32 %v2164, 1.442695
    %v2166 = vpow.pop %v2165
    %v2167 = vadd.f32 %v2166, 1.0
    %v2168 = vrcp.pop %v2167
    %v2169 = vmul.f32 1.0, %v2168
    %v2170 = vtanh.pop %v2156
    %v2171 = vxor.u32 %v2157, 2147483648
    %v2172 = vmul.f32 %v2171, 1.442695
    %v2173 = vpow.pop %v2172
    %v2174 = vadd.f32 %v2173, 1.0
    %v2175 = vrcp.pop %v2174
    %v2176 = vmul.f32 1.0, %v2175
    %v2178 = vrot.slane %v1804, 1
    %v2180 = vmul.f32 %v2169, %v2178
    %v2181 = vmul.f32 %v2163, %v2170
    %v2182 = vadd.f32 %v2180, %v2181
    %v2183 = vtanh.pop %v2182
    %v2184 = vmul.f32 %v2176, %v2183
    %v2186 = vrot.slane %v1999, 3
    %2188 = vst [vmem:[#allocation3 + $0x3] sm:$0x1] %v2186
    %v2190 = vrot.slane %v2184, 4
    %2192 = vst [vmem:[#allocation3 + $0xc] sm:$0x1] %v2190
    %2193 = vmatprep.subr.mxu0 %v575
    %2194 = vmatpush1.msra.mxu0 %v574
    %2195 = vmatprep.subr.mxu0 %v579
    %2196 = vmatpush1.msra.mxu0 %v578
    %2197 = vmatprep.subr.mxu0 %v583
    %2198 = vmatpush1.msra.mxu0 %v582
    %2199 = vmatprep.subr.mxu0 %v587
    %2200 = vmatpush1.msra.mxu0 %v586
    %2201 = vmatprep.subr.mxu0 %v591
    %2202 = vmatpush1.msra.mxu0 %v590
    %2203 = vmatprep.subr.mxu0 %v595
    %2204 = vmatpush1.msra.mxu0 %v594
    %2205 = vmatprep.subr.mxu0 %v599
    %2206 = vmatpush1.msra.mxu0 %v598
    %2207 = vmatprep.subr.mxu0 %v603
    %2208 = vmatpush1.msra.mxu0 %v602
    %2209 = vmatprep.subr.mxu0 %v607
    %2210 = vmatpush1.msra.mxu0 %v606
    %2211 = vmatprep.subr.mxu0 %v611
    %2212 = vmatpush1.msra.mxu0 %v610
    %2213 = vmatprep.subr.mxu0 %v615
    %2214 = vmatpush1.msra.mxu0 %v614
    %2215 = vmatprep.subr.mxu0 %v619
    %2216 = vmatpush1.msra.mxu0 %v618
    %2217 = vmatprep.subr.mxu0 %v623
    %2218 = vmatpush1.msra.mxu0 %v622
    %2219 = vmatprep.subr.mxu0 %v627
    %2220 = vmatpush1.msra.mxu0 %v626
    %2221 = vmatprep.subr.mxu0 %v631
    %2222 = vmatpush1.msra.mxu0 %v630
    %2223 = vmatprep.subr.mxu0 %v635
    %2224 = vmatpush1.msra.mxu0 %v634
    %2225 = vmatprep.subr.mxu0 0.0
    %2226 = vmatpush1.msra.mxu0 0.0
    %2227 = vmatprep.subr.mxu0 0.0
    %2228 = vmatpush1.msra.mxu0 0.0
    %2229 = vmatprep.subr.mxu0 0.0
    %2230 = vmatpush1.msra.mxu0 0.0
    %2231 = vmatprep.subr.mxu0 0.0
    %2232 = vmatpush1.msra.mxu0 0.0
    %2233 = vmatprep.subr.mxu0 0.0
    %2234 = vmatpush1.msra.mxu0 0.0
    %2235 = vmatprep.subr.mxu0 0.0
    %2236 = vmatpush1.msra.mxu0 0.0
    %2237 = vmatprep.subr.mxu0 0.0
    %2238 = vmatpush1.msra.mxu0 0.0
    %2239 = vmatprep.subr.mxu0 0.0
    %2240 = vmatpush1.msra.mxu0 0.0
    %2241 = vmatprep.subr.mxu0 0.0
    %2242 = vmatpush1.msra.mxu0 0.0
    %2243 = vmatprep.subr.mxu0 0.0
    %2244 = vmatpush1.msra.mxu0 0.0
    %2245 = vmatprep.subr.mxu0 0.0
    %2246 = vmatpush1.msra.mxu0 0.0
    %2247 = vmatprep.subr.mxu0 0.0
    %2248 = vmatpush1.msra.mxu0 0.0
    %2249 = vmatprep.subr.mxu0 0.0
    %2250 = vmatpush1.msra.mxu0 0.0
    %2251 = vmatprep.subr.mxu0 0.0
    %2252 = vmatpush1.msra.mxu0 0.0
    %2253 = vmatprep.subr.mxu0 0.0
    %2254 = vmatpush1.msra.mxu0 0.0
    %2255 = vmatprep.subr.mxu0 0.0
    %2256 = vmatpush1.msra.mxu0 0.0
    %2257 = vmatprep.mubr.f32.mxu0 0.0
    %2258 = vmatmul.mubr.f32.gmra.mrb[0].mxu0 %v2186
    %v2259 = vpop.f32.mrb[0].mxu0
    %v2260 = vadd.f32 0.0, %v2259
    %v2261 = vpop.f32.mrb[0].mxu0
    %v2262 = vadd.f32 0.0, %v2261
    %2263 = vdwg.mxu0
    %2264 = vmatprep.subr.mxu0 %v577
    %2265 = vmatpush1.msra.mxu0 %v576
    %2266 = vmatprep.subr.mxu0 %v581
    %2267 = vmatpush1.msra.mxu0 %v580
    %2268 = vmatprep.subr.mxu0 %v585
    %2269 = vmatpush1.msra.mxu0 %v584
    %2270 = vmatprep.subr.mxu0 %v589
    %2271 = vmatpush1.msra.mxu0 %v588
    %2272 = vmatprep.subr.mxu0 %v593
    %2273 = vmatpush1.msra.mxu0 %v592
    %2274 = vmatprep.subr.mxu0 %v597
    %2275 = vmatpush1.msra.mxu0 %v596
    %2276 = vmatprep.subr.mxu0 %v601
    %2277 = vmatpush1.msra.mxu0 %v600
    %2278 = vmatprep.subr.mxu0 %v605
    %2279 = vmatpush1.msra.mxu0 %v604
    %2280 = vmatprep.subr.mxu0 %v609
    %2281 = vmatpush1.msra.mxu0 %v608
    %2282 = vmatprep.subr.mxu0 %v613
    %2283 = vmatpush1.msra.mxu0 %v612
    %2284 = vmatprep.subr.mxu0 %v617
    %2285 = vmatpush1.msra.mxu0 %v616
    %2286 = vmatprep.subr.mxu0 %v621
    %2287 = vmatpush1.msra.mxu0 %v620
    %2288 = vmatprep.subr.mxu0 %v625
    %2289 = vmatpush1.msra.mxu0 %v624
    %2290 = vmatprep.subr.mxu0 %v629
    %2291 = vmatpush1.msra.mxu0 %v628
    %2292 = vmatprep.subr.mxu0 %v633
    %2293 = vmatpush1.msra.mxu0 %v632
    %2294 = vmatprep.subr.mxu0 %v637
    %2295 = vmatpush1.msra.mxu0 %v636
    %2296 = vmatprep.subr.mxu0 0.0
    %2297 = vmatpush1.msra.mxu0 0.0
    %2298 = vmatprep.subr.mxu0 0.0
    %2299 = vmatpush1.msra.mxu0 0.0
    %2300 = vmatprep.subr.mxu0 0.0
    %2301 = vmatpush1.msra.mxu0 0.0
    %2302 = vmatprep.subr.mxu0 0.0
    %2303 = vmatpush1.msra.mxu0 0.0
    %2304 = vmatprep.subr.mxu0 0.0
    %2305 = vmatpush1.msra.mxu0 0.0
    %2306 = vmatprep.subr.mxu0 0.0
    %2307 = vmatpush1.msra.mxu0 0.0
    %2308 = vmatprep.subr.mxu0 0.0
    %2309 = vmatpush1.msra.mxu0 0.0
    %2310 = vmatprep.subr.mxu0 0.0
    %2311 = vmatpush1.msra.mxu0 0.0
    %2312 = vmatprep.subr.mxu0 0.0
    %2313 = vmatpush1.msra.mxu0 0.0
    %2314 = vmatprep.subr.mxu0 0.0
    %2315 = vmatpush1.msra.mxu0 0.0
    %2316 = vmatprep.subr.mxu0 0.0
    %2317 = vmatpush1.msra.mxu0 0.0
    %2318 = vmatprep.subr.mxu0 0.0
    %2319 = vmatpush1.msra.mxu0 0.0
    %2320 = vmatprep.subr.mxu0 0.0
    %2321 = vmatpush1.msra.mxu0 0.0
    %2322 = vmatprep.subr.mxu0 0.0
    %2323 = vmatpush1.msra.mxu0 0.0
    %2324 = vmatprep.subr.mxu0 0.0
    %2325 = vmatpush1.msra.mxu0 0.0
    %2326 = vmatprep.subr.mxu0 0.0
    %2327 = vmatpush1.msra.mxu0 0.0
    %2328 = vmatprep.mubr.f32.mxu0 0.0
    %2329 = vmatmul.mubr.f32.gmra.mrb[0].mxu0 %v2186
    %v2330 = vpop.f32.mrb[0].mxu0
    %v2331 = vadd.f32 0.0, %v2330
    %v2332 = vpop.f32.mrb[0].mxu0
    %v2333 = vadd.f32 0.0, %v2332
    %2334 = vdwg.mxu0
    %v2339 = vrot.slane %v2260, 4
    %v2340 = vrot.slane %v2262, 4
    %v2341 = vrot.slane %v2331, 4
    %v2342 = vrot.slane %v2333, 4
    %v2347 = vadd.f32 %v319, %v2339
    %v2348 = vadd.f32 %v321, %v2340
    %v2349 = vadd.f32 %v390, %v2341
    %v2350 = vadd.f32 %v392, %v2342
    %v2351 = vxor.u32 %v2347, 2147483648
    %v2352 = vmul.f32 %v2351, 1.442695
    %v2353 = vpow.pop %v2352
    %v2354 = vadd.f32 %v2353, 1.0
    %v2355 = vrcp.pop %v2354
    %v2356 = vmul.f32 1.0, %v2355
    %v2357 = vxor.u32 %v2348, 2147483648
    %v2358 = vmul.f32 %v2357, 1.442695
    %v2359 = vpow.pop %v2358
    %v2360 = vadd.f32 %v2359, 1.0
    %v2361 = vrcp.pop %v2360
    %v2362 = vmul.f32 1.0, %v2361
    %v2363 = vtanh.pop %v2349
    %v2364 = vxor.u32 %v2350, 2147483648
    %v2365 = vmul.f32 %v2364, 1.442695
    %v2366 = vpow.pop %v2365
    %v2367 = vadd.f32 %v2366, 1.0
    %v2368 = vrcp.pop %v2367
    %v2369 = vmul.f32 1.0, %v2368
    %v2371 = vrot.slane %v1997, 7
    %v2373 = vmul.f32 %v2362, %v2371
    %v2374 = vmul.f32 %v2356, %v2363
    %v2375 = vadd.f32 %v2373, %v2374
    %v2376 = vtanh.pop %v2375
    %v2377 = vmul.f32 %v2369, %v2376
    %2378 = vmatprep.subr.mxu0 %v639
    %2379 = vmatpush1.msra.mxu0 %v638
    %2380 = vmatprep.subr.mxu0 %v643
    %2381 = vmatpush1.msra.mxu0 %v642
    %2382 = vmatprep.subr.mxu0 %v647
    %2383 = vmatpush1.msra.mxu0 %v646
    %2384 = vmatprep.subr.mxu0 %v651
    %2385 = vmatpush1.msra.mxu0 %v650
    %2386 = vmatprep.subr.mxu0 %v655
    %2387 = vmatpush1.msra.mxu0 %v654
    %2388 = vmatprep.subr.mxu0 %v659
    %2389 = vmatpush1.msra.mxu0 %v658
    %2390 = vmatprep.subr.mxu0 %v663
    %2391 = vmatpush1.msra.mxu0 %v662
    %2392 = vmatprep.subr.mxu0 %v667
    %2393 = vmatpush1.msra.mxu0 %v666
    %2394 = vmatprep.subr.mxu0 %v671
    %2395 = vmatpush1.msra.mxu0 %v670
    %2396 = vmatprep.subr.mxu0 %v675
    %2397 = vmatpush1.msra.mxu0 %v674
    %2398 = vmatprep.subr.mxu0 %v679
    %2399 = vmatpush1.msra.mxu0 %v678
    %2400 = vmatprep.subr.mxu0 %v683
    %2401 = vmatpush1.msra.mxu0 %v682
    %2402 = vmatprep.subr.mxu0 %v687
    %2403 = vmatpush1.msra.mxu0 %v686
    %2404 = vmatprep.subr.mxu0 %v691
    %2405 = vmatpush1.msra.mxu0 %v690
    %2406 = vmatprep.subr.mxu0 %v695
    %2407 = vmatpush1.msra.mxu0 %v694
    %2408 = vmatprep.subr.mxu0 %v699
    %2409 = vmatpush1.msra.mxu0 %v698
    %2410 = vmatprep.subr.mxu0 0.0
    %2411 = vmatpush1.msra.mxu0 0.0
    %2412 = vmatprep.subr.mxu0 0.0
    %2413 = vmatpush1.msra.mxu0 0.0
    %2414 = vmatprep.subr.mxu0 0.0
    %2415 = vmatpush1.msra.mxu0 0.0
    %2416 = vmatprep.subr.mxu0 0.0
    %2417 = vmatpush1.msra.mxu0 0.0
    %2418 = vmatprep.subr.mxu0 0.0
    %2419 = vmatpush1.msra.mxu0 0.0
    %2420 = vmatprep.subr.mxu0 0.0
    %2421 = vmatpush1.msra.mxu0 0.0
    %2422 = vmatprep.subr.mxu0 0.0
    %2423 = vmatpush1.msra.mxu0 0.0
    %2424 = vmatprep.subr.mxu0 0.0
    %2425 = vmatpush1.msra.mxu0 0.0
    %2426 = vmatprep.subr.mxu0 0.0
    %2427 = vmatpush1.msra.mxu0 0.0
    %2428 = vmatprep.subr.mxu0 0.0
    %2429 = vmatpush1.msra.mxu0 0.0
    %2430 = vmatprep.subr.mxu0 0.0
    %2431 = vmatpush1.msra.mxu0 0.0
    %2432 = vmatprep.subr.mxu0 0.0
    %2433 = vmatpush1.msra.mxu0 0.0
    %2434 = vmatprep.subr.mxu0 0.0
    %2435 = vmatpush1.msra.mxu0 0.0
    %2436 = vmatprep.subr.mxu0 0.0
    %2437 = vmatpush1.msra.mxu0 0.0
    %2438 = vmatprep.subr.mxu0 0.0
    %2439 = vmatpush1.msra.mxu0 0.0
    %2440 = vmatprep.subr.mxu0 0.0
    %2441 = vmatpush1.msra.mxu0 0.0
    %2442 = vmatprep.mubr.f32.mxu0 0.0
    %2443 = vmatmul.mubr.f32.gmra.mrb[0].mxu0 %v2190
    %v2444 = vpop.f32.mrb[0].mxu0
    %v2445 = vadd.f32 0.0, %v2444
    %v2446 = vpop.f32.mrb[0].mxu0
    %v2447 = vadd.f32 0.0, %v2446
    %2448 = vdwg.mxu0
    %2449 = vmatprep.subr.mxu0 %v641
    %2450 = vmatpush1.msra.mxu0 %v640
    %2451 = vmatprep.subr.mxu0 %v645
    %2452 = vmatpush1.msra.mxu0 %v644
    %2453 = vmatprep.subr.mxu0 %v649
    %2454 = vmatpush1.msra.mxu0 %v648
    %2455 = vmatprep.subr.mxu0 %v653
    %2456 = vmatpush1.msra.mxu0 %v652
    %2457 = vmatprep.subr.mxu0 %v657
    %2458 = vmatpush1.msra.mxu0 %v656
    %2459 = vmatprep.subr.mxu0 %v661
    %2460 = vmatpush1.msra.mxu0 %v660
    %2461 = vmatprep.subr.mxu0 %v665
    %2462 = vmatpush1.msra.mxu0 %v664
    %2463 = vmatprep.subr.mxu0 %v669
    %2464 = vmatpush1.msra.mxu0 %v668
    %2465 = vmatprep.subr.mxu0 %v673
    %2466 = vmatpush1.msra.mxu0 %v672
    %2467 = vmatprep.subr.mxu0 %v677
    %2468 = vmatpush1.msra.mxu0 %v676
    %2469 = vmatprep.subr.mxu0 %v681
    %2470 = vmatpush1.msra.mxu0 %v680
    %2471 = vmatprep.subr.mxu0 %v685
    %2472 = vmatpush1.msra.mxu0 %v684
    %2473 = vmatprep.subr.mxu0 %v689
    %2474 = vmatpush1.msra.mxu0 %v688
    %2475 = vmatprep.subr.mxu0 %v693
    %2476 = vmatpush1.msra.mxu0 %v692
    %2477 = vmatprep.subr.mxu0 %v697
    %2478 = vmatpush1.msra.mxu0 %v696
    %2479 = vmatprep.subr.mxu0 %v701
    %2480 = vmatpush1.msra.mxu0 %v700
    %2481 = vmatprep.subr.mxu0 0.0
    %2482 = vmatpush1.msra.mxu0 0.0
    %2483 = vmatprep.subr.mxu0 0.0
    %2484 = vmatpush1.msra.mxu0 0.0
    %2485 = vmatprep.subr.mxu0 0.0
    %2486 = vmatpush1.msra.mxu0 0.0
    %2487 = vmatprep.subr.mxu0 0.0
    %2488 = vmatpush1.msra.mxu0 0.0
    %2489 = vmatprep.subr.mxu0 0.0
    %2490 = vmatpush1.msra.mxu0 0.0
    %2491 = vmatprep.subr.mxu0 0.0
    %2492 = vmatpush1.msra.mxu0 0.0
    %2493 = vmatprep.subr.mxu0 0.0
    %2494 = vmatpush1.msra.mxu0 0.0
    %2495 = vmatprep.subr.mxu0 0.0
    %2496 = vmatpush1.msra.mxu0 0.0
    %2497 = vmatprep.subr.mxu0 0.0
    %2498 = vmatpush1.msra.mxu0 0.0
    %2499 = vmatprep.subr.mxu0 0.0
    %2500 = vmatpush1.msra.mxu0 0.0
    %2501 = vmatprep.subr.mxu0 0.0
    %2502 = vmatpush1.msra.mxu0 0.0
    %2503 = vmatprep.subr.mxu0 0.0
    %2504 = vmatpush1.msra.mxu0 0.0
    %2505 = vmatprep.subr.mxu0 0.0
    %2506 = vmatpush1.msra.mxu0 0.0
    %2507 = vmatprep.subr.mxu0 0.0
    %2508 = vmatpush1.msra.mxu0 0.0
    %2509 = vmatprep.subr.mxu0 0.0
    %2510 = vmatpush1.msra.mxu0 0.0
    %2511 = vmatprep.subr.mxu0 0.0
    %2512 = vmatpush1.msra.mxu0 0.0
    %2513 = vmatprep.mubr.f32.mxu0 0.0
    %2514 = vmatmul.mubr.f32.gmra.mrb[0].mxu0 %v2190
    %v2515 = vpop.f32.mrb[0].mxu0
    %v2516 = vadd.f32 0.0, %v2515
    %v2517 = vpop.f32.mrb[0].mxu0
    %v2518 = vadd.f32 0.0, %v2517
    %2519 = vdwg.mxu0
    %v2524 = vrot.slane %v2445, 5
    %v2525 = vrot.slane %v2447, 5
    %v2526 = vrot.slane %v2516, 5
    %v2527 = vrot.slane %v2518, 5
    %v2532 = vadd.f32 %v499, %v2524
    %v2533 = vadd.f32 %v501, %v2525
    %v2534 = vadd.f32 %v570, %v2526
    %v2535 = vadd.f32 %v572, %v2527
    %v2536 = vxor.u32 %v2532, 2147483648
    %v2537 = vmul.f32 %v2536, 1.442695
    %v2538 = vpow.pop %v2537
    %v2539 = vadd.f32 %v2538, 1.0
    %v2540 = vrcp.pop %v2539
    %v2541 = vmul.f32 1.0, %v2540
    %v2542 = vxor.u32 %v2533, 2147483648
    %v2543 = vmul.f32 %v2542, 1.442695
    %v2544 = vpow.pop %v2543
    %v2545 = vadd.f32 %v2544, 1.0
    %v2546 = vrcp.pop %v2545
    %v2547 = vmul.f32 1.0, %v2546
    %v2548 = vtanh.pop %v2534
    %v2549 = vxor.u32 %v2535, 2147483648
    %v2550 = vmul.f32 %v2549, 1.442695
    %v2551 = vpow.pop %v2550
    %v2552 = vadd.f32 %v2551, 1.0
    %v2553 = vrcp.pop %v2552
    %v2554 = vmul.f32 1.0, %v2553
    %v2556 = vrot.slane %v2182, 1
    %v2558 = vmul.f32 %v2547, %v2556
    %v2559 = vmul.f32 %v2541, %v2548
    %v2560 = vadd.f32 %v2558, %v2559
    %v2561 = vtanh.pop %v2560
    %v2562 = vmul.f32 %v2554, %v2561
    %v2564 = vrot.slane %v2377, 4
    %2566 = vst [vmem:[#allocation3 + $0x4] sm:$0x1] %v2564
    %v2568 = vrot.slane %v2562, 3
    %2570 = vst [vmem:[#allocation3 + $0xb] sm:$0x1] %v2568
    %2571 = vmatprep.subr.mxu0 %v575
    %2572 = vmatpush1.msra.mxu0 %v574
    %2573 = vmatprep.subr.mxu0 %v579
    %2574 = vmatpush1.msra.mxu0 %v578
    %2575 = vmatprep.subr.mxu0 %v583
    %2576 = vmatpush1.msra.mxu0 %v582
    %2577 = vmatprep.subr.mxu0 %v587
    %2578 = vmatpush1.msra.mxu0 %v586
    %2579 = vmatprep.subr.mxu0 %v591
    %2580 = vmatpush1.msra.mxu0 %v590
    %2581 = vmatprep.subr.mxu0 %v595
    %2582 = vmatpush1.msra.mxu0 %v594
    %2583 = vmatprep.subr.mxu0 %v599
    %2584 = vmatpush1.msra.mxu0 %v598
    %2585 = vmatprep.subr.mxu0 %v603
    %2586 = vmatpush1.msra.mxu0 %v602
    %2587 = vmatprep.subr.mxu0 %v607
    %2588 = vmatpush1.msra.mxu0 %v606
    %2589 = vmatprep.subr.mxu0 %v611
    %2590 = vmatpush1.msra.mxu0 %v610
    %2591 = vmatprep.subr.mxu0 %v615
    %2592 = vmatpush1.msra.mxu0 %v614
    %2593 = vmatprep.subr.mxu0 %v619
    %2594 = vmatpush1.msra.mxu0 %v618
    %2595 = vmatprep.subr.mxu0 %v623
    %2596 = vmatpush1.msra.mxu0 %v622
    %2597 = vmatprep.subr.mxu0 %v627
    %2598 = vmatpush1.msra.mxu0 %v626
    %2599 = vmatprep.subr.mxu0 %v631
    %2600 = vmatpush1.msra.mxu0 %v630
    %2601 = vmatprep.subr.mxu0 %v635
    %2602 = vmatpush1.msra.mxu0 %v634
    %2603 = vmatprep.subr.mxu0 0.0
    %2604 = vmatpush1.msra.mxu0 0.0
    %2605 = vmatprep.subr.mxu0 0.0
    %2606 = vmatpush1.msra.mxu0 0.0
    %2607 = vmatprep.subr.mxu0 0.0
    %2608 = vmatpush1.msra.mxu0 0.0
    %2609 = vmatprep.subr.mxu0 0.0
    %2610 = vmatpush1.msra.mxu0 0.0
    %2611 = vmatprep.subr.mxu0 0.0
    %2612 = vmatpush1.msra.mxu0 0.0
    %2613 = vmatprep.subr.mxu0 0.0
    %2614 = vmatpush1.msra.mxu0 0.0
    %2615 = vmatprep.subr.mxu0 0.0
    %2616 = vmatpush1.msra.mxu0 0.0
    %2617 = vmatprep.subr.mxu0 0.0
    %2618 = vmatpush1.msra.mxu0 0.0
    %2619 = vmatprep.subr.mxu0 0.0
    %2620 = vmatpush1.msra.mxu0 0.0
    %2621 = vmatprep.subr.mxu0 0.0
    %2622 = vmatpush1.msra.mxu0 0.0
    %2623 = vmatprep.subr.mxu0 0.0
    %2624 = vmatpush1.msra.mxu0 0.0
    %2625 = vmatprep.subr.mxu0 0.0
    %2626 = vmatpush1.msra.mxu0 0.0
    %2627 = vmatprep.subr.mxu0 0.0
    %2628 = vmatpush1.msra.mxu0 0.0
    %2629 = vmatprep.subr.mxu0 0.0
    %2630 = vmatpush1.msra.mxu0 0.0
    %2631 = vmatprep.subr.mxu0 0.0
    %2632 = vmatpush1.msra.mxu0 0.0
    %2633 = vmatprep.subr.mxu0 0.0
    %2634 = vmatpush1.msra.mxu0 0.0
    %2635 = vmatprep.mubr.f32.mxu0 0.0
    %2636 = vmatmul.mubr.f32.gmra.mrb[0].mxu0 %v2564
    %v2637 = vpop.f32.mrb[0].mxu0
    %v2638 = vadd.f32 0.0, %v2637
    %v2639 = vpop.f32.mrb[0].mxu0
    %v2640 = vadd.f32 0.0, %v2639
    %2641 = vdwg.mxu0
    %2642 = vmatprep.subr.mxu0 %v577
    %2643 = vmatpush1.msra.mxu0 %v576
    %2644 = vmatprep.subr.mxu0 %v581
    %2645 = vmatpush1.msra.mxu0 %v580
    %2646 = vmatprep.subr.mxu0 %v585
    %2647 = vmatpush1.msra.mxu0 %v584
    %2648 = vmatprep.subr.mxu0 %v589
    %2649 = vmatpush1.msra.mxu0 %v588
    %2650 = vmatprep.subr.mxu0 %v593
    %2651 = vmatpush1.msra.mxu0 %v592
    %2652 = vmatprep.subr.mxu0 %v597
    %2653 = vmatpush1.msra.mxu0 %v596
    %2654 = vmatprep.subr.mxu0 %v601
    %2655 = vmatpush1.msra.mxu0 %v600
    %2656 = vmatprep.subr.mxu0 %v605
    %2657 = vmatpush1.msra.mxu0 %v604
    %2658 = vmatprep.subr.mxu0 %v609
    %2659 = vmatpush1.msra.mxu0 %v608
    %2660 = vmatprep.subr.mxu0 %v613
    %2661 = vmatpush1.msra.mxu0 %v612
    %2662 = vmatprep.subr.mxu0 %v617
    %2663 = vmatpush1.msra.mxu0 %v616
    %2664 = vmatprep.subr.mxu0 %v621
    %2665 = vmatpush1.msra.mxu0 %v620
    %2666 = vmatprep.subr.mxu0 %v625
    %2667 = vmatpush1.msra.mxu0 %v624
    %2668 = vmatprep.subr.mxu0 %v629
    %2669 = vmatpush1.msra.mxu0 %v628
    %2670 = vmatprep.subr.mxu0 %v633
    %2671 = vmatpush1.msra.mxu0 %v632
    %2672 = vmatprep.subr.mxu0 %v637
    %2673 = vmatpush1.msra.mxu0 %v636
    %2674 = vmatprep.subr.mxu0 0.0
    %2675 = vmatpush1.msra.mxu0 0.0
    %2676 = vmatprep.subr.mxu0 0.0
    %2677 = vmatpush1.msra.mxu0 0.0
    %2678 = vmatprep.subr.mxu0 0.0
    %2679 = vmatpush1.msra.mxu0 0.0
    %2680 = vmatprep.subr.mxu0 0.0
    %2681 = vmatpush1.msra.mxu0 0.0
    %2682 = vmatprep.subr.mxu0 0.0
    %2683 = vmatpush1.msra.mxu0 0.0
    %2684 = vmatprep.subr.mxu0 0.0
    %2685 = vmatpush1.msra.mxu0 0.0
    %2686 = vmatprep.subr.mxu0 0.0
    %2687 = vmatpush1.msra.mxu0 0.0
    %2688 = vmatprep.subr.mxu0 0.0
    %2689 = vmatpush1.msra.mxu0 0.0
    %2690 = vmatprep.subr.mxu0 0.0
    %2691 = vmatpush1.msra.mxu0 0.0
    %2692 = vmatprep.subr.mxu0 0.0
    %2693 = vmatpush1.msra.mxu0 0.0
    %2694 = vmatprep.subr.mxu0 0.0
    %2695 = vmatpush1.msra.mxu0 0.0
    %2696 = vmatprep.subr.mxu0 0.0
    %2697 = vmatpush1.msra.mxu0 0.0
    %2698 = vmatprep.subr.mxu0 0.0
    %2699 = vmatpush1.msra.mxu0 0.0
    %2700 = vmatprep.subr.mxu0 0.0
    %2701 = vmatpush1.msra.mxu0 0.0
    %2702 = vmatprep.subr.mxu0 0.0
    %2703 = vmatpush1.msra.mxu0 0.0
    %2704 = vmatprep.subr.mxu0 0.0
    %2705 = vmatpush1.msra.mxu0 0.0
    %2706 = vmatprep.mubr.f32.mxu0 0.0
    %2707 = vmatmul.mubr.f32.gmra.mrb[0].mxu0 %v2564
    %v2708 = vpop.f32.mrb[0].mxu0
    %v2709 = vadd.f32 0.0, %v2708
    %v2710 = vpop.f32.mrb[0].mxu0
    %v2711 = vadd.f32 0.0, %v2710
    %2712 = vdwg.mxu0
    %v2717 = vrot.slane %v2638, 3
    %v2718 = vrot.slane %v2640, 3
    %v2719 = vrot.slane %v2709, 3
    %v2720 = vrot.slane %v2711, 3
    %v2725 = vadd.f32 %v319, %v2717
    %v2726 = vadd.f32 %v321, %v2718
    %v2727 = vadd.f32 %v390, %v2719
    %v2728 = vadd.f32 %v392, %v2720
    %v2729 = vxor.u32 %v2725, 2147483648
    %v2730 = vmul.f32 %v2729, 1.442695
    %v2731 = vpow.pop %v2730
    %v2732 = vadd.f32 %v2731, 1.0
    %v2733 = vrcp.pop %v2732
    %v2734 = vmul.f32 1.0, %v2733
    %v2735 = vxor.u32 %v2726, 2147483648
    %v2736 = vmul.f32 %v2735, 1.442695
    %v2737 = vpow.pop %v2736
    %v2738 = vadd.f32 %v2737, 1.0
    %v2739 = vrcp.pop %v2738
    %v2740 = vmul.f32 1.0, %v2739
    %v2741 = vtanh.pop %v2727
    %v2742 = vxor.u32 %v2728, 2147483648
    %v2743 = vmul.f32 %v2742, 1.442695
    %v2744 = vpow.pop %v2743
    %v2745 = vadd.f32 %v2744, 1.0
    %v2746 = vrcp.pop %v2745
    %v2747 = vmul.f32 1.0, %v2746
    %v2749 = vrot.slane %v2375, 7
    %v2751 = vmul.f32 %v2740, %v2749
    %v2752 = vmul.f32 %v2734, %v2741
    %v2753 = vadd.f32 %v2751, %v2752
    %v2754 = vtanh.pop %v2753
    %v2755 = vmul.f32 %v2747, %v2754
    %2756 = vmatprep.subr.mxu0 %v639
    %2757 = vmatpush1.msra.mxu0 %v638
    %2758 = vmatprep.subr.mxu0 %v643
    %2759 = vmatpush1.msra.mxu0 %v642
    %2760 = vmatprep.subr.mxu0 %v647
    %2761 = vmatpush1.msra.mxu0 %v646
    %2762 = vmatprep.subr.mxu0 %v651
    %2763 = vmatpush1.msra.mxu0 %v650
    %2764 = vmatprep.subr.mxu0 %v655
    %2765 = vmatpush1.msra.mxu0 %v654
    %2766 = vmatprep.subr.mxu0 %v659
    %2767 = vmatpush1.msra.mxu0 %v658
    %2768 = vmatprep.subr.mxu0 %v663
    %2769 = vmatpush1.msra.mxu0 %v662
    %2770 = vmatprep.subr.mxu0 %v667
    %2771 = vmatpush1.msra.mxu0 %v666
    %2772 = vmatprep.subr.mxu0 %v671
    %2773 = vmatpush1.msra.mxu0 %v670
    %2774 = vmatprep.subr.mxu0 %v675
    %2775 = vmatpush1.msra.mxu0 %v674
    %2776 = vmatprep.subr.mxu0 %v679
    %2777 = vmatpush1.msra.mxu0 %v678
    %2778 = vmatprep.subr.mxu0 %v683
    %2779 = vmatpush1.msra.mxu0 %v682
    %2780 = vmatprep.subr.mxu0 %v687
    %2781 = vmatpush1.msra.mxu0 %v686
    %2782 = vmatprep.subr.mxu0 %v691
    %2783 = vmatpush1.msra.mxu0 %v690
    %2784 = vmatprep.subr.mxu0 %v695
    %2785 = vmatpush1.msra.mxu0 %v694
    %2786 = vmatprep.subr.mxu0 %v699
    %2787 = vmatpush1.msra.mxu0 %v698
    %2788 = vmatprep.subr.mxu0 0.0
    %2789 = vmatpush1.msra.mxu0 0.0
    %2790 = vmatprep.subr.mxu0 0.0
    %2791 = vmatpush1.msra.mxu0 0.0
    %2792 = vmatprep.subr.mxu0 0.0
    %2793 = vmatpush1.msra.mxu0 0.0
    %2794 = vmatprep.subr.mxu0 0.0
    %2795 = vmatpush1.msra.mxu0 0.0
    %2796 = vmatprep.subr.mxu0 0.0
    %2797 = vmatpush1.msra.mxu0 0.0
    %2798 = vmatprep.subr.mxu0 0.0
    %2799 = vmatpush1.msra.mxu0 0.0
    %2800 = vmatprep.subr.mxu0 0.0
    %2801 = vmatpush1.msra.mxu0 0.0
    %2802 = vmatprep.subr.mxu0 0.0
    %2803 = vmatpush1.msra.mxu0 0.0
    %2804 = vmatprep.subr.mxu0 0.0
    %2805 = vmatpush1.msra.mxu0 0.0
    %2806 = vmatprep.subr.mxu0 0.0
    %2807 = vmatpush1.msra.mxu0 0.0
    %2808 = vmatprep.subr.mxu0 0.0
    %2809 = vmatpush1.msra.mxu0 0.0
    %2810 = vmatprep.subr.mxu0 0.0
    %2811 = vmatpush1.msra.mxu0 0.0
    %2812 = vmatprep.subr.mxu0 0.0
    %2813 = vmatpush1.msra.mxu0 0.0
    %2814 = vmatprep.subr.mxu0 0.0
    %2815 = vmatpush1.msra.mxu0 0.0
    %2816 = vmatprep.subr.mxu0 0.0
    %2817 = vmatpush1.msra.mxu0 0.0
    %2818 = vmatprep.subr.mxu0 0.0
    %2819 = vmatpush1.msra.mxu0 0.0
    %2820 = vmatprep.mubr.f32.mxu0 0.0
    %2821 = vmatmul.mubr.f32.gmra.mrb[0].mxu0 %v2568
    %v2822 = vpop.f32.mrb[0].mxu0
    %v2823 = vadd.f32 0.0, %v2822
    %v2824 = vpop.f32.mrb[0].mxu0
    %v2825 = vadd.f32 0.0, %v2824
    %2826 = vdwg.mxu0
    %2827 = vmatprep.subr.mxu0 %v641
    %2828 = vmatpush1.msra.mxu0 %v640
    %2829 = vmatprep.subr.mxu0 %v645
    %2830 = vmatpush1.msra.mxu0 %v644
    %2831 = vmatprep.subr.mxu0 %v649
    %2832 = vmatpush1.msra.mxu0 %v648
    %2833 = vmatprep.subr.mxu0 %v653
    %2834 = vmatpush1.msra.mxu0 %v652
    %2835 = vmatprep.subr.mxu0 %v657
    %2836 = vmatpush1.msra.mxu0 %v656
    %2837 = vmatprep.subr.mxu0 %v661
    %2838 = vmatpush1.msra.mxu0 %v660
    %2839 = vmatprep.subr.mxu0 %v665
    %2840 = vmatpush1.msra.mxu0 %v664
    %2841 = vmatprep.subr.mxu0 %v669
    %2842 = vmatpush1.msra.mxu0 %v668
    %2843 = vmatprep.subr.mxu0 %v673
    %2844 = vmatpush1.msra.mxu0 %v672
    %2845 = vmatprep.subr.mxu0 %v677
    %2846 = vmatpush1.msra.mxu0 %v676
    %2847 = vmatprep.subr.mxu0 %v681
    %2848 = vmatpush1.msra.mxu0 %v680
    %2849 = vmatprep.subr.mxu0 %v685
    %2850 = vmatpush1.msra.mxu0 %v684
    %2851 = vmatprep.subr.mxu0 %v689
    %2852 = vmatpush1.msra.mxu0 %v688
    %2853 = vmatprep.subr.mxu0 %v693
    %2854 = vmatpush1.msra.mxu0 %v692
    %2855 = vmatprep.subr.mxu0 %v697
    %2856 = vmatpush1.msra.mxu0 %v696
    %2857 = vmatprep.subr.mxu0 %v701
    %2858 = vmatpush1.msra.mxu0 %v700
    %2859 = vmatprep.subr.mxu0 0.0
    %2860 = vmatpush1.msra.mxu0 0.0
    %2861 = vmatprep.subr.mxu0 0.0
    %2862 = vmatpush1.msra.mxu0 0.0
    %2863 = vmatprep.subr.mxu0 0.0
    %2864 = vmatpush1.msra.mxu0 0.0
    %2865 = vmatprep.subr.mxu0 0.0
    %2866 = vmatpush1.msra.mxu0 0.0
    %2867 = vmatprep.subr.mxu0 0.0
    %2868 = vmatpush1.msra.mxu0 0.0
    %2869 = vmatprep.subr.mxu0 0.0
    %2870 = vmatpush1.msra.mxu0 0.0
    %2871 = vmatprep.subr.mxu0 0.0
    %2872 = vmatpush1.msra.mxu0 0.0
    %2873 = vmatprep.subr.mxu0 0.0
    %2874 = vmatpush1.msra.mxu0 0.0
    %2875 = vmatprep.subr.mxu0 0.0
    %2876 = vmatpush1.msra.mxu0 0.0
    %2877 = vmatprep.subr.mxu0 0.0
    %2878 = vmatpush1.msra.mxu0 0.0
    %2879 = vmatprep.subr.mxu0 0.0
    %2880 = vmatpush1.msra.mxu0 0.0
    %2881 = vmatprep.subr.mxu0 0.0
    %2882 = vmatpush1.msra.mxu0 0.0
    %2883 = vmatprep.subr.mxu0 0.0
    %2884 = vmatpush1.msra.mxu0 0.0
    %2885 = vmatprep.subr.mxu0 0.0
    %2886 = vmatpush1.msra.mxu0 0.0
    %2887 = vmatprep.subr.mxu0 0.0
    %2888 = vmatpush1.msra.mxu0 0.0
    %2889 = vmatprep.subr.mxu0 0.0
    %2890 = vmatpush1.msra.mxu0 0.0
    %2891 = vmatprep.mubr.f32.mxu0 0.0
    %2892 = vmatmul.mubr.f32.gmra.mrb[0].mxu0 %v2568
    %v2893 = vpop.f32.mrb[0].mxu0
    %v2894 = vadd.f32 0.0, %v2893
    %v2895 = vpop.f32.mrb[0].mxu0
    %v2896 = vadd.f32 0.0, %v2895
    %2897 = vdwg.mxu0
    %v2902 = vrot.slane %v2823, 6
    %v2903 = vrot.slane %v2825, 6
    %v2904 = vrot.slane %v2894, 6
    %v2905 = vrot.slane %v2896, 6
    %v2910 = vadd.f32 %v499, %v2902
    %v2911 = vadd.f32 %v501, %v2903
    %v2912 = vadd.f32 %v570, %v2904
    %v2913 = vadd.f32 %v572, %v2905
    %v2914 = vxor.u32 %v2910, 2147483648
    %v2915 = vmul.f32 %v2914, 1.442695
    %v2916 = vpow.pop %v2915
    %v2917 = vadd.f32 %v2916, 1.0
    %v2918 = vrcp.pop %v2917
    %v2919 = vmul.f32 1.0, %v2918
    %v2920 = vxor.u32 %v2911, 2147483648
    %v2921 = vmul.f32 %v2920, 1.442695
    %v2922 = vpow.pop %v2921
    %v2923 = vadd.f32 %v2922, 1.0
    %v2924 = vrcp.pop %v2923
    %v2925 = vmul.f32 1.0, %v2924
    %v2926 = vtanh.pop %v2912
    %v2927 = vxor.u32 %v2913, 2147483648
    %v2928 = vmul.f32 %v2927, 1.442695
    %v2929 = vpow.pop %v2928
    %v2930 = vadd.f32 %v2929, 1.0
    %v2931 = vrcp.pop %v2930
    %v2932 = vmul.f32 1.0, %v2931
    %v2934 = vrot.slane %v2560, 1
    %v2936 = vmul.f32 %v2925, %v2934
    %v2937 = vmul.f32 %v2919, %v2926
    %v2938 = vadd.f32 %v2936, %v2937
    %v2939 = vtanh.pop %v2938
    %v2940 = vmul.f32 %v2932, %v2939
    %v2942 = vrot.slane %v2755, 5
    %2944 = vst [vmem:[#allocation3 + $0x5] sm:$0x1] %v2942
    %v2946 = vrot.slane %v2940, 2
    %2948 = vst [vmem:[#allocation3 + $0xa] sm:$0x1] %v2946
    %2949 = vmatprep.subr.mxu0 %v575
    %2950 = vmatpush1.msra.mxu0 %v574
    %2951 = vmatprep.subr.mxu0 %v579
    %2952 = vmatpush1.msra.mxu0 %v578
    %2953 = vmatprep.subr.mxu0 %v583
    %2954 = vmatpush1.msra.mxu0 %v582
    %2955 = vmatprep.subr.mxu0 %v587
    %2956 = vmatpush1.msra.mxu0 %v586
    %2957 = vmatprep.subr.mxu0 %v591
    %2958 = vmatpush1.msra.mxu0 %v590
    %2959 = vmatprep.subr.mxu0 %v595
    %2960 = vmatpush1.msra.mxu0 %v594
    %2961 = vmatprep.subr.mxu0 %v599
    %2962 = vmatpush1.msra.mxu0 %v598
    %2963 = vmatprep.subr.mxu0 %v603
    %2964 = vmatpush1.msra.mxu0 %v602
    %2965 = vmatprep.subr.mxu0 %v607
    %2966 = vmatpush1.msra.mxu0 %v606
    %2967 = vmatprep.subr.mxu0 %v611
    %2968 = vmatpush1.msra.mxu0 %v610
    %2969 = vmatprep.subr.mxu0 %v615
    %2970 = vmatpush1.msra.mxu0 %v614
    %2971 = vmatprep.subr.mxu0 %v619
    %2972 = vmatpush1.msra.mxu0 %v618
    %2973 = vmatprep.subr.mxu0 %v623
    %2974 = vmatpush1.msra.mxu0 %v622
    %2975 = vmatprep.subr.mxu0 %v627
    %2976 = vmatpush1.msra.mxu0 %v626
    %2977 = vmatprep.subr.mxu0 %v631
    %2978 = vmatpush1.msra.mxu0 %v630
    %2979 = vmatprep.subr.mxu0 %v635
    %2980 = vmatpush1.msra.mxu0 %v634
    %2981 = vmatprep.subr.mxu0 0.0
    %2982 = vmatpush1.msra.mxu0 0.0
    %2983 = vmatprep.subr.mxu0 0.0
    %2984 = vmatpush1.msra.mxu0 0.0
    %2985 = vmatprep.subr.mxu0 0.0
    %2986 = vmatpush1.msra.mxu0 0.0
    %2987 = vmatprep.subr.mxu0 0.0
    %2988 = vmatpush1.msra.mxu0 0.0
    %2989 = vmatprep.subr.mxu0 0.0
    %2990 = vmatpush1.msra.mxu0 0.0
    %2991 = vmatprep.subr.mxu0 0.0
    %2992 = vmatpush1.msra.mxu0 0.0
    %2993 = vmatprep.subr.mxu0 0.0
    %2994 = vmatpush1.msra.mxu0 0.0
    %2995 = vmatprep.subr.mxu0 0.0
    %2996 = vmatpush1.msra.mxu0 0.0
    %2997 = vmatprep.subr.mxu0 0.0
    %2998 = vmatpush1.msra.mxu0 0.0
    %2999 = vmatprep.subr.mxu0 0.0
    %3000 = vmatpush1.msra.mxu0 0.0
    %3001 = vmatprep.subr.mxu0 0.0
    %3002 = vmatpush1.msra.mxu0 0.0
    %3003 = vmatprep.subr.mxu0 0.0
    %3004 = vmatpush1.msra.mxu0 0.0
    %3005 = vmatprep.subr.mxu0 0.0
    %3006 = vmatpush1.msra.mxu0 0.0
    %3007 = vmatprep.subr.mxu0 0.0
    %3008 = vmatpush1.msra.mxu0 0.0
    %3009 = vmatprep.subr.mxu0 0.0
    %3010 = vmatpush1.msra.mxu0 0.0
    %3011 = vmatprep.subr.mxu0 0.0
    %3012 = vmatpush1.msra.mxu0 0.0
    %3013 = vmatprep.mubr.f32.mxu0 0.0
    %3014 = vmatmul.mubr.f32.gmra.mrb[0].mxu0 %v2942
    %v3015 = vpop.f32.mrb[0].mxu0
    %v3016 = vadd.f32 0.0, %v3015
    %v3017 = vpop.f32.mrb[0].mxu0
    %v3018 = vadd.f32 0.0, %v3017
    %3019 = vdwg.mxu0
    %3020 = vmatprep.subr.mxu0 %v577
    %3021 = vmatpush1.msra.mxu0 %v576
    %3022 = vmatprep.subr.mxu0 %v581
    %3023 = vmatpush1.msra.mxu0 %v580
    %3024 = vmatprep.subr.mxu0 %v585
    %3025 = vmatpush1.msra.mxu0 %v584
    %3026 = vmatprep.subr.mxu0 %v589
    %3027 = vmatpush1.msra.mxu0 %v588
    %3028 = vmatprep.subr.mxu0 %v593
    %3029 = vmatpush1.msra.mxu0 %v592
    %3030 = vmatprep.subr.mxu0 %v597
    %3031 = vmatpush1.msra.mxu0 %v596
    %3032 = vmatprep.subr.mxu0 %v601
    %3033 = vmatpush1.msra.mxu0 %v600
    %3034 = vmatprep.subr.mxu0 %v605
    %3035 = vmatpush1.msra.mxu0 %v604
    %3036 = vmatprep.subr.mxu0 %v609
    %3037 = vmatpush1.msra.mxu0 %v608
    %3038 = vmatprep.subr.mxu0 %v613
    %3039 = vmatpush1.msra.mxu0 %v612
    %3040 = vmatprep.subr.mxu0 %v617
    %3041 = vmatpush1.msra.mxu0 %v616
    %3042 = vmatprep.subr.mxu0 %v621
    %3043 = vmatpush1.msra.mxu0 %v620
    %3044 = vmatprep.subr.mxu0 %v625
    %3045 = vmatpush1.msra.mxu0 %v624
    %3046 = vmatprep.subr.mxu0 %v629
    %3047 = vmatpush1.msra.mxu0 %v628
    %3048 = vmatprep.subr.mxu0 %v633
    %3049 = vmatpush1.msra.mxu0 %v632
    %3050 = vmatprep.subr.mxu0 %v637
    %3051 = vmatpush1.msra.mxu0 %v636
    %3052 = vmatprep.subr.mxu0 0.0
    %3053 = vmatpush1.msra.mxu0 0.0
    %3054 = vmatprep.subr.mxu0 0.0
    %3055 = vmatpush1.msra.mxu0 0.0
    %3056 = vmatprep.subr.mxu0 0.0
    %3057 = vmatpush1.msra.mxu0 0.0
    %3058 = vmatprep.subr.mxu0 0.0
    %3059 = vmatpush1.msra.mxu0 0.0
    %3060 = vmatprep.subr.mxu0 0.0
    %3061 = vmatpush1.msra.mxu0 0.0
    %3062 = vmatprep.subr.mxu0 0.0
    %3063 = vmatpush1.msra.mxu0 0.0
    %3064 = vmatprep.subr.mxu0 0.0
    %3065 = vmatpush1.msra.mxu0 0.0
    %3066 = vmatprep.subr.mxu0 0.0
    %3067 = vmatpush1.msra.mxu0 0.0
    %3068 = vmatprep.subr.mxu0 0.0
    %3069 = vmatpush1.msra.mxu0 0.0
    %3070 = vmatprep.subr.mxu0 0.0
    %3071 = vmatpush1.msra.mxu0 0.0
    %3072 = vmatprep.subr.mxu0 0.0
    %3073 = vmatpush1.msra.mxu0 0.0
    %3074 = vmatprep.subr.mxu0 0.0
    %3075 = vmatpush1.msra.mxu0 0.0
    %3076 = vmatprep.subr.mxu0 0.0
    %3077 = vmatpush1.msra.mxu0 0.0
    %3078 = vmatprep.subr.mxu0 0.0
    %3079 = vmatpush1.msra.mxu0 0.0
    %3080 = vmatprep.subr.mxu0 0.0
    %3081 = vmatpush1.msra.mxu0 0.0
    %3082 = vmatprep.subr.mxu0 0.0
    %3083 = vmatpush1.msra.mxu0 0.0
    %3084 = vmatprep.mubr.f32.mxu0 0.0
    %3085 = vmatmul.mubr.f32.gmra.mrb[0].mxu0 %v2942
    %v3086 = vpop.f32.mrb[0].mxu0
    %v3087 = vadd.f32 0.0, %v3086
    %v3088 = vpop.f32.mrb[0].mxu0
    %v3089 = vadd.f32 0.0, %v3088
    %3090 = vdwg.mxu0
    %v3095 = vrot.slane %v3016, 2
    %v3096 = vrot.slane %v3018, 2
    %v3097 = vrot.slane %v3087, 2
    %v3098 = vrot.slane %v3089, 2
    %v3103 = vadd.f32 %v319, %v3095
    %v3104 = vadd.f32 %v321, %v3096
    %v3105 = vadd.f32 %v390, %v3097
    %v3106 = vadd.f32 %v392, %v3098
    %v3107 = vxor.u32 %v3103, 2147483648
    %v3108 = vmul.f32 %v3107, 1.442695
    %v3109 = vpow.pop %v3108
    %v3110 = vadd.f32 %v3109, 1.0
    %v3111 = vrcp.pop %v3110
    %v3112 = vmul.f32 1.0, %v3111
    %v3113 = vxor.u32 %v3104, 2147483648
    %v3114 = vmul.f32 %v3113, 1.442695
    %v3115 = vpow.pop %v3114
    %v3116 = vadd.f32 %v3115, 1.0
    %v3117 = vrcp.pop %v3116
    %v3118 = vmul.f32 1.0, %v3117
    %v3119 = vtanh.pop %v3105
    %v3120 = vxor.u32 %v3106, 2147483648
    %v3121 = vmul.f32 %v3120, 1.442695
    %v3122 = vpow.pop %v3121
    %v3123 = vadd.f32 %v3122, 1.0
    %v3124 = vrcp.pop %v3123
    %v3125 = vmul.f32 1.0, %v3124
    %v3127 = vrot.slane %v2753, 7
    %v3129 = vmul.f32 %v3118, %v3127
    %v3130 = vmul.f32 %v3112, %v3119
    %v3131 = vadd.f32 %v3129, %v3130
    %v3132 = vtanh.pop %v3131
    %v3133 = vmul.f32 %v3125, %v3132
    %3134 = vmatprep.subr.mxu0 %v639
    %3135 = vmatpush1.msra.mxu0 %v638
    %3136 = vmatprep.subr.mxu0 %v643
    %3137 = vmatpush1.msra.mxu0 %v642
    %3138 = vmatprep.subr.mxu0 %v647
    %3139 = vmatpush1.msra.mxu0 %v646
    %3140 = vmatprep.subr.mxu0 %v651
    %3141 = vmatpush1.msra.mxu0 %v650
    %3142 = vmatprep.subr.mxu0 %v655
    %3143 = vmatpush1.msra.mxu0 %v654
    %3144 = vmatprep.subr.mxu0 %v659
    %3145 = vmatpush1.msra.mxu0 %v658
    %3146 = vmatprep.subr.mxu0 %v663
    %3147 = vmatpush1.msra.mxu0 %v662
    %3148 = vmatprep.subr.mxu0 %v667
    %3149 = vmatpush1.msra.mxu0 %v666
    %3150 = vmatprep.subr.mxu0 %v671
    %3151 = vmatpush1.msra.mxu0 %v670
    %3152 = vmatprep.subr.mxu0 %v675
    %3153 = vmatpush1.msra.mxu0 %v674
    %3154 = vmatprep.subr.mxu0 %v679
    %3155 = vmatpush1.msra.mxu0 %v678
    %3156 = vmatprep.subr.mxu0 %v683
    %3157 = vmatpush1.msra.mxu0 %v682
    %3158 = vmatprep.subr.mxu0 %v687
    %3159 = vmatpush1.msra.mxu0 %v686
    %3160 = vmatprep.subr.mxu0 %v691
    %3161 = vmatpush1.msra.mxu0 %v690
    %3162 = vmatprep.subr.mxu0 %v695
    %3163 = vmatpush1.msra.mxu0 %v694
    %3164 = vmatprep.subr.mxu0 %v699
    %3165 = vmatpush1.msra.mxu0 %v698
    %3166 = vmatprep.subr.mxu0 0.0
    %3167 = vmatpush1.msra.mxu0 0.0
    %3168 = vmatprep.subr.mxu0 0.0
    %3169 = vmatpush1.msra.mxu0 0.0
    %3170 = vmatprep.subr.mxu0 0.0
    %3171 = vmatpush1.msra.mxu0 0.0
    %3172 = vmatprep.subr.mxu0 0.0
    %3173 = vmatpush1.msra.mxu0 0.0
    %3174 = vmatprep.subr.mxu0 0.0
    %3175 = vmatpush1.msra.mxu0 0.0
    %3176 = vmatprep.subr.mxu0 0.0
    %3177 = vmatpush1.msra.mxu0 0.0
    %3178 = vmatprep.subr.mxu0 0.0
    %3179 = vmatpush1.msra.mxu0 0.0
    %3180 = vmatprep.subr.mxu0 0.0
    %3181 = vmatpush1.msra.mxu0 0.0
    %3182 = vmatprep.subr.mxu0 0.0
    %3183 = vmatpush1.msra.mxu0 0.0
    %3184 = vmatprep.subr.mxu0 0.0
    %3185 = vmatpush1.msra.mxu0 0.0
    %3186 = vmatprep.subr.mxu0 0.0
    %3187 = vmatpush1.msra.mxu0 0.0
    %3188 = vmatprep.subr.mxu0 0.0
    %3189 = vmatpush1.msra.mxu0 0.0
    %3190 = vmatprep.subr.mxu0 0.0
    %3191 = vmatpush1.msra.mxu0 0.0
    %3192 = vmatprep.subr.mxu0 0.0
    %3193 = vmatpush1.msra.mxu0 0.0
    %3194 = vmatprep.subr.mxu0 0.0
    %3195 = vmatpush1.msra.mxu0 0.0
    %3196 = vmatprep.subr.mxu0 0.0
    %3197 = vmatpush1.msra.mxu0 0.0
    %3198 = vmatprep.mubr.f32.mxu0 0.0
    %3199 = vmatmul.mubr.f32.gmra.mrb[0].mxu0 %v2946
    %v3200 = vpop.f32.mrb[0].mxu0
    %v3201 = vadd.f32 0.0, %v3200
    %v3202 = vpop.f32.mrb[0].mxu0
    %v3203 = vadd.f32 0.0, %v3202
    %3204 = vdwg.mxu0
    %3205 = vmatprep.subr.mxu0 %v641
    %3206 = vmatpush1.msra.mxu0 %v640
    %3207 = vmatprep.subr.mxu0 %v645
    %3208 = vmatpush1.msra.mxu0 %v644
    %3209 = vmatprep.subr.mxu0 %v649
    %3210 = vmatpush1.msra.mxu0 %v648
    %3211 = vmatprep.subr.mxu0 %v653
    %3212 = vmatpush1.msra.mxu0 %v652
    %3213 = vmatprep.subr.mxu0 %v657
    %3214 = vmatpush1.msra.mxu0 %v656
    %3215 = vmatprep.subr.mxu0 %v661
    %3216 = vmatpush1.msra.mxu0 %v660
    %3217 = vmatprep.subr.mxu0 %v665
    %3218 = vmatpush1.msra.mxu0 %v664
    %3219 = vmatprep.subr.mxu0 %v669
    %3220 = vmatpush1.msra.mxu0 %v668
    %3221 = vmatprep.subr.mxu0 %v673
    %3222 = vmatpush1.msra.mxu0 %v672
    %3223 = vmatprep.subr.mxu0 %v677
    %3224 = vmatpush1.msra.mxu0 %v676
    %3225 = vmatprep.subr.mxu0 %v681
    %3226 = vmatpush1.msra.mxu0 %v680
    %3227 = vmatprep.subr.mxu0 %v685
    %3228 = vmatpush1.msra.mxu0 %v684
    %3229 = vmatprep.subr.mxu0 %v689
    %3230 = vmatpush1.msra.mxu0 %v688
    %3231 = vmatprep.subr.mxu0 %v693
    %3232 = vmatpush1.msra.mxu0 %v692
    %3233 = vmatprep.subr.mxu0 %v697
    %3234 = vmatpush1.msra.mxu0 %v696
    %3235 = vmatprep.subr.mxu0 %v701
    %3236 = vmatpush1.msra.mxu0 %v700
    %3237 = vmatprep.subr.mxu0 0.0
    %3238 = vmatpush1.msra.mxu0 0.0
    %3239 = vmatprep.subr.mxu0 0.0
    %3240 = vmatpush1.msra.mxu0 0.0
    %3241 = vmatprep.subr.mxu0 0.0
    %3242 = vmatpush1.msra.mxu0 0.0
    %3243 = vmatprep.subr.mxu0 0.0
    %3244 = vmatpush1.msra.mxu0 0.0
    %3245 = vmatprep.subr.mxu0 0.0
    %3246 = vmatpush1.msra.mxu0 0.0
    %3247 = vmatprep.subr.mxu0 0.0
    %3248 = vmatpush1.msra.mxu0 0.0
    %3249 = vmatprep.subr.mxu0 0.0
    %3250 = vmatpush1.msra.mxu0 0.0
    %3251 = vmatprep.subr.mxu0 0.0
    %3252 = vmatpush1.msra.mxu0 0.0
    %3253 = vmatprep.subr.mxu0 0.0
    %3254 = vmatpush1.msra.mxu0 0.0
    %3255 = vmatprep.subr.mxu0 0.0
    %3256 = vmatpush1.msra.mxu0 0.0
    %3257 = vmatprep.subr.mxu0 0.0
    %3258 = vmatpush1.msra.mxu0 0.0
    %3259 = vmatprep.subr.mxu0 0.0
    %3260 = vmatpush1.msra.mxu0 0.0
    %3261 = vmatprep.subr.mxu0 0.0
    %3262 = vmatpush1.msra.mxu0 0.0
    %3263 = vmatprep.subr.mxu0 0.0
    %3264 = vmatpush1.msra.mxu0 0.0
    %3265 = vmatprep.subr.mxu0 0.0
    %3266 = vmatpush1.msra.mxu0 0.0
    %3267 = vmatprep.subr.mxu0 0.0
    %3268 = vmatpush1.msra.mxu0 0.0
    %3269 = vmatprep.mubr.f32.mxu0 0.0
    %3270 = vmatmul.mubr.f32.gmra.mrb[0].mxu0 %v2946
    %v3271 = vpop.f32.mrb[0].mxu0
    %v3272 = vadd.f32 0.0, %v3271
    %v3273 = vpop.f32.mrb[0].mxu0
    %v3274 = vadd.f32 0.0, %v3273
    %3275 = vdwg.mxu0
    %v3280 = vrot.slane %v3201, 7
    %v3281 = vrot.slane %v3203, 7
    %v3282 = vrot.slane %v3272, 7
    %v3283 = vrot.slane %v3274, 7
    %v3288 = vadd.f32 %v499, %v3280
    %v3289 = vadd.f32 %v501, %v3281
    %v3290 = vadd.f32 %v570, %v3282
    %v3291 = vadd.f32 %v572, %v3283
    %v3292 = vxor.u32 %v3288, 2147483648
    %v3293 = vmul.f32 %v3292, 1.442695
    %v3294 = vpow.pop %v3293
    %v3295 = vadd.f32 %v3294, 1.0
    %v3296 = vrcp.pop %v3295
    %v3297 = vmul.f32 1.0, %v3296
    %v3298 = vxor.u32 %v3289, 2147483648
    %v3299 = vmul.f32 %v3298, 1.442695
    %v3300 = vpow.pop %v3299
    %v3301 = vadd.f32 %v3300, 1.0
    %v3302 = vrcp.pop %v3301
    %v3303 = vmul.f32 1.0, %v3302
    %v3304 = vtanh.pop %v3290
    %v3305 = vxor.u32 %v3291, 2147483648
    %v3306 = vmul.f32 %v3305, 1.442695
    %v3307 = vpow.pop %v3306
    %v3308 = vadd.f32 %v3307, 1.0
    %v3309 = vrcp.pop %v3308
    %v3310 = vmul.f32 1.0, %v3309
    %v3312 = vrot.slane %v2938, 1
    %v3314 = vmul.f32 %v3303, %v3312
    %v3315 = vmul.f32 %v3297, %v3304
    %v3316 = vadd.f32 %v3314, %v3315
    %v3317 = vtanh.pop %v3316
    %v3318 = vmul.f32 %v3310, %v3317
    %v3320 = vrot.slane %v3133, 6
    %3322 = vst [vmem:[#allocation3 + $0x6] sm:$0x1] %v3320
    %v3324 = vrot.slane %v3318, 1
    %3326 = vst [vmem:[#allocation3 + $0x9] sm:$0x1] %v3324
    %3327 = vmatprep.subr.mxu0 %v575
    %3328 = vmatpush1.msra.mxu0 %v574
    %3329 = vmatprep.subr.mxu0 %v579
    %3330 = vmatpush1.msra.mxu0 %v578
    %3331 = vmatprep.subr.mxu0 %v583
    %3332 = vmatpush1.msra.mxu0 %v582
    %3333 = vmatprep.subr.mxu0 %v587
    %3334 = vmatpush1.msra.mxu0 %v586
    %3335 = vmatprep.subr.mxu0 %v591
    %3336 = vmatpush1.msra.mxu0 %v590
    %3337 = vmatprep.subr.mxu0 %v595
    %3338 = vmatpush1.msra.mxu0 %v594
    %3339 = vmatprep.subr.mxu0 %v599
    %3340 = vmatpush1.msra.mxu0 %v598
    %3341 = vmatprep.subr.mxu0 %v603
    %3342 = vmatpush1.msra.mxu0 %v602
    %3343 = vmatprep.subr.mxu0 %v607
    %3344 = vmatpush1.msra.mxu0 %v606
    %3345 = vmatprep.subr.mxu0 %v611
    %3346 = vmatpush1.msra.mxu0 %v610
    %3347 = vmatprep.subr.mxu0 %v615
    %3348 = vmatpush1.msra.mxu0 %v614
    %3349 = vmatprep.subr.mxu0 %v619
    %3350 = vmatpush1.msra.mxu0 %v618
    %3351 = vmatprep.subr.mxu0 %v623
    %3352 = vmatpush1.msra.mxu0 %v622
    %3353 = vmatprep.subr.mxu0 %v627
    %3354 = vmatpush1.msra.mxu0 %v626
    %3355 = vmatprep.subr.mxu0 %v631
    %3356 = vmatpush1.msra.mxu0 %v630
    %3357 = vmatprep.subr.mxu0 %v635
    %3358 = vmatpush1.msra.mxu0 %v634
    %3359 = vmatprep.subr.mxu0 0.0
    %3360 = vmatpush1.msra.mxu0 0.0
    %3361 = vmatprep.subr.mxu0 0.0
    %3362 = vmatpush1.msra.mxu0 0.0
    %3363 = vmatprep.subr.mxu0 0.0
    %3364 = vmatpush1.msra.mxu0 0.0
    %3365 = vmatprep.subr.mxu0 0.0
    %3366 = vmatpush1.msra.mxu0 0.0
    %3367 = vmatprep.subr.mxu0 0.0
    %3368 = vmatpush1.msra.mxu0 0.0
    %3369 = vmatprep.subr.mxu0 0.0
    %3370 = vmatpush1.msra.mxu0 0.0
    %3371 = vmatprep.subr.mxu0 0.0
    %3372 = vmatpush1.msra.mxu0 0.0
    %3373 = vmatprep.subr.mxu0 0.0
    %3374 = vmatpush1.msra.mxu0 0.0
    %3375 = vmatprep.subr.mxu0 0.0
    %3376 = vmatpush1.msra.mxu0 0.0
    %3377 = vmatprep.subr.mxu0 0.0
    %3378 = vmatpush1.msra.mxu0 0.0
    %3379 = vmatprep.subr.mxu0 0.0
    %3380 = vmatpush1.msra.mxu0 0.0
    %3381 = vmatprep.subr.mxu0 0.0
    %3382 = vmatpush1.msra.mxu0 0.0
    %3383 = vmatprep.subr.mxu0 0.0
    %3384 = vmatpush1.msra.mxu0 0.0
    %3385 = vmatprep.subr.mxu0 0.0
    %3386 = vmatpush1.msra.mxu0 0.0
    %3387 = vmatprep.subr.mxu0 0.0
    %3388 = vmatpush1.msra.mxu0 0.0
    %3389 = vmatprep.subr.mxu0 0.0
    %3390 = vmatpush1.msra.mxu0 0.0
    %3391 = vmatprep.mubr.f32.mxu0 0.0
    %3392 = vmatmul.mubr.f32.gmra.mrb[0].mxu0 %v3320
    %v3393 = vpop.f32.mrb[0].mxu0
    %v3394 = vadd.f32 0.0, %v3393
    %v3395 = vpop.f32.mrb[0].mxu0
    %v3396 = vadd.f32 0.0, %v3395
    %3397 = vdwg.mxu0
    %3398 = vmatprep.subr.mxu0 %v577
    %3399 = vmatpush1.msra.mxu0 %v576
    %3400 = vmatprep.subr.mxu0 %v581
    %3401 = vmatpush1.msra.mxu0 %v580
    %3402 = vmatprep.subr.mxu0 %v585
    %3403 = vmatpush1.msra.mxu0 %v584
    %3404 = vmatprep.subr.mxu0 %v589
    %3405 = vmatpush1.msra.mxu0 %v588
    %3406 = vmatprep.subr.mxu0 %v593
    %3407 = vmatpush1.msra.mxu0 %v592
    %3408 = vmatprep.subr.mxu0 %v597
    %3409 = vmatpush1.msra.mxu0 %v596
    %3410 = vmatprep.subr.mxu0 %v601
    %3411 = vmatpush1.msra.mxu0 %v600
    %3412 = vmatprep.subr.mxu0 %v605
    %3413 = vmatpush1.msra.mxu0 %v604
    %3414 = vmatprep.subr.mxu0 %v609
    %3415 = vmatpush1.msra.mxu0 %v608
    %3416 = vmatprep.subr.mxu0 %v613
    %3417 = vmatpush1.msra.mxu0 %v612
    %3418 = vmatprep.subr.mxu0 %v617
    %3419 = vmatpush1.msra.mxu0 %v616
    %3420 = vmatprep.subr.mxu0 %v621
    %3421 = vmatpush1.msra.mxu0 %v620
    %3422 = vmatprep.subr.mxu0 %v625
    %3423 = vmatpush1.msra.mxu0 %v624
    %3424 = vmatprep.subr.mxu0 %v629
    %3425 = vmatpush1.msra.mxu0 %v628
    %3426 = vmatprep.subr.mxu0 %v633
    %3427 = vmatpush1.msra.mxu0 %v632
    %3428 = vmatprep.subr.mxu0 %v637
    %3429 = vmatpush1.msra.mxu0 %v636
    %3430 = vmatprep.subr.mxu0 0.0
    %3431 = vmatpush1.msra.mxu0 0.0
    %3432 = vmatprep.subr.mxu0 0.0
    %3433 = vmatpush1.msra.mxu0 0.0
    %3434 = vmatprep.subr.mxu0 0.0
    %3435 = vmatpush1.msra.mxu0 0.0
    %3436 = vmatprep.subr.mxu0 0.0
    %3437 = vmatpush1.msra.mxu0 0.0
    %3438 = vmatprep.subr.mxu0 0.0
    %3439 = vmatpush1.msra.mxu0 0.0
    %3440 = vmatprep.subr.mxu0 0.0
    %3441 = vmatpush1.msra.mxu0 0.0
    %3442 = vmatprep.subr.mxu0 0.0
    %3443 = vmatpush1.msra.mxu0 0.0
    %3444 = vmatprep.subr.mxu0 0.0
    %3445 = vmatpush1.msra.mxu0 0.0
    %3446 = vmatprep.subr.mxu0 0.0
    %3447 = vmatpush1.msra.mxu0 0.0
    %3448 = vmatprep.subr.mxu0 0.0
    %3449 = vmatpush1.msra.mxu0 0.0
    %3450 = vmatprep.subr.mxu0 0.0
    %3451 = vmatpush1.msra.mxu0 0.0
    %3452 = vmatprep.subr.mxu0 0.0
    %3453 = vmatpush1.msra.mxu0 0.0
    %3454 = vmatprep.subr.mxu0 0.0
    %3455 = vmatpush1.msra.mxu0 0.0
    %3456 = vmatprep.subr.mxu0 0.0
    %3457 = vmatpush1.msra.mxu0 0.0
    %3458 = vmatprep.subr.mxu0 0.0
    %3459 = vmatpush1.msra.mxu0 0.0
    %3460 = vmatprep.subr.mxu0 0.0
    %3461 = vmatpush1.msra.mxu0 0.0
    %3462 = vmatprep.mubr.f32.mxu0 0.0
    %3463 = vmatmul.mubr.f32.gmra.mrb[0].mxu0 %v3320
    %v3464 = vpop.f32.mrb[0].mxu0
    %v3465 = vadd.f32 0.0, %v3464
    %v3466 = vpop.f32.mrb[0].mxu0
    %v3467 = vadd.f32 0.0, %v3466
    %3468 = vdwg.mxu0
    %v3473 = vrot.slane %v3394, 1
    %v3474 = vrot.slane %v3396, 1
    %v3475 = vrot.slane %v3465, 1
    %v3476 = vrot.slane %v3467, 1
    %v3481 = vadd.f32 %v319, %v3473
    %v3482 = vadd.f32 %v321, %v3474
    %v3483 = vadd.f32 %v390, %v3475
    %v3484 = vadd.f32 %v392, %v3476
    %v3485 = vxor.u32 %v3481, 2147483648
    %v3486 = vmul.f32 %v3485, 1.442695
    %v3487 = vpow.pop %v3486
    %v3488 = vadd.f32 %v3487, 1.0
    %v3489 = vrcp.pop %v3488
    %v3490 = vmul.f32 1.0, %v3489
    %v3491 = vxor.u32 %v3482, 2147483648
    %v3492 = vmul.f32 %v3491, 1.442695
    %v3493 = vpow.pop %v3492
    %v3494 = vadd.f32 %v3493, 1.0
    %v3495 = vrcp.pop %v3494
    %v3496 = vmul.f32 1.0, %v3495
    %v3497 = vtanh.pop %v3483
    %v3498 = vxor.u32 %v3484, 2147483648
    %v3499 = vmul.f32 %v3498, 1.442695
    %v3500 = vpow.pop %v3499
    %v3501 = vadd.f32 %v3500, 1.0
    %v3502 = vrcp.pop %v3501
    %v3503 = vmul.f32 1.0, %v3502
    %v3505 = vrot.slane %v3131, 7
    %v3507 = vmul.f32 %v3496, %v3505
    %v3508 = vmul.f32 %v3490, %v3497
    %v3509 = vadd.f32 %v3507, %v3508
    %v3510 = vtanh.pop %v3509
    %v3511 = vmul.f32 %v3503, %v3510
    %3512 = vmatprep.subr.mxu0 %v639
    %3513 = vmatpush1.msra.mxu0 %v638
    %3514 = vmatprep.subr.mxu0 %v643
    %3515 = vmatpush1.msra.mxu0 %v642
    %3516 = vmatprep.subr.mxu0 %v647
    %3517 = vmatpush1.msra.mxu0 %v646
    %3518 = vmatprep.subr.mxu0 %v651
    %3519 = vmatpush1.msra.mxu0 %v650
    %3520 = vmatprep.subr.mxu0 %v655
    %3521 = vmatpush1.msra.mxu0 %v654
    %3522 = vmatprep.subr.mxu0 %v659
    %3523 = vmatpush1.msra.mxu0 %v658
    %3524 = vmatprep.subr.mxu0 %v663
    %3525 = vmatpush1.msra.mxu0 %v662
    %3526 = vmatprep.subr.mxu0 %v667
    %3527 = vmatpush1.msra.mxu0 %v666
    %3528 = vmatprep.subr.mxu0 %v671
    %3529 = vmatpush1.msra.mxu0 %v670
    %3530 = vmatprep.subr.mxu0 %v675
    %3531 = vmatpush1.msra.mxu0 %v674
    %3532 = vmatprep.subr.mxu0 %v679
    %3533 = vmatpush1.msra.mxu0 %v678
    %3534 = vmatprep.subr.mxu0 %v683
    %3535 = vmatpush1.msra.mxu0 %v682
    %3536 = vmatprep.subr.mxu0 %v687
    %3537 = vmatpush1.msra.mxu0 %v686
    %3538 = vmatprep.subr.mxu0 %v691
    %3539 = vmatpush1.msra.mxu0 %v690
    %3540 = vmatprep.subr.mxu0 %v695
    %3541 = vmatpush1.msra.mxu0 %v694
    %3542 = vmatprep.subr.mxu0 %v699
    %3543 = vmatpush1.msra.mxu0 %v698
    %3544 = vmatprep.subr.mxu0 0.0
    %3545 = vmatpush1.msra.mxu0 0.0
    %3546 = vmatprep.subr.mxu0 0.0
    %3547 = vmatpush1.msra.mxu0 0.0
    %3548 = vmatprep.subr.mxu0 0.0
    %3549 = vmatpush1.msra.mxu0 0.0
    %3550 = vmatprep.subr.mxu0 0.0
    %3551 = vmatpush1.msra.mxu0 0.0
    %3552 = vmatprep.subr.mxu0 0.0
    %3553 = vmatpush1.msra.mxu0 0.0
    %3554 = vmatprep.subr.mxu0 0.0
    %3555 = vmatpush1.msra.mxu0 0.0
    %3556 = vmatprep.subr.mxu0 0.0
    %3557 = vmatpush1.msra.mxu0 0.0
    %3558 = vmatprep.subr.mxu0 0.0
    %3559 = vmatpush1.msra.mxu0 0.0
    %3560 = vmatprep.subr.mxu0 0.0
    %3561 = vmatpush1.msra.mxu0 0.0
    %3562 = vmatprep.subr.mxu0 0.0
    %3563 = vmatpush1.msra.mxu0 0.0
    %3564 = vmatprep.subr.mxu0 0.0
    %3565 = vmatpush1.msra.mxu0 0.0
    %3566 = vmatprep.subr.mxu0 0.0
    %3567 = vmatpush1.msra.mxu0 0.0
    %3568 = vmatprep.subr.mxu0 0.0
    %3569 = vmatpush1.msra.mxu0 0.0
    %3570 = vmatprep.subr.mxu0 0.0
    %3571 = vmatpush1.msra.mxu0 0.0
    %3572 = vmatprep.subr.mxu0 0.0
    %3573 = vmatpush1.msra.mxu0 0.0
    %3574 = vmatprep.subr.mxu0 0.0
    %3575 = vmatpush1.msra.mxu0 0.0
    %3576 = vmatprep.mubr.f32.mxu0 0.0
    %3577 = vmatmul.mubr.f32.gmra.mrb[0].mxu0 %v3324
    %v3578 = vpop.f32.mrb[0].mxu0
    %v3579 = vadd.f32 0.0, %v3578
    %v3580 = vpop.f32.mrb[0].mxu0
    %v3581 = vadd.f32 0.0, %v3580
    %3582 = vdwg.mxu0
    %3583 = vmatprep.subr.mxu0 %v641
    %3584 = vmatpush1.msra.mxu0 %v640
    %3585 = vmatprep.subr.mxu0 %v645
    %3586 = vmatpush1.msra.mxu0 %v644
    %3587 = vmatprep.subr.mxu0 %v649
    %3588 = vmatpush1.msra.mxu0 %v648
    %3589 = vmatprep.subr.mxu0 %v653
    %3590 = vmatpush1.msra.mxu0 %v652
    %3591 = vmatprep.subr.mxu0 %v657
    %3592 = vmatpush1.msra.mxu0 %v656
    %3593 = vmatprep.subr.mxu0 %v661
    %3594 = vmatpush1.msra.mxu0 %v660
    %3595 = vmatprep.subr.mxu0 %v665
    %3596 = vmatpush1.msra.mxu0 %v664
    %3597 = vmatprep.subr.mxu0 %v669
    %3598 = vmatpush1.msra.mxu0 %v668
    %3599 = vmatprep.subr.mxu0 %v673
    %3600 = vmatpush1.msra.mxu0 %v672
    %3601 = vmatprep.subr.mxu0 %v677
    %3602 = vmatpush1.msra.mxu0 %v676
    %3603 = vmatprep.subr.mxu0 %v681
    %3604 = vmatpush1.msra.mxu0 %v680
    %3605 = vmatprep.subr.mxu0 %v685
    %3606 = vmatpush1.msra.mxu0 %v684
    %3607 = vmatprep.subr.mxu0 %v689
    %3608 = vmatpush1.msra.mxu0 %v688
    %3609 = vmatprep.subr.mxu0 %v693
    %3610 = vmatpush1.msra.mxu0 %v692
    %3611 = vmatprep.subr.mxu0 %v697
    %3612 = vmatpush1.msra.mxu0 %v696
    %3613 = vmatprep.subr.mxu0 %v701
    %3614 = vmatpush1.msra.mxu0 %v700
    %3615 = vmatprep.subr.mxu0 0.0
    %3616 = vmatpush1.msra.mxu0 0.0
    %3617 = vmatprep.subr.mxu0 0.0
    %3618 = vmatpush1.msra.mxu0 0.0
    %3619 = vmatprep.subr.mxu0 0.0
    %3620 = vmatpush1.msra.mxu0 0.0
    %3621 = vmatprep.subr.mxu0 0.0
    %3622 = vmatpush1.msra.mxu0 0.0
    %3623 = vmatprep.subr.mxu0 0.0
    %3624 = vmatpush1.msra.mxu0 0.0
    %3625 = vmatprep.subr.mxu0 0.0
    %3626 = vmatpush1.msra.mxu0 0.0
    %3627 = vmatprep.subr.mxu0 0.0
    %3628 = vmatpush1.msra.mxu0 0.0
    %3629 = vmatprep.subr.mxu0 0.0
    %3630 = vmatpush1.msra.mxu0 0.0
    %3631 = vmatprep.subr.mxu0 0.0
    %3632 = vmatpush1.msra.mxu0 0.0
    %3633 = vmatprep.subr.mxu0 0.0
    %3634 = vmatpush1.msra.mxu0 0.0
    %3635 = vmatprep.subr.mxu0 0.0
    %3636 = vmatpush1.msra.mxu0 0.0
    %3637 = vmatprep.subr.mxu0 0.0
    %3638 = vmatpush1.msra.mxu0 0.0
    %3639 = vmatprep.subr.mxu0 0.0
    %3640 = vmatpush1.msra.mxu0 0.0
    %3641 = vmatprep.subr.mxu0 0.0
    %3642 = vmatpush1.msra.mxu0 0.0
    %3643 = vmatprep.subr.mxu0 0.0
    %3644 = vmatpush1.msra.mxu0 0.0
    %3645 = vmatprep.subr.mxu0 0.0
    %3646 = vmatpush1.msra.mxu0 0.0
    %3647 = vmatprep.mubr.f32.mxu0 0.0
    %3648 = vmatmul.mubr.f32.gmra.mrb[0].mxu0 %v3324
    %v3649 = vpop.f32.mrb[0].mxu0
    %v3650 = vadd.f32 0.0, %v3649
    %v3651 = vpop.f32.mrb[0].mxu0
    %v3652 = vadd.f32 0.0, %v3651
    %3653 = vdwg.mxu0
    %v3654 = vadd.f32 %v499, %v3579
    %v3655 = vadd.f32 %v501, %v3581
    %v3656 = vadd.f32 %v570, %v3650
    %v3657 = vadd.f32 %v572, %v3652
    %v3658 = vxor.u32 %v3654, 2147483648
    %v3659 = vmul.f32 %v3658, 1.442695
    %v3660 = vpow.pop %v3659
    %v3661 = vadd.f32 %v3660, 1.0
    %v3662 = vrcp.pop %v3661
    %v3663 = vmul.f32 1.0, %v3662
    %v3664 = vxor.u32 %v3655, 2147483648
    %v3665 = vmul.f32 %v3664, 1.442695
    %v3666 = vpow.pop %v3665
    %v3667 = vadd.f32 %v3666, 1.0
    %v3668 = vrcp.pop %v3667
    %v3669 = vmul.f32 1.0, %v3668
    %v3670 = vtanh.pop %v3656
    %v3671 = vxor.u32 %v3657, 2147483648
    %v3672 = vmul.f32 %v3671, 1.442695
    %v3673 = vpow.pop %v3672
    %v3674 = vadd.f32 %v3673, 1.0
    %v3675 = vrcp.pop %v3674
    %v3676 = vmul.f32 1.0, %v3675
    %v3678 = vrot.slane %v3316, 1
    %v3680 = vmul.f32 %v3669, %v3678
    %v3681 = vmul.f32 %v3663, %v3670
    %v3682 = vadd.f32 %v3680, %v3681
    %v3683 = vtanh.pop %v3682
    %v3684 = vmul.f32 %v3676, %v3683
    %v3686 = vrot.slane %v3511, 7
    %3688 = vst [vmem:[#allocation3 + $0x7] sm:$0x1] %v3686
    %3689 = vst [vmem:[#allocation3 + $0x8] sm:$0x1] %v3684
    %v3690 = vld [vmem:[#allocation3] sm:$0xff]
    %v3691 = vld [vmem:[#allocation3 + $0x8] sm:$0xff]
    %v3692 = vld [vmem:[#allocation13] sm:$0xff]
    %v3693 = vld [vmem:[#allocation13 + $0x8] sm:$0xff]
    %v3694 = vld [vmem:[#allocation13 + $0x10] sm:$0xff]
    %v3695 = vld [vmem:[#allocation13 + $0x18] sm:$0xff]
    %v3696 = vld [vmem:[#allocation13 + $0x20] sm:$0xff]
    %v3697 = vld [vmem:[#allocation13 + $0x28] sm:$0xff]
    %v3698 = vld [vmem:[#allocation13 + $0x30] sm:$0xff]
    %v3699 = vld [vmem:[#allocation13 + $0x38] sm:$0xff]
    %v3700 = vld [vmem:[#allocation13 + $0x40] sm:$0xff]
    %v3701 = vld [vmem:[#allocation13 + $0x48] sm:$0xff]
    %v3702 = vld [vmem:[#allocation13 + $0x50] sm:$0xff]
    %v3703 = vld [vmem:[#allocation13 + $0x58] sm:$0xff]
    %v3704 = vld [vmem:[#allocation13 + $0x60] sm:$0xff]
    %v3705 = vld [vmem:[#allocation13 + $0x68] sm:$0xff]
    %v3706 = vld [vmem:[#allocation13 + $0x70] sm:$0xff]
    %v3707 = vld [vmem:[#allocation13 + $0x78] sm:$0xff]
    %v3708 = vld [vmem:[#allocation13 + $0x80] sm:$0xff]
    %v3709 = vld [vmem:[#allocation13 + $0x88] sm:$0xff]
    %v3710 = vld [vmem:[#allocation13 + $0x90] sm:$0xff]
    %v3711 = vld [vmem:[#allocation13 + $0x98] sm:$0xff]
    %v3712 = vld [vmem:[#allocation13 + $0xa0] sm:$0xff]
    %v3713 = vld [vmem:[#allocation13 + $0xa8] sm:$0xff]
    %v3714 = vld [vmem:[#allocation13 + $0xb0] sm:$0xff]
    %v3715 = vld [vmem:[#allocation13 + $0xb8] sm:$0xff]
    %v3716 = vld [vmem:[#allocation13 + $0xc0] sm:$0xff]
    %v3717 = vld [vmem:[#allocation13 + $0xc8] sm:$0xff]
    %v3718 = vld [vmem:[#allocation13 + $0xd0] sm:$0xff]
    %v3719 = vld [vmem:[#allocation13 + $0xd8] sm:$0xff]
    %v3720 = vld [vmem:[#allocation13 + $0xe0] sm:$0xff]
    %v3721 = vld [vmem:[#allocation13 + $0xe8] sm:$0xff]
    %v3722 = vld [vmem:[#allocation13 + $0xf0] sm:$0xff]
    %v3723 = vld [vmem:[#allocation13 + $0xf8] sm:$0xff]
    %v3724 = vld [vmem:[#allocation13 + $0x100] sm:$0xff]
    %v3725 = vld [vmem:[#allocation13 + $0x108] sm:$0xff]
    %v3726 = vld [vmem:[#allocation13 + $0x110] sm:$0xff]
    %v3727 = vld [vmem:[#allocation13 + $0x118] sm:$0xff]
    %v3728 = vld [vmem:[#allocation13 + $0x120] sm:$0xff]
    %v3729 = vld [vmem:[#allocation13 + $0x128] sm:$0xff]
    %v3730 = vld [vmem:[#allocation13 + $0x130] sm:$0xff]
    %v3731 = vld [vmem:[#allocation13 + $0x138] sm:$0xff]
    %v3732 = vld [vmem:[#allocation13 + $0x140] sm:$0xff]
    %v3733 = vld [vmem:[#allocation13 + $0x148] sm:$0xff]
    %v3734 = vld [vmem:[#allocation13 + $0x150] sm:$0xff]
    %v3735 = vld [vmem:[#allocation13 + $0x158] sm:$0xff]
    %v3736 = vld [vmem:[#allocation13 + $0x160] sm:$0xff]
    %v3737 = vld [vmem:[#allocation13 + $0x168] sm:$0xff]
    %v3738 = vld [vmem:[#allocation13 + $0x170] sm:$0xff]
    %v3739 = vld [vmem:[#allocation13 + $0x178] sm:$0xff]
    %v3740 = vld [vmem:[#allocation13 + $0x180] sm:$0xff]
    %v3741 = vld [vmem:[#allocation13 + $0x188] sm:$0xff]
    %v3742 = vld [vmem:[#allocation13 + $0x190] sm:$0xff]
    %v3743 = vld [vmem:[#allocation13 + $0x198] sm:$0xff]
    %v3744 = vld [vmem:[#allocation13 + $0x1a0] sm:$0xff]
    %v3745 = vld [vmem:[#allocation13 + $0x1a8] sm:$0xff]
    %v3746 = vld [vmem:[#allocation13 + $0x1b0] sm:$0xff]
    %v3747 = vld [vmem:[#allocation13 + $0x1b8] sm:$0xff]
    %v3748 = vld [vmem:[#allocation13 + $0x1c0] sm:$0xff]
    %v3749 = vld [vmem:[#allocation13 + $0x1c8] sm:$0xff]
    %v3750 = vld [vmem:[#allocation13 + $0x1d0] sm:$0xff]
    %v3751 = vld [vmem:[#allocation13 + $0x1d8] sm:$0xff]
    %v3752 = vld [vmem:[#allocation13 + $0x1e0] sm:$0xff]
    %v3753 = vld [vmem:[#allocation13 + $0x1e8] sm:$0xff]
    %v3754 = vld [vmem:[#allocation13 + $0x1f0] sm:$0xff]
    %v3755 = vld [vmem:[#allocation13 + $0x1f8] sm:$0xff]
    %v3756 = vld [vmem:[#allocation13 + $0x200] sm:$0xff]
    %v3757 = vld [vmem:[#allocation13 + $0x208] sm:$0xff]
    %v3758 = vld [vmem:[#allocation13 + $0x210] sm:$0xff]
    %v3759 = vld [vmem:[#allocation13 + $0x218] sm:$0xff]
    %v3760 = vld [vmem:[#allocation13 + $0x220] sm:$0xff]
    %v3761 = vld [vmem:[#allocation13 + $0x228] sm:$0xff]
    %v3762 = vld [vmem:[#allocation13 + $0x230] sm:$0xff]
    %v3763 = vld [vmem:[#allocation13 + $0x238] sm:$0xff]
    %v3764 = vld [vmem:[#allocation13 + $0x240] sm:$0xff]
    %v3765 = vld [vmem:[#allocation13 + $0x248] sm:$0xff]
    %v3766 = vld [vmem:[#allocation13 + $0x250] sm:$0xff]
    %v3767 = vld [vmem:[#allocation13 + $0x258] sm:$0xff]
    %v3768 = vld [vmem:[#allocation13 + $0x260] sm:$0xff]
    %v3769 = vld [vmem:[#allocation13 + $0x268] sm:$0xff]
    %v3770 = vld [vmem:[#allocation13 + $0x270] sm:$0xff]
    %v3771 = vld [vmem:[#allocation13 + $0x278] sm:$0xff]
    %v3772 = vld [vmem:[#allocation13 + $0x280] sm:$0xff]
    %v3773 = vld [vmem:[#allocation13 + $0x288] sm:$0xff]
    %v3774 = vld [vmem:[#allocation13 + $0x290] sm:$0xff]
    %v3775 = vld [vmem:[#allocation13 + $0x298] sm:$0xff]
    %v3776 = vld [vmem:[#allocation13 + $0x2a0] sm:$0xff]
    %v3777 = vld [vmem:[#allocation13 + $0x2a8] sm:$0xff]
    %v3778 = vld [vmem:[#allocation13 + $0x2b0] sm:$0xff]
    %v3779 = vld [vmem:[#allocation13 + $0x2b8] sm:$0xff]
    %v3780 = vld [vmem:[#allocation13 + $0x2c0] sm:$0xff]
    %v3781 = vld [vmem:[#allocation13 + $0x2c8] sm:$0xff]
    %v3782 = vld [vmem:[#allocation13 + $0x2d0] sm:$0xff]
    %v3783 = vld [vmem:[#allocation13 + $0x2d8] sm:$0xff]
    %v3784 = vld [vmem:[#allocation13 + $0x2e0] sm:$0xff]
    %v3785 = vld [vmem:[#allocation13 + $0x2e8] sm:$0xff]
    %v3786 = vld [vmem:[#allocation13 + $0x2f0] sm:$0xff]
    %v3787 = vld [vmem:[#allocation13 + $0x2f8] sm:$0xff]
    %v3788 = vld [vmem:[#allocation13 + $0x300] sm:$0xff]
    %v3789 = vld [vmem:[#allocation13 + $0x308] sm:$0xff]
    %v3790 = vld [vmem:[#allocation13 + $0x310] sm:$0xff]
    %v3791 = vld [vmem:[#allocation13 + $0x318] sm:$0xff]
    %v3792 = vld [vmem:[#allocation13 + $0x320] sm:$0xff]
    %v3793 = vld [vmem:[#allocation13 + $0x328] sm:$0xff]
    %v3794 = vld [vmem:[#allocation13 + $0x330] sm:$0xff]
    %v3795 = vld [vmem:[#allocation13 + $0x338] sm:$0xff]
    %v3796 = vld [vmem:[#allocation13 + $0x340] sm:$0xff]
    %v3797 = vld [vmem:[#allocation13 + $0x348] sm:$0xff]
    %v3798 = vld [vmem:[#allocation13 + $0x350] sm:$0xff]
    %v3799 = vld [vmem:[#allocation13 + $0x358] sm:$0xff]
    %v3800 = vld [vmem:[#allocation13 + $0x360] sm:$0xff]
    %v3801 = vld [vmem:[#allocation13 + $0x368] sm:$0xff]
    %v3802 = vld [vmem:[#allocation13 + $0x370] sm:$0xff]
    %v3803 = vld [vmem:[#allocation13 + $0x378] sm:$0xff]
    %v3804 = vld [vmem:[#allocation13 + $0x380] sm:$0xff]
    %v3805 = vld [vmem:[#allocation13 + $0x388] sm:$0xff]
    %v3806 = vld [vmem:[#allocation13 + $0x390] sm:$0xff]
    %v3807 = vld [vmem:[#allocation13 + $0x398] sm:$0xff]
    %v3808 = vld [vmem:[#allocation13 + $0x3a0] sm:$0xff]
    %v3809 = vld [vmem:[#allocation13 + $0x3a8] sm:$0xff]
    %v3810 = vld [vmem:[#allocation13 + $0x3b0] sm:$0xff]
    %v3811 = vld [vmem:[#allocation13 + $0x3b8] sm:$0xff]
    %v3812 = vld [vmem:[#allocation13 + $0x3c0] sm:$0xff]
    %v3813 = vld [vmem:[#allocation13 + $0x3c8] sm:$0xff]
    %v3814 = vld [vmem:[#allocation13 + $0x3d0] sm:$0xff]
    %v3815 = vld [vmem:[#allocation13 + $0x3d8] sm:$0xff]
    %v3816 = vld [vmem:[#allocation13 + $0x3e0] sm:$0xff]
    %v3817 = vld [vmem:[#allocation13 + $0x3e8] sm:$0xff]
    %v3818 = vld [vmem:[#allocation13 + $0x3f0] sm:$0xff]
    %v3819 = vld [vmem:[#allocation13 + $0x3f8] sm:$0xff]
    %v3820 = vld [vmem:[%s10] sm:$0xf]
    %v3822 = vlaneseq
    %v3823 = vshrl.u32 %v3822, 7
    %v3824 = vsub.s32 0, %v3823
    %v3825 = vrot.slane %v3820, %v3824
    %v3826 = vlaneseq
    %v3827 = vshrl.u32 %v3826, 7
    %v3828 = vsub.s32 1, %v3827
    %v3829 = vrot.slane %v3820, %v3828
    %v3830 = vlaneseq
    %v3831 = vshrl.u32 %v3830, 7
    %v3832 = vsub.s32 2, %v3831
    %v3833 = vrot.slane %v3820, %v3832
    %v3834 = vlaneseq
    %v3835 = vshrl.u32 %v3834, 7
    %v3836 = vsub.s32 3, %v3835
    %v3837 = vrot.slane %v3820, %v3836
    %3842 = vmatprep.subr.mxu0 %v3693
    %3843 = vmatpush1.msra.mxu0 %v3692
    %3844 = vmatprep.subr.mxu0 %v3697
    %3845 = vmatpush1.msra.mxu0 %v3696
    %3846 = vmatprep.subr.mxu0 %v3701
    %3847 = vmatpush1.msra.mxu0 %v3700
    %3848 = vmatprep.subr.mxu0 %v3705
    %3849 = vmatpush1.msra.mxu0 %v3704
    %3850 = vmatprep.subr.mxu0 %v3709
    %3851 = vmatpush1.msra.mxu0 %v3708
    %3852 = vmatprep.subr.mxu0 %v3713
    %3853 = vmatpush1.msra.mxu0 %v3712
    %3854 = vmatprep.subr.mxu0 %v3717
    %3855 = vmatpush1.msra.mxu0 %v3716
    %3856 = vmatprep.subr.mxu0 %v3721
    %3857 = vmatpush1.msra.mxu0 %v3720
    %3858 = vmatprep.subr.mxu0 %v3725
    %3859 = vmatpush1.msra.mxu0 %v3724
    %3860 = vmatprep.subr.mxu0 %v3729
    %3861 = vmatpush1.msra.mxu0 %v3728
    %3862 = vmatprep.subr.mxu0 %v3733
    %3863 = vmatpush1.msra.mxu0 %v3732
    %3864 = vmatprep.subr.mxu0 %v3737
    %3865 = vmatpush1.msra.mxu0 %v3736
    %3866 = vmatprep.subr.mxu0 %v3741
    %3867 = vmatpush1.msra.mxu0 %v3740
    %3868 = vmatprep.subr.mxu0 %v3745
    %3869 = vmatpush1.msra.mxu0 %v3744
    %3870 = vmatprep.subr.mxu0 %v3749
    %3871 = vmatpush1.msra.mxu0 %v3748
    %3872 = vmatprep.subr.mxu0 %v3753
    %3873 = vmatpush1.msra.mxu0 %v3752
    %3874 = vmatprep.subr.mxu0 %v3757
    %3875 = vmatpush1.msra.mxu0 %v3756
    %3876 = vmatprep.subr.mxu0 %v3761
    %3877 = vmatpush1.msra.mxu0 %v3760
    %3878 = vmatprep.subr.mxu0 %v3765
    %3879 = vmatpush1.msra.mxu0 %v3764
    %3880 = vmatprep.subr.mxu0 %v3769
    %3881 = vmatpush1.msra.mxu0 %v3768
    %3882 = vmatprep.subr.mxu0 %v3773
    %3883 = vmatpush1.msra.mxu0 %v3772
    %3884 = vmatprep.subr.mxu0 %v3777
    %3885 = vmatpush1.msra.mxu0 %v3776
    %3886 = vmatprep.subr.mxu0 %v3781
    %3887 = vmatpush1.msra.mxu0 %v3780
    %3888 = vmatprep.subr.mxu0 %v3785
    %3889 = vmatpush1.msra.mxu0 %v3784
    %3890 = vmatprep.subr.mxu0 %v3789
    %3891 = vmatpush1.msra.mxu0 %v3788
    %3892 = vmatprep.subr.mxu0 %v3793
    %3893 = vmatpush1.msra.mxu0 %v3792
    %3894 = vmatprep.subr.mxu0 %v3797
    %3895 = vmatpush1.msra.mxu0 %v3796
    %3896 = vmatprep.subr.mxu0 %v3801
    %3897 = vmatpush1.msra.mxu0 %v3800
    %3898 = vmatprep.subr.mxu0 %v3805
    %3899 = vmatpush1.msra.mxu0 %v3804
    %3900 = vmatprep.subr.mxu0 %v3809
    %3901 = vmatpush1.msra.mxu0 %v3808
    %3902 = vmatprep.subr.mxu0 %v3813
    %3903 = vmatpush1.msra.mxu0 %v3812
    %3904 = vmatprep.subr.mxu0 %v3817
    %3905 = vmatpush1.msra.mxu0 %v3816
    %3906 = vmatprep.mubr.f32.mxu0 %v3691
    %3907 = vmatmul.mubr.f32.gmra.mrb[0].mxu0 %v3690
    %v3908 = vpop.f32.mrb[0].mxu0
    %v3909 = vadd.f32 %v3825, %v3908
    %v3910 = vpop.f32.mrb[0].mxu0
    %v3911 = vadd.f32 %v3829, %v3910
    %3912 = vdwg.mxu0
    %3913 = vmatprep.subr.mxu0 %v3695
    %3914 = vmatpush1.msra.mxu0 %v3694
    %3915 = vmatprep.subr.mxu0 %v3699
    %3916 = vmatpush1.msra.mxu0 %v3698
    %3917 = vmatprep.subr.mxu0 %v3703
    %3918 = vmatpush1.msra.mxu0 %v3702
    %3919 = vmatprep.subr.mxu0 %v3707
    %3920 = vmatpush1.msra.mxu0 %v3706
    %3921 = vmatprep.subr.mxu0 %v3711
    %3922 = vmatpush1.msra.mxu0 %v3710
    %3923 = vmatprep.subr.mxu0 %v3715
    %3924 = vmatpush1.msra.mxu0 %v3714
    %3925 = vmatprep.subr.mxu0 %v3719
    %3926 = vmatpush1.msra.mxu0 %v3718
    %3927 = vmatprep.subr.mxu0 %v3723
    %3928 = vmatpush1.msra.mxu0 %v3722
    %3929 = vmatprep.subr.mxu0 %v3727
    %3930 = vmatpush1.msra.mxu0 %v3726
    %3931 = vmatprep.subr.mxu0 %v3731
    %3932 = vmatpush1.msra.mxu0 %v3730
    %3933 = vmatprep.subr.mxu0 %v3735
    %3934 = vmatpush1.msra.mxu0 %v3734
    %3935 = vmatprep.subr.mxu0 %v3739
    %3936 = vmatpush1.msra.mxu0 %v3738
    %3937 = vmatprep.subr.mxu0 %v3743
    %3938 = vmatpush1.msra.mxu0 %v3742
    %3939 = vmatprep.subr.mxu0 %v3747
    %3940 = vmatpush1.msra.mxu0 %v3746
    %3941 = vmatprep.subr.mxu0 %v3751
    %3942 = vmatpush1.msra.mxu0 %v3750
    %3943 = vmatprep.subr.mxu0 %v3755
    %3944 = vmatpush1.msra.mxu0 %v3754
    %3945 = vmatprep.subr.mxu0 %v3759
    %3946 = vmatpush1.msra.mxu0 %v3758
    %3947 = vmatprep.subr.mxu0 %v3763
    %3948 = vmatpush1.msra.mxu0 %v3762
    %3949 = vmatprep.subr.mxu0 %v3767
    %3950 = vmatpush1.msra.mxu0 %v3766
    %3951 = vmatprep.subr.mxu0 %v3771
    %3952 = vmatpush1.msra.mxu0 %v3770
    %3953 = vmatprep.subr.mxu0 %v3775
    %3954 = vmatpush1.msra.mxu0 %v3774
    %3955 = vmatprep.subr.mxu0 %v3779
    %3956 = vmatpush1.msra.mxu0 %v3778
    %3957 = vmatprep.subr.mxu0 %v3783
    %3958 = vmatpush1.msra.mxu0 %v3782
    %3959 = vmatprep.subr.mxu0 %v3787
    %3960 = vmatpush1.msra.mxu0 %v3786
    %3961 = vmatprep.subr.mxu0 %v3791
    %3962 = vmatpush1.msra.mxu0 %v3790
    %3963 = vmatprep.subr.mxu0 %v3795
    %3964 = vmatpush1.msra.mxu0 %v3794
    %3965 = vmatprep.subr.mxu0 %v3799
    %3966 = vmatpush1.msra.mxu0 %v3798
    %3967 = vmatprep.subr.mxu0 %v3803
    %3968 = vmatpush1.msra.mxu0 %v3802
    %3969 = vmatprep.subr.mxu0 %v3807
    %3970 = vmatpush1.msra.mxu0 %v3806
    %3971 = vmatprep.subr.mxu0 %v3811
    %3972 = vmatpush1.msra.mxu0 %v3810
    %3973 = vmatprep.subr.mxu0 %v3815
    %3974 = vmatpush1.msra.mxu0 %v3814
    %3975 = vmatprep.subr.mxu0 %v3819
    %3976 = vmatpush1.msra.mxu0 %v3818
    %3977 = vmatprep.mubr.f32.mxu0 %v3691
    %3978 = vmatmul.mubr.f32.gmra.mrb[0].mxu0 %v3690
    %v3979 = vpop.f32.mrb[0].mxu0
    %v3980 = vadd.f32 %v3833, %v3979
    %v3981 = vpop.f32.mrb[0].mxu0
    %v3982 = vadd.f32 %v3837, %v3981
    %3983 = vdwg.mxu0
    %v3984 = vld [vmem:[#allocation16] sm:$0xff]
    %v3985 = vld [vmem:[#allocation16 + $0x8] sm:$0xff]
    %v3986 = vld [vmem:[#allocation16 + $0x10] sm:$0xff]
    %v3987 = vld [vmem:[#allocation16 + $0x18] sm:$0xff]
    %v3988 = vld [vmem:[#allocation16 + $0x20] sm:$0xff]
    %v3989 = vld [vmem:[#allocation16 + $0x28] sm:$0xff]
    %v3990 = vld [vmem:[#allocation16 + $0x30] sm:$0xff]
    %v3991 = vld [vmem:[#allocation16 + $0x38] sm:$0xff]
    %v3992 = vld [vmem:[#allocation16 + $0x40] sm:$0xff]
    %v3993 = vld [vmem:[#allocation16 + $0x48] sm:$0xff]
    %v3994 = vld [vmem:[#allocation16 + $0x50] sm:$0xff]
    %v3995 = vld [vmem:[#allocation16 + $0x58] sm:$0xff]
    %v3996 = vld [vmem:[#allocation16 + $0x60] sm:$0xff]
    %v3997 = vld [vmem:[#allocation16 + $0x68] sm:$0xff]
    %v3998 = vld [vmem:[#allocation16 + $0x70] sm:$0xff]
    %v3999 = vld [vmem:[#allocation16 + $0x78] sm:$0xff]
    %v4000 = vld [vmem:[#allocation16 + $0x80] sm:$0xff]
    %v4001 = vld [vmem:[#allocation16 + $0x88] sm:$0xff]
    %v4002 = vld [vmem:[#allocation16 + $0x90] sm:$0xff]
    %v4003 = vld [vmem:[#allocation16 + $0x98] sm:$0xff]
    %v4004 = vld [vmem:[#allocation16 + $0xa0] sm:$0xff]
    %v4005 = vld [vmem:[#allocation16 + $0xa8] sm:$0xff]
    %v4006 = vld [vmem:[#allocation16 + $0xb0] sm:$0xff]
    %v4007 = vld [vmem:[#allocation16 + $0xb8] sm:$0xff]
    %v4008 = vld [vmem:[#allocation16 + $0xc0] sm:$0xff]
    %v4009 = vld [vmem:[#allocation16 + $0xc8] sm:$0xff]
    %v4010 = vld [vmem:[#allocation16 + $0xd0] sm:$0xff]
    %v4011 = vld [vmem:[#allocation16 + $0xd8] sm:$0xff]
    %v4012 = vld [vmem:[#allocation16 + $0xe0] sm:$0xff]
    %v4013 = vld [vmem:[#allocation16 + $0xe8] sm:$0xff]
    %v4014 = vld [vmem:[#allocation16 + $0xf0] sm:$0xff]
    %v4015 = vld [vmem:[#allocation16 + $0xf8] sm:$0xff]
    %v4016 = vld [vmem:[#allocation16 + $0x100] sm:$0xff]
    %v4017 = vld [vmem:[#allocation16 + $0x108] sm:$0xff]
    %v4018 = vld [vmem:[#allocation16 + $0x110] sm:$0xff]
    %v4019 = vld [vmem:[#allocation16 + $0x118] sm:$0xff]
    %v4020 = vld [vmem:[#allocation16 + $0x120] sm:$0xff]
    %v4021 = vld [vmem:[#allocation16 + $0x128] sm:$0xff]
    %v4022 = vld [vmem:[#allocation16 + $0x130] sm:$0xff]
    %v4023 = vld [vmem:[#allocation16 + $0x138] sm:$0xff]
    %v4024 = vld [vmem:[#allocation16 + $0x140] sm:$0xff]
    %v4025 = vld [vmem:[#allocation16 + $0x148] sm:$0xff]
    %v4026 = vld [vmem:[#allocation16 + $0x150] sm:$0xff]
    %v4027 = vld [vmem:[#allocation16 + $0x158] sm:$0xff]
    %v4028 = vld [vmem:[#allocation16 + $0x160] sm:$0xff]
    %v4029 = vld [vmem:[#allocation16 + $0x168] sm:$0xff]
    %v4030 = vld [vmem:[#allocation16 + $0x170] sm:$0xff]
    %v4031 = vld [vmem:[#allocation16 + $0x178] sm:$0xff]
    %v4032 = vld [vmem:[#allocation16 + $0x180] sm:$0xff]
    %v4033 = vld [vmem:[#allocation16 + $0x188] sm:$0xff]
    %v4034 = vld [vmem:[#allocation16 + $0x190] sm:$0xff]
    %v4035 = vld [vmem:[#allocation16 + $0x198] sm:$0xff]
    %v4036 = vld [vmem:[#allocation16 + $0x1a0] sm:$0xff]
    %v4037 = vld [vmem:[#allocation16 + $0x1a8] sm:$0xff]
    %v4038 = vld [vmem:[#allocation16 + $0x1b0] sm:$0xff]
    %v4039 = vld [vmem:[#allocation16 + $0x1b8] sm:$0xff]
    %v4040 = vld [vmem:[#allocation16 + $0x1c0] sm:$0xff]
    %v4041 = vld [vmem:[#allocation16 + $0x1c8] sm:$0xff]
    %v4042 = vld [vmem:[#allocation16 + $0x1d0] sm:$0xff]
    %v4043 = vld [vmem:[#allocation16 + $0x1d8] sm:$0xff]
    %v4044 = vld [vmem:[#allocation16 + $0x1e0] sm:$0xff]
    %v4045 = vld [vmem:[#allocation16 + $0x1e8] sm:$0xff]
    %v4046 = vld [vmem:[#allocation16 + $0x1f0] sm:$0xff]
    %v4047 = vld [vmem:[#allocation16 + $0x1f8] sm:$0xff]
    %v4048 = vld [vmem:[#allocation16 + $0x200] sm:$0xff]
    %v4049 = vld [vmem:[#allocation16 + $0x208] sm:$0xff]
    %v4050 = vld [vmem:[#allocation16 + $0x210] sm:$0xff]
    %v4051 = vld [vmem:[#allocation16 + $0x218] sm:$0xff]
    %v4052 = vld [vmem:[#allocation16 + $0x220] sm:$0xff]
    %v4053 = vld [vmem:[#allocation16 + $0x228] sm:$0xff]
    %v4054 = vld [vmem:[#allocation16 + $0x230] sm:$0xff]
    %v4055 = vld [vmem:[#allocation16 + $0x238] sm:$0xff]
    %v4056 = vld [vmem:[#allocation16 + $0x240] sm:$0xff]
    %v4057 = vld [vmem:[#allocation16 + $0x248] sm:$0xff]
    %v4058 = vld [vmem:[#allocation16 + $0x250] sm:$0xff]
    %v4059 = vld [vmem:[#allocation16 + $0x258] sm:$0xff]
    %v4060 = vld [vmem:[#allocation16 + $0x260] sm:$0xff]
    %v4061 = vld [vmem:[#allocation16 + $0x268] sm:$0xff]
    %v4062 = vld [vmem:[#allocation16 + $0x270] sm:$0xff]
    %v4063 = vld [vmem:[#allocation16 + $0x278] sm:$0xff]
    %v4064 = vld [vmem:[#allocation16 + $0x280] sm:$0xff]
    %v4065 = vld [vmem:[#allocation16 + $0x288] sm:$0xff]
    %v4066 = vld [vmem:[#allocation16 + $0x290] sm:$0xff]
    %v4067 = vld [vmem:[#allocation16 + $0x298] sm:$0xff]
    %v4068 = vld [vmem:[#allocation16 + $0x2a0] sm:$0xff]
    %v4069 = vld [vmem:[#allocation16 + $0x2a8] sm:$0xff]
    %v4070 = vld [vmem:[#allocation16 + $0x2b0] sm:$0xff]
    %v4071 = vld [vmem:[#allocation16 + $0x2b8] sm:$0xff]
    %v4072 = vld [vmem:[#allocation16 + $0x2c0] sm:$0xff]
    %v4073 = vld [vmem:[#allocation16 + $0x2c8] sm:$0xff]
    %v4074 = vld [vmem:[#allocation16 + $0x2d0] sm:$0xff]
    %v4075 = vld [vmem:[#allocation16 + $0x2d8] sm:$0xff]
    %v4076 = vld [vmem:[#allocation16 + $0x2e0] sm:$0xff]
    %v4077 = vld [vmem:[#allocation16 + $0x2e8] sm:$0xff]
    %v4078 = vld [vmem:[#allocation16 + $0x2f0] sm:$0xff]
    %v4079 = vld [vmem:[#allocation16 + $0x2f8] sm:$0xff]
    %v4080 = vld [vmem:[#allocation16 + $0x300] sm:$0xff]
    %v4081 = vld [vmem:[#allocation16 + $0x308] sm:$0xff]
    %v4082 = vld [vmem:[#allocation16 + $0x310] sm:$0xff]
    %v4083 = vld [vmem:[#allocation16 + $0x318] sm:$0xff]
    %v4084 = vld [vmem:[#allocation16 + $0x320] sm:$0xff]
    %v4085 = vld [vmem:[#allocation16 + $0x328] sm:$0xff]
    %v4086 = vld [vmem:[#allocation16 + $0x330] sm:$0xff]
    %v4087 = vld [vmem:[#allocation16 + $0x338] sm:$0xff]
    %v4088 = vld [vmem:[#allocation16 + $0x340] sm:$0xff]
    %v4089 = vld [vmem:[#allocation16 + $0x348] sm:$0xff]
    %v4090 = vld [vmem:[#allocation16 + $0x350] sm:$0xff]
    %v4091 = vld [vmem:[#allocation16 + $0x358] sm:$0xff]
    %v4092 = vld [vmem:[#allocation16 + $0x360] sm:$0xff]
    %v4093 = vld [vmem:[#allocation16 + $0x368] sm:$0xff]
    %v4094 = vld [vmem:[#allocation16 + $0x370] sm:$0xff]
    %v4095 = vld [vmem:[#allocation16 + $0x378] sm:$0xff]
    %v4096 = vld [vmem:[#allocation16 + $0x380] sm:$0xff]
    %v4097 = vld [vmem:[#allocation16 + $0x388] sm:$0xff]
    %v4098 = vld [vmem:[#allocation16 + $0x390] sm:$0xff]
    %v4099 = vld [vmem:[#allocation16 + $0x398] sm:$0xff]
    %v4100 = vld [vmem:[#allocation16 + $0x3a0] sm:$0xff]
    %v4101 = vld [vmem:[#allocation16 + $0x3a8] sm:$0xff]
    %v4102 = vld [vmem:[#allocation16 + $0x3b0] sm:$0xff]
    %v4103 = vld [vmem:[#allocation16 + $0x3b8] sm:$0xff]
    %v4104 = vld [vmem:[#allocation16 + $0x3c0] sm:$0xff]
    %v4105 = vld [vmem:[#allocation16 + $0x3c8] sm:$0xff]
    %v4106 = vld [vmem:[#allocation16 + $0x3d0] sm:$0xff]
    %v4107 = vld [vmem:[#allocation16 + $0x3d8] sm:$0xff]
    %v4108 = vld [vmem:[#allocation16 + $0x3e0] sm:$0xff]
    %v4109 = vld [vmem:[#allocation16 + $0x3e8] sm:$0xff]
    %v4110 = vld [vmem:[#allocation16 + $0x3f0] sm:$0xff]
    %v4111 = vld [vmem:[#allocation16 + $0x3f8] sm:$0xff]
    %v4112 = vld [vmem:[%s13] sm:$0xf]
    %v4114 = vlaneseq
    %v4115 = vshrl.u32 %v4114, 7
    %v4116 = vsub.s32 0, %v4115
    %v4117 = vrot.slane %v4112, %v4116
    %v4118 = vlaneseq
    %v4119 = vshrl.u32 %v4118, 7
    %v4120 = vsub.s32 1, %v4119
    %v4121 = vrot.slane %v4112, %v4120
    %v4122 = vlaneseq
    %v4123 = vshrl.u32 %v4122, 7
    %v4124 = vsub.s32 2, %v4123
    %v4125 = vrot.slane %v4112, %v4124
    %v4126 = vlaneseq
    %v4127 = vshrl.u32 %v4126, 7
    %v4128 = vsub.s32 3, %v4127
    %v4129 = vrot.slane %v4112, %v4128
    %4134 = vmatprep.subr.mxu0 %v3985
    %4135 = vmatpush1.msra.mxu0 %v3984
    %4136 = vmatprep.subr.mxu0 %v3989
    %4137 = vmatpush1.msra.mxu0 %v3988
    %4138 = vmatprep.subr.mxu0 %v3993
    %4139 = vmatpush1.msra.mxu0 %v3992
    %4140 = vmatprep.subr.mxu0 %v3997
    %4141 = vmatpush1.msra.mxu0 %v3996
    %4142 = vmatprep.subr.mxu0 %v4001
    %4143 = vmatpush1.msra.mxu0 %v4000
    %4144 = vmatprep.subr.mxu0 %v4005
    %4145 = vmatpush1.msra.mxu0 %v4004
    %4146 = vmatprep.subr.mxu0 %v4009
    %4147 = vmatpush1.msra.mxu0 %v4008
    %4148 = vmatprep.subr.mxu0 %v4013
    %4149 = vmatpush1.msra.mxu0 %v4012
    %4150 = vmatprep.subr.mxu0 %v4017
    %4151 = vmatpush1.msra.mxu0 %v4016
    %4152 = vmatprep.subr.mxu0 %v4021
    %4153 = vmatpush1.msra.mxu0 %v4020
    %4154 = vmatprep.subr.mxu0 %v4025
    %4155 = vmatpush1.msra.mxu0 %v4024
    %4156 = vmatprep.subr.mxu0 %v4029
    %4157 = vmatpush1.msra.mxu0 %v4028
    %4158 = vmatprep.subr.mxu0 %v4033
    %4159 = vmatpush1.msra.mxu0 %v4032
    %4160 = vmatprep.subr.mxu0 %v4037
    %4161 = vmatpush1.msra.mxu0 %v4036
    %4162 = vmatprep.subr.mxu0 %v4041
    %4163 = vmatpush1.msra.mxu0 %v4040
    %4164 = vmatprep.subr.mxu0 %v4045
    %4165 = vmatpush1.msra.mxu0 %v4044
    %4166 = vmatprep.subr.mxu0 %v4049
    %4167 = vmatpush1.msra.mxu0 %v4048
    %4168 = vmatprep.subr.mxu0 %v4053
    %4169 = vmatpush1.msra.mxu0 %v4052
    %4170 = vmatprep.subr.mxu0 %v4057
    %4171 = vmatpush1.msra.mxu0 %v4056
    %4172 = vmatprep.subr.mxu0 %v4061
    %4173 = vmatpush1.msra.mxu0 %v4060
    %4174 = vmatprep.subr.mxu0 %v4065
    %4175 = vmatpush1.msra.mxu0 %v4064
    %4176 = vmatprep.subr.mxu0 %v4069
    %4177 = vmatpush1.msra.mxu0 %v4068
    %4178 = vmatprep.subr.mxu0 %v4073
    %4179 = vmatpush1.msra.mxu0 %v4072
    %4180 = vmatprep.subr.mxu0 %v4077
    %4181 = vmatpush1.msra.mxu0 %v4076
    %4182 = vmatprep.subr.mxu0 %v4081
    %4183 = vmatpush1.msra.mxu0 %v4080
    %4184 = vmatprep.subr.mxu0 %v4085
    %4185 = vmatpush1.msra.mxu0 %v4084
    %4186 = vmatprep.subr.mxu0 %v4089
    %4187 = vmatpush1.msra.mxu0 %v4088
    %4188 = vmatprep.subr.mxu0 %v4093
    %4189 = vmatpush1.msra.mxu0 %v4092
    %4190 = vmatprep.subr.mxu0 %v4097
    %4191 = vmatpush1.msra.mxu0 %v4096
    %4192 = vmatprep.subr.mxu0 %v4101
    %4193 = vmatpush1.msra.mxu0 %v4100
    %4194 = vmatprep.subr.mxu0 %v4105
    %4195 = vmatpush1.msra.mxu0 %v4104
    %4196 = vmatprep.subr.mxu0 %v4109
    %4197 = vmatpush1.msra.mxu0 %v4108
    %4198 = vmatprep.mubr.f32.mxu0 %v3691
    %4199 = vmatmul.mubr.f32.gmra.mrb[0].mxu0 %v3690
    %v4200 = vpop.f32.mrb[0].mxu0
    %v4201 = vadd.f32 %v4117, %v4200
    %v4202 = vpop.f32.mrb[0].mxu0
    %v4203 = vadd.f32 %v4121, %v4202
    %4204 = vdwg.mxu0
    %4205 = vmatprep.subr.mxu0 %v3987
    %4206 = vmatpush1.msra.mxu0 %v3986
    %4207 = vmatprep.subr.mxu0 %v3991
    %4208 = vmatpush1.msra.mxu0 %v3990
    %4209 = vmatprep.subr.mxu0 %v3995
    %4210 = vmatpush1.msra.mxu0 %v3994
    %4211 = vmatprep.subr.mxu0 %v3999
    %4212 = vmatpush1.msra.mxu0 %v3998
    %4213 = vmatprep.subr.mxu0 %v4003
    %4214 = vmatpush1.msra.mxu0 %v4002
    %4215 = vmatprep.subr.mxu0 %v4007
    %4216 = vmatpush1.msra.mxu0 %v4006
    %4217 = vmatprep.subr.mxu0 %v4011
    %4218 = vmatpush1.msra.mxu0 %v4010
    %4219 = vmatprep.subr.mxu0 %v4015
    %4220 = vmatpush1.msra.mxu0 %v4014
    %4221 = vmatprep.subr.mxu0 %v4019
    %4222 = vmatpush1.msra.mxu0 %v4018
    %4223 = vmatprep.subr.mxu0 %v4023
    %4224 = vmatpush1.msra.mxu0 %v4022
    %4225 = vmatprep.subr.mxu0 %v4027
    %4226 = vmatpush1.msra.mxu0 %v4026
    %4227 = vmatprep.subr.mxu0 %v4031
    %4228 = vmatpush1.msra.mxu0 %v4030
    %4229 = vmatprep.subr.mxu0 %v4035
    %4230 = vmatpush1.msra.mxu0 %v4034
    %4231 = vmatprep.subr.mxu0 %v4039
    %4232 = vmatpush1.msra.mxu0 %v4038
    %4233 = vmatprep.subr.mxu0 %v4043
    %4234 = vmatpush1.msra.mxu0 %v4042
    %4235 = vmatprep.subr.mxu0 %v4047
    %4236 = vmatpush1.msra.mxu0 %v4046
    %4237 = vmatprep.subr.mxu0 %v4051
    %4238 = vmatpush1.msra.mxu0 %v4050
    %4239 = vmatprep.subr.mxu0 %v4055
    %4240 = vmatpush1.msra.mxu0 %v4054
    %4241 = vmatprep.subr.mxu0 %v4059
    %4242 = vmatpush1.msra.mxu0 %v4058
    %4243 = vmatprep.subr.mxu0 %v4063
    %4244 = vmatpush1.msra.mxu0 %v4062
    %4245 = vmatprep.subr.mxu0 %v4067
    %4246 = vmatpush1.msra.mxu0 %v4066
    %4247 = vmatprep.subr.mxu0 %v4071
    %4248 = vmatpush1.msra.mxu0 %v4070
    %4249 = vmatprep.subr.mxu0 %v4075
    %4250 = vmatpush1.msra.mxu0 %v4074
    %4251 = vmatprep.subr.mxu0 %v4079
    %4252 = vmatpush1.msra.mxu0 %v4078
    %4253 = vmatprep.subr.mxu0 %v4083
    %4254 = vmatpush1.msra.mxu0 %v4082
    %4255 = vmatprep.subr.mxu0 %v4087
    %4256 = vmatpush1.msra.mxu0 %v4086
    %4257 = vmatprep.subr.mxu0 %v4091
    %4258 = vmatpush1.msra.mxu0 %v4090
    %4259 = vmatprep.subr.mxu0 %v4095
    %4260 = vmatpush1.msra.mxu0 %v4094
    %4261 = vmatprep.subr.mxu0 %v4099
    %4262 = vmatpush1.msra.mxu0 %v4098
    %4263 = vmatprep.subr.mxu0 %v4103
    %4264 = vmatpush1.msra.mxu0 %v4102
    %4265 = vmatprep.subr.mxu0 %v4107
    %4266 = vmatpush1.msra.mxu0 %v4106
    %4267 = vmatprep.subr.mxu0 %v4111
    %4268 = vmatpush1.msra.mxu0 %v4110
    %4269 = vmatprep.mubr.f32.mxu0 %v3691
    %4270 = vmatmul.mubr.f32.gmra.mrb[0].mxu0 %v3690
    %v4271 = vpop.f32.mrb[0].mxu0
    %v4272 = vadd.f32 %v4125, %v4271
    %v4273 = vpop.f32.mrb[0].mxu0
    %v4274 = vadd.f32 %v4129, %v4273
    %4275 = vdwg.mxu0
    %v4276 = vld [vmem:[#allocation15] sm:$0xff]
    %v4277 = vld [vmem:[#allocation15 + $0x8] sm:$0xff]
    %v4278 = vld [vmem:[#allocation15 + $0x10] sm:$0xff]
    %v4279 = vld [vmem:[#allocation15 + $0x18] sm:$0xff]
    %v4280 = vld [vmem:[#allocation15 + $0x20] sm:$0xff]
    %v4281 = vld [vmem:[#allocation15 + $0x28] sm:$0xff]
    %v4282 = vld [vmem:[#allocation15 + $0x30] sm:$0xff]
    %v4283 = vld [vmem:[#allocation15 + $0x38] sm:$0xff]
    %v4284 = vld [vmem:[#allocation15 + $0x40] sm:$0xff]
    %v4285 = vld [vmem:[#allocation15 + $0x48] sm:$0xff]
    %v4286 = vld [vmem:[#allocation15 + $0x50] sm:$0xff]
    %v4287 = vld [vmem:[#allocation15 + $0x58] sm:$0xff]
    %v4288 = vld [vmem:[#allocation15 + $0x60] sm:$0xff]
    %v4289 = vld [vmem:[#allocation15 + $0x68] sm:$0xff]
    %v4290 = vld [vmem:[#allocation15 + $0x70] sm:$0xff]
    %v4291 = vld [vmem:[#allocation15 + $0x78] sm:$0xff]
    %v4292 = vld [vmem:[#allocation15 + $0x80] sm:$0xff]
    %v4293 = vld [vmem:[#allocation15 + $0x88] sm:$0xff]
    %v4294 = vld [vmem:[#allocation15 + $0x90] sm:$0xff]
    %v4295 = vld [vmem:[#allocation15 + $0x98] sm:$0xff]
    %v4296 = vld [vmem:[#allocation15 + $0xa0] sm:$0xff]
    %v4297 = vld [vmem:[#allocation15 + $0xa8] sm:$0xff]
    %v4298 = vld [vmem:[#allocation15 + $0xb0] sm:$0xff]
    %v4299 = vld [vmem:[#allocation15 + $0xb8] sm:$0xff]
    %v4300 = vld [vmem:[#allocation15 + $0xc0] sm:$0xff]
    %v4301 = vld [vmem:[#allocation15 + $0xc8] sm:$0xff]
    %v4302 = vld [vmem:[#allocation15 + $0xd0] sm:$0xff]
    %v4303 = vld [vmem:[#allocation15 + $0xd8] sm:$0xff]
    %v4304 = vld [vmem:[#allocation15 + $0xe0] sm:$0xff]
    %v4305 = vld [vmem:[#allocation15 + $0xe8] sm:$0xff]
    %v4306 = vld [vmem:[#allocation15 + $0xf0] sm:$0xff]
    %v4307 = vld [vmem:[#allocation15 + $0xf8] sm:$0xff]
    %v4308 = vld [vmem:[#allocation15 + $0x100] sm:$0xff]
    %v4309 = vld [vmem:[#allocation15 + $0x108] sm:$0xff]
    %v4310 = vld [vmem:[#allocation15 + $0x110] sm:$0xff]
    %v4311 = vld [vmem:[#allocation15 + $0x118] sm:$0xff]
    %v4312 = vld [vmem:[#allocation15 + $0x120] sm:$0xff]
    %v4313 = vld [vmem:[#allocation15 + $0x128] sm:$0xff]
    %v4314 = vld [vmem:[#allocation15 + $0x130] sm:$0xff]
    %v4315 = vld [vmem:[#allocation15 + $0x138] sm:$0xff]
    %v4316 = vld [vmem:[#allocation15 + $0x140] sm:$0xff]
    %v4317 = vld [vmem:[#allocation15 + $0x148] sm:$0xff]
    %v4318 = vld [vmem:[#allocation15 + $0x150] sm:$0xff]
    %v4319 = vld [vmem:[#allocation15 + $0x158] sm:$0xff]
    %v4320 = vld [vmem:[#allocation15 + $0x160] sm:$0xff]
    %v4321 = vld [vmem:[#allocation15 + $0x168] sm:$0xff]
    %v4322 = vld [vmem:[#allocation15 + $0x170] sm:$0xff]
    %v4323 = vld [vmem:[#allocation15 + $0x178] sm:$0xff]
    %v4324 = vld [vmem:[#allocation15 + $0x180] sm:$0xff]
    %v4325 = vld [vmem:[#allocation15 + $0x188] sm:$0xff]
    %v4326 = vld [vmem:[#allocation15 + $0x190] sm:$0xff]
    %v4327 = vld [vmem:[#allocation15 + $0x198] sm:$0xff]
    %v4328 = vld [vmem:[#allocation15 + $0x1a0] sm:$0xff]
    %v4329 = vld [vmem:[#allocation15 + $0x1a8] sm:$0xff]
    %v4330 = vld [vmem:[#allocation15 + $0x1b0] sm:$0xff]
    %v4331 = vld [vmem:[#allocation15 + $0x1b8] sm:$0xff]
    %v4332 = vld [vmem:[#allocation15 + $0x1c0] sm:$0xff]
    %v4333 = vld [vmem:[#allocation15 + $0x1c8] sm:$0xff]
    %v4334 = vld [vmem:[#allocation15 + $0x1d0] sm:$0xff]
    %v4335 = vld [vmem:[#allocation15 + $0x1d8] sm:$0xff]
    %v4336 = vld [vmem:[#allocation15 + $0x1e0] sm:$0xff]
    %v4337 = vld [vmem:[#allocation15 + $0x1e8] sm:$0xff]
    %v4338 = vld [vmem:[#allocation15 + $0x1f0] sm:$0xff]
    %v4339 = vld [vmem:[#allocation15 + $0x1f8] sm:$0xff]
    %v4340 = vld [vmem:[#allocation18] sm:$0xff]
    %v4341 = vld [vmem:[#allocation18 + $0x8] sm:$0xff]
    %v4342 = vld [vmem:[#allocation18 + $0x10] sm:$0xff]
    %v4343 = vld [vmem:[#allocation18 + $0x18] sm:$0xff]
    %v4344 = vld [vmem:[#allocation18 + $0x20] sm:$0xff]
    %v4345 = vld [vmem:[#allocation18 + $0x28] sm:$0xff]
    %v4346 = vld [vmem:[#allocation18 + $0x30] sm:$0xff]
    %v4347 = vld [vmem:[#allocation18 + $0x38] sm:$0xff]
    %v4348 = vld [vmem:[#allocation18 + $0x40] sm:$0xff]
    %v4349 = vld [vmem:[#allocation18 + $0x48] sm:$0xff]
    %v4350 = vld [vmem:[#allocation18 + $0x50] sm:$0xff]
    %v4351 = vld [vmem:[#allocation18 + $0x58] sm:$0xff]
    %v4352 = vld [vmem:[#allocation18 + $0x60] sm:$0xff]
    %v4353 = vld [vmem:[#allocation18 + $0x68] sm:$0xff]
    %v4354 = vld [vmem:[#allocation18 + $0x70] sm:$0xff]
    %v4355 = vld [vmem:[#allocation18 + $0x78] sm:$0xff]
    %v4356 = vld [vmem:[#allocation18 + $0x80] sm:$0xff]
    %v4357 = vld [vmem:[#allocation18 + $0x88] sm:$0xff]
    %v4358 = vld [vmem:[#allocation18 + $0x90] sm:$0xff]
    %v4359 = vld [vmem:[#allocation18 + $0x98] sm:$0xff]
    %v4360 = vld [vmem:[#allocation18 + $0xa0] sm:$0xff]
    %v4361 = vld [vmem:[#allocation18 + $0xa8] sm:$0xff]
    %v4362 = vld [vmem:[#allocation18 + $0xb0] sm:$0xff]
    %v4363 = vld [vmem:[#allocation18 + $0xb8] sm:$0xff]
    %v4364 = vld [vmem:[#allocation18 + $0xc0] sm:$0xff]
    %v4365 = vld [vmem:[#allocation18 + $0xc8] sm:$0xff]
    %v4366 = vld [vmem:[#allocation18 + $0xd0] sm:$0xff]
    %v4367 = vld [vmem:[#allocation18 + $0xd8] sm:$0xff]
    %v4368 = vld [vmem:[#allocation18 + $0xe0] sm:$0xff]
    %v4369 = vld [vmem:[#allocation18 + $0xe8] sm:$0xff]
    %v4370 = vld [vmem:[#allocation18 + $0xf0] sm:$0xff]
    %v4371 = vld [vmem:[#allocation18 + $0xf8] sm:$0xff]
    %v4372 = vld [vmem:[#allocation18 + $0x100] sm:$0xff]
    %v4373 = vld [vmem:[#allocation18 + $0x108] sm:$0xff]
    %v4374 = vld [vmem:[#allocation18 + $0x110] sm:$0xff]
    %v4375 = vld [vmem:[#allocation18 + $0x118] sm:$0xff]
    %v4376 = vld [vmem:[#allocation18 + $0x120] sm:$0xff]
    %v4377 = vld [vmem:[#allocation18 + $0x128] sm:$0xff]
    %v4378 = vld [vmem:[#allocation18 + $0x130] sm:$0xff]
    %v4379 = vld [vmem:[#allocation18 + $0x138] sm:$0xff]
    %v4380 = vld [vmem:[#allocation18 + $0x140] sm:$0xff]
    %v4381 = vld [vmem:[#allocation18 + $0x148] sm:$0xff]
    %v4382 = vld [vmem:[#allocation18 + $0x150] sm:$0xff]
    %v4383 = vld [vmem:[#allocation18 + $0x158] sm:$0xff]
    %v4384 = vld [vmem:[#allocation18 + $0x160] sm:$0xff]
    %v4385 = vld [vmem:[#allocation18 + $0x168] sm:$0xff]
    %v4386 = vld [vmem:[#allocation18 + $0x170] sm:$0xff]
    %v4387 = vld [vmem:[#allocation18 + $0x178] sm:$0xff]
    %v4388 = vld [vmem:[#allocation18 + $0x180] sm:$0xff]
    %v4389 = vld [vmem:[#allocation18 + $0x188] sm:$0xff]
    %v4390 = vld [vmem:[#allocation18 + $0x190] sm:$0xff]
    %v4391 = vld [vmem:[#allocation18 + $0x198] sm:$0xff]
    %v4392 = vld [vmem:[#allocation18 + $0x1a0] sm:$0xff]
    %v4393 = vld [vmem:[#allocation18 + $0x1a8] sm:$0xff]
    %v4394 = vld [vmem:[#allocation18 + $0x1b0] sm:$0xff]
    %v4395 = vld [vmem:[#allocation18 + $0x1b8] sm:$0xff]
    %v4396 = vld [vmem:[#allocation18 + $0x1c0] sm:$0xff]
    %v4397 = vld [vmem:[#allocation18 + $0x1c8] sm:$0xff]
    %v4398 = vld [vmem:[#allocation18 + $0x1d0] sm:$0xff]
    %v4399 = vld [vmem:[#allocation18 + $0x1d8] sm:$0xff]
    %v4400 = vld [vmem:[#allocation18 + $0x1e0] sm:$0xff]
    %v4401 = vld [vmem:[#allocation18 + $0x1e8] sm:$0xff]
    %v4402 = vld [vmem:[#allocation18 + $0x1f0] sm:$0xff]
    %v4403 = vld [vmem:[#allocation18 + $0x1f8] sm:$0xff]
    %4404 = vmatprep.subr.mxu0 %v4277
    %4405 = vmatpush1.msra.mxu0 %v4276
    %4406 = vmatprep.subr.mxu0 %v4281
    %4407 = vmatpush1.msra.mxu0 %v4280
    %4408 = vmatprep.subr.mxu0 %v4285
    %4409 = vmatpush1.msra.mxu0 %v4284
    %4410 = vmatprep.subr.mxu0 %v4289
    %4411 = vmatpush1.msra.mxu0 %v4288
    %4412 = vmatprep.subr.mxu0 %v4293
    %4413 = vmatpush1.msra.mxu0 %v4292
    %4414 = vmatprep.subr.mxu0 %v4297
    %4415 = vmatpush1.msra.mxu0 %v4296
    %4416 = vmatprep.subr.mxu0 %v4301
    %4417 = vmatpush1.msra.mxu0 %v4300
    %4418 = vmatprep.subr.mxu0 %v4305
    %4419 = vmatpush1.msra.mxu0 %v4304
    %4420 = vmatprep.subr.mxu0 %v4309
    %4421 = vmatpush1.msra.mxu0 %v4308
    %4422 = vmatprep.subr.mxu0 %v4313
    %4423 = vmatpush1.msra.mxu0 %v4312
    %4424 = vmatprep.subr.mxu0 %v4317
    %4425 = vmatpush1.msra.mxu0 %v4316
    %4426 = vmatprep.subr.mxu0 %v4321
    %4427 = vmatpush1.msra.mxu0 %v4320
    %4428 = vmatprep.subr.mxu0 %v4325
    %4429 = vmatpush1.msra.mxu0 %v4324
    %4430 = vmatprep.subr.mxu0 %v4329
    %4431 = vmatpush1.msra.mxu0 %v4328
    %4432 = vmatprep.subr.mxu0 %v4333
    %4433 = vmatpush1.msra.mxu0 %v4332
    %4434 = vmatprep.subr.mxu0 %v4337
    %4435 = vmatpush1.msra.mxu0 %v4336
    %4436 = vmatprep.subr.mxu0 0.0
    %4437 = vmatpush1.msra.mxu0 0.0
    %4438 = vmatprep.subr.mxu0 0.0
    %4439 = vmatpush1.msra.mxu0 0.0
    %4440 = vmatprep.subr.mxu0 0.0
    %4441 = vmatpush1.msra.mxu0 0.0
    %4442 = vmatprep.subr.mxu0 0.0
    %4443 = vmatpush1.msra.mxu0 0.0
    %4444 = vmatprep.subr.mxu0 0.0
    %4445 = vmatpush1.msra.mxu0 0.0
    %4446 = vmatprep.subr.mxu0 0.0
    %4447 = vmatpush1.msra.mxu0 0.0
    %4448 = vmatprep.subr.mxu0 0.0
    %4449 = vmatpush1.msra.mxu0 0.0
    %4450 = vmatprep.subr.mxu0 0.0
    %4451 = vmatpush1.msra.mxu0 0.0
    %4452 = vmatprep.subr.mxu0 0.0
    %4453 = vmatpush1.msra.mxu0 0.0
    %4454 = vmatprep.subr.mxu0 0.0
    %4455 = vmatpush1.msra.mxu0 0.0
    %4456 = vmatprep.subr.mxu0 0.0
    %4457 = vmatpush1.msra.mxu0 0.0
    %4458 = vmatprep.subr.mxu0 0.0
    %4459 = vmatpush1.msra.mxu0 0.0
    %4460 = vmatprep.subr.mxu0 0.0
    %4461 = vmatpush1.msra.mxu0 0.0
    %4462 = vmatprep.subr.mxu0 0.0
    %4463 = vmatpush1.msra.mxu0 0.0
    %4464 = vmatprep.subr.mxu0 0.0
    %4465 = vmatpush1.msra.mxu0 0.0
    %4466 = vmatprep.subr.mxu0 0.0
    %4467 = vmatpush1.msra.mxu0 0.0
    %4468 = vmatprep.mubr.f32.mxu0 0.0
    %4469 = vmatmul.mubr.f32.gmra.mrb[0].mxu0 0.0
    %v4470 = vpop.f32.mrb[0].mxu0
    %v4471 = vadd.f32 0.0, %v4470
    %v4472 = vpop.f32.mrb[0].mxu0
    %v4473 = vadd.f32 0.0, %v4472
    %4474 = vdwg.mxu0
    %4475 = vmatprep.subr.mxu0 %v4279
    %4476 = vmatpush1.msra.mxu0 %v4278
    %4477 = vmatprep.subr.mxu0 %v4283
    %4478 = vmatpush1.msra.mxu0 %v4282
    %4479 = vmatprep.subr.mxu0 %v4287
    %4480 = vmatpush1.msra.mxu0 %v4286
    %4481 = vmatprep.subr.mxu0 %v4291
    %4482 = vmatpush1.msra.mxu0 %v4290
    %4483 = vmatprep.subr.mxu0 %v4295
    %4484 = vmatpush1.msra.mxu0 %v4294
    %4485 = vmatprep.subr.mxu0 %v4299
    %4486 = vmatpush1.msra.mxu0 %v4298
    %4487 = vmatprep.subr.mxu0 %v4303
    %4488 = vmatpush1.msra.mxu0 %v4302
    %4489 = vmatprep.subr.mxu0 %v4307
    %4490 = vmatpush1.msra.mxu0 %v4306
    %4491 = vmatprep.subr.mxu0 %v4311
    %4492 = vmatpush1.msra.mxu0 %v4310
    %4493 = vmatprep.subr.mxu0 %v4315
    %4494 = vmatpush1.msra.mxu0 %v4314
    %4495 = vmatprep.subr.mxu0 %v4319
    %4496 = vmatpush1.msra.mxu0 %v4318
    %4497 = vmatprep.subr.mxu0 %v4323
    %4498 = vmatpush1.msra.mxu0 %v4322
    %4499 = vmatprep.subr.mxu0 %v4327
    %4500 = vmatpush1.msra.mxu0 %v4326
    %4501 = vmatprep.subr.mxu0 %v4331
    %4502 = vmatpush1.msra.mxu0 %v4330
    %4503 = vmatprep.subr.mxu0 %v4335
    %4504 = vmatpush1.msra.mxu0 %v4334
    %4505 = vmatprep.subr.mxu0 %v4339
    %4506 = vmatpush1.msra.mxu0 %v4338
    %4507 = vmatprep.subr.mxu0 0.0
    %4508 = vmatpush1.msra.mxu0 0.0
    %4509 = vmatprep.subr.mxu0 0.0
    %4510 = vmatpush1.msra.mxu0 0.0
    %4511 = vmatprep.subr.mxu0 0.0
    %4512 = vmatpush1.msra.mxu0 0.0
    %4513 = vmatprep.subr.mxu0 0.0
    %4514 = vmatpush1.msra.mxu0 0.0
    %4515 = vmatprep.subr.mxu0 0.0
    %4516 = vmatpush1.msra.mxu0 0.0
    %4517 = vmatprep.subr.mxu0 0.0
    %4518 = vmatpush1.msra.mxu0 0.0
    %4519 = vmatprep.subr.mxu0 0.0
    %4520 = vmatpush1.msra.mxu0 0.0
    %4521 = vmatprep.subr.mxu0 0.0
    %4522 = vmatpush1.msra.mxu0 0.0
    %4523 = vmatprep.subr.mxu0 0.0
    %4524 = vmatpush1.msra.mxu0 0.0
    %4525 = vmatprep.subr.mxu0 0.0
    %4526 = vmatpush1.msra.mxu0 0.0
    %4527 = vmatprep.subr.mxu0 0.0
    %4528 = vmatpush1.msra.mxu0 0.0
    %4529 = vmatprep.subr.mxu0 0.0
    %4530 = vmatpush1.msra.mxu0 0.0
    %4531 = vmatprep.subr.mxu0 0.0
    %4532 = vmatpush1.msra.mxu0 0.0
    %4533 = vmatprep.subr.mxu0 0.0
    %4534 = vmatpush1.msra.mxu0 0.0
    %4535 = vmatprep.subr.mxu0 0.0
    %4536 = vmatpush1.msra.mxu0 0.0
    %4537 = vmatprep.subr.mxu0 0.0
    %4538 = vmatpush1.msra.mxu0 0.0
    %4539 = vmatprep.mubr.f32.mxu0 0.0
    %4540 = vmatmul.mubr.f32.gmra.mrb[0].mxu0 0.0
    %v4541 = vpop.f32.mrb[0].mxu0
    %v4542 = vadd.f32 0.0, %v4541
    %v4543 = vpop.f32.mrb[0].mxu0
    %v4544 = vadd.f32 0.0, %v4543
    %4545 = vdwg.mxu0
    %v4546 = vadd.f32 %v3909, %v4471
    %v4547 = vadd.f32 %v3911, %v4473
    %v4548 = vadd.f32 %v3980, %v4542
    %v4549 = vadd.f32 %v3982, %v4544
    %v4550 = vxor.u32 %v4546, 2147483648
    %v4551 = vmul.f32 %v4550, 1.442695
    %v4552 = vpow.pop %v4551
    %v4553 = vadd.f32 %v4552, 1.0
    %v4554 = vrcp.pop %v4553
    %v4555 = vmul.f32 1.0, %v4554
    %v4556 = vxor.u32 %v4547, 2147483648
    %v4557 = vmul.f32 %v4556, 1.442695
    %v4558 = vpow.pop %v4557
    %v4559 = vadd.f32 %v4558, 1.0
    %v4560 = vrcp.pop %v4559
    %v4561 = vmul.f32 1.0, %v4560
    %v4562 = vtanh.pop %v4548
    %v4563 = vxor.u32 %v4549, 2147483648
    %v4564 = vmul.f32 %v4563, 1.442695
    %v4565 = vpow.pop %v4564
    %v4566 = vadd.f32 %v4565, 1.0
    %v4567 = vrcp.pop %v4566
    %v4568 = vmul.f32 1.0, %v4567
    %v4569 = vmul.f32 %v4561, 0.0
    %v4570 = vmul.f32 %v4555, %v4562
    %v4571 = vadd.f32 %v4569, %v4570
    %v4572 = vtanh.pop %v4571
    %v4573 = vmul.f32 %v4568, %v4572
    %4574 = vmatprep.subr.mxu0 %v4341
    %4575 = vmatpush1.msra.mxu0 %v4340
    %4576 = vmatprep.subr.mxu0 %v4345
    %4577 = vmatpush1.msra.mxu0 %v4344
    %4578 = vmatprep.subr.mxu0 %v4349
    %4579 = vmatpush1.msra.mxu0 %v4348
    %4580 = vmatprep.subr.mxu0 %v4353
    %4581 = vmatpush1.msra.mxu0 %v4352
    %4582 = vmatprep.subr.mxu0 %v4357
    %4583 = vmatpush1.msra.mxu0 %v4356
    %4584 = vmatprep.subr.mxu0 %v4361
    %4585 = vmatpush1.msra.mxu0 %v4360
    %4586 = vmatprep.subr.mxu0 %v4365
    %4587 = vmatpush1.msra.mxu0 %v4364
    %4588 = vmatprep.subr.mxu0 %v4369
    %4589 = vmatpush1.msra.mxu0 %v4368
    %4590 = vmatprep.subr.mxu0 %v4373
    %4591 = vmatpush1.msra.mxu0 %v4372
    %4592 = vmatprep.subr.mxu0 %v4377
    %4593 = vmatpush1.msra.mxu0 %v4376
    %4594 = vmatprep.subr.mxu0 %v4381
    %4595 = vmatpush1.msra.mxu0 %v4380
    %4596 = vmatprep.subr.mxu0 %v4385
    %4597 = vmatpush1.msra.mxu0 %v4384
    %4598 = vmatprep.subr.mxu0 %v4389
    %4599 = vmatpush1.msra.mxu0 %v4388
    %4600 = vmatprep.subr.mxu0 %v4393
    %4601 = vmatpush1.msra.mxu0 %v4392
    %4602 = vmatprep.subr.mxu0 %v4397
    %4603 = vmatpush1.msra.mxu0 %v4396
    %4604 = vmatprep.subr.mxu0 %v4401
    %4605 = vmatpush1.msra.mxu0 %v4400
    %4606 = vmatprep.subr.mxu0 0.0
    %4607 = vmatpush1.msra.mxu0 0.0
    %4608 = vmatprep.subr.mxu0 0.0
    %4609 = vmatpush1.msra.mxu0 0.0
    %4610 = vmatprep.subr.mxu0 0.0
    %4611 = vmatpush1.msra.mxu0 0.0
    %4612 = vmatprep.subr.mxu0 0.0
    %4613 = vmatpush1.msra.mxu0 0.0
    %4614 = vmatprep.subr.mxu0 0.0
    %4615 = vmatpush1.msra.mxu0 0.0
    %4616 = vmatprep.subr.mxu0 0.0
    %4617 = vmatpush1.msra.mxu0 0.0
    %4618 = vmatprep.subr.mxu0 0.0
    %4619 = vmatpush1.msra.mxu0 0.0
    %4620 = vmatprep.subr.mxu0 0.0
    %4621 = vmatpush1.msra.mxu0 0.0
    %4622 = vmatprep.subr.mxu0 0.0
    %4623 = vmatpush1.msra.mxu0 0.0
    %4624 = vmatprep.subr.mxu0 0.0
    %4625 = vmatpush1.msra.mxu0 0.0
    %4626 = vmatprep.subr.mxu0 0.0
    %4627 = vmatpush1.msra.mxu0 0.0
    %4628 = vmatprep.subr.mxu0 0.0
    %4629 = vmatpush1.msra.mxu0 0.0
    %4630 = vmatprep.subr.mxu0 0.0
    %4631 = vmatpush1.msra.mxu0 0.0
    %4632 = vmatprep.subr.mxu0 0.0
    %4633 = vmatpush1.msra.mxu0 0.0
    %4634 = vmatprep.subr.mxu0 0.0
    %4635 = vmatpush1.msra.mxu0 0.0
    %4636 = vmatprep.subr.mxu0 0.0
    %4637 = vmatpush1.msra.mxu0 0.0
    %4638 = vmatprep.mubr.f32.mxu0 0.0
    %4639 = vmatmul.mubr.f32.gmra.mrb[0].mxu0 0.0
    %v4640 = vpop.f32.mrb[0].mxu0
    %v4641 = vadd.f32 0.0, %v4640
    %v4642 = vpop.f32.mrb[0].mxu0
    %v4643 = vadd.f32 0.0, %v4642
    %4644 = vdwg.mxu0
    %4645 = vmatprep.subr.mxu0 %v4343
    %4646 = vmatpush1.msra.mxu0 %v4342
    %4647 = vmatprep.subr.mxu0 %v4347
    %4648 = vmatpush1.msra.mxu0 %v4346
    %4649 = vmatprep.subr.mxu0 %v4351
    %4650 = vmatpush1.msra.mxu0 %v4350
    %4651 = vmatprep.subr.mxu0 %v4355
    %4652 = vmatpush1.msra.mxu0 %v4354
    %4653 = vmatprep.subr.mxu0 %v4359
    %4654 = vmatpush1.msra.mxu0 %v4358
    %4655 = vmatprep.subr.mxu0 %v4363
    %4656 = vmatpush1.msra.mxu0 %v4362
    %4657 = vmatprep.subr.mxu0 %v4367
    %4658 = vmatpush1.msra.mxu0 %v4366
    %4659 = vmatprep.subr.mxu0 %v4371
    %4660 = vmatpush1.msra.mxu0 %v4370
    %4661 = vmatprep.subr.mxu0 %v4375
    %4662 = vmatpush1.msra.mxu0 %v4374
    %4663 = vmatprep.subr.mxu0 %v4379
    %4664 = vmatpush1.msra.mxu0 %v4378
    %4665 = vmatprep.subr.mxu0 %v4383
    %4666 = vmatpush1.msra.mxu0 %v4382
    %4667 = vmatprep.subr.mxu0 %v4387
    %4668 = vmatpush1.msra.mxu0 %v4386
    %4669 = vmatprep.subr.mxu0 %v4391
    %4670 = vmatpush1.msra.mxu0 %v4390
    %4671 = vmatprep.subr.mxu0 %v4395
    %4672 = vmatpush1.msra.mxu0 %v4394
    %4673 = vmatprep.subr.mxu0 %v4399
    %4674 = vmatpush1.msra.mxu0 %v4398
    %4675 = vmatprep.subr.mxu0 %v4403
    %4676 = vmatpush1.msra.mxu0 %v4402
    %4677 = vmatprep.subr.mxu0 0.0
    %4678 = vmatpush1.msra.mxu0 0.0
    %4679 = vmatprep.subr.mxu0 0.0
    %4680 = vmatpush1.msra.mxu0 0.0
    %4681 = vmatprep.subr.mxu0 0.0
    %4682 = vmatpush1.msra.mxu0 0.0
    %4683 = vmatprep.subr.mxu0 0.0
    %4684 = vmatpush1.msra.mxu0 0.0
    %4685 = vmatprep.subr.mxu0 0.0
    %4686 = vmatpush1.msra.mxu0 0.0
    %4687 = vmatprep.subr.mxu0 0.0
    %4688 = vmatpush1.msra.mxu0 0.0
    %4689 = vmatprep.subr.mxu0 0.0
    %4690 = vmatpush1.msra.mxu0 0.0
    %4691 = vmatprep.subr.mxu0 0.0
    %4692 = vmatpush1.msra.mxu0 0.0
    %4693 = vmatprep.subr.mxu0 0.0
    %4694 = vmatpush1.msra.mxu0 0.0
    %4695 = vmatprep.subr.mxu0 0.0
    %4696 = vmatpush1.msra.mxu0 0.0
    %4697 = vmatprep.subr.mxu0 0.0
    %4698 = vmatpush1.msra.mxu0 0.0
    %4699 = vmatprep.subr.mxu0 0.0
    %4700 = vmatpush1.msra.mxu0 0.0
    %4701 = vmatprep.subr.mxu0 0.0
    %4702 = vmatpush1.msra.mxu0 0.0
    %4703 = vmatprep.subr.mxu0 0.0
    %4704 = vmatpush1.msra.mxu0 0.0
    %4705 = vmatprep.subr.mxu0 0.0
    %4706 = vmatpush1.msra.mxu0 0.0
    %4707 = vmatprep.subr.mxu0 0.0
    %4708 = vmatpush1.msra.mxu0 0.0
    %4709 = vmatprep.mubr.f32.mxu0 0.0
    %4710 = vmatmul.mubr.f32.gmra.mrb[0].mxu0 0.0
    %v4711 = vpop.f32.mrb[0].mxu0
    %v4712 = vadd.f32 0.0, %v4711
    %v4713 = vpop.f32.mrb[0].mxu0
    %v4714 = vadd.f32 0.0, %v4713
    %4715 = vdwg.mxu0
    %v4720 = vrot.slane %v4641, 1
    %v4721 = vrot.slane %v4643, 1
    %v4722 = vrot.slane %v4712, 1
    %v4723 = vrot.slane %v4714, 1
    %v4728 = vadd.f32 %v4201, %v4720
    %v4729 = vadd.f32 %v4203, %v4721
    %v4730 = vadd.f32 %v4272, %v4722
    %v4731 = vadd.f32 %v4274, %v4723
    %v4732 = vxor.u32 %v4728, 2147483648
    %v4733 = vmul.f32 %v4732, 1.442695
    %v4734 = vpow.pop %v4733
    %v4735 = vadd.f32 %v4734, 1.0
    %v4736 = vrcp.pop %v4735
    %v4737 = vmul.f32 1.0, %v4736
    %v4738 = vxor.u32 %v4729, 2147483648
    %v4739 = vmul.f32 %v4738, 1.442695
    %v4740 = vpow.pop %v4739
    %v4741 = vadd.f32 %v4740, 1.0
    %v4742 = vrcp.pop %v4741
    %v4743 = vmul.f32 1.0, %v4742
    %v4744 = vtanh.pop %v4730
    %v4745 = vxor.u32 %v4731, 2147483648
    %v4746 = vmul.f32 %v4745, 1.442695
    %v4747 = vpow.pop %v4746
    %v4748 = vadd.f32 %v4747, 1.0
    %v4749 = vrcp.pop %v4748
    %v4750 = vmul.f32 1.0, %v4749
    %v4751 = vmul.f32 %v4743, 0.0
    %v4752 = vmul.f32 %v4737, %v4744
    %v4753 = vadd.f32 %v4751, %v4752
    %v4754 = vtanh.pop %v4753
    %v4755 = vmul.f32 %v4750, %v4754
    %4756 = vst [vmem:[#allocation4] sm:$0x1] %v4573
    %v4758 = vrot.slane %v4755, 7
    %4760 = vst [vmem:[#allocation4 + $0xf] sm:$0x1] %v4758
    %4761 = vmatprep.subr.mxu0 %v4277
    %4762 = vmatpush1.msra.mxu0 %v4276
    %4763 = vmatprep.subr.mxu0 %v4281
    %4764 = vmatpush1.msra.mxu0 %v4280
    %4765 = vmatprep.subr.mxu0 %v4285
    %4766 = vmatpush1.msra.mxu0 %v4284
    %4767 = vmatprep.subr.mxu0 %v4289
    %4768 = vmatpush1.msra.mxu0 %v4288
    %4769 = vmatprep.subr.mxu0 %v4293
    %4770 = vmatpush1.msra.mxu0 %v4292
    %4771 = vmatprep.subr.mxu0 %v4297
    %4772 = vmatpush1.msra.mxu0 %v4296
    %4773 = vmatprep.subr.mxu0 %v4301
    %4774 = vmatpush1.msra.mxu0 %v4300
    %4775 = vmatprep.subr.mxu0 %v4305
    %4776 = vmatpush1.msra.mxu0 %v4304
    %4777 = vmatprep.subr.mxu0 %v4309
    %4778 = vmatpush1.msra.mxu0 %v4308
    %4779 = vmatprep.subr.mxu0 %v4313
    %4780 = vmatpush1.msra.mxu0 %v4312
    %4781 = vmatprep.subr.mxu0 %v4317
    %4782 = vmatpush1.msra.mxu0 %v4316
    %4783 = vmatprep.subr.mxu0 %v4321
    %4784 = vmatpush1.msra.mxu0 %v4320
    %4785 = vmatprep.subr.mxu0 %v4325
    %4786 = vmatpush1.msra.mxu0 %v4324
    %4787 = vmatprep.subr.mxu0 %v4329
    %4788 = vmatpush1.msra.mxu0 %v4328
    %4789 = vmatprep.subr.mxu0 %v4333
    %4790 = vmatpush1.msra.mxu0 %v4332
    %4791 = vmatprep.subr.mxu0 %v4337
    %4792 = vmatpush1.msra.mxu0 %v4336
    %4793 = vmatprep.subr.mxu0 0.0
    %4794 = vmatpush1.msra.mxu0 0.0
    %4795 = vmatprep.subr.mxu0 0.0
    %4796 = vmatpush1.msra.mxu0 0.0
    %4797 = vmatprep.subr.mxu0 0.0
    %4798 = vmatpush1.msra.mxu0 0.0
    %4799 = vmatprep.subr.mxu0 0.0
    %4800 = vmatpush1.msra.mxu0 0.0
    %4801 = vmatprep.subr.mxu0 0.0
    %4802 = vmatpush1.msra.mxu0 0.0
    %4803 = vmatprep.subr.mxu0 0.0
    %4804 = vmatpush1.msra.mxu0 0.0
    %4805 = vmatprep.subr.mxu0 0.0
    %4806 = vmatpush1.msra.mxu0 0.0
    %4807 = vmatprep.subr.mxu0 0.0
    %4808 = vmatpush1.msra.mxu0 0.0
    %4809 = vmatprep.subr.mxu0 0.0
    %4810 = vmatpush1.msra.mxu0 0.0
    %4811 = vmatprep.subr.mxu0 0.0
    %4812 = vmatpush1.msra.mxu0 0.0
    %4813 = vmatprep.subr.mxu0 0.0
    %4814 = vmatpush1.msra.mxu0 0.0
    %4815 = vmatprep.subr.mxu0 0.0
    %4816 = vmatpush1.msra.mxu0 0.0
    %4817 = vmatprep.subr.mxu0 0.0
    %4818 = vmatpush1.msra.mxu0 0.0
    %4819 = vmatprep.subr.mxu0 0.0
    %4820 = vmatpush1.msra.mxu0 0.0
    %4821 = vmatprep.subr.mxu0 0.0
    %4822 = vmatpush1.msra.mxu0 0.0
    %4823 = vmatprep.subr.mxu0 0.0
    %4824 = vmatpush1.msra.mxu0 0.0
    %4825 = vmatprep.mubr.f32.mxu0 0.0
    %4826 = vmatmul.mubr.f32.gmra.mrb[0].mxu0 %v4573
    %v4827 = vpop.f32.mrb[0].mxu0
    %v4828 = vadd.f32 0.0, %v4827
    %v4829 = vpop.f32.mrb[0].mxu0
    %v4830 = vadd.f32 0.0, %v4829
    %4831 = vdwg.mxu0
    %4832 = vmatprep.subr.mxu0 %v4279
    %4833 = vmatpush1.msra.mxu0 %v4278
    %4834 = vmatprep.subr.mxu0 %v4283
    %4835 = vmatpush1.msra.mxu0 %v4282
    %4836 = vmatprep.subr.mxu0 %v4287
    %4837 = vmatpush1.msra.mxu0 %v4286
    %4838 = vmatprep.subr.mxu0 %v4291
    %4839 = vmatpush1.msra.mxu0 %v4290
    %4840 = vmatprep.subr.mxu0 %v4295
    %4841 = vmatpush1.msra.mxu0 %v4294
    %4842 = vmatprep.subr.mxu0 %v4299
    %4843 = vmatpush1.msra.mxu0 %v4298
    %4844 = vmatprep.subr.mxu0 %v4303
    %4845 = vmatpush1.msra.mxu0 %v4302
    %4846 = vmatprep.subr.mxu0 %v4307
    %4847 = vmatpush1.msra.mxu0 %v4306
    %4848 = vmatprep.subr.mxu0 %v4311
    %4849 = vmatpush1.msra.mxu0 %v4310
    %4850 = vmatprep.subr.mxu0 %v4315
    %4851 = vmatpush1.msra.mxu0 %v4314
    %4852 = vmatprep.subr.mxu0 %v4319
    %4853 = vmatpush1.msra.mxu0 %v4318
    %4854 = vmatprep.subr.mxu0 %v4323
    %4855 = vmatpush1.msra.mxu0 %v4322
    %4856 = vmatprep.subr.mxu0 %v4327
    %4857 = vmatpush1.msra.mxu0 %v4326
    %4858 = vmatprep.subr.mxu0 %v4331
    %4859 = vmatpush1.msra.mxu0 %v4330
    %4860 = vmatprep.subr.mxu0 %v4335
    %4861 = vmatpush1.msra.mxu0 %v4334
    %4862 = vmatprep.subr.mxu0 %v4339
    %4863 = vmatpush1.msra.mxu0 %v4338
    %4864 = vmatprep.subr.mxu0 0.0
    %4865 = vmatpush1.msra.mxu0 0.0
    %4866 = vmatprep.subr.mxu0 0.0
    %4867 = vmatpush1.msra.mxu0 0.0
    %4868 = vmatprep.subr.mxu0 0.0
    %4869 = vmatpush1.msra.mxu0 0.0
    %4870 = vmatprep.subr.mxu0 0.0
    %4871 = vmatpush1.msra.mxu0 0.0
    %4872 = vmatprep.subr.mxu0 0.0
    %4873 = vmatpush1.msra.mxu0 0.0
    %4874 = vmatprep.subr.mxu0 0.0
    %4875 = vmatpush1.msra.mxu0 0.0
    %4876 = vmatprep.subr.mxu0 0.0
    %4877 = vmatpush1.msra.mxu0 0.0
    %4878 = vmatprep.subr.mxu0 0.0
    %4879 = vmatpush1.msra.mxu0 0.0
    %4880 = vmatprep.subr.mxu0 0.0
    %4881 = vmatpush1.msra.mxu0 0.0
    %4882 = vmatprep.subr.mxu0 0.0
    %4883 = vmatpush1.msra.mxu0 0.0
    %4884 = vmatprep.subr.mxu0 0.0
    %4885 = vmatpush1.msra.mxu0 0.0
    %4886 = vmatprep.subr.mxu0 0.0
    %4887 = vmatpush1.msra.mxu0 0.0
    %4888 = vmatprep.subr.mxu0 0.0
    %4889 = vmatpush1.msra.mxu0 0.0
    %4890 = vmatprep.subr.mxu0 0.0
    %4891 = vmatpush1.msra.mxu0 0.0
    %4892 = vmatprep.subr.mxu0 0.0
    %4893 = vmatpush1.msra.mxu0 0.0
    %4894 = vmatprep.subr.mxu0 0.0
    %4895 = vmatpush1.msra.mxu0 0.0
    %4896 = vmatprep.mubr.f32.mxu0 0.0
    %4897 = vmatmul.mubr.f32.gmra.mrb[0].mxu0 %v4573
    %v4898 = vpop.f32.mrb[0].mxu0
    %v4899 = vadd.f32 0.0, %v4898
    %v4900 = vpop.f32.mrb[0].mxu0
    %v4901 = vadd.f32 0.0, %v4900
    %4902 = vdwg.mxu0
    %v4907 = vrot.slane %v4828, 7
    %v4908 = vrot.slane %v4830, 7
    %v4909 = vrot.slane %v4899, 7
    %v4910 = vrot.slane %v4901, 7
    %v4915 = vadd.f32 %v3909, %v4907
    %v4916 = vadd.f32 %v3911, %v4908
    %v4917 = vadd.f32 %v3980, %v4909
    %v4918 = vadd.f32 %v3982, %v4910
    %v4919 = vxor.u32 %v4915, 2147483648
    %v4920 = vmul.f32 %v4919, 1.442695
    %v4921 = vpow.pop %v4920
    %v4922 = vadd.f32 %v4921, 1.0
    %v4923 = vrcp.pop %v4922
    %v4924 = vmul.f32 1.0, %v4923
    %v4925 = vxor.u32 %v4916, 2147483648
    %v4926 = vmul.f32 %v4925, 1.442695
    %v4927 = vpow.pop %v4926
    %v4928 = vadd.f32 %v4927, 1.0
    %v4929 = vrcp.pop %v4928
    %v4930 = vmul.f32 1.0, %v4929
    %v4931 = vtanh.pop %v4917
    %v4932 = vxor.u32 %v4918, 2147483648
    %v4933 = vmul.f32 %v4932, 1.442695
    %v4934 = vpow.pop %v4933
    %v4935 = vadd.f32 %v4934, 1.0
    %v4936 = vrcp.pop %v4935
    %v4937 = vmul.f32 1.0, %v4936
    %v4939 = vrot.slane %v4571, 7
    %v4941 = vmul.f32 %v4930, %v4939
    %v4942 = vmul.f32 %v4924, %v4931
    %v4943 = vadd.f32 %v4941, %v4942
    %v4944 = vtanh.pop %v4943
    %v4945 = vmul.f32 %v4937, %v4944
    %4946 = vmatprep.subr.mxu0 %v4341
    %4947 = vmatpush1.msra.mxu0 %v4340
    %4948 = vmatprep.subr.mxu0 %v4345
    %4949 = vmatpush1.msra.mxu0 %v4344
    %4950 = vmatprep.subr.mxu0 %v4349
    %4951 = vmatpush1.msra.mxu0 %v4348
    %4952 = vmatprep.subr.mxu0 %v4353
    %4953 = vmatpush1.msra.mxu0 %v4352
    %4954 = vmatprep.subr.mxu0 %v4357
    %4955 = vmatpush1.msra.mxu0 %v4356
    %4956 = vmatprep.subr.mxu0 %v4361
    %4957 = vmatpush1.msra.mxu0 %v4360
    %4958 = vmatprep.subr.mxu0 %v4365
    %4959 = vmatpush1.msra.mxu0 %v4364
    %4960 = vmatprep.subr.mxu0 %v4369
    %4961 = vmatpush1.msra.mxu0 %v4368
    %4962 = vmatprep.subr.mxu0 %v4373
    %4963 = vmatpush1.msra.mxu0 %v4372
    %4964 = vmatprep.subr.mxu0 %v4377
    %4965 = vmatpush1.msra.mxu0 %v4376
    %4966 = vmatprep.subr.mxu0 %v4381
    %4967 = vmatpush1.msra.mxu0 %v4380
    %4968 = vmatprep.subr.mxu0 %v4385
    %4969 = vmatpush1.msra.mxu0 %v4384
    %4970 = vmatprep.subr.mxu0 %v4389
    %4971 = vmatpush1.msra.mxu0 %v4388
    %4972 = vmatprep.subr.mxu0 %v4393
    %4973 = vmatpush1.msra.mxu0 %v4392
    %4974 = vmatprep.subr.mxu0 %v4397
    %4975 = vmatpush1.msra.mxu0 %v4396
    %4976 = vmatprep.subr.mxu0 %v4401
    %4977 = vmatpush1.msra.mxu0 %v4400
    %4978 = vmatprep.subr.mxu0 0.0
    %4979 = vmatpush1.msra.mxu0 0.0
    %4980 = vmatprep.subr.mxu0 0.0
    %4981 = vmatpush1.msra.mxu0 0.0
    %4982 = vmatprep.subr.mxu0 0.0
    %4983 = vmatpush1.msra.mxu0 0.0
    %4984 = vmatprep.subr.mxu0 0.0
    %4985 = vmatpush1.msra.mxu0 0.0
    %4986 = vmatprep.subr.mxu0 0.0
    %4987 = vmatpush1.msra.mxu0 0.0
    %4988 = vmatprep.subr.mxu0 0.0
    %4989 = vmatpush1.msra.mxu0 0.0
    %4990 = vmatprep.subr.mxu0 0.0
    %4991 = vmatpush1.msra.mxu0 0.0
    %4992 = vmatprep.subr.mxu0 0.0
    %4993 = vmatpush1.msra.mxu0 0.0
    %4994 = vmatprep.subr.mxu0 0.0
    %4995 = vmatpush1.msra.mxu0 0.0
    %4996 = vmatprep.subr.mxu0 0.0
    %4997 = vmatpush1.msra.mxu0 0.0
    %4998 = vmatprep.subr.mxu0 0.0
    %4999 = vmatpush1.msra.mxu0 0.0
    %5000 = vmatprep.subr.mxu0 0.0
    %5001 = vmatpush1.msra.mxu0 0.0
    %5002 = vmatprep.subr.mxu0 0.0
    %5003 = vmatpush1.msra.mxu0 0.0
    %5004 = vmatprep.subr.mxu0 0.0
    %5005 = vmatpush1.msra.mxu0 0.0
    %5006 = vmatprep.subr.mxu0 0.0
    %5007 = vmatpush1.msra.mxu0 0.0
    %5008 = vmatprep.subr.mxu0 0.0
    %5009 = vmatpush1.msra.mxu0 0.0
    %5010 = vmatprep.mubr.f32.mxu0 0.0
    %5011 = vmatmul.mubr.f32.gmra.mrb[0].mxu0 %v4758
    %v5012 = vpop.f32.mrb[0].mxu0
    %v5013 = vadd.f32 0.0, %v5012
    %v5014 = vpop.f32.mrb[0].mxu0
    %v5015 = vadd.f32 0.0, %v5014
    %5016 = vdwg.mxu0
    %5017 = vmatprep.subr.mxu0 %v4343
    %5018 = vmatpush1.msra.mxu0 %v4342
    %5019 = vmatprep.subr.mxu0 %v4347
    %5020 = vmatpush1.msra.mxu0 %v4346
    %5021 = vmatprep.subr.mxu0 %v4351
    %5022 = vmatpush1.msra.mxu0 %v4350
    %5023 = vmatprep.subr.mxu0 %v4355
    %5024 = vmatpush1.msra.mxu0 %v4354
    %5025 = vmatprep.subr.mxu0 %v4359
    %5026 = vmatpush1.msra.mxu0 %v4358
    %5027 = vmatprep.subr.mxu0 %v4363
    %5028 = vmatpush1.msra.mxu0 %v4362
    %5029 = vmatprep.subr.mxu0 %v4367
    %5030 = vmatpush1.msra.mxu0 %v4366
    %5031 = vmatprep.subr.mxu0 %v4371
    %5032 = vmatpush1.msra.mxu0 %v4370
    %5033 = vmatprep.subr.mxu0 %v4375
    %5034 = vmatpush1.msra.mxu0 %v4374
    %5035 = vmatprep.subr.mxu0 %v4379
    %5036 = vmatpush1.msra.mxu0 %v4378
    %5037 = vmatprep.subr.mxu0 %v4383
    %5038 = vmatpush1.msra.mxu0 %v4382
    %5039 = vmatprep.subr.mxu0 %v4387
    %5040 = vmatpush1.msra.mxu0 %v4386
    %5041 = vmatprep.subr.mxu0 %v4391
    %5042 = vmatpush1.msra.mxu0 %v4390
    %5043 = vmatprep.subr.mxu0 %v4395
    %5044 = vmatpush1.msra.mxu0 %v4394
    %5045 = vmatprep.subr.mxu0 %v4399
    %5046 = vmatpush1.msra.mxu0 %v4398
    %5047 = vmatprep.subr.mxu0 %v4403
    %5048 = vmatpush1.msra.mxu0 %v4402
    %5049 = vmatprep.subr.mxu0 0.0
    %5050 = vmatpush1.msra.mxu0 0.0
    %5051 = vmatprep.subr.mxu0 0.0
    %5052 = vmatpush1.msra.mxu0 0.0
    %5053 = vmatprep.subr.mxu0 0.0
    %5054 = vmatpush1.msra.mxu0 0.0
    %5055 = vmatprep.subr.mxu0 0.0
    %5056 = vmatpush1.msra.mxu0 0.0
    %5057 = vmatprep.subr.mxu0 0.0
    %5058 = vmatpush1.msra.mxu0 0.0
    %5059 = vmatprep.subr.mxu0 0.0
    %5060 = vmatpush1.msra.mxu0 0.0
    %5061 = vmatprep.subr.mxu0 0.0
    %5062 = vmatpush1.msra.mxu0 0.0
    %5063 = vmatprep.subr.mxu0 0.0
    %5064 = vmatpush1.msra.mxu0 0.0
    %5065 = vmatprep.subr.mxu0 0.0
    %5066 = vmatpush1.msra.mxu0 0.0
    %5067 = vmatprep.subr.mxu0 0.0
    %5068 = vmatpush1.msra.mxu0 0.0
    %5069 = vmatprep.subr.mxu0 0.0
    %5070 = vmatpush1.msra.mxu0 0.0
    %5071 = vmatprep.subr.mxu0 0.0
    %5072 = vmatpush1.msra.mxu0 0.0
    %5073 = vmatprep.subr.mxu0 0.0
    %5074 = vmatpush1.msra.mxu0 0.0
    %5075 = vmatprep.subr.mxu0 0.0
    %5076 = vmatpush1.msra.mxu0 0.0
    %5077 = vmatprep.subr.mxu0 0.0
    %5078 = vmatpush1.msra.mxu0 0.0
    %5079 = vmatprep.subr.mxu0 0.0
    %5080 = vmatpush1.msra.mxu0 0.0
    %5081 = vmatprep.mubr.f32.mxu0 0.0
    %5082 = vmatmul.mubr.f32.gmra.mrb[0].mxu0 %v4758
    %v5083 = vpop.f32.mrb[0].mxu0
    %v5084 = vadd.f32 0.0, %v5083
    %v5085 = vpop.f32.mrb[0].mxu0
    %v5086 = vadd.f32 0.0, %v5085
    %5087 = vdwg.mxu0
    %v5092 = vrot.slane %v5013, 2
    %v5093 = vrot.slane %v5015, 2
    %v5094 = vrot.slane %v5084, 2
    %v5095 = vrot.slane %v5086, 2
    %v5100 = vadd.f32 %v4201, %v5092
    %v5101 = vadd.f32 %v4203, %v5093
    %v5102 = vadd.f32 %v4272, %v5094
    %v5103 = vadd.f32 %v4274, %v5095
    %v5104 = vxor.u32 %v5100, 2147483648
    %v5105 = vmul.f32 %v5104, 1.442695
    %v5106 = vpow.pop %v5105
    %v5107 = vadd.f32 %v5106, 1.0
    %v5108 = vrcp.pop %v5107
    %v5109 = vmul.f32 1.0, %v5108
    %v5110 = vxor.u32 %v5101, 2147483648
    %v5111 = vmul.f32 %v5110, 1.442695
    %v5112 = vpow.pop %v5111
    %v5113 = vadd.f32 %v5112, 1.0
    %v5114 = vrcp.pop %v5113
    %v5115 = vmul.f32 1.0, %v5114
    %v5116 = vtanh.pop %v5102
    %v5117 = vxor.u32 %v5103, 2147483648
    %v5118 = vmul.f32 %v5117, 1.442695
    %v5119 = vpow.pop %v5118
    %v5120 = vadd.f32 %v5119, 1.0
    %v5121 = vrcp.pop %v5120
    %v5122 = vmul.f32 1.0, %v5121
    %v5124 = vrot.slane %v4753, 1
    %v5126 = vmul.f32 %v5115, %v5124
    %v5127 = vmul.f32 %v5109, %v5116
    %v5128 = vadd.f32 %v5126, %v5127
    %v5129 = vtanh.pop %v5128
    %v5130 = vmul.f32 %v5122, %v5129
    %v5132 = vrot.slane %v4945, 1
    %5134 = vst [vmem:[#allocation4 + $0x1] sm:$0x1] %v5132
    %v5136 = vrot.slane %v5130, 6
    %5138 = vst [vmem:[#allocation4 + $0xe] sm:$0x1] %v5136
    %5139 = vmatprep.subr.mxu0 %v4277
    %5140 = vmatpush1.msra.mxu0 %v4276
    %5141 = vmatprep.subr.mxu0 %v4281
    %5142 = vmatpush1.msra.mxu0 %v4280
    %5143 = vmatprep.subr.mxu0 %v4285
    %5144 = vmatpush1.msra.mxu0 %v4284
    %5145 = vmatprep.subr.mxu0 %v4289
    %5146 = vmatpush1.msra.mxu0 %v4288
    %5147 = vmatprep.subr.mxu0 %v4293
    %5148 = vmatpush1.msra.mxu0 %v4292
    %5149 = vmatprep.subr.mxu0 %v4297
    %5150 = vmatpush1.msra.mxu0 %v4296
    %5151 = vmatprep.subr.mxu0 %v4301
    %5152 = vmatpush1.msra.mxu0 %v4300
    %5153 = vmatprep.subr.mxu0 %v4305
    %5154 = vmatpush1.msra.mxu0 %v4304
    %5155 = vmatprep.subr.mxu0 %v4309
    %5156 = vmatpush1.msra.mxu0 %v4308
    %5157 = vmatprep.subr.mxu0 %v4313
    %5158 = vmatpush1.msra.mxu0 %v4312
    %5159 = vmatprep.subr.mxu0 %v4317
    %5160 = vmatpush1.msra.mxu0 %v4316
    %5161 = vmatprep.subr.mxu0 %v4321
    %5162 = vmatpush1.msra.mxu0 %v4320
    %5163 = vmatprep.subr.mxu0 %v4325
    %5164 = vmatpush1.msra.mxu0 %v4324
    %5165 = vmatprep.subr.mxu0 %v4329
    %5166 = vmatpush1.msra.mxu0 %v4328
    %5167 = vmatprep.subr.mxu0 %v4333
    %5168 = vmatpush1.msra.mxu0 %v4332
    %5169 = vmatprep.subr.mxu0 %v4337
    %5170 = vmatpush1.msra.mxu0 %v4336
    %5171 = vmatprep.subr.mxu0 0.0
    %5172 = vmatpush1.msra.mxu0 0.0
    %5173 = vmatprep.subr.mxu0 0.0
    %5174 = vmatpush1.msra.mxu0 0.0
    %5175 = vmatprep.subr.mxu0 0.0
    %5176 = vmatpush1.msra.mxu0 0.0
    %5177 = vmatprep.subr.mxu0 0.0
    %5178 = vmatpush1.msra.mxu0 0.0
    %5179 = vmatprep.subr.mxu0 0.0
    %5180 = vmatpush1.msra.mxu0 0.0
    %5181 = vmatprep.subr.mxu0 0.0
    %5182 = vmatpush1.msra.mxu0 0.0
    %5183 = vmatprep.subr.mxu0 0.0
    %5184 = vmatpush1.msra.mxu0 0.0
    %5185 = vmatprep.subr.mxu0 0.0
    %5186 = vmatpush1.msra.mxu0 0.0
    %5187 = vmatprep.subr.mxu0 0.0
    %5188 = vmatpush1.msra.mxu0 0.0
    %5189 = vmatprep.subr.mxu0 0.0
    %5190 = vmatpush1.msra.mxu0 0.0
    %5191 = vmatprep.subr.mxu0 0.0
    %5192 = vmatpush1.msra.mxu0 0.0
    %5193 = vmatprep.subr.mxu0 0.0
    %5194 = vmatpush1.msra.mxu0 0.0
    %5195 = vmatprep.subr.mxu0 0.0
    %5196 = vmatpush1.msra.mxu0 0.0
    %5197 = vmatprep.subr.mxu0 0.0
    %5198 = vmatpush1.msra.mxu0 0.0
    %5199 = vmatprep.subr.mxu0 0.0
    %5200 = vmatpush1.msra.mxu0 0.0
    %5201 = vmatprep.subr.mxu0 0.0
    %5202 = vmatpush1.msra.mxu0 0.0
    %5203 = vmatprep.mubr.f32.mxu0 0.0
    %5204 = vmatmul.mubr.f32.gmra.mrb[0].mxu0 %v5132
    %v5205 = vpop.f32.mrb[0].mxu0
    %v5206 = vadd.f32 0.0, %v5205
    %v5207 = vpop.f32.mrb[0].mxu0
    %v5208 = vadd.f32 0.0, %v5207
    %5209 = vdwg.mxu0
    %5210 = vmatprep.subr.mxu0 %v4279
    %5211 = vmatpush1.msra.mxu0 %v4278
    %5212 = vmatprep.subr.mxu0 %v4283
    %5213 = vmatpush1.msra.mxu0 %v4282
    %5214 = vmatprep.subr.mxu0 %v4287
    %5215 = vmatpush1.msra.mxu0 %v4286
    %5216 = vmatprep.subr.mxu0 %v4291
    %5217 = vmatpush1.msra.mxu0 %v4290
    %5218 = vmatprep.subr.mxu0 %v4295
    %5219 = vmatpush1.msra.mxu0 %v4294
    %5220 = vmatprep.subr.mxu0 %v4299
    %5221 = vmatpush1.msra.mxu0 %v4298
    %5222 = vmatprep.subr.mxu0 %v4303
    %5223 = vmatpush1.msra.mxu0 %v4302
    %5224 = vmatprep.subr.mxu0 %v4307
    %5225 = vmatpush1.msra.mxu0 %v4306
    %5226 = vmatprep.subr.mxu0 %v4311
    %5227 = vmatpush1.msra.mxu0 %v4310
    %5228 = vmatprep.subr.mxu0 %v4315
    %5229 = vmatpush1.msra.mxu0 %v4314
    %5230 = vmatprep.subr.mxu0 %v4319
    %5231 = vmatpush1.msra.mxu0 %v4318
    %5232 = vmatprep.subr.mxu0 %v4323
    %5233 = vmatpush1.msra.mxu0 %v4322
    %5234 = vmatprep.subr.mxu0 %v4327
    %5235 = vmatpush1.msra.mxu0 %v4326
    %5236 = vmatprep.subr.mxu0 %v4331
    %5237 = vmatpush1.msra.mxu0 %v4330
    %5238 = vmatprep.subr.mxu0 %v4335
    %5239 = vmatpush1.msra.mxu0 %v4334
    %5240 = vmatprep.subr.mxu0 %v4339
    %5241 = vmatpush1.msra.mxu0 %v4338
    %5242 = vmatprep.subr.mxu0 0.0
    %5243 = vmatpush1.msra.mxu0 0.0
    %5244 = vmatprep.subr.mxu0 0.0
    %5245 = vmatpush1.msra.mxu0 0.0
    %5246 = vmatprep.subr.mxu0 0.0
    %5247 = vmatpush1.msra.mxu0 0.0
    %5248 = vmatprep.subr.mxu0 0.0
    %5249 = vmatpush1.msra.mxu0 0.0
    %5250 = vmatprep.subr.mxu0 0.0
    %5251 = vmatpush1.msra.mxu0 0.0
    %5252 = vmatprep.subr.mxu0 0.0
    %5253 = vmatpush1.msra.mxu0 0.0
    %5254 = vmatprep.subr.mxu0 0.0
    %5255 = vmatpush1.msra.mxu0 0.0
    %5256 = vmatprep.subr.mxu0 0.0
    %5257 = vmatpush1.msra.mxu0 0.0
    %5258 = vmatprep.subr.mxu0 0.0
    %5259 = vmatpush1.msra.mxu0 0.0
    %5260 = vmatprep.subr.mxu0 0.0
    %5261 = vmatpush1.msra.mxu0 0.0
    %5262 = vmatprep.subr.mxu0 0.0
    %5263 = vmatpush1.msra.mxu0 0.0
    %5264 = vmatprep.subr.mxu0 0.0
    %5265 = vmatpush1.msra.mxu0 0.0
    %5266 = vmatprep.subr.mxu0 0.0
    %5267 = vmatpush1.msra.mxu0 0.0
    %5268 = vmatprep.subr.mxu0 0.0
    %5269 = vmatpush1.msra.mxu0 0.0
    %5270 = vmatprep.subr.mxu0 0.0
    %5271 = vmatpush1.msra.mxu0 0.0
    %5272 = vmatprep.subr.mxu0 0.0
    %5273 = vmatpush1.msra.mxu0 0.0
    %5274 = vmatprep.mubr.f32.mxu0 0.0
    %5275 = vmatmul.mubr.f32.gmra.mrb[0].mxu0 %v5132
    %v5276 = vpop.f32.mrb[0].mxu0
    %v5277 = vadd.f32 0.0, %v5276
    %v5278 = vpop.f32.mrb[0].mxu0
    %v5279 = vadd.f32 0.0, %v5278
    %5280 = vdwg.mxu0
    %v5285 = vrot.slane %v5206, 6
    %v5286 = vrot.slane %v5208, 6
    %v5287 = vrot.slane %v5277, 6
    %v5288 = vrot.slane %v5279, 6
    %v5293 = vadd.f32 %v3909, %v5285
    %v5294 = vadd.f32 %v3911, %v5286
    %v5295 = vadd.f32 %v3980, %v5287
    %v5296 = vadd.f32 %v3982, %v5288
    %v5297 = vxor.u32 %v5293, 2147483648
    %v5298 = vmul.f32 %v5297, 1.442695
    %v5299 = vpow.pop %v5298
    %v5300 = vadd.f32 %v5299, 1.0
    %v5301 = vrcp.pop %v5300
    %v5302 = vmul.f32 1.0, %v5301
    %v5303 = vxor.u32 %v5294, 2147483648
    %v5304 = vmul.f32 %v5303, 1.442695
    %v5305 = vpow.pop %v5304
    %v5306 = vadd.f32 %v5305, 1.0
    %v5307 = vrcp.pop %v5306
    %v5308 = vmul.f32 1.0, %v5307
    %v5309 = vtanh.pop %v5295
    %v5310 = vxor.u32 %v5296, 2147483648
    %v5311 = vmul.f32 %v5310, 1.442695
    %v5312 = vpow.pop %v5311
    %v5313 = vadd.f32 %v5312, 1.0
    %v5314 = vrcp.pop %v5313
    %v5315 = vmul.f32 1.0, %v5314
    %v5317 = vrot.slane %v4943, 7
    %v5319 = vmul.f32 %v5308, %v5317
    %v5320 = vmul.f32 %v5302, %v5309
    %v5321 = vadd.f32 %v5319, %v5320
    %v5322 = vtanh.pop %v5321
    %v5323 = vmul.f32 %v5315, %v5322
    %5324 = vmatprep.subr.mxu0 %v4341
    %5325 = vmatpush1.msra.mxu0 %v4340
    %5326 = vmatprep.subr.mxu0 %v4345
    %5327 = vmatpush1.msra.mxu0 %v4344
    %5328 = vmatprep.subr.mxu0 %v4349
    %5329 = vmatpush1.msra.mxu0 %v4348
    %5330 = vmatprep.subr.mxu0 %v4353
    %5331 = vmatpush1.msra.mxu0 %v4352
    %5332 = vmatprep.subr.mxu0 %v4357
    %5333 = vmatpush1.msra.mxu0 %v4356
    %5334 = vmatprep.subr.mxu0 %v4361
    %5335 = vmatpush1.msra.mxu0 %v4360
    %5336 = vmatprep.subr.mxu0 %v4365
    %5337 = vmatpush1.msra.mxu0 %v4364
    %5338 = vmatprep.subr.mxu0 %v4369
    %5339 = vmatpush1.msra.mxu0 %v4368
    %5340 = vmatprep.subr.mxu0 %v4373
    %5341 = vmatpush1.msra.mxu0 %v4372
    %5342 = vmatprep.subr.mxu0 %v4377
    %5343 = vmatpush1.msra.mxu0 %v4376
    %5344 = vmatprep.subr.mxu0 %v4381
    %5345 = vmatpush1.msra.mxu0 %v4380
    %5346 = vmatprep.subr.mxu0 %v4385
    %5347 = vmatpush1.msra.mxu0 %v4384
    %5348 = vmatprep.subr.mxu0 %v4389
    %5349 = vmatpush1.msra.mxu0 %v4388
    %5350 = vmatprep.subr.mxu0 %v4393
    %5351 = vmatpush1.msra.mxu0 %v4392
    %5352 = vmatprep.subr.mxu0 %v4397
    %5353 = vmatpush1.msra.mxu0 %v4396
    %5354 = vmatprep.subr.mxu0 %v4401
    %5355 = vmatpush1.msra.mxu0 %v4400
    %5356 = vmatprep.subr.mxu0 0.0
    %5357 = vmatpush1.msra.mxu0 0.0
    %5358 = vmatprep.subr.mxu0 0.0
    %5359 = vmatpush1.msra.mxu0 0.0
    %5360 = vmatprep.subr.mxu0 0.0
    %5361 = vmatpush1.msra.mxu0 0.0
    %5362 = vmatprep.subr.mxu0 0.0
    %5363 = vmatpush1.msra.mxu0 0.0
    %5364 = vmatprep.subr.mxu0 0.0
    %5365 = vmatpush1.msra.mxu0 0.0
    %5366 = vmatprep.subr.mxu0 0.0
    %5367 = vmatpush1.msra.mxu0 0.0
    %5368 = vmatprep.subr.mxu0 0.0
    %5369 = vmatpush1.msra.mxu0 0.0
    %5370 = vmatprep.subr.mxu0 0.0
    %5371 = vmatpush1.msra.mxu0 0.0
    %5372 = vmatprep.subr.mxu0 0.0
    %5373 = vmatpush1.msra.mxu0 0.0
    %5374 = vmatprep.subr.mxu0 0.0
    %5375 = vmatpush1.msra.mxu0 0.0
    %5376 = vmatprep.subr.mxu0 0.0
    %5377 = vmatpush1.msra.mxu0 0.0
    %5378 = vmatprep.subr.mxu0 0.0
    %5379 = vmatpush1.msra.mxu0 0.0
    %5380 = vmatprep.subr.mxu0 0.0
    %5381 = vmatpush1.msra.mxu0 0.0
    %5382 = vmatprep.subr.mxu0 0.0
    %5383 = vmatpush1.msra.mxu0 0.0
    %5384 = vmatprep.subr.mxu0 0.0
    %5385 = vmatpush1.msra.mxu0 0.0
    %5386 = vmatprep.subr.mxu0 0.0
    %5387 = vmatpush1.msra.mxu0 0.0
    %5388 = vmatprep.mubr.f32.mxu0 0.0
    %5389 = vmatmul.mubr.f32.gmra.mrb[0].mxu0 %v5136
    %v5390 = vpop.f32.mrb[0].mxu0
    %v5391 = vadd.f32 0.0, %v5390
    %v5392 = vpop.f32.mrb[0].mxu0
    %v5393 = vadd.f32 0.0, %v5392
    %5394 = vdwg.mxu0
    %5395 = vmatprep.subr.mxu0 %v4343
    %5396 = vmatpush1.msra.mxu0 %v4342
    %5397 = vmatprep.subr.mxu0 %v4347
    %5398 = vmatpush1.msra.mxu0 %v4346
    %5399 = vmatprep.subr.mxu0 %v4351
    %5400 = vmatpush1.msra.mxu0 %v4350
    %5401 = vmatprep.subr.mxu0 %v4355
    %5402 = vmatpush1.msra.mxu0 %v4354
    %5403 = vmatprep.subr.mxu0 %v4359
    %5404 = vmatpush1.msra.mxu0 %v4358
    %5405 = vmatprep.subr.mxu0 %v4363
    %5406 = vmatpush1.msra.mxu0 %v4362
    %5407 = vmatprep.subr.mxu0 %v4367
    %5408 = vmatpush1.msra.mxu0 %v4366
    %5409 = vmatprep.subr.mxu0 %v4371
    %5410 = vmatpush1.msra.mxu0 %v4370
    %5411 = vmatprep.subr.mxu0 %v4375
    %5412 = vmatpush1.msra.mxu0 %v4374
    %5413 = vmatprep.subr.mxu0 %v4379
    %5414 = vmatpush1.msra.mxu0 %v4378
    %5415 = vmatprep.subr.mxu0 %v4383
    %5416 = vmatpush1.msra.mxu0 %v4382
    %5417 = vmatprep.subr.mxu0 %v4387
    %5418 = vmatpush1.msra.mxu0 %v4386
    %5419 = vmatprep.subr.mxu0 %v4391
    %5420 = vmatpush1.msra.mxu0 %v4390
    %5421 = vmatprep.subr.mxu0 %v4395
    %5422 = vmatpush1.msra.mxu0 %v4394
    %5423 = vmatprep.subr.mxu0 %v4399
    %5424 = vmatpush1.msra.mxu0 %v4398
    %5425 = vmatprep.subr.mxu0 %v4403
    %5426 = vmatpush1.msra.mxu0 %v4402
    %5427 = vmatprep.subr.mxu0 0.0
    %5428 = vmatpush1.msra.mxu0 0.0
    %5429 = vmatprep.subr.mxu0 0.0
    %5430 = vmatpush1.msra.mxu0 0.0
    %5431 = vmatprep.subr.mxu0 0.0
    %5432 = vmatpush1.msra.mxu0 0.0
    %5433 = vmatprep.subr.mxu0 0.0
    %5434 = vmatpush1.msra.mxu0 0.0
    %5435 = vmatprep.subr.mxu0 0.0
    %5436 = vmatpush1.msra.mxu0 0.0
    %5437 = vmatprep.subr.mxu0 0.0
    %5438 = vmatpush1.msra.mxu0 0.0
    %5439 = vmatprep.subr.mxu0 0.0
    %5440 = vmatpush1.msra.mxu0 0.0
    %5441 = vmatprep.subr.mxu0 0.0
    %5442 = vmatpush1.msra.mxu0 0.0
    %5443 = vmatprep.subr.mxu0 0.0
    %5444 = vmatpush1.msra.mxu0 0.0
    %5445 = vmatprep.subr.mxu0 0.0
    %5446 = vmatpush1.msra.mxu0 0.0
    %5447 = vmatprep.subr.mxu0 0.0
    %5448 = vmatpush1.msra.mxu0 0.0
    %5449 = vmatprep.subr.mxu0 0.0
    %5450 = vmatpush1.msra.mxu0 0.0
    %5451 = vmatprep.subr.mxu0 0.0
    %5452 = vmatpush1.msra.mxu0 0.0
    %5453 = vmatprep.subr.mxu0 0.0
    %5454 = vmatpush1.msra.mxu0 0.0
    %5455 = vmatprep.subr.mxu0 0.0
    %5456 = vmatpush1.msra.mxu0 0.0
    %5457 = vmatprep.subr.mxu0 0.0
    %5458 = vmatpush1.msra.mxu0 0.0
    %5459 = vmatprep.mubr.f32.mxu0 0.0
    %5460 = vmatmul.mubr.f32.gmra.mrb[0].mxu0 %v5136
    %v5461 = vpop.f32.mrb[0].mxu0
    %v5462 = vadd.f32 0.0, %v5461
    %v5463 = vpop.f32.mrb[0].mxu0
    %v5464 = vadd.f32 0.0, %v5463
    %5465 = vdwg.mxu0
    %v5470 = vrot.slane %v5391, 3
    %v5471 = vrot.slane %v5393, 3
    %v5472 = vrot.slane %v5462, 3
    %v5473 = vrot.slane %v5464, 3
    %v5478 = vadd.f32 %v4201, %v5470
    %v5479 = vadd.f32 %v4203, %v5471
    %v5480 = vadd.f32 %v4272, %v5472
    %v5481 = vadd.f32 %v4274, %v5473
    %v5482 = vxor.u32 %v5478, 2147483648
    %v5483 = vmul.f32 %v5482, 1.442695
    %v5484 = vpow.pop %v5483
    %v5485 = vadd.f32 %v5484, 1.0
    %v5486 = vrcp.pop %v5485
    %v5487 = vmul.f32 1.0, %v5486
    %v5488 = vxor.u32 %v5479, 2147483648
    %v5489 = vmul.f32 %v5488, 1.442695
    %v5490 = vpow.pop %v5489
    %v5491 = vadd.f32 %v5490, 1.0
    %v5492 = vrcp.pop %v5491
    %v5493 = vmul.f32 1.0, %v5492
    %v5494 = vtanh.pop %v5480
    %v5495 = vxor.u32 %v5481, 2147483648
    %v5496 = vmul.f32 %v5495, 1.442695
    %v5497 = vpow.pop %v5496
    %v5498 = vadd.f32 %v5497, 1.0
    %v5499 = vrcp.pop %v5498
    %v5500 = vmul.f32 1.0, %v5499
    %v5502 = vrot.slane %v5128, 1
    %v5504 = vmul.f32 %v5493, %v5502
    %v5505 = vmul.f32 %v5487, %v5494
    %v5506 = vadd.f32 %v5504, %v5505
    %v5507 = vtanh.pop %v5506
    %v5508 = vmul.f32 %v5500, %v5507
    %v5510 = vrot.slane %v5323, 2
    %5512 = vst [vmem:[#allocation4 + $0x2] sm:$0x1] %v5510
    %v5514 = vrot.slane %v5508, 5
    %5516 = vst [vmem:[#allocation4 + $0xd] sm:$0x1] %v5514
    %5517 = vmatprep.subr.mxu0 %v4277
    %5518 = vmatpush1.msra.mxu0 %v4276
    %5519 = vmatprep.subr.mxu0 %v4281
    %5520 = vmatpush1.msra.mxu0 %v4280
    %5521 = vmatprep.subr.mxu0 %v4285
    %5522 = vmatpush1.msra.mxu0 %v4284
    %5523 = vmatprep.subr.mxu0 %v4289
    %5524 = vmatpush1.msra.mxu0 %v4288
    %5525 = vmatprep.subr.mxu0 %v4293
    %5526 = vmatpush1.msra.mxu0 %v4292
    %5527 = vmatprep.subr.mxu0 %v4297
    %5528 = vmatpush1.msra.mxu0 %v4296
    %5529 = vmatprep.subr.mxu0 %v4301
    %5530 = vmatpush1.msra.mxu0 %v4300
    %5531 = vmatprep.subr.mxu0 %v4305
    %5532 = vmatpush1.msra.mxu0 %v4304
    %5533 = vmatprep.subr.mxu0 %v4309
    %5534 = vmatpush1.msra.mxu0 %v4308
    %5535 = vmatprep.subr.mxu0 %v4313
    %5536 = vmatpush1.msra.mxu0 %v4312
    %5537 = vmatprep.subr.mxu0 %v4317
    %5538 = vmatpush1.msra.mxu0 %v4316
    %5539 = vmatprep.subr.mxu0 %v4321
    %5540 = vmatpush1.msra.mxu0 %v4320
    %5541 = vmatprep.subr.mxu0 %v4325
    %5542 = vmatpush1.msra.mxu0 %v4324
    %5543 = vmatprep.subr.mxu0 %v4329
    %5544 = vmatpush1.msra.mxu0 %v4328
    %5545 = vmatprep.subr.mxu0 %v4333
    %5546 = vmatpush1.msra.mxu0 %v4332
    %5547 = vmatprep.subr.mxu0 %v4337
    %5548 = vmatpush1.msra.mxu0 %v4336
    %5549 = vmatprep.subr.mxu0 0.0
    %5550 = vmatpush1.msra.mxu0 0.0
    %5551 = vmatprep.subr.mxu0 0.0
    %5552 = vmatpush1.msra.mxu0 0.0
    %5553 = vmatprep.subr.mxu0 0.0
    %5554 = vmatpush1.msra.mxu0 0.0
    %5555 = vmatprep.subr.mxu0 0.0
    %5556 = vmatpush1.msra.mxu0 0.0
    %5557 = vmatprep.subr.mxu0 0.0
    %5558 = vmatpush1.msra.mxu0 0.0
    %5559 = vmatprep.subr.mxu0 0.0
    %5560 = vmatpush1.msra.mxu0 0.0
    %5561 = vmatprep.subr.mxu0 0.0
    %5562 = vmatpush1.msra.mxu0 0.0
    %5563 = vmatprep.subr.mxu0 0.0
    %5564 = vmatpush1.msra.mxu0 0.0
    %5565 = vmatprep.subr.mxu0 0.0
    %5566 = vmatpush1.msra.mxu0 0.0
    %5567 = vmatprep.subr.mxu0 0.0
    %5568 = vmatpush1.msra.mxu0 0.0
    %5569 = vmatprep.subr.mxu0 0.0
    %5570 = vmatpush1.msra.mxu0 0.0
    %5571 = vmatprep.subr.mxu0 0.0
    %5572 = vmatpush1.msra.mxu0 0.0
    %5573 = vmatprep.subr.mxu0 0.0
    %5574 = vmatpush1.msra.mxu0 0.0
    %5575 = vmatprep.subr.mxu0 0.0
    %5576 = vmatpush1.msra.mxu0 0.0
    %5577 = vmatprep.subr.mxu0 0.0
    %5578 = vmatpush1.msra.mxu0 0.0
    %5579 = vmatprep.subr.mxu0 0.0
    %5580 = vmatpush1.msra.mxu0 0.0
    %5581 = vmatprep.mubr.f32.mxu0 0.0
    %5582 = vmatmul.mubr.f32.gmra.mrb[0].mxu0 %v5510
    %v5583 = vpop.f32.mrb[0].mxu0
    %v5584 = vadd.f32 0.0, %v5583
    %v5585 = vpop.f32.mrb[0].mxu0
    %v5586 = vadd.f32 0.0, %v5585
    %5587 = vdwg.mxu0
    %5588 = vmatprep.subr.mxu0 %v4279
    %5589 = vmatpush1.msra.mxu0 %v4278
    %5590 = vmatprep.subr.mxu0 %v4283
    %5591 = vmatpush1.msra.mxu0 %v4282
    %5592 = vmatprep.subr.mxu0 %v4287
    %5593 = vmatpush1.msra.mxu0 %v4286
    %5594 = vmatprep.subr.mxu0 %v4291
    %5595 = vmatpush1.msra.mxu0 %v4290
    %5596 = vmatprep.subr.mxu0 %v4295
    %5597 = vmatpush1.msra.mxu0 %v4294
    %5598 = vmatprep.subr.mxu0 %v4299
    %5599 = vmatpush1.msra.mxu0 %v4298
    %5600 = vmatprep.subr.mxu0 %v4303
    %5601 = vmatpush1.msra.mxu0 %v4302
    %5602 = vmatprep.subr.mxu0 %v4307
    %5603 = vmatpush1.msra.mxu0 %v4306
    %5604 = vmatprep.subr.mxu0 %v4311
    %5605 = vmatpush1.msra.mxu0 %v4310
    %5606 = vmatprep.subr.mxu0 %v4315
    %5607 = vmatpush1.msra.mxu0 %v4314
    %5608 = vmatprep.subr.mxu0 %v4319
    %5609 = vmatpush1.msra.mxu0 %v4318
    %5610 = vmatprep.subr.mxu0 %v4323
    %5611 = vmatpush1.msra.mxu0 %v4322
    %5612 = vmatprep.subr.mxu0 %v4327
    %5613 = vmatpush1.msra.mxu0 %v4326
    %5614 = vmatprep.subr.mxu0 %v4331
    %5615 = vmatpush1.msra.mxu0 %v4330
    %5616 = vmatprep.subr.mxu0 %v4335
    %5617 = vmatpush1.msra.mxu0 %v4334
    %5618 = vmatprep.subr.mxu0 %v4339
    %5619 = vmatpush1.msra.mxu0 %v4338
    %5620 = vmatprep.subr.mxu0 0.0
    %5621 = vmatpush1.msra.mxu0 0.0
    %5622 = vmatprep.subr.mxu0 0.0
    %5623 = vmatpush1.msra.mxu0 0.0
    %5624 = vmatprep.subr.mxu0 0.0
    %5625 = vmatpush1.msra.mxu0 0.0
    %5626 = vmatprep.subr.mxu0 0.0
    %5627 = vmatpush1.msra.mxu0 0.0
    %5628 = vmatprep.subr.mxu0 0.0
    %5629 = vmatpush1.msra.mxu0 0.0
    %5630 = vmatprep.subr.mxu0 0.0
    %5631 = vmatpush1.msra.mxu0 0.0
    %5632 = vmatprep.subr.mxu0 0.0
    %5633 = vmatpush1.msra.mxu0 0.0
    %5634 = vmatprep.subr.mxu0 0.0
    %5635 = vmatpush1.msra.mxu0 0.0
    %5636 = vmatprep.subr.mxu0 0.0
    %5637 = vmatpush1.msra.mxu0 0.0
    %5638 = vmatprep.subr.mxu0 0.0
    %5639 = vmatpush1.msra.mxu0 0.0
    %5640 = vmatprep.subr.mxu0 0.0
    %5641 = vmatpush1.msra.mxu0 0.0
    %5642 = vmatprep.subr.mxu0 0.0
    %5643 = vmatpush1.msra.mxu0 0.0
    %5644 = vmatprep.subr.mxu0 0.0
    %5645 = vmatpush1.msra.mxu0 0.0
    %5646 = vmatprep.subr.mxu0 0.0
    %5647 = vmatpush1.msra.mxu0 0.0
    %5648 = vmatprep.subr.mxu0 0.0
    %5649 = vmatpush1.msra.mxu0 0.0
    %5650 = vmatprep.subr.mxu0 0.0
    %5651 = vmatpush1.msra.mxu0 0.0
    %5652 = vmatprep.mubr.f32.mxu0 0.0
    %5653 = vmatmul.mubr.f32.gmra.mrb[0].mxu0 %v5510
    %v5654 = vpop.f32.mrb[0].mxu0
    %v5655 = vadd.f32 0.0, %v5654
    %v5656 = vpop.f32.mrb[0].mxu0
    %v5657 = vadd.f32 0.0, %v5656
    %5658 = vdwg.mxu0
    %v5663 = vrot.slane %v5584, 5
    %v5664 = vrot.slane %v5586, 5
    %v5665 = vrot.slane %v5655, 5
    %v5666 = vrot.slane %v5657, 5
    %v5671 = vadd.f32 %v3909, %v5663
    %v5672 = vadd.f32 %v3911, %v5664
    %v5673 = vadd.f32 %v3980, %v5665
    %v5674 = vadd.f32 %v3982, %v5666
    %v5675 = vxor.u32 %v5671, 2147483648
    %v5676 = vmul.f32 %v5675, 1.442695
    %v5677 = vpow.pop %v5676
    %v5678 = vadd.f32 %v5677, 1.0
    %v5679 = vrcp.pop %v5678
    %v5680 = vmul.f32 1.0, %v5679
    %v5681 = vxor.u32 %v5672, 2147483648
    %v5682 = vmul.f32 %v5681, 1.442695
    %v5683 = vpow.pop %v5682
    %v5684 = vadd.f32 %v5683, 1.0
    %v5685 = vrcp.pop %v5684
    %v5686 = vmul.f32 1.0, %v5685
    %v5687 = vtanh.pop %v5673
    %v5688 = vxor.u32 %v5674, 2147483648
    %v5689 = vmul.f32 %v5688, 1.442695
    %v5690 = vpow.pop %v5689
    %v5691 = vadd.f32 %v5690, 1.0
    %v5692 = vrcp.pop %v5691
    %v5693 = vmul.f32 1.0, %v5692
    %v5695 = vrot.slane %v5321, 7
    %v5697 = vmul.f32 %v5686, %v5695
    %v5698 = vmul.f32 %v5680, %v5687
    %v5699 = vadd.f32 %v5697, %v5698
    %v5700 = vtanh.pop %v5699
    %v5701 = vmul.f32 %v5693, %v5700
    %5702 = vmatprep.subr.mxu0 %v4341
    %5703 = vmatpush1.msra.mxu0 %v4340
    %5704 = vmatprep.subr.mxu0 %v4345
    %5705 = vmatpush1.msra.mxu0 %v4344
    %5706 = vmatprep.subr.mxu0 %v4349
    %5707 = vmatpush1.msra.mxu0 %v4348
    %5708 = vmatprep.subr.mxu0 %v4353
    %5709 = vmatpush1.msra.mxu0 %v4352
    %5710 = vmatprep.subr.mxu0 %v4357
    %5711 = vmatpush1.msra.mxu0 %v4356
    %5712 = vmatprep.subr.mxu0 %v4361
    %5713 = vmatpush1.msra.mxu0 %v4360
    %5714 = vmatprep.subr.mxu0 %v4365
    %5715 = vmatpush1.msra.mxu0 %v4364
    %5716 = vmatprep.subr.mxu0 %v4369
    %5717 = vmatpush1.msra.mxu0 %v4368
    %5718 = vmatprep.subr.mxu0 %v4373
    %5719 = vmatpush1.msra.mxu0 %v4372
    %5720 = vmatprep.subr.mxu0 %v4377
    %5721 = vmatpush1.msra.mxu0 %v4376
    %5722 = vmatprep.subr.mxu0 %v4381
    %5723 = vmatpush1.msra.mxu0 %v4380
    %5724 = vmatprep.subr.mxu0 %v4385
    %5725 = vmatpush1.msra.mxu0 %v4384
    %5726 = vmatprep.subr.mxu0 %v4389
    %5727 = vmatpush1.msra.mxu0 %v4388
    %5728 = vmatprep.subr.mxu0 %v4393
    %5729 = vmatpush1.msra.mxu0 %v4392
    %5730 = vmatprep.subr.mxu0 %v4397
    %5731 = vmatpush1.msra.mxu0 %v4396
    %5732 = vmatprep.subr.mxu0 %v4401
    %5733 = vmatpush1.msra.mxu0 %v4400
    %5734 = vmatprep.subr.mxu0 0.0
    %5735 = vmatpush1.msra.mxu0 0.0
    %5736 = vmatprep.subr.mxu0 0.0
    %5737 = vmatpush1.msra.mxu0 0.0
    %5738 = vmatprep.subr.mxu0 0.0
    %5739 = vmatpush1.msra.mxu0 0.0
    %5740 = vmatprep.subr.mxu0 0.0
    %5741 = vmatpush1.msra.mxu0 0.0
    %5742 = vmatprep.subr.mxu0 0.0
    %5743 = vmatpush1.msra.mxu0 0.0
    %5744 = vmatprep.subr.mxu0 0.0
    %5745 = vmatpush1.msra.mxu0 0.0
    %5746 = vmatprep.subr.mxu0 0.0
    %5747 = vmatpush1.msra.mxu0 0.0
    %5748 = vmatprep.subr.mxu0 0.0
    %5749 = vmatpush1.msra.mxu0 0.0
    %5750 = vmatprep.subr.mxu0 0.0
    %5751 = vmatpush1.msra.mxu0 0.0
    %5752 = vmatprep.subr.mxu0 0.0
    %5753 = vmatpush1.msra.mxu0 0.0
    %5754 = vmatprep.subr.mxu0 0.0
    %5755 = vmatpush1.msra.mxu0 0.0
    %5756 = vmatprep.subr.mxu0 0.0
    %5757 = vmatpush1.msra.mxu0 0.0
    %5758 = vmatprep.subr.mxu0 0.0
    %5759 = vmatpush1.msra.mxu0 0.0
    %5760 = vmatprep.subr.mxu0 0.0
    %5761 = vmatpush1.msra.mxu0 0.0
    %5762 = vmatprep.subr.mxu0 0.0
    %5763 = vmatpush1.msra.mxu0 0.0
    %5764 = vmatprep.subr.mxu0 0.0
    %5765 = vmatpush1.msra.mxu0 0.0
    %5766 = vmatprep.mubr.f32.mxu0 0.0
    %5767 = vmatmul.mubr.f32.gmra.mrb[0].mxu0 %v5514
    %v5768 = vpop.f32.mrb[0].mxu0
    %v5769 = vadd.f32 0.0, %v5768
    %v5770 = vpop.f32.mrb[0].mxu0
    %v5771 = vadd.f32 0.0, %v5770
    %5772 = vdwg.mxu0
    %5773 = vmatprep.subr.mxu0 %v4343
    %5774 = vmatpush1.msra.mxu0 %v4342
    %5775 = vmatprep.subr.mxu0 %v4347
    %5776 = vmatpush1.msra.mxu0 %v4346
    %5777 = vmatprep.subr.mxu0 %v4351
    %5778 = vmatpush1.msra.mxu0 %v4350
    %5779 = vmatprep.subr.mxu0 %v4355
    %5780 = vmatpush1.msra.mxu0 %v4354
    %5781 = vmatprep.subr.mxu0 %v4359
    %5782 = vmatpush1.msra.mxu0 %v4358
    %5783 = vmatprep.subr.mxu0 %v4363
    %5784 = vmatpush1.msra.mxu0 %v4362
    %5785 = vmatprep.subr.mxu0 %v4367
    %5786 = vmatpush1.msra.mxu0 %v4366
    %5787 = vmatprep.subr.mxu0 %v4371
    %5788 = vmatpush1.msra.mxu0 %v4370
    %5789 = vmatprep.subr.mxu0 %v4375
    %5790 = vmatpush1.msra.mxu0 %v4374
    %5791 = vmatprep.subr.mxu0 %v4379
    %5792 = vmatpush1.msra.mxu0 %v4378
    %5793 = vmatprep.subr.mxu0 %v4383
    %5794 = vmatpush1.msra.mxu0 %v4382
    %5795 = vmatprep.subr.mxu0 %v4387
    %5796 = vmatpush1.msra.mxu0 %v4386
    %5797 = vmatprep.subr.mxu0 %v4391
    %5798 = vmatpush1.msra.mxu0 %v4390
    %5799 = vmatprep.subr.mxu0 %v4395
    %5800 = vmatpush1.msra.mxu0 %v4394
    %5801 = vmatprep.subr.mxu0 %v4399
    %5802 = vmatpush1.msra.mxu0 %v4398
    %5803 = vmatprep.subr.mxu0 %v4403
    %5804 = vmatpush1.msra.mxu0 %v4402
    %5805 = vmatprep.subr.mxu0 0.0
    %5806 = vmatpush1.msra.mxu0 0.0
    %5807 = vmatprep.subr.mxu0 0.0
    %5808 = vmatpush1.msra.mxu0 0.0
    %5809 = vmatprep.subr.mxu0 0.0
    %5810 = vmatpush1.msra.mxu0 0.0
    %5811 = vmatprep.subr.mxu0 0.0
    %5812 = vmatpush1.msra.mxu0 0.0
    %5813 = vmatprep.subr.mxu0 0.0
    %5814 = vmatpush1.msra.mxu0 0.0
    %5815 = vmatprep.subr.mxu0 0.0
    %5816 = vmatpush1.msra.mxu0 0.0
    %5817 = vmatprep.subr.mxu0 0.0
    %5818 = vmatpush1.msra.mxu0 0.0
    %5819 = vmatprep.subr.mxu0 0.0
    %5820 = vmatpush1.msra.mxu0 0.0
    %5821 = vmatprep.subr.mxu0 0.0
    %5822 = vmatpush1.msra.mxu0 0.0
    %5823 = vmatprep.subr.mxu0 0.0
    %5824 = vmatpush1.msra.mxu0 0.0
    %5825 = vmatprep.subr.mxu0 0.0
    %5826 = vmatpush1.msra.mxu0 0.0
    %5827 = vmatprep.subr.mxu0 0.0
    %5828 = vmatpush1.msra.mxu0 0.0
    %5829 = vmatprep.subr.mxu0 0.0
    %5830 = vmatpush1.msra.mxu0 0.0
    %5831 = vmatprep.subr.mxu0 0.0
    %5832 = vmatpush1.msra.mxu0 0.0
    %5833 = vmatprep.subr.mxu0 0.0
    %5834 = vmatpush1.msra.mxu0 0.0
    %5835 = vmatprep.subr.mxu0 0.0
    %5836 = vmatpush1.msra.mxu0 0.0
    %5837 = vmatprep.mubr.f32.mxu0 0.0
    %5838 = vmatmul.mubr.f32.gmra.mrb[0].mxu0 %v5514
    %v5839 = vpop.f32.mrb[0].mxu0
    %v5840 = vadd.f32 0.0, %v5839
    %v5841 = vpop.f32.mrb[0].mxu0
    %v5842 = vadd.f32 0.0, %v5841
    %5843 = vdwg.mxu0
    %v5848 = vrot.slane %v5769, 4
    %v5849 = vrot.slane %v5771, 4
    %v5850 = vrot.slane %v5840, 4
    %v5851 = vrot.slane %v5842, 4
    %v5856 = vadd.f32 %v4201, %v5848
    %v5857 = vadd.f32 %v4203, %v5849
    %v5858 = vadd.f32 %v4272, %v5850
    %v5859 = vadd.f32 %v4274, %v5851
    %v5860 = vxor.u32 %v5856, 2147483648
    %v5861 = vmul.f32 %v5860, 1.442695
    %v5862 = vpow.pop %v5861
    %v5863 = vadd.f32 %v5862, 1.0
    %v5864 = vrcp.pop %v5863
    %v5865 = vmul.f32 1.0, %v5864
    %v5866 = vxor.u32 %v5857, 2147483648
    %v5867 = vmul.f32 %v5866, 1.442695
    %v5868 = vpow.pop %v5867
    %v5869 = vadd.f32 %v5868, 1.0
    %v5870 = vrcp.pop %v5869
    %v5871 = vmul.f32 1.0, %v5870
    %v5872 = vtanh.pop %v5858
    %v5873 = vxor.u32 %v5859, 2147483648
    %v5874 = vmul.f32 %v5873, 1.442695
    %v5875 = vpow.pop %v5874
    %v5876 = vadd.f32 %v5875, 1.0
    %v5877 = vrcp.pop %v5876
    %v5878 = vmul.f32 1.0, %v5877
    %v5880 = vrot.slane %v5506, 1
    %v5882 = vmul.f32 %v5871, %v5880
    %v5883 = vmul.f32 %v5865, %v5872
    %v5884 = vadd.f32 %v5882, %v5883
    %v5885 = vtanh.pop %v5884
    %v5886 = vmul.f32 %v5878, %v5885
    %v5888 = vrot.slane %v5701, 3
    %5890 = vst [vmem:[#allocation4 + $0x3] sm:$0x1] %v5888
    %v5892 = vrot.slane %v5886, 4
    %5894 = vst [vmem:[#allocation4 + $0xc] sm:$0x1] %v5892
    %5895 = vmatprep.subr.mxu0 %v4277
    %5896 = vmatpush1.msra.mxu0 %v4276
    %5897 = vmatprep.subr.mxu0 %v4281
    %5898 = vmatpush1.msra.mxu0 %v4280
    %5899 = vmatprep.subr.mxu0 %v4285
    %5900 = vmatpush1.msra.mxu0 %v4284
    %5901 = vmatprep.subr.mxu0 %v4289
    %5902 = vmatpush1.msra.mxu0 %v4288
    %5903 = vmatprep.subr.mxu0 %v4293
    %5904 = vmatpush1.msra.mxu0 %v4292
    %5905 = vmatprep.subr.mxu0 %v4297
    %5906 = vmatpush1.msra.mxu0 %v4296
    %5907 = vmatprep.subr.mxu0 %v4301
    %5908 = vmatpush1.msra.mxu0 %v4300
    %5909 = vmatprep.subr.mxu0 %v4305
    %5910 = vmatpush1.msra.mxu0 %v4304
    %5911 = vmatprep.subr.mxu0 %v4309
    %5912 = vmatpush1.msra.mxu0 %v4308
    %5913 = vmatprep.subr.mxu0 %v4313
    %5914 = vmatpush1.msra.mxu0 %v4312
    %5915 = vmatprep.subr.mxu0 %v4317
    %5916 = vmatpush1.msra.mxu0 %v4316
    %5917 = vmatprep.subr.mxu0 %v4321
    %5918 = vmatpush1.msra.mxu0 %v4320
    %5919 = vmatprep.subr.mxu0 %v4325
    %5920 = vmatpush1.msra.mxu0 %v4324
    %5921 = vmatprep.subr.mxu0 %v4329
    %5922 = vmatpush1.msra.mxu0 %v4328
    %5923 = vmatprep.subr.mxu0 %v4333
    %5924 = vmatpush1.msra.mxu0 %v4332
    %5925 = vmatprep.subr.mxu0 %v4337
    %5926 = vmatpush1.msra.mxu0 %v4336
    %5927 = vmatprep.subr.mxu0 0.0
    %5928 = vmatpush1.msra.mxu0 0.0
    %5929 = vmatprep.subr.mxu0 0.0
    %5930 = vmatpush1.msra.mxu0 0.0
    %5931 = vmatprep.subr.mxu0 0.0
    %5932 = vmatpush1.msra.mxu0 0.0
    %5933 = vmatprep.subr.mxu0 0.0
    %5934 = vmatpush1.msra.mxu0 0.0
    %5935 = vmatprep.subr.mxu0 0.0
    %5936 = vmatpush1.msra.mxu0 0.0
    %5937 = vmatprep.subr.mxu0 0.0
    %5938 = vmatpush1.msra.mxu0 0.0
    %5939 = vmatprep.subr.mxu0 0.0
    %5940 = vmatpush1.msra.mxu0 0.0
    %5941 = vmatprep.subr.mxu0 0.0
    %5942 = vmatpush1.msra.mxu0 0.0
    %5943 = vmatprep.subr.mxu0 0.0
    %5944 = vmatpush1.msra.mxu0 0.0
    %5945 = vmatprep.subr.mxu0 0.0
    %5946 = vmatpush1.msra.mxu0 0.0
    %5947 = vmatprep.subr.mxu0 0.0
    %5948 = vmatpush1.msra.mxu0 0.0
    %5949 = vmatprep.subr.mxu0 0.0
    %5950 = vmatpush1.msra.mxu0 0.0
    %5951 = vmatprep.subr.mxu0 0.0
    %5952 = vmatpush1.msra.mxu0 0.0
    %5953 = vmatprep.subr.mxu0 0.0
    %5954 = vmatpush1.msra.mxu0 0.0
    %5955 = vmatprep.subr.mxu0 0.0
    %5956 = vmatpush1.msra.mxu0 0.0
    %5957 = vmatprep.subr.mxu0 0.0
    %5958 = vmatpush1.msra.mxu0 0.0
    %5959 = vmatprep.mubr.f32.mxu0 0.0
    %5960 = vmatmul.mubr.f32.gmra.mrb[0].mxu0 %v5888
    %v5961 = vpop.f32.mrb[0].mxu0
    %v5962 = vadd.f32 0.0, %v5961
    %v5963 = vpop.f32.mrb[0].mxu0
    %v5964 = vadd.f32 0.0, %v5963
    %5965 = vdwg.mxu0
    %5966 = vmatprep.subr.mxu0 %v4279
    %5967 = vmatpush1.msra.mxu0 %v4278
    %5968 = vmatprep.subr.mxu0 %v4283
    %5969 = vmatpush1.msra.mxu0 %v4282
    %5970 = vmatprep.subr.mxu0 %v4287
    %5971 = vmatpush1.msra.mxu0 %v4286
    %5972 = vmatprep.subr.mxu0 %v4291
    %5973 = vmatpush1.msra.mxu0 %v4290
    %5974 = vmatprep.subr.mxu0 %v4295
    %5975 = vmatpush1.msra.mxu0 %v4294
    %5976 = vmatprep.subr.mxu0 %v4299
    %5977 = vmatpush1.msra.mxu0 %v4298
    %5978 = vmatprep.subr.mxu0 %v4303
    %5979 = vmatpush1.msra.mxu0 %v4302
    %5980 = vmatprep.subr.mxu0 %v4307
    %5981 = vmatpush1.msra.mxu0 %v4306
    %5982 = vmatprep.subr.mxu0 %v4311
    %5983 = vmatpush1.msra.mxu0 %v4310
    %5984 = vmatprep.subr.mxu0 %v4315
    %5985 = vmatpush1.msra.mxu0 %v4314
    %5986 = vmatprep.subr.mxu0 %v4319
    %5987 = vmatpush1.msra.mxu0 %v4318
    %5988 = vmatprep.subr.mxu0 %v4323
    %5989 = vmatpush1.msra.mxu0 %v4322
    %5990 = vmatprep.subr.mxu0 %v4327
    %5991 = vmatpush1.msra.mxu0 %v4326
    %5992 = vmatprep.subr.mxu0 %v4331
    %5993 = vmatpush1.msra.mxu0 %v4330
    %5994 = vmatprep.subr.mxu0 %v4335
    %5995 = vmatpush1.msra.mxu0 %v4334
    %5996 = vmatprep.subr.mxu0 %v4339
    %5997 = vmatpush1.msra.mxu0 %v4338
    %5998 = vmatprep.subr.mxu0 0.0
    %5999 = vmatpush1.msra.mxu0 0.0
    %6000 = vmatprep.subr.mxu0 0.0
    %6001 = vmatpush1.msra.mxu0 0.0
    %6002 = vmatprep.subr.mxu0 0.0
    %6003 = vmatpush1.msra.mxu0 0.0
    %6004 = vmatprep.subr.mxu0 0.0
    %6005 = vmatpush1.msra.mxu0 0.0
    %6006 = vmatprep.subr.mxu0 0.0
    %6007 = vmatpush1.msra.mxu0 0.0
    %6008 = vmatprep.subr.mxu0 0.0
    %6009 = vmatpush1.msra.mxu0 0.0
    %6010 = vmatprep.subr.mxu0 0.0
    %6011 = vmatpush1.msra.mxu0 0.0
    %6012 = vmatprep.subr.mxu0 0.0
    %6013 = vmatpush1.msra.mxu0 0.0
    %6014 = vmatprep.subr.mxu0 0.0
    %6015 = vmatpush1.msra.mxu0 0.0
    %6016 = vmatprep.subr.mxu0 0.0
    %6017 = vmatpush1.msra.mxu0 0.0
    %6018 = vmatprep.subr.mxu0 0.0
    %6019 = vmatpush1.msra.mxu0 0.0
    %6020 = vmatprep.subr.mxu0 0.0
    %6021 = vmatpush1.msra.mxu0 0.0
    %6022 = vmatprep.subr.mxu0 0.0
    %6023 = vmatpush1.msra.mxu0 0.0
    %6024 = vmatprep.subr.mxu0 0.0
    %6025 = vmatpush1.msra.mxu0 0.0
    %6026 = vmatprep.subr.mxu0 0.0
    %6027 = vmatpush1.msra.mxu0 0.0
    %6028 = vmatprep.subr.mxu0 0.0
    %6029 = vmatpush1.msra.mxu0 0.0
    %6030 = vmatprep.mubr.f32.mxu0 0.0
    %6031 = vmatmul.mubr.f32.gmra.mrb[0].mxu0 %v5888
    %v6032 = vpop.f32.mrb[0].mxu0
    %v6033 = vadd.f32 0.0, %v6032
    %v6034 = vpop.f32.mrb[0].mxu0
    %v6035 = vadd.f32 0.0, %v6034
    %6036 = vdwg.mxu0
    %v6041 = vrot.slane %v5962, 4
    %v6042 = vrot.slane %v5964, 4
    %v6043 = vrot.slane %v6033, 4
    %v6044 = vrot.slane %v6035, 4
    %v6049 = vadd.f32 %v3909, %v6041
    %v6050 = vadd.f32 %v3911, %v6042
    %v6051 = vadd.f32 %v3980, %v6043
    %v6052 = vadd.f32 %v3982, %v6044
    %v6053 = vxor.u32 %v6049, 2147483648
    %v6054 = vmul.f32 %v6053, 1.442695
    %v6055 = vpow.pop %v6054
    %v6056 = vadd.f32 %v6055, 1.0
    %v6057 = vrcp.pop %v6056
    %v6058 = vmul.f32 1.0, %v6057
    %v6059 = vxor.u32 %v6050, 2147483648
    %v6060 = vmul.f32 %v6059, 1.442695
    %v6061 = vpow.pop %v6060
    %v6062 = vadd.f32 %v6061, 1.0
    %v6063 = vrcp.pop %v6062
    %v6064 = vmul.f32 1.0, %v6063
    %v6065 = vtanh.pop %v6051
    %v6066 = vxor.u32 %v6052, 2147483648
    %v6067 = vmul.f32 %v6066, 1.442695
    %v6068 = vpow.pop %v6067
    %v6069 = vadd.f32 %v6068, 1.0
    %v6070 = vrcp.pop %v6069
    %v6071 = vmul.f32 1.0, %v6070
    %v6073 = vrot.slane %v5699, 7
    %v6075 = vmul.f32 %v6064, %v6073
    %v6076 = vmul.f32 %v6058, %v6065
    %v6077 = vadd.f32 %v6075, %v6076
    %v6078 = vtanh.pop %v6077
    %v6079 = vmul.f32 %v6071, %v6078
    %6080 = vmatprep.subr.mxu0 %v4341
    %6081 = vmatpush1.msra.mxu0 %v4340
    %6082 = vmatprep.subr.mxu0 %v4345
    %6083 = vmatpush1.msra.mxu0 %v4344
    %6084 = vmatprep.subr.mxu0 %v4349
    %6085 = vmatpush1.msra.mxu0 %v4348
    %6086 = vmatprep.subr.mxu0 %v4353
    %6087 = vmatpush1.msra.mxu0 %v4352
    %6088 = vmatprep.subr.mxu0 %v4357
    %6089 = vmatpush1.msra.mxu0 %v4356
    %6090 = vmatprep.subr.mxu0 %v4361
    %6091 = vmatpush1.msra.mxu0 %v4360
    %6092 = vmatprep.subr.mxu0 %v4365
    %6093 = vmatpush1.msra.mxu0 %v4364
    %6094 = vmatprep.subr.mxu0 %v4369
    %6095 = vmatpush1.msra.mxu0 %v4368
    %6096 = vmatprep.subr.mxu0 %v4373
    %6097 = vmatpush1.msra.mxu0 %v4372
    %6098 = vmatprep.subr.mxu0 %v4377
    %6099 = vmatpush1.msra.mxu0 %v4376
    %6100 = vmatprep.subr.mxu0 %v4381
    %6101 = vmatpush1.msra.mxu0 %v4380
    %6102 = vmatprep.subr.mxu0 %v4385
    %6103 = vmatpush1.msra.mxu0 %v4384
    %6104 = vmatprep.subr.mxu0 %v4389
    %6105 = vmatpush1.msra.mxu0 %v4388
    %6106 = vmatprep.subr.mxu0 %v4393
    %6107 = vmatpush1.msra.mxu0 %v4392
    %6108 = vmatprep.subr.mxu0 %v4397
    %6109 = vmatpush1.msra.mxu0 %v4396
    %6110 = vmatprep.subr.mxu0 %v4401
    %6111 = vmatpush1.msra.mxu0 %v4400
    %6112 = vmatprep.subr.mxu0 0.0
    %6113 = vmatpush1.msra.mxu0 0.0
    %6114 = vmatprep.subr.mxu0 0.0
    %6115 = vmatpush1.msra.mxu0 0.0
    %6116 = vmatprep.subr.mxu0 0.0
    %6117 = vmatpush1.msra.mxu0 0.0
    %6118 = vmatprep.subr.mxu0 0.0
    %6119 = vmatpush1.msra.mxu0 0.0
    %6120 = vmatprep.subr.mxu0 0.0
    %6121 = vmatpush1.msra.mxu0 0.0
    %6122 = vmatprep.subr.mxu0 0.0
    %6123 = vmatpush1.msra.mxu0 0.0
    %6124 = vmatprep.subr.mxu0 0.0
    %6125 = vmatpush1.msra.mxu0 0.0
    %6126 = vmatprep.subr.mxu0 0.0
    %6127 = vmatpush1.msra.mxu0 0.0
    %6128 = vmatprep.subr.mxu0 0.0
    %6129 = vmatpush1.msra.mxu0 0.0
    %6130 = vmatprep.subr.mxu0 0.0
    %6131 = vmatpush1.msra.mxu0 0.0
    %6132 = vmatprep.subr.mxu0 0.0
    %6133 = vmatpush1.msra.mxu0 0.0
    %6134 = vmatprep.subr.mxu0 0.0
    %6135 = vmatpush1.msra.mxu0 0.0
    %6136 = vmatprep.subr.mxu0 0.0
    %6137 = vmatpush1.msra.mxu0 0.0
    %6138 = vmatprep.subr.mxu0 0.0
    %6139 = vmatpush1.msra.mxu0 0.0
    %6140 = vmatprep.subr.mxu0 0.0
    %6141 = vmatpush1.msra.mxu0 0.0
    %6142 = vmatprep.subr.mxu0 0.0
    %6143 = vmatpush1.msra.mxu0 0.0
    %6144 = vmatprep.mubr.f32.mxu0 0.0
    %6145 = vmatmul.mubr.f32.gmra.mrb[0].mxu0 %v5892
    %v6146 = vpop.f32.mrb[0].mxu0
    %v6147 = vadd.f32 0.0, %v6146
    %v6148 = vpop.f32.mrb[0].mxu0
    %v6149 = vadd.f32 0.0, %v6148
    %6150 = vdwg.mxu0
    %6151 = vmatprep.subr.mxu0 %v4343
    %6152 = vmatpush1.msra.mxu0 %v4342
    %6153 = vmatprep.subr.mxu0 %v4347
    %6154 = vmatpush1.msra.mxu0 %v4346
    %6155 = vmatprep.subr.mxu0 %v4351
    %6156 = vmatpush1.msra.mxu0 %v4350
    %6157 = vmatprep.subr.mxu0 %v4355
    %6158 = vmatpush1.msra.mxu0 %v4354
    %6159 = vmatprep.subr.mxu0 %v4359
    %6160 = vmatpush1.msra.mxu0 %v4358
    %6161 = vmatprep.subr.mxu0 %v4363
    %6162 = vmatpush1.msra.mxu0 %v4362
    %6163 = vmatprep.subr.mxu0 %v4367
    %6164 = vmatpush1.msra.mxu0 %v4366
    %6165 = vmatprep.subr.mxu0 %v4371
    %6166 = vmatpush1.msra.mxu0 %v4370
    %6167 = vmatprep.subr.mxu0 %v4375
    %6168 = vmatpush1.msra.mxu0 %v4374
    %6169 = vmatprep.subr.mxu0 %v4379
    %6170 = vmatpush1.msra.mxu0 %v4378
    %6171 = vmatprep.subr.mxu0 %v4383
    %6172 = vmatpush1.msra.mxu0 %v4382
    %6173 = vmatprep.subr.mxu0 %v4387
    %6174 = vmatpush1.msra.mxu0 %v4386
    %6175 = vmatprep.subr.mxu0 %v4391
    %6176 = vmatpush1.msra.mxu0 %v4390
    %6177 = vmatprep.subr.mxu0 %v4395
    %6178 = vmatpush1.msra.mxu0 %v4394
    %6179 = vmatprep.subr.mxu0 %v4399
    %6180 = vmatpush1.msra.mxu0 %v4398
    %6181 = vmatprep.subr.mxu0 %v4403
    %6182 = vmatpush1.msra.mxu0 %v4402
    %6183 = vmatprep.subr.mxu0 0.0
    %6184 = vmatpush1.msra.mxu0 0.0
    %6185 = vmatprep.subr.mxu0 0.0
    %6186 = vmatpush1.msra.mxu0 0.0
    %6187 = vmatprep.subr.mxu0 0.0
    %6188 = vmatpush1.msra.mxu0 0.0
    %6189 = vmatprep.subr.mxu0 0.0
    %6190 = vmatpush1.msra.mxu0 0.0
    %6191 = vmatprep.subr.mxu0 0.0
    %6192 = vmatpush1.msra.mxu0 0.0
    %6193 = vmatprep.subr.mxu0 0.0
    %6194 = vmatpush1.msra.mxu0 0.0
    %6195 = vmatprep.subr.mxu0 0.0
    %6196 = vmatpush1.msra.mxu0 0.0
    %6197 = vmatprep.subr.mxu0 0.0
    %6198 = vmatpush1.msra.mxu0 0.0
    %6199 = vmatprep.subr.mxu0 0.0
    %6200 = vmatpush1.msra.mxu0 0.0
    %6201 = vmatprep.subr.mxu0 0.0
    %6202 = vmatpush1.msra.mxu0 0.0
    %6203 = vmatprep.subr.mxu0 0.0
    %6204 = vmatpush1.msra.mxu0 0.0
    %6205 = vmatprep.subr.mxu0 0.0
    %6206 = vmatpush1.msra.mxu0 0.0
    %6207 = vmatprep.subr.mxu0 0.0
    %6208 = vmatpush1.msra.mxu0 0.0
    %6209 = vmatprep.subr.mxu0 0.0
    %6210 = vmatpush1.msra.mxu0 0.0
    %6211 = vmatprep.subr.mxu0 0.0
    %6212 = vmatpush1.msra.mxu0 0.0
    %6213 = vmatprep.subr.mxu0 0.0
    %6214 = vmatpush1.msra.mxu0 0.0
    %6215 = vmatprep.mubr.f32.mxu0 0.0
    %6216 = vmatmul.mubr.f32.gmra.mrb[0].mxu0 %v5892
    %v6217 = vpop.f32.mrb[0].mxu0
    %v6218 = vadd.f32 0.0, %v6217
    %v6219 = vpop.f32.mrb[0].mxu0
    %v6220 = vadd.f32 0.0, %v6219
    %6221 = vdwg.mxu0
    %v6226 = vrot.slane %v6147, 5
    %v6227 = vrot.slane %v6149, 5
    %v6228 = vrot.slane %v6218, 5
    %v6229 = vrot.slane %v6220, 5
    %v6234 = vadd.f32 %v4201, %v6226
    %v6235 = vadd.f32 %v4203, %v6227
    %v6236 = vadd.f32 %v4272, %v6228
    %v6237 = vadd.f32 %v4274, %v6229
    %v6238 = vxor.u32 %v6234, 2147483648
    %v6239 = vmul.f32 %v6238, 1.442695
    %v6240 = vpow.pop %v6239
    %v6241 = vadd.f32 %v6240, 1.0
    %v6242 = vrcp.pop %v6241
    %v6243 = vmul.f32 1.0, %v6242
    %v6244 = vxor.u32 %v6235, 2147483648
    %v6245 = vmul.f32 %v6244, 1.442695
    %v6246 = vpow.pop %v6245
    %v6247 = vadd.f32 %v6246, 1.0
    %v6248 = vrcp.pop %v6247
    %v6249 = vmul.f32 1.0, %v6248
    %v6250 = vtanh.pop %v6236
    %v6251 = vxor.u32 %v6237, 2147483648
    %v6252 = vmul.f32 %v6251, 1.442695
    %v6253 = vpow.pop %v6252
    %v6254 = vadd.f32 %v6253, 1.0
    %v6255 = vrcp.pop %v6254
    %v6256 = vmul.f32 1.0, %v6255
    %v6258 = vrot.slane %v5884, 1
    %v6260 = vmul.f32 %v6249, %v6258
    %v6261 = vmul.f32 %v6243, %v6250
    %v6262 = vadd.f32 %v6260, %v6261
    %v6263 = vtanh.pop %v6262
    %v6264 = vmul.f32 %v6256, %v6263
    %v6266 = vrot.slane %v6079, 4
    %6268 = vst [vmem:[#allocation4 + $0x4] sm:$0x1] %v6266
    %v6270 = vrot.slane %v6264, 3
    %6272 = vst [vmem:[#allocation4 + $0xb] sm:$0x1] %v6270
    %6273 = vmatprep.subr.mxu0 %v4277
    %6274 = vmatpush1.msra.mxu0 %v4276
    %6275 = vmatprep.subr.mxu0 %v4281
    %6276 = vmatpush1.msra.mxu0 %v4280
    %6277 = vmatprep.subr.mxu0 %v4285
    %6278 = vmatpush1.msra.mxu0 %v4284
    %6279 = vmatprep.subr.mxu0 %v4289
    %6280 = vmatpush1.msra.mxu0 %v4288
    %6281 = vmatprep.subr.mxu0 %v4293
    %6282 = vmatpush1.msra.mxu0 %v4292
    %6283 = vmatprep.subr.mxu0 %v4297
    %6284 = vmatpush1.msra.mxu0 %v4296
    %6285 = vmatprep.subr.mxu0 %v4301
    %6286 = vmatpush1.msra.mxu0 %v4300
    %6287 = vmatprep.subr.mxu0 %v4305
    %6288 = vmatpush1.msra.mxu0 %v4304
    %6289 = vmatprep.subr.mxu0 %v4309
    %6290 = vmatpush1.msra.mxu0 %v4308
    %6291 = vmatprep.subr.mxu0 %v4313
    %6292 = vmatpush1.msra.mxu0 %v4312
    %6293 = vmatprep.subr.mxu0 %v4317
    %6294 = vmatpush1.msra.mxu0 %v4316
    %6295 = vmatprep.subr.mxu0 %v4321
    %6296 = vmatpush1.msra.mxu0 %v4320
    %6297 = vmatprep.subr.mxu0 %v4325
    %6298 = vmatpush1.msra.mxu0 %v4324
    %6299 = vmatprep.subr.mxu0 %v4329
    %6300 = vmatpush1.msra.mxu0 %v4328
    %6301 = vmatprep.subr.mxu0 %v4333
    %6302 = vmatpush1.msra.mxu0 %v4332
    %6303 = vmatprep.subr.mxu0 %v4337
    %6304 = vmatpush1.msra.mxu0 %v4336
    %6305 = vmatprep.subr.mxu0 0.0
    %6306 = vmatpush1.msra.mxu0 0.0
    %6307 = vmatprep.subr.mxu0 0.0
    %6308 = vmatpush1.msra.mxu0 0.0
    %6309 = vmatprep.subr.mxu0 0.0
    %6310 = vmatpush1.msra.mxu0 0.0
    %6311 = vmatprep.subr.mxu0 0.0
    %6312 = vmatpush1.msra.mxu0 0.0
    %6313 = vmatprep.subr.mxu0 0.0
    %6314 = vmatpush1.msra.mxu0 0.0
    %6315 = vmatprep.subr.mxu0 0.0
    %6316 = vmatpush1.msra.mxu0 0.0
    %6317 = vmatprep.subr.mxu0 0.0
    %6318 = vmatpush1.msra.mxu0 0.0
    %6319 = vmatprep.subr.mxu0 0.0
    %6320 = vmatpush1.msra.mxu0 0.0
    %6321 = vmatprep.subr.mxu0 0.0
    %6322 = vmatpush1.msra.mxu0 0.0
    %6323 = vmatprep.subr.mxu0 0.0
    %6324 = vmatpush1.msra.mxu0 0.0
    %6325 = vmatprep.subr.mxu0 0.0
    %6326 = vmatpush1.msra.mxu0 0.0
    %6327 = vmatprep.subr.mxu0 0.0
    %6328 = vmatpush1.msra.mxu0 0.0
    %6329 = vmatprep.subr.mxu0 0.0
    %6330 = vmatpush1.msra.mxu0 0.0
    %6331 = vmatprep.subr.mxu0 0.0
    %6332 = vmatpush1.msra.mxu0 0.0
    %6333 = vmatprep.subr.mxu0 0.0
    %6334 = vmatpush1.msra.mxu0 0.0
    %6335 = vmatprep.subr.mxu0 0.0
    %6336 = vmatpush1.msra.mxu0 0.0
    %6337 = vmatprep.mubr.f32.mxu0 0.0
    %6338 = vmatmul.mubr.f32.gmra.mrb[0].mxu0 %v6266
    %v6339 = vpop.f32.mrb[0].mxu0
    %v6340 = vadd.f32 0.0, %v6339
    %v6341 = vpop.f32.mrb[0].mxu0
    %v6342 = vadd.f32 0.0, %v6341
    %6343 = vdwg.mxu0
    %6344 = vmatprep.subr.mxu0 %v4279
    %6345 = vmatpush1.msra.mxu0 %v4278
    %6346 = vmatprep.subr.mxu0 %v4283
    %6347 = vmatpush1.msra.mxu0 %v4282
    %6348 = vmatprep.subr.mxu0 %v4287
    %6349 = vmatpush1.msra.mxu0 %v4286
    %6350 = vmatprep.subr.mxu0 %v4291
    %6351 = vmatpush1.msra.mxu0 %v4290
    %6352 = vmatprep.subr.mxu0 %v4295
    %6353 = vmatpush1.msra.mxu0 %v4294
    %6354 = vmatprep.subr.mxu0 %v4299
    %6355 = vmatpush1.msra.mxu0 %v4298
    %6356 = vmatprep.subr.mxu0 %v4303
    %6357 = vmatpush1.msra.mxu0 %v4302
    %6358 = vmatprep.subr.mxu0 %v4307
    %6359 = vmatpush1.msra.mxu0 %v4306
    %6360 = vmatprep.subr.mxu0 %v4311
    %6361 = vmatpush1.msra.mxu0 %v4310
    %6362 = vmatprep.subr.mxu0 %v4315
    %6363 = vmatpush1.msra.mxu0 %v4314
    %6364 = vmatprep.subr.mxu0 %v4319
    %6365 = vmatpush1.msra.mxu0 %v4318
    %6366 = vmatprep.subr.mxu0 %v4323
    %6367 = vmatpush1.msra.mxu0 %v4322
    %6368 = vmatprep.subr.mxu0 %v4327
    %6369 = vmatpush1.msra.mxu0 %v4326
    %6370 = vmatprep.subr.mxu0 %v4331
    %6371 = vmatpush1.msra.mxu0 %v4330
    %6372 = vmatprep.subr.mxu0 %v4335
    %6373 = vmatpush1.msra.mxu0 %v4334
    %6374 = vmatprep.subr.mxu0 %v4339
    %6375 = vmatpush1.msra.mxu0 %v4338
    %6376 = vmatprep.subr.mxu0 0.0
    %6377 = vmatpush1.msra.mxu0 0.0
    %6378 = vmatprep.subr.mxu0 0.0
    %6379 = vmatpush1.msra.mxu0 0.0
    %6380 = vmatprep.subr.mxu0 0.0
    %6381 = vmatpush1.msra.mxu0 0.0
    %6382 = vmatprep.subr.mxu0 0.0
    %6383 = vmatpush1.msra.mxu0 0.0
    %6384 = vmatprep.subr.mxu0 0.0
    %6385 = vmatpush1.msra.mxu0 0.0
    %6386 = vmatprep.subr.mxu0 0.0
    %6387 = vmatpush1.msra.mxu0 0.0
    %6388 = vmatprep.subr.mxu0 0.0
    %6389 = vmatpush1.msra.mxu0 0.0
    %6390 = vmatprep.subr.mxu0 0.0
    %6391 = vmatpush1.msra.mxu0 0.0
    %6392 = vmatprep.subr.mxu0 0.0
    %6393 = vmatpush1.msra.mxu0 0.0
    %6394 = vmatprep.subr.mxu0 0.0
    %6395 = vmatpush1.msra.mxu0 0.0
    %6396 = vmatprep.subr.mxu0 0.0
    %6397 = vmatpush1.msra.mxu0 0.0
    %6398 = vmatprep.subr.mxu0 0.0
    %6399 = vmatpush1.msra.mxu0 0.0
    %6400 = vmatprep.subr.mxu0 0.0
    %6401 = vmatpush1.msra.mxu0 0.0
    %6402 = vmatprep.subr.mxu0 0.0
    %6403 = vmatpush1.msra.mxu0 0.0
    %6404 = vmatprep.subr.mxu0 0.0
    %6405 = vmatpush1.msra.mxu0 0.0
    %6406 = vmatprep.subr.mxu0 0.0
    %6407 = vmatpush1.msra.mxu0 0.0
    %6408 = vmatprep.mubr.f32.mxu0 0.0
    %6409 = vmatmul.mubr.f32.gmra.mrb[0].mxu0 %v6266
    %v6410 = vpop.f32.mrb[0].mxu0
    %v6411 = vadd.f32 0.0, %v6410
    %v6412 = vpop.f32.mrb[0].mxu0
    %v6413 = vadd.f32 0.0, %v6412
    %6414 = vdwg.mxu0
    %v6419 = vrot.slane %v6340, 3
    %v6420 = vrot.slane %v6342, 3
    %v6421 = vrot.slane %v6411, 3
    %v6422 = vrot.slane %v6413, 3
    %v6427 = vadd.f32 %v3909, %v6419
    %v6428 = vadd.f32 %v3911, %v6420
    %v6429 = vadd.f32 %v3980, %v6421
    %v6430 = vadd.f32 %v3982, %v6422
    %v6431 = vxor.u32 %v6427, 2147483648
    %v6432 = vmul.f32 %v6431, 1.442695
    %v6433 = vpow.pop %v6432
    %v6434 = vadd.f32 %v6433, 1.0
    %v6435 = vrcp.pop %v6434
    %v6436 = vmul.f32 1.0, %v6435
    %v6437 = vxor.u32 %v6428, 2147483648
    %v6438 = vmul.f32 %v6437, 1.442695
    %v6439 = vpow.pop %v6438
    %v6440 = vadd.f32 %v6439, 1.0
    %v6441 = vrcp.pop %v6440
    %v6442 = vmul.f32 1.0, %v6441
    %v6443 = vtanh.pop %v6429
    %v6444 = vxor.u32 %v6430, 2147483648
    %v6445 = vmul.f32 %v6444, 1.442695
    %v6446 = vpow.pop %v6445
    %v6447 = vadd.f32 %v6446, 1.0
    %v6448 = vrcp.pop %v6447
    %v6449 = vmul.f32 1.0, %v6448
    %v6451 = vrot.slane %v6077, 7
    %v6453 = vmul.f32 %v6442, %v6451
    %v6454 = vmul.f32 %v6436, %v6443
    %v6455 = vadd.f32 %v6453, %v6454
    %v6456 = vtanh.pop %v6455
    %v6457 = vmul.f32 %v6449, %v6456
    %6458 = vmatprep.subr.mxu0 %v4341
    %6459 = vmatpush1.msra.mxu0 %v4340
    %6460 = vmatprep.subr.mxu0 %v4345
    %6461 = vmatpush1.msra.mxu0 %v4344
    %6462 = vmatprep.subr.mxu0 %v4349
    %6463 = vmatpush1.msra.mxu0 %v4348
    %6464 = vmatprep.subr.mxu0 %v4353
    %6465 = vmatpush1.msra.mxu0 %v4352
    %6466 = vmatprep.subr.mxu0 %v4357
    %6467 = vmatpush1.msra.mxu0 %v4356
    %6468 = vmatprep.subr.mxu0 %v4361
    %6469 = vmatpush1.msra.mxu0 %v4360
    %6470 = vmatprep.subr.mxu0 %v4365
    %6471 = vmatpush1.msra.mxu0 %v4364
    %6472 = vmatprep.subr.mxu0 %v4369
    %6473 = vmatpush1.msra.mxu0 %v4368
    %6474 = vmatprep.subr.mxu0 %v4373
    %6475 = vmatpush1.msra.mxu0 %v4372
    %6476 = vmatprep.subr.mxu0 %v4377
    %6477 = vmatpush1.msra.mxu0 %v4376
    %6478 = vmatprep.subr.mxu0 %v4381
    %6479 = vmatpush1.msra.mxu0 %v4380
    %6480 = vmatprep.subr.mxu0 %v4385
    %6481 = vmatpush1.msra.mxu0 %v4384
    %6482 = vmatprep.subr.mxu0 %v4389
    %6483 = vmatpush1.msra.mxu0 %v4388
    %6484 = vmatprep.subr.mxu0 %v4393
    %6485 = vmatpush1.msra.mxu0 %v4392
    %6486 = vmatprep.subr.mxu0 %v4397
    %6487 = vmatpush1.msra.mxu0 %v4396
    %6488 = vmatprep.subr.mxu0 %v4401
    %6489 = vmatpush1.msra.mxu0 %v4400
    %6490 = vmatprep.subr.mxu0 0.0
    %6491 = vmatpush1.msra.mxu0 0.0
    %6492 = vmatprep.subr.mxu0 0.0
    %6493 = vmatpush1.msra.mxu0 0.0
    %6494 = vmatprep.subr.mxu0 0.0
    %6495 = vmatpush1.msra.mxu0 0.0
    %6496 = vmatprep.subr.mxu0 0.0
    %6497 = vmatpush1.msra.mxu0 0.0
    %6498 = vmatprep.subr.mxu0 0.0
    %6499 = vmatpush1.msra.mxu0 0.0
    %6500 = vmatprep.subr.mxu0 0.0
    %6501 = vmatpush1.msra.mxu0 0.0
    %6502 = vmatprep.subr.mxu0 0.0
    %6503 = vmatpush1.msra.mxu0 0.0
    %6504 = vmatprep.subr.mxu0 0.0
    %6505 = vmatpush1.msra.mxu0 0.0
    %6506 = vmatprep.subr.mxu0 0.0
    %6507 = vmatpush1.msra.mxu0 0.0
    %6508 = vmatprep.subr.mxu0 0.0
    %6509 = vmatpush1.msra.mxu0 0.0
    %6510 = vmatprep.subr.mxu0 0.0
    %6511 = vmatpush1.msra.mxu0 0.0
    %6512 = vmatprep.subr.mxu0 0.0
    %6513 = vmatpush1.msra.mxu0 0.0
    %6514 = vmatprep.subr.mxu0 0.0
    %6515 = vmatpush1.msra.mxu0 0.0
    %6516 = vmatprep.subr.mxu0 0.0
    %6517 = vmatpush1.msra.mxu0 0.0
    %6518 = vmatprep.subr.mxu0 0.0
    %6519 = vmatpush1.msra.mxu0 0.0
    %6520 = vmatprep.subr.mxu0 0.0
    %6521 = vmatpush1.msra.mxu0 0.0
    %6522 = vmatprep.mubr.f32.mxu0 0.0
    %6523 = vmatmul.mubr.f32.gmra.mrb[0].mxu0 %v6270
    %v6524 = vpop.f32.mrb[0].mxu0
    %v6525 = vadd.f32 0.0, %v6524
    %v6526 = vpop.f32.mrb[0].mxu0
    %v6527 = vadd.f32 0.0, %v6526
    %6528 = vdwg.mxu0
    %6529 = vmatprep.subr.mxu0 %v4343
    %6530 = vmatpush1.msra.mxu0 %v4342
    %6531 = vmatprep.subr.mxu0 %v4347
    %6532 = vmatpush1.msra.mxu0 %v4346
    %6533 = vmatprep.subr.mxu0 %v4351
    %6534 = vmatpush1.msra.mxu0 %v4350
    %6535 = vmatprep.subr.mxu0 %v4355
    %6536 = vmatpush1.msra.mxu0 %v4354
    %6537 = vmatprep.subr.mxu0 %v4359
    %6538 = vmatpush1.msra.mxu0 %v4358
    %6539 = vmatprep.subr.mxu0 %v4363
    %6540 = vmatpush1.msra.mxu0 %v4362
    %6541 = vmatprep.subr.mxu0 %v4367
    %6542 = vmatpush1.msra.mxu0 %v4366
    %6543 = vmatprep.subr.mxu0 %v4371
    %6544 = vmatpush1.msra.mxu0 %v4370
    %6545 = vmatprep.subr.mxu0 %v4375
    %6546 = vmatpush1.msra.mxu0 %v4374
    %6547 = vmatprep.subr.mxu0 %v4379
    %6548 = vmatpush1.msra.mxu0 %v4378
    %6549 = vmatprep.subr.mxu0 %v4383
    %6550 = vmatpush1.msra.mxu0 %v4382
    %6551 = vmatprep.subr.mxu0 %v4387
    %6552 = vmatpush1.msra.mxu0 %v4386
    %6553 = vmatprep.subr.mxu0 %v4391
    %6554 = vmatpush1.msra.mxu0 %v4390
    %6555 = vmatprep.subr.mxu0 %v4395
    %6556 = vmatpush1.msra.mxu0 %v4394
    %6557 = vmatprep.subr.mxu0 %v4399
    %6558 = vmatpush1.msra.mxu0 %v4398
    %6559 = vmatprep.subr.mxu0 %v4403
    %6560 = vmatpush1.msra.mxu0 %v4402
    %6561 = vmatprep.subr.mxu0 0.0
    %6562 = vmatpush1.msra.mxu0 0.0
    %6563 = vmatprep.subr.mxu0 0.0
    %6564 = vmatpush1.msra.mxu0 0.0
    %6565 = vmatprep.subr.mxu0 0.0
    %6566 = vmatpush1.msra.mxu0 0.0
    %6567 = vmatprep.subr.mxu0 0.0
    %6568 = vmatpush1.msra.mxu0 0.0
    %6569 = vmatprep.subr.mxu0 0.0
    %6570 = vmatpush1.msra.mxu0 0.0
    %6571 = vmatprep.subr.mxu0 0.0
    %6572 = vmatpush1.msra.mxu0 0.0
    %6573 = vmatprep.subr.mxu0 0.0
    %6574 = vmatpush1.msra.mxu0 0.0
    %6575 = vmatprep.subr.mxu0 0.0
    %6576 = vmatpush1.msra.mxu0 0.0
    %6577 = vmatprep.subr.mxu0 0.0
    %6578 = vmatpush1.msra.mxu0 0.0
    %6579 = vmatprep.subr.mxu0 0.0
    %6580 = vmatpush1.msra.mxu0 0.0
    %6581 = vmatprep.subr.mxu0 0.0
    %6582 = vmatpush1.msra.mxu0 0.0
    %6583 = vmatprep.subr.mxu0 0.0
    %6584 = vmatpush1.msra.mxu0 0.0
    %6585 = vmatprep.subr.mxu0 0.0
    %6586 = vmatpush1.msra.mxu0 0.0
    %6587 = vmatprep.subr.mxu0 0.0
    %6588 = vmatpush1.msra.mxu0 0.0
    %6589 = vmatprep.subr.mxu0 0.0
    %6590 = vmatpush1.msra.mxu0 0.0
    %6591 = vmatprep.subr.mxu0 0.0
    %6592 = vmatpush1.msra.mxu0 0.0
    %6593 = vmatprep.mubr.f32.mxu0 0.0
    %6594 = vmatmul.mubr.f32.gmra.mrb[0].mxu0 %v6270
    %v6595 = vpop.f32.mrb[0].mxu0
    %v6596 = vadd.f32 0.0, %v6595
    %v6597 = vpop.f32.mrb[0].mxu0
    %v6598 = vadd.f32 0.0, %v6597
    %6599 = vdwg.mxu0
    %v6604 = vrot.slane %v6525, 6
    %v6605 = vrot.slane %v6527, 6
    %v6606 = vrot.slane %v6596, 6
    %v6607 = vrot.slane %v6598, 6
    %v6612 = vadd.f32 %v4201, %v6604
    %v6613 = vadd.f32 %v4203, %v6605
    %v6614 = vadd.f32 %v4272, %v6606
    %v6615 = vadd.f32 %v4274, %v6607
    %v6616 = vxor.u32 %v6612, 2147483648
    %v6617 = vmul.f32 %v6616, 1.442695
    %v6618 = vpow.pop %v6617
    %v6619 = vadd.f32 %v6618, 1.0
    %v6620 = vrcp.pop %v6619
    %v6621 = vmul.f32 1.0, %v6620
    %v6622 = vxor.u32 %v6613, 2147483648
    %v6623 = vmul.f32 %v6622, 1.442695
    %v6624 = vpow.pop %v6623
    %v6625 = vadd.f32 %v6624, 1.0
    %v6626 = vrcp.pop %v6625
    %v6627 = vmul.f32 1.0, %v6626
    %v6628 = vtanh.pop %v6614
    %v6629 = vxor.u32 %v6615, 2147483648
    %v6630 = vmul.f32 %v6629, 1.442695
    %v6631 = vpow.pop %v6630
    %v6632 = vadd.f32 %v6631, 1.0
    %v6633 = vrcp.pop %v6632
    %v6634 = vmul.f32 1.0, %v6633
    %v6636 = vrot.slane %v6262, 1
    %v6638 = vmul.f32 %v6627, %v6636
    %v6639 = vmul.f32 %v6621, %v6628
    %v6640 = vadd.f32 %v6638, %v6639
    %v6641 = vtanh.pop %v6640
    %v6642 = vmul.f32 %v6634, %v6641
    %v6644 = vrot.slane %v6457, 5
    %6646 = vst [vmem:[#allocation4 + $0x5] sm:$0x1] %v6644
    %v6648 = vrot.slane %v6642, 2
    %6650 = vst [vmem:[#allocation4 + $0xa] sm:$0x1] %v6648
    %6651 = vmatprep.subr.mxu0 %v4277
    %6652 = vmatpush1.msra.mxu0 %v4276
    %6653 = vmatprep.subr.mxu0 %v4281
    %6654 = vmatpush1.msra.mxu0 %v4280
    %6655 = vmatprep.subr.mxu0 %v4285
    %6656 = vmatpush1.msra.mxu0 %v4284
    %6657 = vmatprep.subr.mxu0 %v4289
    %6658 = vmatpush1.msra.mxu0 %v4288
    %6659 = vmatprep.subr.mxu0 %v4293
    %6660 = vmatpush1.msra.mxu0 %v4292
    %6661 = vmatprep.subr.mxu0 %v4297
    %6662 = vmatpush1.msra.mxu0 %v4296
    %6663 = vmatprep.subr.mxu0 %v4301
    %6664 = vmatpush1.msra.mxu0 %v4300
    %6665 = vmatprep.subr.mxu0 %v4305
    %6666 = vmatpush1.msra.mxu0 %v4304
    %6667 = vmatprep.subr.mxu0 %v4309
    %6668 = vmatpush1.msra.mxu0 %v4308
    %6669 = vmatprep.subr.mxu0 %v4313
    %6670 = vmatpush1.msra.mxu0 %v4312
    %6671 = vmatprep.subr.mxu0 %v4317
    %6672 = vmatpush1.msra.mxu0 %v4316
    %6673 = vmatprep.subr.mxu0 %v4321
    %6674 = vmatpush1.msra.mxu0 %v4320
    %6675 = vmatprep.subr.mxu0 %v4325
    %6676 = vmatpush1.msra.mxu0 %v4324
    %6677 = vmatprep.subr.mxu0 %v4329
    %6678 = vmatpush1.msra.mxu0 %v4328
    %6679 = vmatprep.subr.mxu0 %v4333
    %6680 = vmatpush1.msra.mxu0 %v4332
    %6681 = vmatprep.subr.mxu0 %v4337
    %6682 = vmatpush1.msra.mxu0 %v4336
    %6683 = vmatprep.subr.mxu0 0.0
    %6684 = vmatpush1.msra.mxu0 0.0
    %6685 = vmatprep.subr.mxu0 0.0
    %6686 = vmatpush1.msra.mxu0 0.0
    %6687 = vmatprep.subr.mxu0 0.0
    %6688 = vmatpush1.msra.mxu0 0.0
    %6689 = vmatprep.subr.mxu0 0.0
    %6690 = vmatpush1.msra.mxu0 0.0
    %6691 = vmatprep.subr.mxu0 0.0
    %6692 = vmatpush1.msra.mxu0 0.0
    %6693 = vmatprep.subr.mxu0 0.0
    %6694 = vmatpush1.msra.mxu0 0.0
    %6695 = vmatprep.subr.mxu0 0.0
    %6696 = vmatpush1.msra.mxu0 0.0
    %6697 = vmatprep.subr.mxu0 0.0
    %6698 = vmatpush1.msra.mxu0 0.0
    %6699 = vmatprep.subr.mxu0 0.0
    %6700 = vmatpush1.msra.mxu0 0.0
    %6701 = vmatprep.subr.mxu0 0.0
    %6702 = vmatpush1.msra.mxu0 0.0
    %6703 = vmatprep.subr.mxu0 0.0
    %6704 = vmatpush1.msra.mxu0 0.0
    %6705 = vmatprep.subr.mxu0 0.0
    %6706 = vmatpush1.msra.mxu0 0.0
    %6707 = vmatprep.subr.mxu0 0.0
    %6708 = vmatpush1.msra.mxu0 0.0
    %6709 = vmatprep.subr.mxu0 0.0
    %6710 = vmatpush1.msra.mxu0 0.0
    %6711 = vmatprep.subr.mxu0 0.0
    %6712 = vmatpush1.msra.mxu0 0.0
    %6713 = vmatprep.subr.mxu0 0.0
    %6714 = vmatpush1.msra.mxu0 0.0
    %6715 = vmatprep.mubr.f32.mxu0 0.0
    %6716 = vmatmul.mubr.f32.gmra.mrb[0].mxu0 %v6644
    %v6717 = vpop.f32.mrb[0].mxu0
    %v6718 = vadd.f32 0.0, %v6717
    %v6719 = vpop.f32.mrb[0].mxu0
    %v6720 = vadd.f32 0.0, %v6719
    %6721 = vdwg.mxu0
    %6722 = vmatprep.subr.mxu0 %v4279
    %6723 = vmatpush1.msra.mxu0 %v4278
    %6724 = vmatprep.subr.mxu0 %v4283
    %6725 = vmatpush1.msra.mxu0 %v4282
    %6726 = vmatprep.subr.mxu0 %v4287
    %6727 = vmatpush1.msra.mxu0 %v4286
    %6728 = vmatprep.subr.mxu0 %v4291
    %6729 = vmatpush1.msra.mxu0 %v4290
    %6730 = vmatprep.subr.mxu0 %v4295
    %6731 = vmatpush1.msra.mxu0 %v4294
    %6732 = vmatprep.subr.mxu0 %v4299
    %6733 = vmatpush1.msra.mxu0 %v4298
    %6734 = vmatprep.subr.mxu0 %v4303
    %6735 = vmatpush1.msra.mxu0 %v4302
    %6736 = vmatprep.subr.mxu0 %v4307
    %6737 = vmatpush1.msra.mxu0 %v4306
    %6738 = vmatprep.subr.mxu0 %v4311
    %6739 = vmatpush1.msra.mxu0 %v4310
    %6740 = vmatprep.subr.mxu0 %v4315
    %6741 = vmatpush1.msra.mxu0 %v4314
    %6742 = vmatprep.subr.mxu0 %v4319
    %6743 = vmatpush1.msra.mxu0 %v4318
    %6744 = vmatprep.subr.mxu0 %v4323
    %6745 = vmatpush1.msra.mxu0 %v4322
    %6746 = vmatprep.subr.mxu0 %v4327
    %6747 = vmatpush1.msra.mxu0 %v4326
    %6748 = vmatprep.subr.mxu0 %v4331
    %6749 = vmatpush1.msra.mxu0 %v4330
    %6750 = vmatprep.subr.mxu0 %v4335
    %6751 = vmatpush1.msra.mxu0 %v4334
    %6752 = vmatprep.subr.mxu0 %v4339
    %6753 = vmatpush1.msra.mxu0 %v4338
    %6754 = vmatprep.subr.mxu0 0.0
    %6755 = vmatpush1.msra.mxu0 0.0
    %6756 = vmatprep.subr.mxu0 0.0
    %6757 = vmatpush1.msra.mxu0 0.0
    %6758 = vmatprep.subr.mxu0 0.0
    %6759 = vmatpush1.msra.mxu0 0.0
    %6760 = vmatprep.subr.mxu0 0.0
    %6761 = vmatpush1.msra.mxu0 0.0
    %6762 = vmatprep.subr.mxu0 0.0
    %6763 = vmatpush1.msra.mxu0 0.0
    %6764 = vmatprep.subr.mxu0 0.0
    %6765 = vmatpush1.msra.mxu0 0.0
    %6766 = vmatprep.subr.mxu0 0.0
    %6767 = vmatpush1.msra.mxu0 0.0
    %6768 = vmatprep.subr.mxu0 0.0
    %6769 = vmatpush1.msra.mxu0 0.0
    %6770 = vmatprep.subr.mxu0 0.0
    %6771 = vmatpush1.msra.mxu0 0.0
    %6772 = vmatprep.subr.mxu0 0.0
    %6773 = vmatpush1.msra.mxu0 0.0
    %6774 = vmatprep.subr.mxu0 0.0
    %6775 = vmatpush1.msra.mxu0 0.0
    %6776 = vmatprep.subr.mxu0 0.0
    %6777 = vmatpush1.msra.mxu0 0.0
    %6778 = vmatprep.subr.mxu0 0.0
    %6779 = vmatpush1.msra.mxu0 0.0
    %6780 = vmatprep.subr.mxu0 0.0
    %6781 = vmatpush1.msra.mxu0 0.0
    %6782 = vmatprep.subr.mxu0 0.0
    %6783 = vmatpush1.msra.mxu0 0.0
    %6784 = vmatprep.subr.mxu0 0.0
    %6785 = vmatpush1.msra.mxu0 0.0
    %6786 = vmatprep.mubr.f32.mxu0 0.0
    %6787 = vmatmul.mubr.f32.gmra.mrb[0].mxu0 %v6644
    %v6788 = vpop.f32.mrb[0].mxu0
    %v6789 = vadd.f32 0.0, %v6788
    %v6790 = vpop.f32.mrb[0].mxu0
    %v6791 = vadd.f32 0.0, %v6790
    %6792 = vdwg.mxu0
    %v6797 = vrot.slane %v6718, 2
    %v6798 = vrot.slane %v6720, 2
    %v6799 = vrot.slane %v6789, 2
    %v6800 = vrot.slane %v6791, 2
    %v6805 = vadd.f32 %v3909, %v6797
    %v6806 = vadd.f32 %v3911, %v6798
    %v6807 = vadd.f32 %v3980, %v6799
    %v6808 = vadd.f32 %v3982, %v6800
    %v6809 = vxor.u32 %v6805, 2147483648
    %v6810 = vmul.f32 %v6809, 1.442695
    %v6811 = vpow.pop %v6810
    %v6812 = vadd.f32 %v6811, 1.0
    %v6813 = vrcp.pop %v6812
    %v6814 = vmul.f32 1.0, %v6813
    %v6815 = vxor.u32 %v6806, 2147483648
    %v6816 = vmul.f32 %v6815, 1.442695
    %v6817 = vpow.pop %v6816
    %v6818 = vadd.f32 %v6817, 1.0
    %v6819 = vrcp.pop %v6818
    %v6820 = vmul.f32 1.0, %v6819
    %v6821 = vtanh.pop %v6807
    %v6822 = vxor.u32 %v6808, 2147483648
    %v6823 = vmul.f32 %v6822, 1.442695
    %v6824 = vpow.pop %v6823
    %v6825 = vadd.f32 %v6824, 1.0
    %v6826 = vrcp.pop %v6825
    %v6827 = vmul.f32 1.0, %v6826
    %v6829 = vrot.slane %v6455, 7
    %v6831 = vmul.f32 %v6820, %v6829
    %v6832 = vmul.f32 %v6814, %v6821
    %v6833 = vadd.f32 %v6831, %v6832
    %v6834 = vtanh.pop %v6833
    %v6835 = vmul.f32 %v6827, %v6834
    %6836 = vmatprep.subr.mxu0 %v4341
    %6837 = vmatpush1.msra.mxu0 %v4340
    %6838 = vmatprep.subr.mxu0 %v4345
    %6839 = vmatpush1.msra.mxu0 %v4344
    %6840 = vmatprep.subr.mxu0 %v4349
    %6841 = vmatpush1.msra.mxu0 %v4348
    %6842 = vmatprep.subr.mxu0 %v4353
    %6843 = vmatpush1.msra.mxu0 %v4352
    %6844 = vmatprep.subr.mxu0 %v4357
    %6845 = vmatpush1.msra.mxu0 %v4356
    %6846 = vmatprep.subr.mxu0 %v4361
    %6847 = vmatpush1.msra.mxu0 %v4360
    %6848 = vmatprep.subr.mxu0 %v4365
    %6849 = vmatpush1.msra.mxu0 %v4364
    %6850 = vmatprep.subr.mxu0 %v4369
    %6851 = vmatpush1.msra.mxu0 %v4368
    %6852 = vmatprep.subr.mxu0 %v4373
    %6853 = vmatpush1.msra.mxu0 %v4372
    %6854 = vmatprep.subr.mxu0 %v4377
    %6855 = vmatpush1.msra.mxu0 %v4376
    %6856 = vmatprep.subr.mxu0 %v4381
    %6857 = vmatpush1.msra.mxu0 %v4380
    %6858 = vmatprep.subr.mxu0 %v4385
    %6859 = vmatpush1.msra.mxu0 %v4384
    %6860 = vmatprep.subr.mxu0 %v4389
    %6861 = vmatpush1.msra.mxu0 %v4388
    %6862 = vmatprep.subr.mxu0 %v4393
    %6863 = vmatpush1.msra.mxu0 %v4392
    %6864 = vmatprep.subr.mxu0 %v4397
    %6865 = vmatpush1.msra.mxu0 %v4396
    %6866 = vmatprep.subr.mxu0 %v4401
    %6867 = vmatpush1.msra.mxu0 %v4400
    %6868 = vmatprep.subr.mxu0 0.0
    %6869 = vmatpush1.msra.mxu0 0.0
    %6870 = vmatprep.subr.mxu0 0.0
    %6871 = vmatpush1.msra.mxu0 0.0
    %6872 = vmatprep.subr.mxu0 0.0
    %6873 = vmatpush1.msra.mxu0 0.0
    %6874 = vmatprep.subr.mxu0 0.0
    %6875 = vmatpush1.msra.mxu0 0.0
    %6876 = vmatprep.subr.mxu0 0.0
    %6877 = vmatpush1.msra.mxu0 0.0
    %6878 = vmatprep.subr.mxu0 0.0
    %6879 = vmatpush1.msra.mxu0 0.0
    %6880 = vmatprep.subr.mxu0 0.0
    %6881 = vmatpush1.msra.mxu0 0.0
    %6882 = vmatprep.subr.mxu0 0.0
    %6883 = vmatpush1.msra.mxu0 0.0
    %6884 = vmatprep.subr.mxu0 0.0
    %6885 = vmatpush1.msra.mxu0 0.0
    %6886 = vmatprep.subr.mxu0 0.0
    %6887 = vmatpush1.msra.mxu0 0.0
    %6888 = vmatprep.subr.mxu0 0.0
    %6889 = vmatpush1.msra.mxu0 0.0
    %6890 = vmatprep.subr.mxu0 0.0
    %6891 = vmatpush1.msra.mxu0 0.0
    %6892 = vmatprep.subr.mxu0 0.0
    %6893 = vmatpush1.msra.mxu0 0.0
    %6894 = vmatprep.subr.mxu0 0.0
    %6895 = vmatpush1.msra.mxu0 0.0
    %6896 = vmatprep.subr.mxu0 0.0
    %6897 = vmatpush1.msra.mxu0 0.0
    %6898 = vmatprep.subr.mxu0 0.0
    %6899 = vmatpush1.msra.mxu0 0.0
    %6900 = vmatprep.mubr.f32.mxu0 0.0
    %6901 = vmatmul.mubr.f32.gmra.mrb[0].mxu0 %v6648
    %v6902 = vpop.f32.mrb[0].mxu0
    %v6903 = vadd.f32 0.0, %v6902
    %v6904 = vpop.f32.mrb[0].mxu0
    %v6905 = vadd.f32 0.0, %v6904
    %6906 = vdwg.mxu0
    %6907 = vmatprep.subr.mxu0 %v4343
    %6908 = vmatpush1.msra.mxu0 %v4342
    %6909 = vmatprep.subr.mxu0 %v4347
    %6910 = vmatpush1.msra.mxu0 %v4346
    %6911 = vmatprep.subr.mxu0 %v4351
    %6912 = vmatpush1.msra.mxu0 %v4350
    %6913 = vmatprep.subr.mxu0 %v4355
    %6914 = vmatpush1.msra.mxu0 %v4354
    %6915 = vmatprep.subr.mxu0 %v4359
    %6916 = vmatpush1.msra.mxu0 %v4358
    %6917 = vmatprep.subr.mxu0 %v4363
    %6918 = vmatpush1.msra.mxu0 %v4362
    %6919 = vmatprep.subr.mxu0 %v4367
    %6920 = vmatpush1.msra.mxu0 %v4366
    %6921 = vmatprep.subr.mxu0 %v4371
    %6922 = vmatpush1.msra.mxu0 %v4370
    %6923 = vmatprep.subr.mxu0 %v4375
    %6924 = vmatpush1.msra.mxu0 %v4374
    %6925 = vmatprep.subr.mxu0 %v4379
    %6926 = vmatpush1.msra.mxu0 %v4378
    %6927 = vmatprep.subr.mxu0 %v4383
    %6928 = vmatpush1.msra.mxu0 %v4382
    %6929 = vmatprep.subr.mxu0 %v4387
    %6930 = vmatpush1.msra.mxu0 %v4386
    %6931 = vmatprep.subr.mxu0 %v4391
    %6932 = vmatpush1.msra.mxu0 %v4390
    %6933 = vmatprep.subr.mxu0 %v4395
    %6934 = vmatpush1.msra.mxu0 %v4394
    %6935 = vmatprep.subr.mxu0 %v4399
    %6936 = vmatpush1.msra.mxu0 %v4398
    %6937 = vmatprep.subr.mxu0 %v4403
    %6938 = vmatpush1.msra.mxu0 %v4402
    %6939 = vmatprep.subr.mxu0 0.0
    %6940 = vmatpush1.msra.mxu0 0.0
    %6941 = vmatprep.subr.mxu0 0.0
    %6942 = vmatpush1.msra.mxu0 0.0
    %6943 = vmatprep.subr.mxu0 0.0
    %6944 = vmatpush1.msra.mxu0 0.0
    %6945 = vmatprep.subr.mxu0 0.0
    %6946 = vmatpush1.msra.mxu0 0.0
    %6947 = vmatprep.subr.mxu0 0.0
    %6948 = vmatpush1.msra.mxu0 0.0
    %6949 = vmatprep.subr.mxu0 0.0
    %6950 = vmatpush1.msra.mxu0 0.0
    %6951 = vmatprep.subr.mxu0 0.0
    %6952 = vmatpush1.msra.mxu0 0.0
    %6953 = vmatprep.subr.mxu0 0.0
    %6954 = vmatpush1.msra.mxu0 0.0
    %6955 = vmatprep.subr.mxu0 0.0
    %6956 = vmatpush1.msra.mxu0 0.0
    %6957 = vmatprep.subr.mxu0 0.0
    %6958 = vmatpush1.msra.mxu0 0.0
    %6959 = vmatprep.subr.mxu0 0.0
    %6960 = vmatpush1.msra.mxu0 0.0
    %6961 = vmatprep.subr.mxu0 0.0
    %6962 = vmatpush1.msra.mxu0 0.0
    %6963 = vmatprep.subr.mxu0 0.0
    %6964 = vmatpush1.msra.mxu0 0.0
    %6965 = vmatprep.subr.mxu0 0.0
    %6966 = vmatpush1.msra.mxu0 0.0
    %6967 = vmatprep.subr.mxu0 0.0
    %6968 = vmatpush1.msra.mxu0 0.0
    %6969 = vmatprep.subr.mxu0 0.0
    %6970 = vmatpush1.msra.mxu0 0.0
    %6971 = vmatprep.mubr.f32.mxu0 0.0
    %6972 = vmatmul.mubr.f32.gmra.mrb[0].mxu0 %v6648
    %v6973 = vpop.f32.mrb[0].mxu0
    %v6974 = vadd.f32 0.0, %v6973
    %v6975 = vpop.f32.mrb[0].mxu0
    %v6976 = vadd.f32 0.0, %v6975
    %6977 = vdwg.mxu0
    %v6982 = vrot.slane %v6903, 7
    %v6983 = vrot.slane %v6905, 7
    %v6984 = vrot.slane %v6974, 7
    %v6985 = vrot.slane %v6976, 7
    %v6990 = vadd.f32 %v4201, %v6982
    %v6991 = vadd.f32 %v4203, %v6983
    %v6992 = vadd.f32 %v4272, %v6984
    %v6993 = vadd.f32 %v4274, %v6985
    %v6994 = vxor.u32 %v6990, 2147483648
    %v6995 = vmul.f32 %v6994, 1.442695
    %v6996 = vpow.pop %v6995
    %v6997 = vadd.f32 %v6996, 1.0
    %v6998 = vrcp.pop %v6997
    %v6999 = vmul.f32 1.0, %v6998
    %v7000 = vxor.u32 %v6991, 2147483648
    %v7001 = vmul.f32 %v7000, 1.442695
    %v7002 = vpow.pop %v7001
    %v7003 = vadd.f32 %v7002, 1.0
    %v7004 = vrcp.pop %v7003
    %v7005 = vmul.f32 1.0, %v7004
    %v7006 = vtanh.pop %v6992
    %v7007 = vxor.u32 %v6993, 2147483648
    %v7008 = vmul.f32 %v7007, 1.442695
    %v7009 = vpow.pop %v7008
    %v7010 = vadd.f32 %v7009, 1.0
    %v7011 = vrcp.pop %v7010
    %v7012 = vmul.f32 1.0, %v7011
    %v7014 = vrot.slane %v6640, 1
    %v7016 = vmul.f32 %v7005, %v7014
    %v7017 = vmul.f32 %v6999, %v7006
    %v7018 = vadd.f32 %v7016, %v7017
    %v7019 = vtanh.pop %v7018
    %v7020 = vmul.f32 %v7012, %v7019
    %v7022 = vrot.slane %v6835, 6
    %7024 = vst [vmem:[#allocation4 + $0x6] sm:$0x1] %v7022
    %v7026 = vrot.slane %v7020, 1
    %7028 = vst [vmem:[#allocation4 + $0x9] sm:$0x1] %v7026
    %7029 = vmatprep.subr.mxu0 %v4277
    %7030 = vmatpush1.msra.mxu0 %v4276
    %7031 = vmatprep.subr.mxu0 %v4281
    %7032 = vmatpush1.msra.mxu0 %v4280
    %7033 = vmatprep.subr.mxu0 %v4285
    %7034 = vmatpush1.msra.mxu0 %v4284
    %7035 = vmatprep.subr.mxu0 %v4289
    %7036 = vmatpush1.msra.mxu0 %v4288
    %7037 = vmatprep.subr.mxu0 %v4293
    %7038 = vmatpush1.msra.mxu0 %v4292
    %7039 = vmatprep.subr.mxu0 %v4297
    %7040 = vmatpush1.msra.mxu0 %v4296
    %7041 = vmatprep.subr.mxu0 %v4301
    %7042 = vmatpush1.msra.mxu0 %v4300
    %7043 = vmatprep.subr.mxu0 %v4305
    %7044 = vmatpush1.msra.mxu0 %v4304
    %7045 = vmatprep.subr.mxu0 %v4309
    %7046 = vmatpush1.msra.mxu0 %v4308
    %7047 = vmatprep.subr.mxu0 %v4313
    %7048 = vmatpush1.msra.mxu0 %v4312
    %7049 = vmatprep.subr.mxu0 %v4317
    %7050 = vmatpush1.msra.mxu0 %v4316
    %7051 = vmatprep.subr.mxu0 %v4321
    %7052 = vmatpush1.msra.mxu0 %v4320
    %7053 = vmatprep.subr.mxu0 %v4325
    %7054 = vmatpush1.msra.mxu0 %v4324
    %7055 = vmatprep.subr.mxu0 %v4329
    %7056 = vmatpush1.msra.mxu0 %v4328
    %7057 = vmatprep.subr.mxu0 %v4333
    %7058 = vmatpush1.msra.mxu0 %v4332
    %7059 = vmatprep.subr.mxu0 %v4337
    %7060 = vmatpush1.msra.mxu0 %v4336
    %7061 = vmatprep.subr.mxu0 0.0
    %7062 = vmatpush1.msra.mxu0 0.0
    %7063 = vmatprep.subr.mxu0 0.0
    %7064 = vmatpush1.msra.mxu0 0.0
    %7065 = vmatprep.subr.mxu0 0.0
    %7066 = vmatpush1.msra.mxu0 0.0
    %7067 = vmatprep.subr.mxu0 0.0
    %7068 = vmatpush1.msra.mxu0 0.0
    %7069 = vmatprep.subr.mxu0 0.0
    %7070 = vmatpush1.msra.mxu0 0.0
    %7071 = vmatprep.subr.mxu0 0.0
    %7072 = vmatpush1.msra.mxu0 0.0
    %7073 = vmatprep.subr.mxu0 0.0
    %7074 = vmatpush1.msra.mxu0 0.0
    %7075 = vmatprep.subr.mxu0 0.0
    %7076 = vmatpush1.msra.mxu0 0.0
    %7077 = vmatprep.subr.mxu0 0.0
    %7078 = vmatpush1.msra.mxu0 0.0
    %7079 = vmatprep.subr.mxu0 0.0
    %7080 = vmatpush1.msra.mxu0 0.0
    %7081 = vmatprep.subr.mxu0 0.0
    %7082 = vmatpush1.msra.mxu0 0.0
    %7083 = vmatprep.subr.mxu0 0.0
    %7084 = vmatpush1.msra.mxu0 0.0
    %7085 = vmatprep.subr.mxu0 0.0
    %7086 = vmatpush1.msra.mxu0 0.0
    %7087 = vmatprep.subr.mxu0 0.0
    %7088 = vmatpush1.msra.mxu0 0.0
    %7089 = vmatprep.subr.mxu0 0.0
    %7090 = vmatpush1.msra.mxu0 0.0
    %7091 = vmatprep.subr.mxu0 0.0
    %7092 = vmatpush1.msra.mxu0 0.0
    %7093 = vmatprep.mubr.f32.mxu0 0.0
    %7094 = vmatmul.mubr.f32.gmra.mrb[0].mxu0 %v7022
    %v7095 = vpop.f32.mrb[0].mxu0
    %v7096 = vadd.f32 0.0, %v7095
    %v7097 = vpop.f32.mrb[0].mxu0
    %v7098 = vadd.f32 0.0, %v7097
    %7099 = vdwg.mxu0
    %7100 = vmatprep.subr.mxu0 %v4279
    %7101 = vmatpush1.msra.mxu0 %v4278
    %7102 = vmatprep.subr.mxu0 %v4283
    %7103 = vmatpush1.msra.mxu0 %v4282
    %7104 = vmatprep.subr.mxu0 %v4287
    %7105 = vmatpush1.msra.mxu0 %v4286
    %7106 = vmatprep.subr.mxu0 %v4291
    %7107 = vmatpush1.msra.mxu0 %v4290
    %7108 = vmatprep.subr.mxu0 %v4295
    %7109 = vmatpush1.msra.mxu0 %v4294
    %7110 = vmatprep.subr.mxu0 %v4299
    %7111 = vmatpush1.msra.mxu0 %v4298
    %7112 = vmatprep.subr.mxu0 %v4303
    %7113 = vmatpush1.msra.mxu0 %v4302
    %7114 = vmatprep.subr.mxu0 %v4307
    %7115 = vmatpush1.msra.mxu0 %v4306
    %7116 = vmatprep.subr.mxu0 %v4311
    %7117 = vmatpush1.msra.mxu0 %v4310
    %7118 = vmatprep.subr.mxu0 %v4315
    %7119 = vmatpush1.msra.mxu0 %v4314
    %7120 = vmatprep.subr.mxu0 %v4319
    %7121 = vmatpush1.msra.mxu0 %v4318
    %7122 = vmatprep.subr.mxu0 %v4323
    %7123 = vmatpush1.msra.mxu0 %v4322
    %7124 = vmatprep.subr.mxu0 %v4327
    %7125 = vmatpush1.msra.mxu0 %v4326
    %7126 = vmatprep.subr.mxu0 %v4331
    %7127 = vmatpush1.msra.mxu0 %v4330
    %7128 = vmatprep.subr.mxu0 %v4335
    %7129 = vmatpush1.msra.mxu0 %v4334
    %7130 = vmatprep.subr.mxu0 %v4339
    %7131 = vmatpush1.msra.mxu0 %v4338
    %7132 = vmatprep.subr.mxu0 0.0
    %7133 = vmatpush1.msra.mxu0 0.0
    %7134 = vmatprep.subr.mxu0 0.0
    %7135 = vmatpush1.msra.mxu0 0.0
    %7136 = vmatprep.subr.mxu0 0.0
    %7137 = vmatpush1.msra.mxu0 0.0
    %7138 = vmatprep.subr.mxu0 0.0
    %7139 = vmatpush1.msra.mxu0 0.0
    %7140 = vmatprep.subr.mxu0 0.0
    %7141 = vmatpush1.msra.mxu0 0.0
    %7142 = vmatprep.subr.mxu0 0.0
    %7143 = vmatpush1.msra.mxu0 0.0
    %7144 = vmatprep.subr.mxu0 0.0
    %7145 = vmatpush1.msra.mxu0 0.0
    %7146 = vmatprep.subr.mxu0 0.0
    %7147 = vmatpush1.msra.mxu0 0.0
    %7148 = vmatprep.subr.mxu0 0.0
    %7149 = vmatpush1.msra.mxu0 0.0
    %7150 = vmatprep.subr.mxu0 0.0
    %7151 = vmatpush1.msra.mxu0 0.0
    %7152 = vmatprep.subr.mxu0 0.0
    %7153 = vmatpush1.msra.mxu0 0.0
    %7154 = vmatprep.subr.mxu0 0.0
    %7155 = vmatpush1.msra.mxu0 0.0
    %7156 = vmatprep.subr.mxu0 0.0
    %7157 = vmatpush1.msra.mxu0 0.0
    %7158 = vmatprep.subr.mxu0 0.0
    %7159 = vmatpush1.msra.mxu0 0.0
    %7160 = vmatprep.subr.mxu0 0.0
    %7161 = vmatpush1.msra.mxu0 0.0
    %7162 = vmatprep.subr.mxu0 0.0
    %7163 = vmatpush1.msra.mxu0 0.0
    %7164 = vmatprep.mubr.f32.mxu0 0.0
    %7165 = vmatmul.mubr.f32.gmra.mrb[0].mxu0 %v7022
    %v7166 = vpop.f32.mrb[0].mxu0
    %v7167 = vadd.f32 0.0, %v7166
    %v7168 = vpop.f32.mrb[0].mxu0
    %v7169 = vadd.f32 0.0, %v7168
    %7170 = vdwg.mxu0
    %v7175 = vrot.slane %v7096, 1
    %v7176 = vrot.slane %v7098, 1
    %v7177 = vrot.slane %v7167, 1
    %v7178 = vrot.slane %v7169, 1
    %v7183 = vadd.f32 %v3909, %v7175
    %v7184 = vadd.f32 %v3911, %v7176
    %v7185 = vadd.f32 %v3980, %v7177
    %v7186 = vadd.f32 %v3982, %v7178
    %v7187 = vxor.u32 %v7183, 2147483648
    %v7188 = vmul.f32 %v7187, 1.442695
    %v7189 = vpow.pop %v7188
    %v7190 = vadd.f32 %v7189, 1.0
    %v7191 = vrcp.pop %v7190
    %v7192 = vmul.f32 1.0, %v7191
    %v7193 = vxor.u32 %v7184, 2147483648
    %v7194 = vmul.f32 %v7193, 1.442695
    %v7195 = vpow.pop %v7194
    %v7196 = vadd.f32 %v7195, 1.0
    %v7197 = vrcp.pop %v7196
    %v7198 = vmul.f32 1.0, %v7197
    %v7199 = vtanh.pop %v7185
    %v7200 = vxor.u32 %v7186, 2147483648
    %v7201 = vmul.f32 %v7200, 1.442695
    %v7202 = vpow.pop %v7201
    %v7203 = vadd.f32 %v7202, 1.0
    %v7204 = vrcp.pop %v7203
    %v7205 = vmul.f32 1.0, %v7204
    %v7207 = vrot.slane %v6833, 7
    %v7209 = vmul.f32 %v7198, %v7207
    %v7210 = vmul.f32 %v7192, %v7199
    %v7211 = vadd.f32 %v7209, %v7210
    %v7212 = vtanh.pop %v7211
    %v7213 = vmul.f32 %v7205, %v7212
    %7214 = vmatprep.subr.mxu0 %v4341
    %7215 = vmatpush1.msra.mxu0 %v4340
    %7216 = vmatprep.subr.mxu0 %v4345
    %7217 = vmatpush1.msra.mxu0 %v4344
    %7218 = vmatprep.subr.mxu0 %v4349
    %7219 = vmatpush1.msra.mxu0 %v4348
    %7220 = vmatprep.subr.mxu0 %v4353
    %7221 = vmatpush1.msra.mxu0 %v4352
    %7222 = vmatprep.subr.mxu0 %v4357
    %7223 = vmatpush1.msra.mxu0 %v4356
    %7224 = vmatprep.subr.mxu0 %v4361
    %7225 = vmatpush1.msra.mxu0 %v4360
    %7226 = vmatprep.subr.mxu0 %v4365
    %7227 = vmatpush1.msra.mxu0 %v4364
    %7228 = vmatprep.subr.mxu0 %v4369
    %7229 = vmatpush1.msra.mxu0 %v4368
    %7230 = vmatprep.subr.mxu0 %v4373
    %7231 = vmatpush1.msra.mxu0 %v4372
    %7232 = vmatprep.subr.mxu0 %v4377
    %7233 = vmatpush1.msra.mxu0 %v4376
    %7234 = vmatprep.subr.mxu0 %v4381
    %7235 = vmatpush1.msra.mxu0 %v4380
    %7236 = vmatprep.subr.mxu0 %v4385
    %7237 = vmatpush1.msra.mxu0 %v4384
    %7238 = vmatprep.subr.mxu0 %v4389
    %7239 = vmatpush1.msra.mxu0 %v4388
    %7240 = vmatprep.subr.mxu0 %v4393
    %7241 = vmatpush1.msra.mxu0 %v4392
    %7242 = vmatprep.subr.mxu0 %v4397
    %7243 = vmatpush1.msra.mxu0 %v4396
    %7244 = vmatprep.subr.mxu0 %v4401
    %7245 = vmatpush1.msra.mxu0 %v4400
    %7246 = vmatprep.subr.mxu0 0.0
    %7247 = vmatpush1.msra.mxu0 0.0
    %7248 = vmatprep.subr.mxu0 0.0
    %7249 = vmatpush1.msra.mxu0 0.0
    %7250 = vmatprep.subr.mxu0 0.0
    %7251 = vmatpush1.msra.mxu0 0.0
    %7252 = vmatprep.subr.mxu0 0.0
    %7253 = vmatpush1.msra.mxu0 0.0
    %7254 = vmatprep.subr.mxu0 0.0
    %7255 = vmatpush1.msra.mxu0 0.0
    %7256 = vmatprep.subr.mxu0 0.0
    %7257 = vmatpush1.msra.mxu0 0.0
    %7258 = vmatprep.subr.mxu0 0.0
    %7259 = vmatpush1.msra.mxu0 0.0
    %7260 = vmatprep.subr.mxu0 0.0
    %7261 = vmatpush1.msra.mxu0 0.0
    %7262 = vmatprep.subr.mxu0 0.0
    %7263 = vmatpush1.msra.mxu0 0.0
    %7264 = vmatprep.subr.mxu0 0.0
    %7265 = vmatpush1.msra.mxu0 0.0
    %7266 = vmatprep.subr.mxu0 0.0
    %7267 = vmatpush1.msra.mxu0 0.0
    %7268 = vmatprep.subr.mxu0 0.0
    %7269 = vmatpush1.msra.mxu0 0.0
    %7270 = vmatprep.subr.mxu0 0.0
    %7271 = vmatpush1.msra.mxu0 0.0
    %7272 = vmatprep.subr.mxu0 0.0
    %7273 = vmatpush1.msra.mxu0 0.0
    %7274 = vmatprep.subr.mxu0 0.0
    %7275 = vmatpush1.msra.mxu0 0.0
    %7276 = vmatprep.subr.mxu0 0.0
    %7277 = vmatpush1.msra.mxu0 0.0
    %7278 = vmatprep.mubr.f32.mxu0 0.0
    %7279 = vmatmul.mubr.f32.gmra.mrb[0].mxu0 %v7026
    %v7280 = vpop.f32.mrb[0].mxu0
    %v7281 = vadd.f32 0.0, %v7280
    %v7282 = vpop.f32.mrb[0].mxu0
    %v7283 = vadd.f32 0.0, %v7282
    %7284 = vdwg.mxu0
    %7285 = vmatprep.subr.mxu0 %v4343
    %7286 = vmatpush1.msra.mxu0 %v4342
    %7287 = vmatprep.subr.mxu0 %v4347
    %7288 = vmatpush1.msra.mxu0 %v4346
    %7289 = vmatprep.subr.mxu0 %v4351
    %7290 = vmatpush1.msra.mxu0 %v4350
    %7291 = vmatprep.subr.mxu0 %v4355
    %7292 = vmatpush1.msra.mxu0 %v4354
    %7293 = vmatprep.subr.mxu0 %v4359
    %7294 = vmatpush1.msra.mxu0 %v4358
    %7295 = vmatprep.subr.mxu0 %v4363
    %7296 = vmatpush1.msra.mxu0 %v4362
    %7297 = vmatprep.subr.mxu0 %v4367
    %7298 = vmatpush1.msra.mxu0 %v4366
    %7299 = vmatprep.subr.mxu0 %v4371
    %7300 = vmatpush1.msra.mxu0 %v4370
    %7301 = vmatprep.subr.mxu0 %v4375
    %7302 = vmatpush1.msra.mxu0 %v4374
    %7303 = vmatprep.subr.mxu0 %v4379
    %7304 = vmatpush1.msra.mxu0 %v4378
    %7305 = vmatprep.subr.mxu0 %v4383
    %7306 = vmatpush1.msra.mxu0 %v4382
    %7307 = vmatprep.subr.mxu0 %v4387
    %7308 = vmatpush1.msra.mxu0 %v4386
    %7309 = vmatprep.subr.mxu0 %v4391
    %7310 = vmatpush1.msra.mxu0 %v4390
    %7311 = vmatprep.subr.mxu0 %v4395
    %7312 = vmatpush1.msra.mxu0 %v4394
    %7313 = vmatprep.subr.mxu0 %v4399
    %7314 = vmatpush1.msra.mxu0 %v4398
    %7315 = vmatprep.subr.mxu0 %v4403
    %7316 = vmatpush1.msra.mxu0 %v4402
    %7317 = vmatprep.subr.mxu0 0.0
    %7318 = vmatpush1.msra.mxu0 0.0
    %7319 = vmatprep.subr.mxu0 0.0
    %7320 = vmatpush1.msra.mxu0 0.0
    %7321 = vmatprep.subr.mxu0 0.0
    %7322 = vmatpush1.msra.mxu0 0.0
    %7323 = vmatprep.subr.mxu0 0.0
    %7324 = vmatpush1.msra.mxu0 0.0
    %7325 = vmatprep.subr.mxu0 0.0
    %7326 = vmatpush1.msra.mxu0 0.0
    %7327 = vmatprep.subr.mxu0 0.0
    %7328 = vmatpush1.msra.mxu0 0.0
    %7329 = vmatprep.subr.mxu0 0.0
    %7330 = vmatpush1.msra.mxu0 0.0
    %7331 = vmatprep.subr.mxu0 0.0
    %7332 = vmatpush1.msra.mxu0 0.0
    %7333 = vmatprep.subr.mxu0 0.0
    %7334 = vmatpush1.msra.mxu0 0.0
    %7335 = vmatprep.subr.mxu0 0.0
    %7336 = vmatpush1.msra.mxu0 0.0
    %7337 = vmatprep.subr.mxu0 0.0
    %7338 = vmatpush1.msra.mxu0 0.0
    %7339 = vmatprep.subr.mxu0 0.0
    %7340 = vmatpush1.msra.mxu0 0.0
    %7341 = vmatprep.subr.mxu0 0.0
    %7342 = vmatpush1.msra.mxu0 0.0
    %7343 = vmatprep.subr.mxu0 0.0
    %7344 = vmatpush1.msra.mxu0 0.0
    %7345 = vmatprep.subr.mxu0 0.0
    %7346 = vmatpush1.msra.mxu0 0.0
    %7347 = vmatprep.subr.mxu0 0.0
    %7348 = vmatpush1.msra.mxu0 0.0
    %7349 = vmatprep.mubr.f32.mxu0 0.0
    %7350 = vmatmul.mubr.f32.gmra.mrb[0].mxu0 %v7026
    %v7351 = vpop.f32.mrb[0].mxu0
    %v7352 = vadd.f32 0.0, %v7351
    %v7353 = vpop.f32.mrb[0].mxu0
    %v7354 = vadd.f32 0.0, %v7353
    %7355 = vdwg.mxu0
    %v7356 = vadd.f32 %v4201, %v7281
    %v7357 = vadd.f32 %v4203, %v7283
    %v7358 = vadd.f32 %v4272, %v7352
    %v7359 = vadd.f32 %v4274, %v7354
    %v7360 = vxor.u32 %v7356, 2147483648
    %v7361 = vmul.f32 %v7360, 1.442695
    %v7362 = vpow.pop %v7361
    %v7363 = vadd.f32 %v7362, 1.0
    %v7364 = vrcp.pop %v7363
    %v7365 = vmul.f32 1.0, %v7364
    %v7366 = vxor.u32 %v7357, 2147483648
    %v7367 = vmul.f32 %v7366, 1.442695
    %v7368 = vpow.pop %v7367
    %v7369 = vadd.f32 %v7368, 1.0
    %v7370 = vrcp.pop %v7369
    %v7371 = vmul.f32 1.0, %v7370
    %v7372 = vtanh.pop %v7358
    %v7373 = vxor.u32 %v7359, 2147483648
    %v7374 = vmul.f32 %v7373, 1.442695
    %v7375 = vpow.pop %v7374
    %v7376 = vadd.f32 %v7375, 1.0
    %v7377 = vrcp.pop %v7376
    %v7378 = vmul.f32 1.0, %v7377
    %v7380 = vrot.slane %v7018, 1
    %v7382 = vmul.f32 %v7371, %v7380
    %v7383 = vmul.f32 %v7365, %v7372
    %v7384 = vadd.f32 %v7382, %v7383
    %v7385 = vtanh.pop %v7384
    %v7386 = vmul.f32 %v7378, %v7385
    %v7388 = vrot.slane %v7213, 7
    %7390 = vst [vmem:[#allocation4 + $0x7] sm:$0x1] %v7388
    %7391 = vst [vmem:[#allocation4 + $0x8] sm:$0x1] %v7386
    %v7392 = vld [vmem:[#allocation4] sm:$0xff]
    %v7393 = vld [vmem:[#allocation4 + $0x8] sm:$0xff]
    %v7394 = vld [vmem:[#allocation19] sm:$0xff]
    %v7395 = vld [vmem:[#allocation19 + $0x8] sm:$0xff]
    %v7396 = vld [vmem:[#allocation19 + $0x10] sm:$0xff]
    %v7397 = vld [vmem:[#allocation19 + $0x18] sm:$0xff]
    %v7398 = vld [vmem:[#allocation19 + $0x20] sm:$0xff]
    %v7399 = vld [vmem:[#allocation19 + $0x28] sm:$0xff]
    %v7400 = vld [vmem:[#allocation19 + $0x30] sm:$0xff]
    %v7401 = vld [vmem:[#allocation19 + $0x38] sm:$0xff]
    %v7402 = vld [vmem:[#allocation19 + $0x40] sm:$0xff]
    %v7403 = vld [vmem:[#allocation19 + $0x48] sm:$0xff]
    %v7404 = vld [vmem:[#allocation19 + $0x50] sm:$0xff]
    %v7405 = vld [vmem:[#allocation19 + $0x58] sm:$0xff]
    %v7406 = vld [vmem:[#allocation19 + $0x60] sm:$0xff]
    %v7407 = vld [vmem:[#allocation19 + $0x68] sm:$0xff]
    %v7408 = vld [vmem:[#allocation19 + $0x70] sm:$0xff]
    %v7409 = vld [vmem:[#allocation19 + $0x78] sm:$0xff]
    %v7410 = vld [vmem:[#allocation19 + $0x80] sm:$0xff]
    %v7411 = vld [vmem:[#allocation19 + $0x88] sm:$0xff]
    %v7412 = vld [vmem:[#allocation19 + $0x90] sm:$0xff]
    %v7413 = vld [vmem:[#allocation19 + $0x98] sm:$0xff]
    %v7414 = vld [vmem:[#allocation19 + $0xa0] sm:$0xff]
    %v7415 = vld [vmem:[#allocation19 + $0xa8] sm:$0xff]
    %v7416 = vld [vmem:[#allocation19 + $0xb0] sm:$0xff]
    %v7417 = vld [vmem:[#allocation19 + $0xb8] sm:$0xff]
    %v7418 = vld [vmem:[#allocation19 + $0xc0] sm:$0xff]
    %v7419 = vld [vmem:[#allocation19 + $0xc8] sm:$0xff]
    %v7420 = vld [vmem:[#allocation19 + $0xd0] sm:$0xff]
    %v7421 = vld [vmem:[#allocation19 + $0xd8] sm:$0xff]
    %v7422 = vld [vmem:[#allocation19 + $0xe0] sm:$0xff]
    %v7423 = vld [vmem:[#allocation19 + $0xe8] sm:$0xff]
    %v7424 = vld [vmem:[#allocation19 + $0xf0] sm:$0xff]
    %v7425 = vld [vmem:[#allocation19 + $0xf8] sm:$0xff]
    %v7426 = vld [vmem:[%s15] sm:$0x1]
    %v7428 = vlaneseq
    %v7429 = vshrl.u32 %v7428, 7
    %v7430 = vsub.s32 0, %v7429
    %v7431 = vrot.slane %v7426, %v7430
    %7433 = vmatprep.subr.mxu0 0.0
    %7434 = vmatpush1.msra.mxu0 %v7394
    %7435 = vmatprep.subr.mxu0 0.0
    %7436 = vmatpush1.msra.mxu0 %v7395
    %7437 = vmatprep.subr.mxu0 0.0
    %7438 = vmatpush1.msra.mxu0 %v7396
    %7439 = vmatprep.subr.mxu0 0.0
    %7440 = vmatpush1.msra.mxu0 %v7397
    %7441 = vmatprep.subr.mxu0 0.0
    %7442 = vmatpush1.msra.mxu0 %v7398
    %7443 = vmatprep.subr.mxu0 0.0
    %7444 = vmatpush1.msra.mxu0 %v7399
    %7445 = vmatprep.subr.mxu0 0.0
    %7446 = vmatpush1.msra.mxu0 %v7400
    %7447 = vmatprep.subr.mxu0 0.0
    %7448 = vmatpush1.msra.mxu0 %v7401
    %7449 = vmatprep.subr.mxu0 0.0
    %7450 = vmatpush1.msra.mxu0 %v7402
    %7451 = vmatprep.subr.mxu0 0.0
    %7452 = vmatpush1.msra.mxu0 %v7403
    %7453 = vmatprep.subr.mxu0 0.0
    %7454 = vmatpush1.msra.mxu0 %v7404
    %7455 = vmatprep.subr.mxu0 0.0
    %7456 = vmatpush1.msra.mxu0 %v7405
    %7457 = vmatprep.subr.mxu0 0.0
    %7458 = vmatpush1.msra.mxu0 %v7406
    %7459 = vmatprep.subr.mxu0 0.0
    %7460 = vmatpush1.msra.mxu0 %v7407
    %7461 = vmatprep.subr.mxu0 0.0
    %7462 = vmatpush1.msra.mxu0 %v7408
    %7463 = vmatprep.subr.mxu0 0.0
    %7464 = vmatpush1.msra.mxu0 %v7409
    %7465 = vmatprep.subr.mxu0 0.0
    %7466 = vmatpush1.msra.mxu0 %v7410
    %7467 = vmatprep.subr.mxu0 0.0
    %7468 = vmatpush1.msra.mxu0 %v7411
    %7469 = vmatprep.subr.mxu0 0.0
    %7470 = vmatpush1.msra.mxu0 %v7412
    %7471 = vmatprep.subr.mxu0 0.0
    %7472 = vmatpush1.msra.mxu0 %v7413
    %7473 = vmatprep.subr.mxu0 0.0
    %7474 = vmatpush1.msra.mxu0 %v7414
    %7475 = vmatprep.subr.mxu0 0.0
    %7476 = vmatpush1.msra.mxu0 %v7415
    %7477 = vmatprep.subr.mxu0 0.0
    %7478 = vmatpush1.msra.mxu0 %v7416
    %7479 = vmatprep.subr.mxu0 0.0
    %7480 = vmatpush1.msra.mxu0 %v7417
    %7481 = vmatprep.subr.mxu0 0.0
    %7482 = vmatpush1.msra.mxu0 %v7418
    %7483 = vmatprep.subr.mxu0 0.0
    %7484 = vmatpush1.msra.mxu0 %v7419
    %7485 = vmatprep.subr.mxu0 0.0
    %7486 = vmatpush1.msra.mxu0 %v7420
    %7487 = vmatprep.subr.mxu0 0.0
    %7488 = vmatpush1.msra.mxu0 %v7421
    %7489 = vmatprep.subr.mxu0 0.0
    %7490 = vmatpush1.msra.mxu0 %v7422
    %7491 = vmatprep.subr.mxu0 0.0
    %7492 = vmatpush1.msra.mxu0 %v7423
    %7493 = vmatprep.subr.mxu0 0.0
    %7494 = vmatpush1.msra.mxu0 %v7424
    %7495 = vmatprep.subr.mxu0 0.0
    %7496 = vmatpush1.msra.mxu0 %v7425
    %7497 = vmatprep.mubr.f32.mxu0 %v7393
    %7498 = vmatmul.mubr.f32.gmra.mrb[0].mxu0 %v7392
    %v7499 = vpop.f32.mrb[0].mxu0
    %v7500 = vadd.f32 %v7431, %v7499
    %v7501 = vpop.f32.mrb[0].mxu0
    %7502 = vdwg.mxu0
    %7503 = vmax.xlane.f32.xlu0 %v7500
    %v7504 = vpop.xlane.xlu0 %7503
    %v7505 = vsub.f32 %v7500, %v7504
    %v7506 = vmul.f32 %v7505, 1.442695
    %v7507 = vpow.pop %v7506
    %7508 = vadd.xlane.f32.xlu0 %v7507
    %v7509 = vpop.xlane.xlu0 %7508
    %v7510 = vlog2.pop %v7509
    %v7511 = vmul.f32 %v7510, 0.6931472
    %v7512 = vadd.f32 %v7511, %v7504
    %v7513 = vsub.f32 %v7500, %v7512
    %7514 = vst [vmem:[#allocation21] sm:$0xff] %v7513
    // Predicated region
    $region102: #{tpu_custom_call.1} parent=1 // pred_check
      _
    $region103: #{tpu_custom_call.1} parent=1 // pred_check_branch
      %7516 = sbr.rel (0) target = $region105
    $region104: #{tpu_custom_call.1} parent=1 // pred_region
      %s7518 = ssub.s32 128, 128
      %7519 = vsyncadd [#allocation7], %s7518
      %s7521 = sshll.u32 [#allocation21], 4
      %s7522 = int_to_ptr.vmem [resolvable:$true] %s7521
      %7524 = dma.vmem_to_hbm [thread:$0]  %s7522, 128, %s16, [#allocation7]
    $region105: #{tpu_custom_call.1} parent=1 // pred_fallthru
      _
    // Predicated region
    $region106: #{tpu_custom_call.1} parent=1 // pred_check
      _
    $region107: #{tpu_custom_call.1} parent=1 // pred_check_branch
      %7526 = sbr.rel (0) target = $region109
    $region108: #{tpu_custom_call.1} parent=1 // pred_region
      %7527 = dma.done [#allocation7], 128
    $region109: #{tpu_custom_call.1} parent=1 // pred_fallthru
      _
    %7528 = vsyncpa [#allocation6], 1
    %7529 = vsyncpa [#allocation11], 1
    %7530 = vsyncpa [#allocation14], 1
    %7531 = vsyncpa [#allocation17], 1
    %7532 = vsyncpa [#allocation20], 1
    %7533 = vsyncpa [#allocation7], 1
    %7534 = vsyncpa [#allocation8], 1

</llo_original>
